<compile_context>
chip_gen: v5e
topology: v5e:2x2
jax: 0.10.0
libtpu: 0.0.40
codegen_flags: <defaults>
</compile_context>

<pallas_src>
import numpy as np
import jax
import jax.numpy as jnp
from jax.experimental import pallas as pl
from jax.experimental.pallas import tpu as pltpu


# ---------------------------------------------------------------------------
# Parameter initialization (deterministic, torch-Linear-style uniform init)
# ---------------------------------------------------------------------------
def init_linear(key, fan_in, fan_out):
    kw, kb = jax.random.split(key)
    bound = 1.0 / np.sqrt(fan_in)
    w = jax.random.uniform(kw, (fan_in, fan_out), jnp.float32, -bound, bound)
    b = jax.random.uniform(kb, (1, fan_out), jnp.float32, -bound, bound)
    return w, b


def init_mlp(key, in_f, out_f, features=(4, 5, 4)):
    sizes = [in_f] + list(features) + [out_f]
    keys = jax.random.split(key, len(sizes) - 1)
    return [init_linear(k, sizes[i], sizes[i + 1]) for i, k in enumerate(keys)]


def make_params(key, in_feat_x, out_feat_x, in_feat_en, out_feat_en):
    k1, k2, k3, k4, k5, k6 = jax.random.split(key, 6)
    theta_w, theta_b = init_linear(k1, in_feat_x, out_feat_x)
    phi_w, phi_b = init_linear(k2, in_feat_x, out_feat_x)
    w_full, w_b = init_linear(k3, 2 * in_feat_x, 2)     # W: Linear(2*in_feat_x, 2)
    tlin_w, tlin_b = init_linear(k4, in_feat_en, out_feat_en)
    theta_en = init_mlp(k5, in_feat_en, out_feat_en)
    phi_en = init_mlp(k6, in_feat_en, out_feat_en)
    return {
        "theta_w": theta_w, "theta_b": theta_b,
        "phi_w": phi_w, "phi_b": phi_b,
        # W([x_src, x_dst]) split so the kernel never needs a lane concat:
        "Wsrc_w": w_full[:in_feat_x], "Wdst_w": w_full[in_feat_x:], "W_b": w_b,
        "tlin_en_w": tlin_w, "tlin_en_b": tlin_b,
        "theta_en": theta_en, "phi_en": phi_en,
    }


# ---------------------------------------------------------------------------
# Pack all tiny weights into one (rows, 8) f32 slab; return static offsets.
# Weights are stored transposed as (out, in) blocks, biases as (out, 1) columns,
# matching the feature-major in-kernel layout.
# ---------------------------------------------------------------------------
def pack_weights(params):
    ox = params["theta_w"].shape[1]
    oe = params["tlin_en_w"].shape[1]

    items = []
    items.append(("theta_wT", params["theta_w"].T))                       # (ox, fx)
    items.append(("theta_b", params["theta_b"].reshape(ox, 1)))
    items.append(("dphi_wT", (params["phi_w"] - params["theta_w"]).T))    # (ox, fx)
    items.append(("phi_b", params["phi_b"].reshape(ox, 1)))
    # logits difference d = l0 - l1 only needs the column difference of W
    wdiff_src = (params["Wsrc_w"][:, 0] - params["Wsrc_w"][:, 1]).reshape(1, -1)
    wdiff_dst = (params["Wdst_w"][:, 0] - params["Wdst_w"][:, 1]).reshape(1, -1)
    bdiff = (params["W_b"][:, 0] - params["W_b"][:, 1]).reshape(1, 1)
    items.append(("wdiff_src", wdiff_src))
    items.append(("wdiff_dst", wdiff_dst))
    items.append(("bdiff", bdiff))
    items.append(("tlin_wT", params["tlin_en_w"].T))                      # (oe, fe)
    items.append(("tlin_b", params["tlin_en_b"].reshape(oe, 1)))
    for branch in ("theta_en", "phi_en"):
        for li, (w, b) in enumerate(params[branch]):
            items.append((f"{branch}_w{li}", w.T))
            items.append((f"{branch}_b{li}", b.reshape(-1, 1)))

    width = 8
    offsets = {}
    rows = []
    r = 0
    for name, a in items:
        a = a.astype(jnp.float32)
        o, i = a.shape
        if i < width:
            a = jnp.concatenate([a, jnp.zeros((o, width - i), jnp.float32)], axis=1)
        rows.append(a)
        offsets[name] = (r, o, i)
        r += o
    slab = jnp.concatenate(rows, axis=0)
    pad_r = (-slab.shape[0]) % 8
    if pad_r:
        slab = jnp.concatenate([slab, jnp.zeros((pad_r, width), jnp.float32)], axis=0)
    return slab, offsets


# ---------------------------------------------------------------------------
# Pallas kernel (feature-major: all node slabs are (F, TN), N in lanes)
# ---------------------------------------------------------------------------
def _make_kernel(k_val, fx, fe, ox, oe, offsets, n_mlp_layers):

    def kernel(x_ref, xs_ref, en_ref, ens_ref, w_ref, out_ref):
        w = w_ref[...]

        def get(name):
            r, o, i = offsets[name]
            return w[r:r + o, 0:i]

        # Tiny linears on the VPU: out (O,TN) = sum_i wT[:, i:i+1] * x[i:i+1, :]
        # (contraction depth 3..5 -> broadcast mul-adds on full-lane vregs beat
        #  a <3%-utilized 128/256-wide MXU contraction).
        def vlin(wT, xv, b=None):
            o, i = wT.shape
            acc = wT[:, 0:1] * xv[0:1, :]
            for c in range(1, i):
                acc = acc + wT[:, c:c + 1] * xv[c:c + 1, :]
            if b is not None:
                acc = acc + b
            return acc

        def vmlp(layers, v):
            h = v
            last = len(layers) - 1
            for li, (wm, b) in enumerate(layers):
                h = vlin(wm, h, b)
                if li < last:
                    h = jnp.maximum(h, 0.0)      # ReLU between hidden layers
            return h

        theta_wT, theta_b = get("theta_wT"), get("theta_b")
        dphi_wT, phi_b = get("dphi_wT"), get("phi_b")
        wdiff_src, wdiff_dst, bdiff = get("wdiff_src"), get("wdiff_dst"), get("bdiff")
        tlin_wT, tlin_b = get("tlin_wT"), get("tlin_b")
        te_layers = [(get(f"theta_en_w{li}"), get(f"theta_en_b{li}"))
                     for li in range(n_mlp_layers)]
        pe_layers = [(get(f"phi_en_w{li}"), get(f"phi_en_b{li}"))
                     for li in range(n_mlp_layers)]

        x_dst = x_ref[...]          # (fx, TN)
        en_dst = en_ref[...]        # (fe, TN)
        tn = x_dst.shape[-1]

        # ---- hoisted, neighbor-invariant terms ----
        base_x = vlin(theta_wT, x_dst, theta_b)     # theta(x_dst), also the residual
        d_dst = vlin(wdiff_dst, x_dst, bdiff)       # dst half of the logit difference
        tlin_en = vlin(tlin_wT, en_dst, tlin_b)     # en residual

        m_x = jnp.full((ox, tn), -jnp.inf, jnp.float32)
        d_max = jnp.full((1, tn), -jnp.inf, jnp.float32)
        d_min = jnp.full((1, tn), jnp.inf, jnp.float32)
        en_sum = jnp.zeros((oe, tn), jnp.float32)

        # static loop over the K incoming edges of each destination node
        for j in range(k_val):
            x_s = xs_ref[j]          # (fx, TN)
            en_s = ens_ref[j]        # (fe, TN)

            # edge_x_j = theta(x_dst - x_s) + phi(x_s)
            #          = base_x + phi_b + (phi - theta)(x_s)   -> only max the last term
            m_x = jnp.maximum(m_x, vlin(dphi_wT, x_s))

            # d_j = logits[...,0] - logits[...,1]
            d_j = vlin(wdiff_src, x_s) + d_dst
            d_max = jnp.maximum(d_max, d_j)
            d_min = jnp.minimum(d_min, d_j)

            # edge_en_j = phi_en(en_s) + theta_en(en_dst - en_s)   (fn.mean -> sum)
            en_sum = en_sum + vmlp(pe_layers, en_s) + vmlp(te_layers, en_dst - en_s)

        # x = max_j edge_x_j + theta(x_dst)
        x_out = m_x + phi_b + 2.0 * base_x
        # en = mean_j edge_en_j + theta_Linear_en(en_dst)
        en_out = en_sum * (1.0 / k_val) + tlin_en
        # score = max_j softmax(W([x_s, x_dst])) = [sigmoid(max d), sigmoid(-min d)]
        s0 = 1.0 / (1.0 + jnp.exp(-d_max))
        s1 = 1.0 / (1.0 + jnp.exp(d_min))

        # fused lane-dense output slab (ox + oe + 2, TN)
        out_ref[0:ox, :] = x_out
        out_ref[ox:ox + oe, :] = en_out
        out_ref[ox + oe:ox + oe + 1, :] = s0
        out_ref[ox + oe + 1:ox + oe + 2, :] = s1

    return kernel


def edge_conv_pallas(x, en, nbr_idx, params, *, tile_n=512):
    n, fx = x.shape
    fe = en.shape[1]
    k_val = nbr_idx.shape[1]
    ox = params["theta_w"].shape[1]
    oe = params["tlin_en_w"].shape[1]
    n_mlp_layers = len(params["theta_en"])

    assert tile_n % 128 == 0, "tile_n must be a multiple of 128 (lane dim)"
    n_tiles = pl.cdiv(n, tile_n)
    n_pad = n_tiles * tile_n

    # ---- glue: pad node axis, gather neighbor features, go feature-major ----
    pad = n_pad - n
    if pad:
        x_p = jnp.concatenate([x, jnp.zeros((pad, fx), x.dtype)], axis=0)
        en_p = jnp.concatenate([en, jnp.zeros((pad, fe), en.dtype)], axis=0)
        nbr_p = jnp.concatenate([nbr_idx, jnp.zeros((pad, k_val), nbr_idx.dtype)], axis=0)
    else:
        x_p, en_p, nbr_p = x, en, nbr_idx

    x_src = x[nbr_p]                                    # (n_pad, K, fx)
    en_src = en[nbr_p]                                  # (n_pad, K, fe)

    x_fm = x_p.T                                        # (fx, n_pad)
    en_fm = en_p.T                                      # (fe, n_pad)
    x_src_fm = jnp.transpose(x_src, (1, 2, 0))          # (K, fx, n_pad)
    en_src_fm = jnp.transpose(en_src, (1, 2, 0))        # (K, fe, n_pad)

    wslab, offsets = pack_weights(params)

    kernel = _make_kernel(k_val, fx, fe, ox, oe, offsets, n_mlp_layers)
    out_rows = ox + oe + 2

    out = pl.pallas_call(
        kernel,
        out_shape=jax.ShapeDtypeStruct((out_rows, n_pad), jnp.float32),
        grid=(n_tiles,),
        in_specs=[
            pl.BlockSpec((fx, tile_n), lambda i: (0, i)),
            pl.BlockSpec((k_val, fx, tile_n), lambda i: (0, 0, i)),
            pl.BlockSpec((fe, tile_n), lambda i: (0, i)),
            pl.BlockSpec((k_val, fe, tile_n), lambda i: (0, 0, i)),
            pl.BlockSpec(wslab.shape, lambda i: (0, 0)),
        ],
        out_specs=pl.BlockSpec((out_rows, tile_n), lambda i: (0, i)),
        compiler_params=pltpu.CompilerParams(
            dimension_semantics=("parallel",)),
    )(x_fm, x_src_fm, en_fm, en_src_fm, wslab)

    out = out[:, :n]                                    # drop node padding
    x_out = out[0:ox].T
    en_out = out[ox:ox + oe].T
    score_out = out[ox + oe:ox + oe + 2].T
    return x_out, en_out, score_out


# ---------------------------------------------------------------------------
# Pure-JAX reference (mirrors the PyTorch/DGL forward, batch_norm=False path)
# ---------------------------------------------------------------------------
def edge_conv_reference(x, en, nbr_idx, params):
    P = jax.lax.Precision.HIGHEST
    x_src = x[nbr_idx]            # (N, K, Fx)
    en_src = en[nbr_idx]          # (N, K, Fe)
    x_dst = x[:, None, :]
    en_dst = en[:, None, :]

    def lin(v, w, b):
        return jnp.dot(v, w, precision=P) + b

    def mlp(v, layers):
        h = v
        for li, (w, b) in enumerate(layers):
            h = jnp.dot(h, w, precision=P) + b
            if li < len(layers) - 1:
                h = jnp.maximum(h, 0.0)
        return h

    edge_x = (lin(x_dst - x_src, params["theta_w"], params["theta_b"])
              + lin(x_src, params["phi_w"], params["phi_b"]))
    edge_en = (mlp(en_src, params["phi_en"])
               + mlp(en_dst - en_src, params["theta_en"]))
    logits = (jnp.dot(x_src, params["Wsrc_w"], precision=P)
              + jnp.dot(x_dst, params["Wdst_w"], precision=P) + params["W_b"])
    score = jax.nn.softmax(logits, axis=-1)

    x_new = edge_x.max(axis=1) + lin(x, params["theta_w"], params["theta_b"])
    en_new = edge_en.mean(axis=1) + lin(en, params["tlin_en_w"], params["tlin_en_b"])
    score_new = score.max(axis=1)
    return x_new, en_new, score_new


# ---------------------------------------------------------------------------
if __name__ == "__main__":
    # small shapes consistent with the module (kNN graph, k_val = 5)
    N = 1000          # number of graph nodes (not a multiple of tile_n -> tests padding)
    K = 5             # k_val
    IN_FEAT_X, OUT_FEAT_X = 4, 8
    IN_FEAT_EN, OUT_FEAT_EN = 3, 6

    key = jax.random.PRNGKey(0)
    kp, kx, ke, kn = jax.random.split(key, 4)

    params = make_params(kp, IN_FEAT_X, OUT_FEAT_X, IN_FEAT_EN, OUT_FEAT_EN)
    x = jax.random.normal(kx, (N, IN_FEAT_X), jnp.float32)
    en = jax.random.normal(ke, (N, IN_FEAT_EN), jnp.float32)
    nbr_idx = jax.random.randint(kn, (N, K), 0, N)   # synthetic kNN graph edges

    x_out, en_out, score_out = jax.block_until_ready(
        edge_conv_pallas(x, en, nbr_idx, params, tile_n=512))

    x_ref, en_ref, score_ref = edge_conv_reference(x, en, nbr_idx, params)

    assert np.allclose(np.asarray(x_out), np.asarray(x_ref), rtol=2e-5, atol=2e-5)
    assert np.allclose(np.asarray(en_out), np.asarray(en_ref), rtol=2e-5, atol=2e-5)
    assert np.allclose(np.asarray(score_out), np.asarray(score_ref), rtol=2e-5, atol=2e-5)

    print("KERNEL_OK")
</pallas_src>

<mosaic_0001>
module attributes {stable_mosaic.version = 11 : i64} {
  func.func @kernel(%arg0: i32, %arg1: memref<4x512xf32, #tpu.memory_space<vmem>>, %arg2: memref<5x4x512xf32, #tpu.memory_space<vmem>>, %arg3: memref<3x512xf32, #tpu.memory_space<vmem>>, %arg4: memref<5x3x512xf32, #tpu.memory_space<vmem>>, %arg5: memref<128x8xf32, #tpu.memory_space<vmem>>, %arg6: memref<16x512xf32, #tpu.memory_space<vmem>>) attributes {dimension_semantics = [#tpu.dimension_semantics<parallel>], iteration_bounds = array<i64: 2>, scalar_prefetch = 0 : i64, scratch_operands = 0 : i64, tpu.core_type = #tpu.core_type<tc>, window_params = [{transform_indices = @transform_0, window_bounds = array<i64: 4, 512>}, {transform_indices = @transform_1, window_bounds = array<i64: 5, 4, 512>}, {transform_indices = @transform_2, window_bounds = array<i64: 3, 512>}, {transform_indices = @transform_3, window_bounds = array<i64: 5, 3, 512>}, {pipeline_mode = #tpu.pipeline_mode<synchronous>, transform_indices = @transform_4, window_bounds = array<i64: 128, 8>}, {transform_indices = @transform_5, window_bounds = array<i64: 16, 512>}]} {
    %c0 = arith.constant 0 : index
    %c0_0 = arith.constant 0 : index
    %0 = vector.load %arg5[%c0, %c0_0] : memref<128x8xf32, #tpu.memory_space<vmem>>, vector<128x8xf32>
    %1 = vector.extract_strided_slice %0 {offsets = [0, 0], sizes = [8, 4], strides = [1, 1]} : vector<128x8xf32> to vector<8x4xf32>
    %2 = vector.extract_strided_slice %0 {offsets = [8, 0], sizes = [8, 1], strides = [1, 1]} : vector<128x8xf32> to vector<8x1xf32>
    %3 = vector.extract_strided_slice %0 {offsets = [16, 0], sizes = [8, 4], strides = [1, 1]} : vector<128x8xf32> to vector<8x4xf32>
    %4 = vector.extract_strided_slice %0 {offsets = [24, 0], sizes = [8, 1], strides = [1, 1]} : vector<128x8xf32> to vector<8x1xf32>
    %5 = vector.extract_strided_slice %0 {offsets = [32, 0], sizes = [1, 4], strides = [1, 1]} : vector<128x8xf32> to vector<1x4xf32>
    %6 = vector.extract_strided_slice %0 {offsets = [33, 0], sizes = [1, 4], strides = [1, 1]} : vector<128x8xf32> to vector<1x4xf32>
    %7 = vector.extract_strided_slice %0 {offsets = [34, 0], sizes = [1, 1], strides = [1, 1]} : vector<128x8xf32> to vector<1x1xf32>
    %8 = vector.extract_strided_slice %0 {offsets = [35, 0], sizes = [6, 3], strides = [1, 1]} : vector<128x8xf32> to vector<6x3xf32>
    %9 = vector.extract_strided_slice %0 {offsets = [41, 0], sizes = [6, 1], strides = [1, 1]} : vector<128x8xf32> to vector<6x1xf32>
    %10 = vector.extract_strided_slice %0 {offsets = [47, 0], sizes = [4, 3], strides = [1, 1]} : vector<128x8xf32> to vector<4x3xf32>
    %11 = vector.extract_strided_slice %0 {offsets = [51, 0], sizes = [4, 1], strides = [1, 1]} : vector<128x8xf32> to vector<4x1xf32>
    %12 = vector.extract_strided_slice %0 {offsets = [55, 0], sizes = [5, 4], strides = [1, 1]} : vector<128x8xf32> to vector<5x4xf32>
    %13 = vector.extract_strided_slice %0 {offsets = [60, 0], sizes = [5, 1], strides = [1, 1]} : vector<128x8xf32> to vector<5x1xf32>
    %14 = vector.extract_strided_slice %0 {offsets = [65, 0], sizes = [4, 5], strides = [1, 1]} : vector<128x8xf32> to vector<4x5xf32>
    %15 = vector.extract_strided_slice %0 {offsets = [69, 0], sizes = [4, 1], strides = [1, 1]} : vector<128x8xf32> to vector<4x1xf32>
    %16 = vector.extract_strided_slice %0 {offsets = [73, 0], sizes = [6, 4], strides = [1, 1]} : vector<128x8xf32> to vector<6x4xf32>
    %17 = vector.extract_strided_slice %0 {offsets = [79, 0], sizes = [6, 1], strides = [1, 1]} : vector<128x8xf32> to vector<6x1xf32>
    %18 = vector.extract_strided_slice %0 {offsets = [85, 0], sizes = [4, 3], strides = [1, 1]} : vector<128x8xf32> to vector<4x3xf32>
    %19 = vector.extract_strided_slice %0 {offsets = [89, 0], sizes = [4, 1], strides = [1, 1]} : vector<128x8xf32> to vector<4x1xf32>
    %20 = vector.extract_strided_slice %0 {offsets = [93, 0], sizes = [5, 4], strides = [1, 1]} : vector<128x8xf32> to vector<5x4xf32>
    %21 = vector.extract_strided_slice %0 {offsets = [98, 0], sizes = [5, 1], strides = [1, 1]} : vector<128x8xf32> to vector<5x1xf32>
    %22 = vector.extract_strided_slice %0 {offsets = [103, 0], sizes = [4, 5], strides = [1, 1]} : vector<128x8xf32> to vector<4x5xf32>
    %23 = vector.extract_strided_slice %0 {offsets = [107, 0], sizes = [4, 1], strides = [1, 1]} : vector<128x8xf32> to vector<4x1xf32>
    %24 = vector.extract_strided_slice %0 {offsets = [111, 0], sizes = [6, 4], strides = [1, 1]} : vector<128x8xf32> to vector<6x4xf32>
    %25 = vector.extract_strided_slice %0 {offsets = [117, 0], sizes = [6, 1], strides = [1, 1]} : vector<128x8xf32> to vector<6x1xf32>
    %c0_1 = arith.constant 0 : index
    %c0_2 = arith.constant 0 : index
    %26 = vector.load %arg1[%c0_1, %c0_2] : memref<4x512xf32, #tpu.memory_space<vmem>>, vector<4x512xf32>
    %c0_3 = arith.constant 0 : index
    %c0_4 = arith.constant 0 : index
    %27 = vector.load %arg3[%c0_3, %c0_4] : memref<3x512xf32, #tpu.memory_space<vmem>>, vector<3x512xf32>
    %28 = vector.extract_strided_slice %1 {offsets = [0, 0], sizes = [8, 1], strides = [1, 1]} : vector<8x4xf32> to vector<8x1xf32>
    %29 = vector.extract_strided_slice %26 {offsets = [0, 0], sizes = [1, 512], strides = [1, 1]} : vector<4x512xf32> to vector<1x512xf32>
    %30 = vector.broadcast %28 : vector<8x1xf32> to vector<8x512xf32>
    %31 = vector.broadcast %29 : vector<1x512xf32> to vector<8x512xf32>
    %32 = arith.mulf %30, %31 : vector<8x512xf32>
    %33 = vector.extract_strided_slice %1 {offsets = [0, 1], sizes = [8, 1], strides = [1, 1]} : vector<8x4xf32> to vector<8x1xf32>
    %34 = vector.extract_strided_slice %26 {offsets = [1, 0], sizes = [1, 512], strides = [1, 1]} : vector<4x512xf32> to vector<1x512xf32>
    %35 = vector.broadcast %33 : vector<8x1xf32> to vector<8x512xf32>
    %36 = vector.broadcast %34 : vector<1x512xf32> to vector<8x512xf32>
    %37 = arith.mulf %35, %36 : vector<8x512xf32>
    %38 = arith.addf %32, %37 : vector<8x512xf32>
    %39 = vector.extract_strided_slice %1 {offsets = [0, 2], sizes = [8, 1], strides = [1, 1]} : vector<8x4xf32> to vector<8x1xf32>
    %40 = vector.extract_strided_slice %26 {offsets = [2, 0], sizes = [1, 512], strides = [1, 1]} : vector<4x512xf32> to vector<1x512xf32>
    %41 = vector.broadcast %39 : vector<8x1xf32> to vector<8x512xf32>
    %42 = vector.broadcast %40 : vector<1x512xf32> to vector<8x512xf32>
    %43 = arith.mulf %41, %42 : vector<8x512xf32>
    %44 = arith.addf %38, %43 : vector<8x512xf32>
    %45 = vector.extract_strided_slice %1 {offsets = [0, 3], sizes = [8, 1], strides = [1, 1]} : vector<8x4xf32> to vector<8x1xf32>
    %46 = vector.extract_strided_slice %26 {offsets = [3, 0], sizes = [1, 512], strides = [1, 1]} : vector<4x512xf32> to vector<1x512xf32>
    %47 = vector.broadcast %45 : vector<8x1xf32> to vector<8x512xf32>
    %48 = vector.broadcast %46 : vector<1x512xf32> to vector<8x512xf32>
    %49 = arith.mulf %47, %48 : vector<8x512xf32>
    %50 = arith.addf %44, %49 : vector<8x512xf32>
    %51 = vector.broadcast %2 : vector<8x1xf32> to vector<8x512xf32>
    %52 = arith.addf %50, %51 : vector<8x512xf32>
    %53 = vector.extract_strided_slice %6 {offsets = [0, 0], sizes = [1, 1], strides = [1, 1]} : vector<1x4xf32> to vector<1x1xf32>
    %54 = vector.extract_strided_slice %26 {offsets = [0, 0], sizes = [1, 512], strides = [1, 1]} : vector<4x512xf32> to vector<1x512xf32>
    %55 = vector.broadcast %53 : vector<1x1xf32> to vector<1x512xf32>
    %56 = arith.mulf %55, %54 : vector<1x512xf32>
    %57 = vector.extract_strided_slice %6 {offsets = [0, 1], sizes = [1, 1], strides = [1, 1]} : vector<1x4xf32> to vector<1x1xf32>
    %58 = vector.extract_strided_slice %26 {offsets = [1, 0], sizes = [1, 512], strides = [1, 1]} : vector<4x512xf32> to vector<1x512xf32>
    %59 = vector.broadcast %57 : vector<1x1xf32> to vector<1x512xf32>
    %60 = arith.mulf %59, %58 : vector<1x512xf32>
    %61 = arith.addf %56, %60 : vector<1x512xf32>
    %62 = vector.extract_strided_slice %6 {offsets = [0, 2], sizes = [1, 1], strides = [1, 1]} : vector<1x4xf32> to vector<1x1xf32>
    %63 = vector.extract_strided_slice %26 {offsets = [2, 0], sizes = [1, 512], strides = [1, 1]} : vector<4x512xf32> to vector<1x512xf32>
    %64 = vector.broadcast %62 : vector<1x1xf32> to vector<1x512xf32>
    %65 = arith.mulf %64, %63 : vector<1x512xf32>
    %66 = arith.addf %61, %65 : vector<1x512xf32>
    %67 = vector.extract_strided_slice %6 {offsets = [0, 3], sizes = [1, 1], strides = [1, 1]} : vector<1x4xf32> to vector<1x1xf32>
    %68 = vector.extract_strided_slice %26 {offsets = [3, 0], sizes = [1, 512], strides = [1, 1]} : vector<4x512xf32> to vector<1x512xf32>
    %69 = vector.broadcast %67 : vector<1x1xf32> to vector<1x512xf32>
    %70 = arith.mulf %69, %68 : vector<1x512xf32>
    %71 = arith.addf %66, %70 : vector<1x512xf32>
    %72 = vector.broadcast %7 : vector<1x1xf32> to vector<1x512xf32>
    %73 = arith.addf %71, %72 : vector<1x512xf32>
    %74 = vector.extract_strided_slice %8 {offsets = [0, 0], sizes = [6, 1], strides = [1, 1]} : vector<6x3xf32> to vector<6x1xf32>
    %75 = vector.extract_strided_slice %27 {offsets = [0, 0], sizes = [1, 512], strides = [1, 1]} : vector<3x512xf32> to vector<1x512xf32>
    %76 = vector.broadcast %74 : vector<6x1xf32> to vector<6x512xf32>
    %77 = vector.broadcast %75 : vector<1x512xf32> to vector<6x512xf32>
    %78 = arith.mulf %76, %77 : vector<6x512xf32>
    %79 = vector.extract_strided_slice %8 {offsets = [0, 1], sizes = [6, 1], strides = [1, 1]} : vector<6x3xf32> to vector<6x1xf32>
    %80 = vector.extract_strided_slice %27 {offsets = [1, 0], sizes = [1, 512], strides = [1, 1]} : vector<3x512xf32> to vector<1x512xf32>
    %81 = vector.broadcast %79 : vector<6x1xf32> to vector<6x512xf32>
    %82 = vector.broadcast %80 : vector<1x512xf32> to vector<6x512xf32>
    %83 = arith.mulf %81, %82 : vector<6x512xf32>
    %84 = arith.addf %78, %83 : vector<6x512xf32>
    %85 = vector.extract_strided_slice %8 {offsets = [0, 2], sizes = [6, 1], strides = [1, 1]} : vector<6x3xf32> to vector<6x1xf32>
    %86 = vector.extract_strided_slice %27 {offsets = [2, 0], sizes = [1, 512], strides = [1, 1]} : vector<3x512xf32> to vector<1x512xf32>
    %87 = vector.broadcast %85 : vector<6x1xf32> to vector<6x512xf32>
    %88 = vector.broadcast %86 : vector<1x512xf32> to vector<6x512xf32>
    %89 = arith.mulf %87, %88 : vector<6x512xf32>
    %90 = arith.addf %84, %89 : vector<6x512xf32>
    %91 = vector.broadcast %9 : vector<6x1xf32> to vector<6x512xf32>
    %92 = arith.addf %90, %91 : vector<6x512xf32>
    %cst = arith.constant 0xFF800000 : f32
    %93 = vector.broadcast %cst : f32 to vector<8x512xf32>
    %cst_5 = arith.constant 0xFF800000 : f32
    %94 = vector.broadcast %cst_5 : f32 to vector<1x512xf32>
    %cst_6 = arith.constant 0x7F800000 : f32
    %95 = vector.broadcast %cst_6 : f32 to vector<1x512xf32>
    %cst_7 = arith.constant 0.000000e+00 : f32
    %96 = vector.broadcast %cst_7 : f32 to vector<6x512xf32>
    %c0_8 = arith.constant 0 : index
    %c0_9 = arith.constant 0 : index
    %c0_10 = arith.constant 0 : index
    %97 = vector.load %arg2[%c0_8, %c0_9, %c0_10] : memref<5x4x512xf32, #tpu.memory_space<vmem>>, vector<1x4x512xf32>
    %98 = vector.shape_cast %97 : vector<1x4x512xf32> to vector<4x512xf32>
    %c0_11 = arith.constant 0 : index
    %c0_12 = arith.constant 0 : index
    %c0_13 = arith.constant 0 : index
    %99 = vector.load %arg4[%c0_11, %c0_12, %c0_13] : memref<5x3x512xf32, #tpu.memory_space<vmem>>, vector<1x3x512xf32>
    %100 = vector.shape_cast %99 : vector<1x3x512xf32> to vector<3x512xf32>
    %101 = vector.extract_strided_slice %3 {offsets = [0, 0], sizes = [8, 1], strides = [1, 1]} : vector<8x4xf32> to vector<8x1xf32>
    %102 = vector.extract_strided_slice %98 {offsets = [0, 0], sizes = [1, 512], strides = [1, 1]} : vector<4x512xf32> to vector<1x512xf32>
    %103 = vector.broadcast %101 : vector<8x1xf32> to vector<8x512xf32>
    %104 = vector.broadcast %102 : vector<1x512xf32> to vector<8x512xf32>
    %105 = arith.mulf %103, %104 : vector<8x512xf32>
    %106 = vector.extract_strided_slice %3 {offsets = [0, 1], sizes = [8, 1], strides = [1, 1]} : vector<8x4xf32> to vector<8x1xf32>
    %107 = vector.extract_strided_slice %98 {offsets = [1, 0], sizes = [1, 512], strides = [1, 1]} : vector<4x512xf32> to vector<1x512xf32>
    %108 = vector.broadcast %106 : vector<8x1xf32> to vector<8x512xf32>
    %109 = vector.broadcast %107 : vector<1x512xf32> to vector<8x512xf32>
    %110 = arith.mulf %108, %109 : vector<8x512xf32>
    %111 = arith.addf %105, %110 : vector<8x512xf32>
    %112 = vector.extract_strided_slice %3 {offsets = [0, 2], sizes = [8, 1], strides = [1, 1]} : vector<8x4xf32> to vector<8x1xf32>
    %113 = vector.extract_strided_slice %98 {offsets = [2, 0], sizes = [1, 512], strides = [1, 1]} : vector<4x512xf32> to vector<1x512xf32>
    %114 = vector.broadcast %112 : vector<8x1xf32> to vector<8x512xf32>
    %115 = vector.broadcast %113 : vector<1x512xf32> to vector<8x512xf32>
    %116 = arith.mulf %114, %115 : vector<8x512xf32>
    %117 = arith.addf %111, %116 : vector<8x512xf32>
    %118 = vector.extract_strided_slice %3 {offsets = [0, 3], sizes = [8, 1], strides = [1, 1]} : vector<8x4xf32> to vector<8x1xf32>
    %119 = vector.extract_strided_slice %98 {offsets = [3, 0], sizes = [1, 512], strides = [1, 1]} : vector<4x512xf32> to vector<1x512xf32>
    %120 = vector.broadcast %118 : vector<8x1xf32> to vector<8x512xf32>
    %121 = vector.broadcast %119 : vector<1x512xf32> to vector<8x512xf32>
    %122 = arith.mulf %120, %121 : vector<8x512xf32>
    %123 = arith.addf %117, %122 : vector<8x512xf32>
    %124 = arith.maximumf %93, %123 : vector<8x512xf32>
    %125 = vector.extract_strided_slice %5 {offsets = [0, 0], sizes = [1, 1], strides = [1, 1]} : vector<1x4xf32> to vector<1x1xf32>
    %126 = vector.extract_strided_slice %98 {offsets = [0, 0], sizes = [1, 512], strides = [1, 1]} : vector<4x512xf32> to vector<1x512xf32>
    %127 = vector.broadcast %125 : vector<1x1xf32> to vector<1x512xf32>
    %128 = arith.mulf %127, %126 : vector<1x512xf32>
    %129 = vector.extract_strided_slice %5 {offsets = [0, 1], sizes = [1, 1], strides = [1, 1]} : vector<1x4xf32> to vector<1x1xf32>
    %130 = vector.extract_strided_slice %98 {offsets = [1, 0], sizes = [1, 512], strides = [1, 1]} : vector<4x512xf32> to vector<1x512xf32>
    %131 = vector.broadcast %129 : vector<1x1xf32> to vector<1x512xf32>
    %132 = arith.mulf %131, %130 : vector<1x512xf32>
    %133 = arith.addf %128, %132 : vector<1x512xf32>
    %134 = vector.extract_strided_slice %5 {offsets = [0, 2], sizes = [1, 1], strides = [1, 1]} : vector<1x4xf32> to vector<1x1xf32>
    %135 = vector.extract_strided_slice %98 {offsets = [2, 0], sizes = [1, 512], strides = [1, 1]} : vector<4x512xf32> to vector<1x512xf32>
    %136 = vector.broadcast %134 : vector<1x1xf32> to vector<1x512xf32>
    %137 = arith.mulf %136, %135 : vector<1x512xf32>
    %138 = arith.addf %133, %137 : vector<1x512xf32>
    %139 = vector.extract_strided_slice %5 {offsets = [0, 3], sizes = [1, 1], strides = [1, 1]} : vector<1x4xf32> to vector<1x1xf32>
    %140 = vector.extract_strided_slice %98 {offsets = [3, 0], sizes = [1, 512], strides = [1, 1]} : vector<4x512xf32> to vector<1x512xf32>
    %141 = vector.broadcast %139 : vector<1x1xf32> to vector<1x512xf32>
    %142 = arith.mulf %141, %140 : vector<1x512xf32>
    %143 = arith.addf %138, %142 : vector<1x512xf32>
    %144 = arith.addf %143, %73 : vector<1x512xf32>
    %145 = arith.maximumf %94, %144 : vector<1x512xf32>
    %146 = arith.minimumf %95, %144 : vector<1x512xf32>
    %147 = vector.extract_strided_slice %18 {offsets = [0, 0], sizes = [4, 1], strides = [1, 1]} : vector<4x3xf32> to vector<4x1xf32>
    %148 = vector.extract_strided_slice %100 {offsets = [0, 0], sizes = [1, 512], strides = [1, 1]} : vector<3x512xf32> to vector<1x512xf32>
    %149 = vector.broadcast %147 : vector<4x1xf32> to vector<4x512xf32>
    %150 = vector.broadcast %148 : vector<1x512xf32> to vector<4x512xf32>
    %151 = arith.mulf %149, %150 : vector<4x512xf32>
    %152 = vector.extract_strided_slice %18 {offsets = [0, 1], sizes = [4, 1], strides = [1, 1]} : vector<4x3xf32> to vector<4x1xf32>
    %153 = vector.extract_strided_slice %100 {offsets = [1, 0], sizes = [1, 512], strides = [1, 1]} : vector<3x512xf32> to vector<1x512xf32>
    %154 = vector.broadcast %152 : vector<4x1xf32> to vector<4x512xf32>
    %155 = vector.broadcast %153 : vector<1x512xf32> to vector<4x512xf32>
    %156 = arith.mulf %154, %155 : vector<4x512xf32>
    %157 = arith.addf %151, %156 : vector<4x512xf32>
    %158 = vector.extract_strided_slice %18 {offsets = [0, 2], sizes = [4, 1], strides = [1, 1]} : vector<4x3xf32> to vector<4x1xf32>
    %159 = vector.extract_strided_slice %100 {offsets = [2, 0], sizes = [1, 512], strides = [1, 1]} : vector<3x512xf32> to vector<1x512xf32>
    %160 = vector.broadcast %158 : vector<4x1xf32> to vector<4x512xf32>
    %161 = vector.broadcast %159 : vector<1x512xf32> to vector<4x512xf32>
    %162 = arith.mulf %160, %161 : vector<4x512xf32>
    %163 = arith.addf %157, %162 : vector<4x512xf32>
    %164 = vector.broadcast %19 : vector<4x1xf32> to vector<4x512xf32>
    %165 = arith.addf %163, %164 : vector<4x512xf32>
    %cst_14 = arith.constant 0.000000e+00 : f32
    %166 = vector.broadcast %cst_14 : f32 to vector<4x512xf32>
    %167 = arith.maximumf %165, %166 : vector<4x512xf32>
    %168 = vector.extract_strided_slice %20 {offsets = [0, 0], sizes = [5, 1], strides = [1, 1]} : vector<5x4xf32> to vector<5x1xf32>
    %169 = vector.extract_strided_slice %167 {offsets = [0, 0], sizes = [1, 512], strides = [1, 1]} : vector<4x512xf32> to vector<1x512xf32>
    %170 = vector.broadcast %168 : vector<5x1xf32> to vector<5x512xf32>
    %171 = vector.broadcast %169 : vector<1x512xf32> to vector<5x512xf32>
    %172 = arith.mulf %170, %171 : vector<5x512xf32>
    %173 = vector.extract_strided_slice %20 {offsets = [0, 1], sizes = [5, 1], strides = [1, 1]} : vector<5x4xf32> to vector<5x1xf32>
    %174 = vector.extract_strided_slice %167 {offsets = [1, 0], sizes = [1, 512], strides = [1, 1]} : vector<4x512xf32> to vector<1x512xf32>
    %175 = vector.broadcast %173 : vector<5x1xf32> to vector<5x512xf32>
    %176 = vector.broadcast %174 : vector<1x512xf32> to vector<5x512xf32>
    %177 = arith.mulf %175, %176 : vector<5x512xf32>
    %178 = arith.addf %172, %177 : vector<5x512xf32>
    %179 = vector.extract_strided_slice %20 {offsets = [0, 2], sizes = [5, 1], strides = [1, 1]} : vector<5x4xf32> to vector<5x1xf32>
    %180 = vector.extract_strided_slice %167 {offsets = [2, 0], sizes = [1, 512], strides = [1, 1]} : vector<4x512xf32> to vector<1x512xf32>
    %181 = vector.broadcast %179 : vector<5x1xf32> to vector<5x512xf32>
    %182 = vector.broadcast %180 : vector<1x512xf32> to vector<5x512xf32>
    %183 = arith.mulf %181, %182 : vector<5x512xf32>
    %184 = arith.addf %178, %183 : vector<5x512xf32>
    %185 = vector.extract_strided_slice %20 {offsets = [0, 3], sizes = [5, 1], strides = [1, 1]} : vector<5x4xf32> to vector<5x1xf32>
    %186 = vector.extract_strided_slice %167 {offsets = [3, 0], sizes = [1, 512], strides = [1, 1]} : vector<4x512xf32> to vector<1x512xf32>
    %187 = vector.broadcast %185 : vector<5x1xf32> to vector<5x512xf32>
    %188 = vector.broadcast %186 : vector<1x512xf32> to vector<5x512xf32>
    %189 = arith.mulf %187, %188 : vector<5x512xf32>
    %190 = arith.addf %184, %189 : vector<5x512xf32>
    %191 = vector.broadcast %21 : vector<5x1xf32> to vector<5x512xf32>
    %192 = arith.addf %190, %191 : vector<5x512xf32>
    %cst_15 = arith.constant 0.000000e+00 : f32
    %193 = vector.broadcast %cst_15 : f32 to vector<5x512xf32>
    %194 = arith.maximumf %192, %193 : vector<5x512xf32>
    %195 = vector.extract_strided_slice %22 {offsets = [0, 0], sizes = [4, 1], strides = [1, 1]} : vector<4x5xf32> to vector<4x1xf32>
    %196 = vector.extract_strided_slice %194 {offsets = [0, 0], sizes = [1, 512], strides = [1, 1]} : vector<5x512xf32> to vector<1x512xf32>
    %197 = vector.broadcast %195 : vector<4x1xf32> to vector<4x512xf32>
    %198 = vector.broadcast %196 : vector<1x512xf32> to vector<4x512xf32>
    %199 = arith.mulf %197, %198 : vector<4x512xf32>
    %200 = vector.extract_strided_slice %22 {offsets = [0, 1], sizes = [4, 1], strides = [1, 1]} : vector<4x5xf32> to vector<4x1xf32>
    %201 = vector.extract_strided_slice %194 {offsets = [1, 0], sizes = [1, 512], strides = [1, 1]} : vector<5x512xf32> to vector<1x512xf32>
    %202 = vector.broadcast %200 : vector<4x1xf32> to vector<4x512xf32>
    %203 = vector.broadcast %201 : vector<1x512xf32> to vector<4x512xf32>
    %204 = arith.mulf %202, %203 : vector<4x512xf32>
    %205 = arith.addf %199, %204 : vector<4x512xf32>
    %206 = vector.extract_strided_slice %22 {offsets = [0, 2], sizes = [4, 1], strides = [1, 1]} : vector<4x5xf32> to vector<4x1xf32>
    %207 = vector.extract_strided_slice %194 {offsets = [2, 0], sizes = [1, 512], strides = [1, 1]} : vector<5x512xf32> to vector<1x512xf32>
    %208 = vector.broadcast %206 : vector<4x1xf32> to vector<4x512xf32>
    %209 = vector.broadcast %207 : vector<1x512xf32> to vector<4x512xf32>
    %210 = arith.mulf %208, %209 : vector<4x512xf32>
    %211 = arith.addf %205, %210 : vector<4x512xf32>
    %212 = vector.extract_strided_slice %22 {offsets = [0, 3], sizes = [4, 1], strides = [1, 1]} : vector<4x5xf32> to vector<4x1xf32>
    %213 = vector.extract_strided_slice %194 {offsets = [3, 0], sizes = [1, 512], strides = [1, 1]} : vector<5x512xf32> to vector<1x512xf32>
    %214 = vector.broadcast %212 : vector<4x1xf32> to vector<4x512xf32>
    %215 = vector.broadcast %213 : vector<1x512xf32> to vector<4x512xf32>
    %216 = arith.mulf %214, %215 : vector<4x512xf32>
    %217 = arith.addf %211, %216 : vector<4x512xf32>
    %218 = vector.extract_strided_slice %22 {offsets = [0, 4], sizes = [4, 1], strides = [1, 1]} : vector<4x5xf32> to vector<4x1xf32>
    %219 = vector.extract_strided_slice %194 {offsets = [4, 0], sizes = [1, 512], strides = [1, 1]} : vector<5x512xf32> to vector<1x512xf32>
    %220 = vector.broadcast %218 : vector<4x1xf32> to vector<4x512xf32>
    %221 = vector.broadcast %219 : vector<1x512xf32> to vector<4x512xf32>
    %222 = arith.mulf %220, %221 : vector<4x512xf32>
    %223 = arith.addf %217, %222 : vector<4x512xf32>
    %224 = vector.broadcast %23 : vector<4x1xf32> to vector<4x512xf32>
    %225 = arith.addf %223, %224 : vector<4x512xf32>
    %cst_16 = arith.constant 0.000000e+00 : f32
    %226 = vector.broadcast %cst_16 : f32 to vector<4x512xf32>
    %227 = arith.maximumf %225, %226 : vector<4x512xf32>
    %228 = vector.extract_strided_slice %24 {offsets = [0, 0], sizes = [6, 1], strides = [1, 1]} : vector<6x4xf32> to vector<6x1xf32>
    %229 = vector.extract_strided_slice %227 {offsets = [0, 0], sizes = [1, 512], strides = [1, 1]} : vector<4x512xf32> to vector<1x512xf32>
    %230 = vector.broadcast %228 : vector<6x1xf32> to vector<6x512xf32>
    %231 = vector.broadcast %229 : vector<1x512xf32> to vector<6x512xf32>
    %232 = arith.mulf %230, %231 : vector<6x512xf32>
    %233 = vector.extract_strided_slice %24 {offsets = [0, 1], sizes = [6, 1], strides = [1, 1]} : vector<6x4xf32> to vector<6x1xf32>
    %234 = vector.extract_strided_slice %227 {offsets = [1, 0], sizes = [1, 512], strides = [1, 1]} : vector<4x512xf32> to vector<1x512xf32>
    %235 = vector.broadcast %233 : vector<6x1xf32> to vector<6x512xf32>
    %236 = vector.broadcast %234 : vector<1x512xf32> to vector<6x512xf32>
    %237 = arith.mulf %235, %236 : vector<6x512xf32>
    %238 = arith.addf %232, %237 : vector<6x512xf32>
    %239 = vector.extract_strided_slice %24 {offsets = [0, 2], sizes = [6, 1], strides = [1, 1]} : vector<6x4xf32> to vector<6x1xf32>
    %240 = vector.extract_strided_slice %227 {offsets = [2, 0], sizes = [1, 512], strides = [1, 1]} : vector<4x512xf32> to vector<1x512xf32>
    %241 = vector.broadcast %239 : vector<6x1xf32> to vector<6x512xf32>
    %242 = vector.broadcast %240 : vector<1x512xf32> to vector<6x512xf32>
    %243 = arith.mulf %241, %242 : vector<6x512xf32>
    %244 = arith.addf %238, %243 : vector<6x512xf32>
    %245 = vector.extract_strided_slice %24 {offsets = [0, 3], sizes = [6, 1], strides = [1, 1]} : vector<6x4xf32> to vector<6x1xf32>
    %246 = vector.extract_strided_slice %227 {offsets = [3, 0], sizes = [1, 512], strides = [1, 1]} : vector<4x512xf32> to vector<1x512xf32>
    %247 = vector.broadcast %245 : vector<6x1xf32> to vector<6x512xf32>
    %248 = vector.broadcast %246 : vector<1x512xf32> to vector<6x512xf32>
    %249 = arith.mulf %247, %248 : vector<6x512xf32>
    %250 = arith.addf %244, %249 : vector<6x512xf32>
    %251 = vector.broadcast %25 : vector<6x1xf32> to vector<6x512xf32>
    %252 = arith.addf %250, %251 : vector<6x512xf32>
    %253 = arith.addf %96, %252 : vector<6x512xf32>
    %254 = arith.subf %27, %100 : vector<3x512xf32>
    %255 = vector.extract_strided_slice %10 {offsets = [0, 0], sizes = [4, 1], strides = [1, 1]} : vector<4x3xf32> to vector<4x1xf32>
    %256 = vector.extract_strided_slice %254 {offsets = [0, 0], sizes = [1, 512], strides = [1, 1]} : vector<3x512xf32> to vector<1x512xf32>
    %257 = vector.broadcast %255 : vector<4x1xf32> to vector<4x512xf32>
    %258 = vector.broadcast %256 : vector<1x512xf32> to vector<4x512xf32>
    %259 = arith.mulf %257, %258 : vector<4x512xf32>
    %260 = vector.extract_strided_slice %10 {offsets = [0, 1], sizes = [4, 1], strides = [1, 1]} : vector<4x3xf32> to vector<4x1xf32>
    %261 = vector.extract_strided_slice %254 {offsets = [1, 0], sizes = [1, 512], strides = [1, 1]} : vector<3x512xf32> to vector<1x512xf32>
    %262 = vector.broadcast %260 : vector<4x1xf32> to vector<4x512xf32>
    %263 = vector.broadcast %261 : vector<1x512xf32> to vector<4x512xf32>
    %264 = arith.mulf %262, %263 : vector<4x512xf32>
    %265 = arith.addf %259, %264 : vector<4x512xf32>
    %266 = vector.extract_strided_slice %10 {offsets = [0, 2], sizes = [4, 1], strides = [1, 1]} : vector<4x3xf32> to vector<4x1xf32>
    %267 = vector.extract_strided_slice %254 {offsets = [2, 0], sizes = [1, 512], strides = [1, 1]} : vector<3x512xf32> to vector<1x512xf32>
    %268 = vector.broadcast %266 : vector<4x1xf32> to vector<4x512xf32>
    %269 = vector.broadcast %267 : vector<1x512xf32> to vector<4x512xf32>
    %270 = arith.mulf %268, %269 : vector<4x512xf32>
    %271 = arith.addf %265, %270 : vector<4x512xf32>
    %272 = vector.broadcast %11 : vector<4x1xf32> to vector<4x512xf32>
    %273 = arith.addf %271, %272 : vector<4x512xf32>
    %cst_17 = arith.constant 0.000000e+00 : f32
    %274 = vector.broadcast %cst_17 : f32 to vector<4x512xf32>
    %275 = arith.maximumf %273, %274 : vector<4x512xf32>
    %276 = vector.extract_strided_slice %12 {offsets = [0, 0], sizes = [5, 1], strides = [1, 1]} : vector<5x4xf32> to vector<5x1xf32>
    %277 = vector.extract_strided_slice %275 {offsets = [0, 0], sizes = [1, 512], strides = [1, 1]} : vector<4x512xf32> to vector<1x512xf32>
    %278 = vector.broadcast %276 : vector<5x1xf32> to vector<5x512xf32>
    %279 = vector.broadcast %277 : vector<1x512xf32> to vector<5x512xf32>
    %280 = arith.mulf %278, %279 : vector<5x512xf32>
    %281 = vector.extract_strided_slice %12 {offsets = [0, 1], sizes = [5, 1], strides = [1, 1]} : vector<5x4xf32> to vector<5x1xf32>
    %282 = vector.extract_strided_slice %275 {offsets = [1, 0], sizes = [1, 512], strides = [1, 1]} : vector<4x512xf32> to vector<1x512xf32>
    %283 = vector.broadcast %281 : vector<5x1xf32> to vector<5x512xf32>
    %284 = vector.broadcast %282 : vector<1x512xf32> to vector<5x512xf32>
    %285 = arith.mulf %283, %284 : vector<5x512xf32>
    %286 = arith.addf %280, %285 : vector<5x512xf32>
    %287 = vector.extract_strided_slice %12 {offsets = [0, 2], sizes = [5, 1], strides = [1, 1]} : vector<5x4xf32> to vector<5x1xf32>
    %288 = vector.extract_strided_slice %275 {offsets = [2, 0], sizes = [1, 512], strides = [1, 1]} : vector<4x512xf32> to vector<1x512xf32>
    %289 = vector.broadcast %287 : vector<5x1xf32> to vector<5x512xf32>
    %290 = vector.broadcast %288 : vector<1x512xf32> to vector<5x512xf32>
    %291 = arith.mulf %289, %290 : vector<5x512xf32>
    %292 = arith.addf %286, %291 : vector<5x512xf32>
    %293 = vector.extract_strided_slice %12 {offsets = [0, 3], sizes = [5, 1], strides = [1, 1]} : vector<5x4xf32> to vector<5x1xf32>
    %294 = vector.extract_strided_slice %275 {offsets = [3, 0], sizes = [1, 512], strides = [1, 1]} : vector<4x512xf32> to vector<1x512xf32>
    %295 = vector.broadcast %293 : vector<5x1xf32> to vector<5x512xf32>
    %296 = vector.broadcast %294 : vector<1x512xf32> to vector<5x512xf32>
    %297 = arith.mulf %295, %296 : vector<5x512xf32>
    %298 = arith.addf %292, %297 : vector<5x512xf32>
    %299 = vector.broadcast %13 : vector<5x1xf32> to vector<5x512xf32>
    %300 = arith.addf %298, %299 : vector<5x512xf32>
    %cst_18 = arith.constant 0.000000e+00 : f32
    %301 = vector.broadcast %cst_18 : f32 to vector<5x512xf32>
    %302 = arith.maximumf %300, %301 : vector<5x512xf32>
    %303 = vector.extract_strided_slice %14 {offsets = [0, 0], sizes = [4, 1], strides = [1, 1]} : vector<4x5xf32> to vector<4x1xf32>
    %304 = vector.extract_strided_slice %302 {offsets = [0, 0], sizes = [1, 512], strides = [1, 1]} : vector<5x512xf32> to vector<1x512xf32>
    %305 = vector.broadcast %303 : vector<4x1xf32> to vector<4x512xf32>
    %306 = vector.broadcast %304 : vector<1x512xf32> to vector<4x512xf32>
    %307 = arith.mulf %305, %306 : vector<4x512xf32>
    %308 = vector.extract_strided_slice %14 {offsets = [0, 1], sizes = [4, 1], strides = [1, 1]} : vector<4x5xf32> to vector<4x1xf32>
    %309 = vector.extract_strided_slice %302 {offsets = [1, 0], sizes = [1, 512], strides = [1, 1]} : vector<5x512xf32> to vector<1x512xf32>
    %310 = vector.broadcast %308 : vector<4x1xf32> to vector<4x512xf32>
    %311 = vector.broadcast %309 : vector<1x512xf32> to vector<4x512xf32>
    %312 = arith.mulf %310, %311 : vector<4x512xf32>
    %313 = arith.addf %307, %312 : vector<4x512xf32>
    %314 = vector.extract_strided_slice %14 {offsets = [0, 2], sizes = [4, 1], strides = [1, 1]} : vector<4x5xf32> to vector<4x1xf32>
    %315 = vector.extract_strided_slice %302 {offsets = [2, 0], sizes = [1, 512], strides = [1, 1]} : vector<5x512xf32> to vector<1x512xf32>
    %316 = vector.broadcast %314 : vector<4x1xf32> to vector<4x512xf32>
    %317 = vector.broadcast %315 : vector<1x512xf32> to vector<4x512xf32>
    %318 = arith.mulf %316, %317 : vector<4x512xf32>
    %319 = arith.addf %313, %318 : vector<4x512xf32>
    %320 = vector.extract_strided_slice %14 {offsets = [0, 3], sizes = [4, 1], strides = [1, 1]} : vector<4x5xf32> to vector<4x1xf32>
    %321 = vector.extract_strided_slice %302 {offsets = [3, 0], sizes = [1, 512], strides = [1, 1]} : vector<5x512xf32> to vector<1x512xf32>
    %322 = vector.broadcast %320 : vector<4x1xf32> to vector<4x512xf32>
    %323 = vector.broadcast %321 : vector<1x512xf32> to vector<4x512xf32>
    %324 = arith.mulf %322, %323 : vector<4x512xf32>
    %325 = arith.addf %319, %324 : vector<4x512xf32>
    %326 = vector.extract_strided_slice %14 {offsets = [0, 4], sizes = [4, 1], strides = [1, 1]} : vector<4x5xf32> to vector<4x1xf32>
    %327 = vector.extract_strided_slice %302 {offsets = [4, 0], sizes = [1, 512], strides = [1, 1]} : vector<5x512xf32> to vector<1x512xf32>
    %328 = vector.broadcast %326 : vector<4x1xf32> to vector<4x512xf32>
    %329 = vector.broadcast %327 : vector<1x512xf32> to vector<4x512xf32>
    %330 = arith.mulf %328, %329 : vector<4x512xf32>
    %331 = arith.addf %325, %330 : vector<4x512xf32>
    %332 = vector.broadcast %15 : vector<4x1xf32> to vector<4x512xf32>
    %333 = arith.addf %331, %332 : vector<4x512xf32>
    %cst_19 = arith.constant 0.000000e+00 : f32
    %334 = vector.broadcast %cst_19 : f32 to vector<4x512xf32>
    %335 = arith.maximumf %333, %334 : vector<4x512xf32>
    %336 = vector.extract_strided_slice %16 {offsets = [0, 0], sizes = [6, 1], strides = [1, 1]} : vector<6x4xf32> to vector<6x1xf32>
    %337 = vector.extract_strided_slice %335 {offsets = [0, 0], sizes = [1, 512], strides = [1, 1]} : vector<4x512xf32> to vector<1x512xf32>
    %338 = vector.broadcast %336 : vector<6x1xf32> to vector<6x512xf32>
    %339 = vector.broadcast %337 : vector<1x512xf32> to vector<6x512xf32>
    %340 = arith.mulf %338, %339 : vector<6x512xf32>
    %341 = vector.extract_strided_slice %16 {offsets = [0, 1], sizes = [6, 1], strides = [1, 1]} : vector<6x4xf32> to vector<6x1xf32>
    %342 = vector.extract_strided_slice %335 {offsets = [1, 0], sizes = [1, 512], strides = [1, 1]} : vector<4x512xf32> to vector<1x512xf32>
    %343 = vector.broadcast %341 : vector<6x1xf32> to vector<6x512xf32>
    %344 = vector.broadcast %342 : vector<1x512xf32> to vector<6x512xf32>
    %345 = arith.mulf %343, %344 : vector<6x512xf32>
    %346 = arith.addf %340, %345 : vector<6x512xf32>
    %347 = vector.extract_strided_slice %16 {offsets = [0, 2], sizes = [6, 1], strides = [1, 1]} : vector<6x4xf32> to vector<6x1xf32>
    %348 = vector.extract_strided_slice %335 {offsets = [2, 0], sizes = [1, 512], strides = [1, 1]} : vector<4x512xf32> to vector<1x512xf32>
    %349 = vector.broadcast %347 : vector<6x1xf32> to vector<6x512xf32>
    %350 = vector.broadcast %348 : vector<1x512xf32> to vector<6x512xf32>
    %351 = arith.mulf %349, %350 : vector<6x512xf32>
    %352 = arith.addf %346, %351 : vector<6x512xf32>
    %353 = vector.extract_strided_slice %16 {offsets = [0, 3], sizes = [6, 1], strides = [1, 1]} : vector<6x4xf32> to vector<6x1xf32>
    %354 = vector.extract_strided_slice %335 {offsets = [3, 0], sizes = [1, 512], strides = [1, 1]} : vector<4x512xf32> to vector<1x512xf32>
    %355 = vector.broadcast %353 : vector<6x1xf32> to vector<6x512xf32>
    %356 = vector.broadcast %354 : vector<1x512xf32> to vector<6x512xf32>
    %357 = arith.mulf %355, %356 : vector<6x512xf32>
    %358 = arith.addf %352, %357 : vector<6x512xf32>
    %359 = vector.broadcast %17 : vector<6x1xf32> to vector<6x512xf32>
    %360 = arith.addf %358, %359 : vector<6x512xf32>
    %361 = arith.addf %253, %360 : vector<6x512xf32>
    %c1 = arith.constant 1 : index
    %c0_20 = arith.constant 0 : index
    %c0_21 = arith.constant 0 : index
    %362 = vector.load %arg2[%c1, %c0_20, %c0_21] : memref<5x4x512xf32, #tpu.memory_space<vmem>>, vector<1x4x512xf32>
    %363 = vector.shape_cast %362 : vector<1x4x512xf32> to vector<4x512xf32>
    %c1_22 = arith.constant 1 : index
    %c0_23 = arith.constant 0 : index
    %c0_24 = arith.constant 0 : index
    %364 = vector.load %arg4[%c1_22, %c0_23, %c0_24] : memref<5x3x512xf32, #tpu.memory_space<vmem>>, vector<1x3x512xf32>
    %365 = vector.shape_cast %364 : vector<1x3x512xf32> to vector<3x512xf32>
    %366 = vector.extract_strided_slice %3 {offsets = [0, 0], sizes = [8, 1], strides = [1, 1]} : vector<8x4xf32> to vector<8x1xf32>
    %367 = vector.extract_strided_slice %363 {offsets = [0, 0], sizes = [1, 512], strides = [1, 1]} : vector<4x512xf32> to vector<1x512xf32>
    %368 = vector.broadcast %366 : vector<8x1xf32> to vector<8x512xf32>
    %369 = vector.broadcast %367 : vector<1x512xf32> to vector<8x512xf32>
    %370 = arith.mulf %368, %369 : vector<8x512xf32>
    %371 = vector.extract_strided_slice %3 {offsets = [0, 1], sizes = [8, 1], strides = [1, 1]} : vector<8x4xf32> to vector<8x1xf32>
    %372 = vector.extract_strided_slice %363 {offsets = [1, 0], sizes = [1, 512], strides = [1, 1]} : vector<4x512xf32> to vector<1x512xf32>
    %373 = vector.broadcast %371 : vector<8x1xf32> to vector<8x512xf32>
    %374 = vector.broadcast %372 : vector<1x512xf32> to vector<8x512xf32>
    %375 = arith.mulf %373, %374 : vector<8x512xf32>
    %376 = arith.addf %370, %375 : vector<8x512xf32>
    %377 = vector.extract_strided_slice %3 {offsets = [0, 2], sizes = [8, 1], strides = [1, 1]} : vector<8x4xf32> to vector<8x1xf32>
    %378 = vector.extract_strided_slice %363 {offsets = [2, 0], sizes = [1, 512], strides = [1, 1]} : vector<4x512xf32> to vector<1x512xf32>
    %379 = vector.broadcast %377 : vector<8x1xf32> to vector<8x512xf32>
    %380 = vector.broadcast %378 : vector<1x512xf32> to vector<8x512xf32>
    %381 = arith.mulf %379, %380 : vector<8x512xf32>
    %382 = arith.addf %376, %381 : vector<8x512xf32>
    %383 = vector.extract_strided_slice %3 {offsets = [0, 3], sizes = [8, 1], strides = [1, 1]} : vector<8x4xf32> to vector<8x1xf32>
    %384 = vector.extract_strided_slice %363 {offsets = [3, 0], sizes = [1, 512], strides = [1, 1]} : vector<4x512xf32> to vector<1x512xf32>
    %385 = vector.broadcast %383 : vector<8x1xf32> to vector<8x512xf32>
    %386 = vector.broadcast %384 : vector<1x512xf32> to vector<8x512xf32>
    %387 = arith.mulf %385, %386 : vector<8x512xf32>
    %388 = arith.addf %382, %387 : vector<8x512xf32>
    %389 = arith.maximumf %124, %388 : vector<8x512xf32>
    %390 = vector.extract_strided_slice %5 {offsets = [0, 0], sizes = [1, 1], strides = [1, 1]} : vector<1x4xf32> to vector<1x1xf32>
    %391 = vector.extract_strided_slice %363 {offsets = [0, 0], sizes = [1, 512], strides = [1, 1]} : vector<4x512xf32> to vector<1x512xf32>
    %392 = vector.broadcast %390 : vector<1x1xf32> to vector<1x512xf32>
    %393 = arith.mulf %392, %391 : vector<1x512xf32>
    %394 = vector.extract_strided_slice %5 {offsets = [0, 1], sizes = [1, 1], strides = [1, 1]} : vector<1x4xf32> to vector<1x1xf32>
    %395 = vector.extract_strided_slice %363 {offsets = [1, 0], sizes = [1, 512], strides = [1, 1]} : vector<4x512xf32> to vector<1x512xf32>
    %396 = vector.broadcast %394 : vector<1x1xf32> to vector<1x512xf32>
    %397 = arith.mulf %396, %395 : vector<1x512xf32>
    %398 = arith.addf %393, %397 : vector<1x512xf32>
    %399 = vector.extract_strided_slice %5 {offsets = [0, 2], sizes = [1, 1], strides = [1, 1]} : vector<1x4xf32> to vector<1x1xf32>
    %400 = vector.extract_strided_slice %363 {offsets = [2, 0], sizes = [1, 512], strides = [1, 1]} : vector<4x512xf32> to vector<1x512xf32>
    %401 = vector.broadcast %399 : vector<1x1xf32> to vector<1x512xf32>
    %402 = arith.mulf %401, %400 : vector<1x512xf32>
    %403 = arith.addf %398, %402 : vector<1x512xf32>
    %404 = vector.extract_strided_slice %5 {offsets = [0, 3], sizes = [1, 1], strides = [1, 1]} : vector<1x4xf32> to vector<1x1xf32>
    %405 = vector.extract_strided_slice %363 {offsets = [3, 0], sizes = [1, 512], strides = [1, 1]} : vector<4x512xf32> to vector<1x512xf32>
    %406 = vector.broadcast %404 : vector<1x1xf32> to vector<1x512xf32>
    %407 = arith.mulf %406, %405 : vector<1x512xf32>
    %408 = arith.addf %403, %407 : vector<1x512xf32>
    %409 = arith.addf %408, %73 : vector<1x512xf32>
    %410 = arith.maximumf %145, %409 : vector<1x512xf32>
    %411 = arith.minimumf %146, %409 : vector<1x512xf32>
    %412 = vector.extract_strided_slice %18 {offsets = [0, 0], sizes = [4, 1], strides = [1, 1]} : vector<4x3xf32> to vector<4x1xf32>
    %413 = vector.extract_strided_slice %365 {offsets = [0, 0], sizes = [1, 512], strides = [1, 1]} : vector<3x512xf32> to vector<1x512xf32>
    %414 = vector.broadcast %412 : vector<4x1xf32> to vector<4x512xf32>
    %415 = vector.broadcast %413 : vector<1x512xf32> to vector<4x512xf32>
    %416 = arith.mulf %414, %415 : vector<4x512xf32>
    %417 = vector.extract_strided_slice %18 {offsets = [0, 1], sizes = [4, 1], strides = [1, 1]} : vector<4x3xf32> to vector<4x1xf32>
    %418 = vector.extract_strided_slice %365 {offsets = [1, 0], sizes = [1, 512], strides = [1, 1]} : vector<3x512xf32> to vector<1x512xf32>
    %419 = vector.broadcast %417 : vector<4x1xf32> to vector<4x512xf32>
    %420 = vector.broadcast %418 : vector<1x512xf32> to vector<4x512xf32>
    %421 = arith.mulf %419, %420 : vector<4x512xf32>
    %422 = arith.addf %416, %421 : vector<4x512xf32>
    %423 = vector.extract_strided_slice %18 {offsets = [0, 2], sizes = [4, 1], strides = [1, 1]} : vector<4x3xf32> to vector<4x1xf32>
    %424 = vector.extract_strided_slice %365 {offsets = [2, 0], sizes = [1, 512], strides = [1, 1]} : vector<3x512xf32> to vector<1x512xf32>
    %425 = vector.broadcast %423 : vector<4x1xf32> to vector<4x512xf32>
    %426 = vector.broadcast %424 : vector<1x512xf32> to vector<4x512xf32>
    %427 = arith.mulf %425, %426 : vector<4x512xf32>
    %428 = arith.addf %422, %427 : vector<4x512xf32>
    %429 = vector.broadcast %19 : vector<4x1xf32> to vector<4x512xf32>
    %430 = arith.addf %428, %429 : vector<4x512xf32>
    %cst_25 = arith.constant 0.000000e+00 : f32
    %431 = vector.broadcast %cst_25 : f32 to vector<4x512xf32>
    %432 = arith.maximumf %430, %431 : vector<4x512xf32>
    %433 = vector.extract_strided_slice %20 {offsets = [0, 0], sizes = [5, 1], strides = [1, 1]} : vector<5x4xf32> to vector<5x1xf32>
    %434 = vector.extract_strided_slice %432 {offsets = [0, 0], sizes = [1, 512], strides = [1, 1]} : vector<4x512xf32> to vector<1x512xf32>
    %435 = vector.broadcast %433 : vector<5x1xf32> to vector<5x512xf32>
    %436 = vector.broadcast %434 : vector<1x512xf32> to vector<5x512xf32>
    %437 = arith.mulf %435, %436 : vector<5x512xf32>
    %438 = vector.extract_strided_slice %20 {offsets = [0, 1], sizes = [5, 1], strides = [1, 1]} : vector<5x4xf32> to vector<5x1xf32>
    %439 = vector.extract_strided_slice %432 {offsets = [1, 0], sizes = [1, 512], strides = [1, 1]} : vector<4x512xf32> to vector<1x512xf32>
    %440 = vector.broadcast %438 : vector<5x1xf32> to vector<5x512xf32>
    %441 = vector.broadcast %439 : vector<1x512xf32> to vector<5x512xf32>
    %442 = arith.mulf %440, %441 : vector<5x512xf32>
    %443 = arith.addf %437, %442 : vector<5x512xf32>
    %444 = vector.extract_strided_slice %20 {offsets = [0, 2], sizes = [5, 1], strides = [1, 1]} : vector<5x4xf32> to vector<5x1xf32>
    %445 = vector.extract_strided_slice %432 {offsets = [2, 0], sizes = [1, 512], strides = [1, 1]} : vector<4x512xf32> to vector<1x512xf32>
    %446 = vector.broadcast %444 : vector<5x1xf32> to vector<5x512xf32>
    %447 = vector.broadcast %445 : vector<1x512xf32> to vector<5x512xf32>
    %448 = arith.mulf %446, %447 : vector<5x512xf32>
    %449 = arith.addf %443, %448 : vector<5x512xf32>
    %450 = vector.extract_strided_slice %20 {offsets = [0, 3], sizes = [5, 1], strides = [1, 1]} : vector<5x4xf32> to vector<5x1xf32>
    %451 = vector.extract_strided_slice %432 {offsets = [3, 0], sizes = [1, 512], strides = [1, 1]} : vector<4x512xf32> to vector<1x512xf32>
    %452 = vector.broadcast %450 : vector<5x1xf32> to vector<5x512xf32>
    %453 = vector.broadcast %451 : vector<1x512xf32> to vector<5x512xf32>
    %454 = arith.mulf %452, %453 : vector<5x512xf32>
    %455 = arith.addf %449, %454 : vector<5x512xf32>
    %456 = vector.broadcast %21 : vector<5x1xf32> to vector<5x512xf32>
    %457 = arith.addf %455, %456 : vector<5x512xf32>
    %cst_26 = arith.constant 0.000000e+00 : f32
    %458 = vector.broadcast %cst_26 : f32 to vector<5x512xf32>
    %459 = arith.maximumf %457, %458 : vector<5x512xf32>
    %460 = vector.extract_strided_slice %22 {offsets = [0, 0], sizes = [4, 1], strides = [1, 1]} : vector<4x5xf32> to vector<4x1xf32>
    %461 = vector.extract_strided_slice %459 {offsets = [0, 0], sizes = [1, 512], strides = [1, 1]} : vector<5x512xf32> to vector<1x512xf32>
    %462 = vector.broadcast %460 : vector<4x1xf32> to vector<4x512xf32>
    %463 = vector.broadcast %461 : vector<1x512xf32> to vector<4x512xf32>
    %464 = arith.mulf %462, %463 : vector<4x512xf32>
    %465 = vector.extract_strided_slice %22 {offsets = [0, 1], sizes = [4, 1], strides = [1, 1]} : vector<4x5xf32> to vector<4x1xf32>
    %466 = vector.extract_strided_slice %459 {offsets = [1, 0], sizes = [1, 512], strides = [1, 1]} : vector<5x512xf32> to vector<1x512xf32>
    %467 = vector.broadcast %465 : vector<4x1xf32> to vector<4x512xf32>
    %468 = vector.broadcast %466 : vector<1x512xf32> to vector<4x512xf32>
    %469 = arith.mulf %467, %468 : vector<4x512xf32>
    %470 = arith.addf %464, %469 : vector<4x512xf32>
    %471 = vector.extract_strided_slice %22 {offsets = [0, 2], sizes = [4, 1], strides = [1, 1]} : vector<4x5xf32> to vector<4x1xf32>
    %472 = vector.extract_strided_slice %459 {offsets = [2, 0], sizes = [1, 512], strides = [1, 1]} : vector<5x512xf32> to vector<1x512xf32>
    %473 = vector.broadcast %471 : vector<4x1xf32> to vector<4x512xf32>
    %474 = vector.broadcast %472 : vector<1x512xf32> to vector<4x512xf32>
    %475 = arith.mulf %473, %474 : vector<4x512xf32>
    %476 = arith.addf %470, %475 : vector<4x512xf32>
    %477 = vector.extract_strided_slice %22 {offsets = [0, 3], sizes = [4, 1], strides = [1, 1]} : vector<4x5xf32> to vector<4x1xf32>
    %478 = vector.extract_strided_slice %459 {offsets = [3, 0], sizes = [1, 512], strides = [1, 1]} : vector<5x512xf32> to vector<1x512xf32>
    %479 = vector.broadcast %477 : vector<4x1xf32> to vector<4x512xf32>
    %480 = vector.broadcast %478 : vector<1x512xf32> to vector<4x512xf32>
    %481 = arith.mulf %479, %480 : vector<4x512xf32>
    %482 = arith.addf %476, %481 : vector<4x512xf32>
    %483 = vector.extract_strided_slice %22 {offsets = [0, 4], sizes = [4, 1], strides = [1, 1]} : vector<4x5xf32> to vector<4x1xf32>
    %484 = vector.extract_strided_slice %459 {offsets = [4, 0], sizes = [1, 512], strides = [1, 1]} : vector<5x512xf32> to vector<1x512xf32>
    %485 = vector.broadcast %483 : vector<4x1xf32> to vector<4x512xf32>
    %486 = vector.broadcast %484 : vector<1x512xf32> to vector<4x512xf32>
    %487 = arith.mulf %485, %486 : vector<4x512xf32>
    %488 = arith.addf %482, %487 : vector<4x512xf32>
    %489 = vector.broadcast %23 : vector<4x1xf32> to vector<4x512xf32>
    %490 = arith.addf %488, %489 : vector<4x512xf32>
    %cst_27 = arith.constant 0.000000e+00 : f32
    %491 = vector.broadcast %cst_27 : f32 to vector<4x512xf32>
    %492 = arith.maximumf %490, %491 : vector<4x512xf32>
    %493 = vector.extract_strided_slice %24 {offsets = [0, 0], sizes = [6, 1], strides = [1, 1]} : vector<6x4xf32> to vector<6x1xf32>
    %494 = vector.extract_strided_slice %492 {offsets = [0, 0], sizes = [1, 512], strides = [1, 1]} : vector<4x512xf32> to vector<1x512xf32>
    %495 = vector.broadcast %493 : vector<6x1xf32> to vector<6x512xf32>
    %496 = vector.broadcast %494 : vector<1x512xf32> to vector<6x512xf32>
    %497 = arith.mulf %495, %496 : vector<6x512xf32>
    %498 = vector.extract_strided_slice %24 {offsets = [0, 1], sizes = [6, 1], strides = [1, 1]} : vector<6x4xf32> to vector<6x1xf32>
    %499 = vector.extract_strided_slice %492 {offsets = [1, 0], sizes = [1, 512], strides = [1, 1]} : vector<4x512xf32> to vector<1x512xf32>
    %500 = vector.broadcast %498 : vector<6x1xf32> to vector<6x512xf32>
    %501 = vector.broadcast %499 : vector<1x512xf32> to vector<6x512xf32>
    %502 = arith.mulf %500, %501 : vector<6x512xf32>
    %503 = arith.addf %497, %502 : vector<6x512xf32>
    %504 = vector.extract_strided_slice %24 {offsets = [0, 2], sizes = [6, 1], strides = [1, 1]} : vector<6x4xf32> to vector<6x1xf32>
    %505 = vector.extract_strided_slice %492 {offsets = [2, 0], sizes = [1, 512], strides = [1, 1]} : vector<4x512xf32> to vector<1x512xf32>
    %506 = vector.broadcast %504 : vector<6x1xf32> to vector<6x512xf32>
    %507 = vector.broadcast %505 : vector<1x512xf32> to vector<6x512xf32>
    %508 = arith.mulf %506, %507 : vector<6x512xf32>
    %509 = arith.addf %503, %508 : vector<6x512xf32>
    %510 = vector.extract_strided_slice %24 {offsets = [0, 3], sizes = [6, 1], strides = [1, 1]} : vector<6x4xf32> to vector<6x1xf32>
    %511 = vector.extract_strided_slice %492 {offsets = [3, 0], sizes = [1, 512], strides = [1, 1]} : vector<4x512xf32> to vector<1x512xf32>
    %512 = vector.broadcast %510 : vector<6x1xf32> to vector<6x512xf32>
    %513 = vector.broadcast %511 : vector<1x512xf32> to vector<6x512xf32>
    %514 = arith.mulf %512, %513 : vector<6x512xf32>
    %515 = arith.addf %509, %514 : vector<6x512xf32>
    %516 = vector.broadcast %25 : vector<6x1xf32> to vector<6x512xf32>
    %517 = arith.addf %515, %516 : vector<6x512xf32>
    %518 = arith.addf %361, %517 : vector<6x512xf32>
    %519 = arith.subf %27, %365 : vector<3x512xf32>
    %520 = vector.extract_strided_slice %10 {offsets = [0, 0], sizes = [4, 1], strides = [1, 1]} : vector<4x3xf32> to vector<4x1xf32>
    %521 = vector.extract_strided_slice %519 {offsets = [0, 0], sizes = [1, 512], strides = [1, 1]} : vector<3x512xf32> to vector<1x512xf32>
    %522 = vector.broadcast %520 : vector<4x1xf32> to vector<4x512xf32>
    %523 = vector.broadcast %521 : vector<1x512xf32> to vector<4x512xf32>
    %524 = arith.mulf %522, %523 : vector<4x512xf32>
    %525 = vector.extract_strided_slice %10 {offsets = [0, 1], sizes = [4, 1], strides = [1, 1]} : vector<4x3xf32> to vector<4x1xf32>
    %526 = vector.extract_strided_slice %519 {offsets = [1, 0], sizes = [1, 512], strides = [1, 1]} : vector<3x512xf32> to vector<1x512xf32>
    %527 = vector.broadcast %525 : vector<4x1xf32> to vector<4x512xf32>
    %528 = vector.broadcast %526 : vector<1x512xf32> to vector<4x512xf32>
    %529 = arith.mulf %527, %528 : vector<4x512xf32>
    %530 = arith.addf %524, %529 : vector<4x512xf32>
    %531 = vector.extract_strided_slice %10 {offsets = [0, 2], sizes = [4, 1], strides = [1, 1]} : vector<4x3xf32> to vector<4x1xf32>
    %532 = vector.extract_strided_slice %519 {offsets = [2, 0], sizes = [1, 512], strides = [1, 1]} : vector<3x512xf32> to vector<1x512xf32>
    %533 = vector.broadcast %531 : vector<4x1xf32> to vector<4x512xf32>
    %534 = vector.broadcast %532 : vector<1x512xf32> to vector<4x512xf32>
    %535 = arith.mulf %533, %534 : vector<4x512xf32>
    %536 = arith.addf %530, %535 : vector<4x512xf32>
    %537 = vector.broadcast %11 : vector<4x1xf32> to vector<4x512xf32>
    %538 = arith.addf %536, %537 : vector<4x512xf32>
    %cst_28 = arith.constant 0.000000e+00 : f32
    %539 = vector.broadcast %cst_28 : f32 to vector<4x512xf32>
    %540 = arith.maximumf %538, %539 : vector<4x512xf32>
    %541 = vector.extract_strided_slice %12 {offsets = [0, 0], sizes = [5, 1], strides = [1, 1]} : vector<5x4xf32> to vector<5x1xf32>
    %542 = vector.extract_strided_slice %540 {offsets = [0, 0], sizes = [1, 512], strides = [1, 1]} : vector<4x512xf32> to vector<1x512xf32>
    %543 = vector.broadcast %541 : vector<5x1xf32> to vector<5x512xf32>
    %544 = vector.broadcast %542 : vector<1x512xf32> to vector<5x512xf32>
    %545 = arith.mulf %543, %544 : vector<5x512xf32>
    %546 = vector.extract_strided_slice %12 {offsets = [0, 1], sizes = [5, 1], strides = [1, 1]} : vector<5x4xf32> to vector<5x1xf32>
    %547 = vector.extract_strided_slice %540 {offsets = [1, 0], sizes = [1, 512], strides = [1, 1]} : vector<4x512xf32> to vector<1x512xf32>
    %548 = vector.broadcast %546 : vector<5x1xf32> to vector<5x512xf32>
    %549 = vector.broadcast %547 : vector<1x512xf32> to vector<5x512xf32>
    %550 = arith.mulf %548, %549 : vector<5x512xf32>
    %551 = arith.addf %545, %550 : vector<5x512xf32>
    %552 = vector.extract_strided_slice %12 {offsets = [0, 2], sizes = [5, 1], strides = [1, 1]} : vector<5x4xf32> to vector<5x1xf32>
    %553 = vector.extract_strided_slice %540 {offsets = [2, 0], sizes = [1, 512], strides = [1, 1]} : vector<4x512xf32> to vector<1x512xf32>
    %554 = vector.broadcast %552 : vector<5x1xf32> to vector<5x512xf32>
    %555 = vector.broadcast %553 : vector<1x512xf32> to vector<5x512xf32>
    %556 = arith.mulf %554, %555 : vector<5x512xf32>
    %557 = arith.addf %551, %556 : vector<5x512xf32>
    %558 = vector.extract_strided_slice %12 {offsets = [0, 3], sizes = [5, 1], strides = [1, 1]} : vector<5x4xf32> to vector<5x1xf32>
    %559 = vector.extract_strided_slice %540 {offsets = [3, 0], sizes = [1, 512], strides = [1, 1]} : vector<4x512xf32> to vector<1x512xf32>
    %560 = vector.broadcast %558 : vector<5x1xf32> to vector<5x512xf32>
    %561 = vector.broadcast %559 : vector<1x512xf32> to vector<5x512xf32>
    %562 = arith.mulf %560, %561 : vector<5x512xf32>
    %563 = arith.addf %557, %562 : vector<5x512xf32>
    %564 = vector.broadcast %13 : vector<5x1xf32> to vector<5x512xf32>
    %565 = arith.addf %563, %564 : vector<5x512xf32>
    %cst_29 = arith.constant 0.000000e+00 : f32
    %566 = vector.broadcast %cst_29 : f32 to vector<5x512xf32>
    %567 = arith.maximumf %565, %566 : vector<5x512xf32>
    %568 = vector.extract_strided_slice %14 {offsets = [0, 0], sizes = [4, 1], strides = [1, 1]} : vector<4x5xf32> to vector<4x1xf32>
    %569 = vector.extract_strided_slice %567 {offsets = [0, 0], sizes = [1, 512], strides = [1, 1]} : vector<5x512xf32> to vector<1x512xf32>
    %570 = vector.broadcast %568 : vector<4x1xf32> to vector<4x512xf32>
    %571 = vector.broadcast %569 : vector<1x512xf32> to vector<4x512xf32>
    %572 = arith.mulf %570, %571 : vector<4x512xf32>
    %573 = vector.extract_strided_slice %14 {offsets = [0, 1], sizes = [4, 1], strides = [1, 1]} : vector<4x5xf32> to vector<4x1xf32>
    %574 = vector.extract_strided_slice %567 {offsets = [1, 0], sizes = [1, 512], strides = [1, 1]} : vector<5x512xf32> to vector<1x512xf32>
    %575 = vector.broadcast %573 : vector<4x1xf32> to vector<4x512xf32>
    %576 = vector.broadcast %574 : vector<1x512xf32> to vector<4x512xf32>
    %577 = arith.mulf %575, %576 : vector<4x512xf32>
    %578 = arith.addf %572, %577 : vector<4x512xf32>
    %579 = vector.extract_strided_slice %14 {offsets = [0, 2], sizes = [4, 1], strides = [1, 1]} : vector<4x5xf32> to vector<4x1xf32>
    %580 = vector.extract_strided_slice %567 {offsets = [2, 0], sizes = [1, 512], strides = [1, 1]} : vector<5x512xf32> to vector<1x512xf32>
    %581 = vector.broadcast %579 : vector<4x1xf32> to vector<4x512xf32>
    %582 = vector.broadcast %580 : vector<1x512xf32> to vector<4x512xf32>
    %583 = arith.mulf %581, %582 : vector<4x512xf32>
    %584 = arith.addf %578, %583 : vector<4x512xf32>
    %585 = vector.extract_strided_slice %14 {offsets = [0, 3], sizes = [4, 1], strides = [1, 1]} : vector<4x5xf32> to vector<4x1xf32>
    %586 = vector.extract_strided_slice %567 {offsets = [3, 0], sizes = [1, 512], strides = [1, 1]} : vector<5x512xf32> to vector<1x512xf32>
    %587 = vector.broadcast %585 : vector<4x1xf32> to vector<4x512xf32>
    %588 = vector.broadcast %586 : vector<1x512xf32> to vector<4x512xf32>
    %589 = arith.mulf %587, %588 : vector<4x512xf32>
    %590 = arith.addf %584, %589 : vector<4x512xf32>
    %591 = vector.extract_strided_slice %14 {offsets = [0, 4], sizes = [4, 1], strides = [1, 1]} : vector<4x5xf32> to vector<4x1xf32>
    %592 = vector.extract_strided_slice %567 {offsets = [4, 0], sizes = [1, 512], strides = [1, 1]} : vector<5x512xf32> to vector<1x512xf32>
    %593 = vector.broadcast %591 : vector<4x1xf32> to vector<4x512xf32>
    %594 = vector.broadcast %592 : vector<1x512xf32> to vector<4x512xf32>
    %595 = arith.mulf %593, %594 : vector<4x512xf32>
    %596 = arith.addf %590, %595 : vector<4x512xf32>
    %597 = vector.broadcast %15 : vector<4x1xf32> to vector<4x512xf32>
    %598 = arith.addf %596, %597 : vector<4x512xf32>
    %cst_30 = arith.constant 0.000000e+00 : f32
    %599 = vector.broadcast %cst_30 : f32 to vector<4x512xf32>
    %600 = arith.maximumf %598, %599 : vector<4x512xf32>
    %601 = vector.extract_strided_slice %16 {offsets = [0, 0], sizes = [6, 1], strides = [1, 1]} : vector<6x4xf32> to vector<6x1xf32>
    %602 = vector.extract_strided_slice %600 {offsets = [0, 0], sizes = [1, 512], strides = [1, 1]} : vector<4x512xf32> to vector<1x512xf32>
    %603 = vector.broadcast %601 : vector<6x1xf32> to vector<6x512xf32>
    %604 = vector.broadcast %602 : vector<1x512xf32> to vector<6x512xf32>
    %605 = arith.mulf %603, %604 : vector<6x512xf32>
    %606 = vector.extract_strided_slice %16 {offsets = [0, 1], sizes = [6, 1], strides = [1, 1]} : vector<6x4xf32> to vector<6x1xf32>
    %607 = vector.extract_strided_slice %600 {offsets = [1, 0], sizes = [1, 512], strides = [1, 1]} : vector<4x512xf32> to vector<1x512xf32>
    %608 = vector.broadcast %606 : vector<6x1xf32> to vector<6x512xf32>
    %609 = vector.broadcast %607 : vector<1x512xf32> to vector<6x512xf32>
    %610 = arith.mulf %608, %609 : vector<6x512xf32>
    %611 = arith.addf %605, %610 : vector<6x512xf32>
    %612 = vector.extract_strided_slice %16 {offsets = [0, 2], sizes = [6, 1], strides = [1, 1]} : vector<6x4xf32> to vector<6x1xf32>
    %613 = vector.extract_strided_slice %600 {offsets = [2, 0], sizes = [1, 512], strides = [1, 1]} : vector<4x512xf32> to vector<1x512xf32>
    %614 = vector.broadcast %612 : vector<6x1xf32> to vector<6x512xf32>
    %615 = vector.broadcast %613 : vector<1x512xf32> to vector<6x512xf32>
    %616 = arith.mulf %614, %615 : vector<6x512xf32>
    %617 = arith.addf %611, %616 : vector<6x512xf32>
    %618 = vector.extract_strided_slice %16 {offsets = [0, 3], sizes = [6, 1], strides = [1, 1]} : vector<6x4xf32> to vector<6x1xf32>
    %619 = vector.extract_strided_slice %600 {offsets = [3, 0], sizes = [1, 512], strides = [1, 1]} : vector<4x512xf32> to vector<1x512xf32>
    %620 = vector.broadcast %618 : vector<6x1xf32> to vector<6x512xf32>
    %621 = vector.broadcast %619 : vector<1x512xf32> to vector<6x512xf32>
    %622 = arith.mulf %620, %621 : vector<6x512xf32>
    %623 = arith.addf %617, %622 : vector<6x512xf32>
    %624 = vector.broadcast %17 : vector<6x1xf32> to vector<6x512xf32>
    %625 = arith.addf %623, %624 : vector<6x512xf32>
    %626 = arith.addf %518, %625 : vector<6x512xf32>
    %c2 = arith.constant 2 : index
    %c0_31 = arith.constant 0 : index
    %c0_32 = arith.constant 0 : index
    %627 = vector.load %arg2[%c2, %c0_31, %c0_32] : memref<5x4x512xf32, #tpu.memory_space<vmem>>, vector<1x4x512xf32>
    %628 = vector.shape_cast %627 : vector<1x4x512xf32> to vector<4x512xf32>
    %c2_33 = arith.constant 2 : index
    %c0_34 = arith.constant 0 : index
    %c0_35 = arith.constant 0 : index
    %629 = vector.load %arg4[%c2_33, %c0_34, %c0_35] : memref<5x3x512xf32, #tpu.memory_space<vmem>>, vector<1x3x512xf32>
    %630 = vector.shape_cast %629 : vector<1x3x512xf32> to vector<3x512xf32>
    %631 = vector.extract_strided_slice %3 {offsets = [0, 0], sizes = [8, 1], strides = [1, 1]} : vector<8x4xf32> to vector<8x1xf32>
    %632 = vector.extract_strided_slice %628 {offsets = [0, 0], sizes = [1, 512], strides = [1, 1]} : vector<4x512xf32> to vector<1x512xf32>
    %633 = vector.broadcast %631 : vector<8x1xf32> to vector<8x512xf32>
    %634 = vector.broadcast %632 : vector<1x512xf32> to vector<8x512xf32>
    %635 = arith.mulf %633, %634 : vector<8x512xf32>
    %636 = vector.extract_strided_slice %3 {offsets = [0, 1], sizes = [8, 1], strides = [1, 1]} : vector<8x4xf32> to vector<8x1xf32>
    %637 = vector.extract_strided_slice %628 {offsets = [1, 0], sizes = [1, 512], strides = [1, 1]} : vector<4x512xf32> to vector<1x512xf32>
    %638 = vector.broadcast %636 : vector<8x1xf32> to vector<8x512xf32>
    %639 = vector.broadcast %637 : vector<1x512xf32> to vector<8x512xf32>
    %640 = arith.mulf %638, %639 : vector<8x512xf32>
    %641 = arith.addf %635, %640 : vector<8x512xf32>
    %642 = vector.extract_strided_slice %3 {offsets = [0, 2], sizes = [8, 1], strides = [1, 1]} : vector<8x4xf32> to vector<8x1xf32>
    %643 = vector.extract_strided_slice %628 {offsets = [2, 0], sizes = [1, 512], strides = [1, 1]} : vector<4x512xf32> to vector<1x512xf32>
    %644 = vector.broadcast %642 : vector<8x1xf32> to vector<8x512xf32>
    %645 = vector.broadcast %643 : vector<1x512xf32> to vector<8x512xf32>
    %646 = arith.mulf %644, %645 : vector<8x512xf32>
    %647 = arith.addf %641, %646 : vector<8x512xf32>
    %648 = vector.extract_strided_slice %3 {offsets = [0, 3], sizes = [8, 1], strides = [1, 1]} : vector<8x4xf32> to vector<8x1xf32>
    %649 = vector.extract_strided_slice %628 {offsets = [3, 0], sizes = [1, 512], strides = [1, 1]} : vector<4x512xf32> to vector<1x512xf32>
    %650 = vector.broadcast %648 : vector<8x1xf32> to vector<8x512xf32>
    %651 = vector.broadcast %649 : vector<1x512xf32> to vector<8x512xf32>
    %652 = arith.mulf %650, %651 : vector<8x512xf32>
    %653 = arith.addf %647, %652 : vector<8x512xf32>
    %654 = arith.maximumf %389, %653 : vector<8x512xf32>
    %655 = vector.extract_strided_slice %5 {offsets = [0, 0], sizes = [1, 1], strides = [1, 1]} : vector<1x4xf32> to vector<1x1xf32>
    %656 = vector.extract_strided_slice %628 {offsets = [0, 0], sizes = [1, 512], strides = [1, 1]} : vector<4x512xf32> to vector<1x512xf32>
    %657 = vector.broadcast %655 : vector<1x1xf32> to vector<1x512xf32>
    %658 = arith.mulf %657, %656 : vector<1x512xf32>
    %659 = vector.extract_strided_slice %5 {offsets = [0, 1], sizes = [1, 1], strides = [1, 1]} : vector<1x4xf32> to vector<1x1xf32>
    %660 = vector.extract_strided_slice %628 {offsets = [1, 0], sizes = [1, 512], strides = [1, 1]} : vector<4x512xf32> to vector<1x512xf32>
    %661 = vector.broadcast %659 : vector<1x1xf32> to vector<1x512xf32>
    %662 = arith.mulf %661, %660 : vector<1x512xf32>
    %663 = arith.addf %658, %662 : vector<1x512xf32>
    %664 = vector.extract_strided_slice %5 {offsets = [0, 2], sizes = [1, 1], strides = [1, 1]} : vector<1x4xf32> to vector<1x1xf32>
    %665 = vector.extract_strided_slice %628 {offsets = [2, 0], sizes = [1, 512], strides = [1, 1]} : vector<4x512xf32> to vector<1x512xf32>
    %666 = vector.broadcast %664 : vector<1x1xf32> to vector<1x512xf32>
    %667 = arith.mulf %666, %665 : vector<1x512xf32>
    %668 = arith.addf %663, %667 : vector<1x512xf32>
    %669 = vector.extract_strided_slice %5 {offsets = [0, 3], sizes = [1, 1], strides = [1, 1]} : vector<1x4xf32> to vector<1x1xf32>
    %670 = vector.extract_strided_slice %628 {offsets = [3, 0], sizes = [1, 512], strides = [1, 1]} : vector<4x512xf32> to vector<1x512xf32>
    %671 = vector.broadcast %669 : vector<1x1xf32> to vector<1x512xf32>
    %672 = arith.mulf %671, %670 : vector<1x512xf32>
    %673 = arith.addf %668, %672 : vector<1x512xf32>
    %674 = arith.addf %673, %73 : vector<1x512xf32>
    %675 = arith.maximumf %410, %674 : vector<1x512xf32>
    %676 = arith.minimumf %411, %674 : vector<1x512xf32>
    %677 = vector.extract_strided_slice %18 {offsets = [0, 0], sizes = [4, 1], strides = [1, 1]} : vector<4x3xf32> to vector<4x1xf32>
    %678 = vector.extract_strided_slice %630 {offsets = [0, 0], sizes = [1, 512], strides = [1, 1]} : vector<3x512xf32> to vector<1x512xf32>
    %679 = vector.broadcast %677 : vector<4x1xf32> to vector<4x512xf32>
    %680 = vector.broadcast %678 : vector<1x512xf32> to vector<4x512xf32>
    %681 = arith.mulf %679, %680 : vector<4x512xf32>
    %682 = vector.extract_strided_slice %18 {offsets = [0, 1], sizes = [4, 1], strides = [1, 1]} : vector<4x3xf32> to vector<4x1xf32>
    %683 = vector.extract_strided_slice %630 {offsets = [1, 0], sizes = [1, 512], strides = [1, 1]} : vector<3x512xf32> to vector<1x512xf32>
    %684 = vector.broadcast %682 : vector<4x1xf32> to vector<4x512xf32>
    %685 = vector.broadcast %683 : vector<1x512xf32> to vector<4x512xf32>
    %686 = arith.mulf %684, %685 : vector<4x512xf32>
    %687 = arith.addf %681, %686 : vector<4x512xf32>
    %688 = vector.extract_strided_slice %18 {offsets = [0, 2], sizes = [4, 1], strides = [1, 1]} : vector<4x3xf32> to vector<4x1xf32>
    %689 = vector.extract_strided_slice %630 {offsets = [2, 0], sizes = [1, 512], strides = [1, 1]} : vector<3x512xf32> to vector<1x512xf32>
    %690 = vector.broadcast %688 : vector<4x1xf32> to vector<4x512xf32>
    %691 = vector.broadcast %689 : vector<1x512xf32> to vector<4x512xf32>
    %692 = arith.mulf %690, %691 : vector<4x512xf32>
    %693 = arith.addf %687, %692 : vector<4x512xf32>
    %694 = vector.broadcast %19 : vector<4x1xf32> to vector<4x512xf32>
    %695 = arith.addf %693, %694 : vector<4x512xf32>
    %cst_36 = arith.constant 0.000000e+00 : f32
    %696 = vector.broadcast %cst_36 : f32 to vector<4x512xf32>
    %697 = arith.maximumf %695, %696 : vector<4x512xf32>
    %698 = vector.extract_strided_slice %20 {offsets = [0, 0], sizes = [5, 1], strides = [1, 1]} : vector<5x4xf32> to vector<5x1xf32>
    %699 = vector.extract_strided_slice %697 {offsets = [0, 0], sizes = [1, 512], strides = [1, 1]} : vector<4x512xf32> to vector<1x512xf32>
    %700 = vector.broadcast %698 : vector<5x1xf32> to vector<5x512xf32>
    %701 = vector.broadcast %699 : vector<1x512xf32> to vector<5x512xf32>
    %702 = arith.mulf %700, %701 : vector<5x512xf32>
    %703 = vector.extract_strided_slice %20 {offsets = [0, 1], sizes = [5, 1], strides = [1, 1]} : vector<5x4xf32> to vector<5x1xf32>
    %704 = vector.extract_strided_slice %697 {offsets = [1, 0], sizes = [1, 512], strides = [1, 1]} : vector<4x512xf32> to vector<1x512xf32>
    %705 = vector.broadcast %703 : vector<5x1xf32> to vector<5x512xf32>
    %706 = vector.broadcast %704 : vector<1x512xf32> to vector<5x512xf32>
    %707 = arith.mulf %705, %706 : vector<5x512xf32>
    %708 = arith.addf %702, %707 : vector<5x512xf32>
    %709 = vector.extract_strided_slice %20 {offsets = [0, 2], sizes = [5, 1], strides = [1, 1]} : vector<5x4xf32> to vector<5x1xf32>
    %710 = vector.extract_strided_slice %697 {offsets = [2, 0], sizes = [1, 512], strides = [1, 1]} : vector<4x512xf32> to vector<1x512xf32>
    %711 = vector.broadcast %709 : vector<5x1xf32> to vector<5x512xf32>
    %712 = vector.broadcast %710 : vector<1x512xf32> to vector<5x512xf32>
    %713 = arith.mulf %711, %712 : vector<5x512xf32>
    %714 = arith.addf %708, %713 : vector<5x512xf32>
    %715 = vector.extract_strided_slice %20 {offsets = [0, 3], sizes = [5, 1], strides = [1, 1]} : vector<5x4xf32> to vector<5x1xf32>
    %716 = vector.extract_strided_slice %697 {offsets = [3, 0], sizes = [1, 512], strides = [1, 1]} : vector<4x512xf32> to vector<1x512xf32>
    %717 = vector.broadcast %715 : vector<5x1xf32> to vector<5x512xf32>
    %718 = vector.broadcast %716 : vector<1x512xf32> to vector<5x512xf32>
    %719 = arith.mulf %717, %718 : vector<5x512xf32>
    %720 = arith.addf %714, %719 : vector<5x512xf32>
    %721 = vector.broadcast %21 : vector<5x1xf32> to vector<5x512xf32>
    %722 = arith.addf %720, %721 : vector<5x512xf32>
    %cst_37 = arith.constant 0.000000e+00 : f32
    %723 = vector.broadcast %cst_37 : f32 to vector<5x512xf32>
    %724 = arith.maximumf %722, %723 : vector<5x512xf32>
    %725 = vector.extract_strided_slice %22 {offsets = [0, 0], sizes = [4, 1], strides = [1, 1]} : vector<4x5xf32> to vector<4x1xf32>
    %726 = vector.extract_strided_slice %724 {offsets = [0, 0], sizes = [1, 512], strides = [1, 1]} : vector<5x512xf32> to vector<1x512xf32>
    %727 = vector.broadcast %725 : vector<4x1xf32> to vector<4x512xf32>
    %728 = vector.broadcast %726 : vector<1x512xf32> to vector<4x512xf32>
    %729 = arith.mulf %727, %728 : vector<4x512xf32>
    %730 = vector.extract_strided_slice %22 {offsets = [0, 1], sizes = [4, 1], strides = [1, 1]} : vector<4x5xf32> to vector<4x1xf32>
    %731 = vector.extract_strided_slice %724 {offsets = [1, 0], sizes = [1, 512], strides = [1, 1]} : vector<5x512xf32> to vector<1x512xf32>
    %732 = vector.broadcast %730 : vector<4x1xf32> to vector<4x512xf32>
    %733 = vector.broadcast %731 : vector<1x512xf32> to vector<4x512xf32>
    %734 = arith.mulf %732, %733 : vector<4x512xf32>
    %735 = arith.addf %729, %734 : vector<4x512xf32>
    %736 = vector.extract_strided_slice %22 {offsets = [0, 2], sizes = [4, 1], strides = [1, 1]} : vector<4x5xf32> to vector<4x1xf32>
    %737 = vector.extract_strided_slice %724 {offsets = [2, 0], sizes = [1, 512], strides = [1, 1]} : vector<5x512xf32> to vector<1x512xf32>
    %738 = vector.broadcast %736 : vector<4x1xf32> to vector<4x512xf32>
    %739 = vector.broadcast %737 : vector<1x512xf32> to vector<4x512xf32>
    %740 = arith.mulf %738, %739 : vector<4x512xf32>
    %741 = arith.addf %735, %740 : vector<4x512xf32>
    %742 = vector.extract_strided_slice %22 {offsets = [0, 3], sizes = [4, 1], strides = [1, 1]} : vector<4x5xf32> to vector<4x1xf32>
    %743 = vector.extract_strided_slice %724 {offsets = [3, 0], sizes = [1, 512], strides = [1, 1]} : vector<5x512xf32> to vector<1x512xf32>
    %744 = vector.broadcast %742 : vector<4x1xf32> to vector<4x512xf32>
    %745 = vector.broadcast %743 : vector<1x512xf32> to vector<4x512xf32>
    %746 = arith.mulf %744, %745 : vector<4x512xf32>
    %747 = arith.addf %741, %746 : vector<4x512xf32>
    %748 = vector.extract_strided_slice %22 {offsets = [0, 4], sizes = [4, 1], strides = [1, 1]} : vector<4x5xf32> to vector<4x1xf32>
    %749 = vector.extract_strided_slice %724 {offsets = [4, 0], sizes = [1, 512], strides = [1, 1]} : vector<5x512xf32> to vector<1x512xf32>
    %750 = vector.broadcast %748 : vector<4x1xf32> to vector<4x512xf32>
    %751 = vector.broadcast %749 : vector<1x512xf32> to vector<4x512xf32>
    %752 = arith.mulf %750, %751 : vector<4x512xf32>
    %753 = arith.addf %747, %752 : vector<4x512xf32>
    %754 = vector.broadcast %23 : vector<4x1xf32> to vector<4x512xf32>
    %755 = arith.addf %753, %754 : vector<4x512xf32>
    %cst_38 = arith.constant 0.000000e+00 : f32
    %756 = vector.broadcast %cst_38 : f32 to vector<4x512xf32>
    %757 = arith.maximumf %755, %756 : vector<4x512xf32>
    %758 = vector.extract_strided_slice %24 {offsets = [0, 0], sizes = [6, 1], strides = [1, 1]} : vector<6x4xf32> to vector<6x1xf32>
    %759 = vector.extract_strided_slice %757 {offsets = [0, 0], sizes = [1, 512], strides = [1, 1]} : vector<4x512xf32> to vector<1x512xf32>
    %760 = vector.broadcast %758 : vector<6x1xf32> to vector<6x512xf32>
    %761 = vector.broadcast %759 : vector<1x512xf32> to vector<6x512xf32>
    %762 = arith.mulf %760, %761 : vector<6x512xf32>
    %763 = vector.extract_strided_slice %24 {offsets = [0, 1], sizes = [6, 1], strides = [1, 1]} : vector<6x4xf32> to vector<6x1xf32>
    %764 = vector.extract_strided_slice %757 {offsets = [1, 0], sizes = [1, 512], strides = [1, 1]} : vector<4x512xf32> to vector<1x512xf32>
    %765 = vector.broadcast %763 : vector<6x1xf32> to vector<6x512xf32>
    %766 = vector.broadcast %764 : vector<1x512xf32> to vector<6x512xf32>
    %767 = arith.mulf %765, %766 : vector<6x512xf32>
    %768 = arith.addf %762, %767 : vector<6x512xf32>
    %769 = vector.extract_strided_slice %24 {offsets = [0, 2], sizes = [6, 1], strides = [1, 1]} : vector<6x4xf32> to vector<6x1xf32>
    %770 = vector.extract_strided_slice %757 {offsets = [2, 0], sizes = [1, 512], strides = [1, 1]} : vector<4x512xf32> to vector<1x512xf32>
    %771 = vector.broadcast %769 : vector<6x1xf32> to vector<6x512xf32>
    %772 = vector.broadcast %770 : vector<1x512xf32> to vector<6x512xf32>
    %773 = arith.mulf %771, %772 : vector<6x512xf32>
    %774 = arith.addf %768, %773 : vector<6x512xf32>
    %775 = vector.extract_strided_slice %24 {offsets = [0, 3], sizes = [6, 1], strides = [1, 1]} : vector<6x4xf32> to vector<6x1xf32>
    %776 = vector.extract_strided_slice %757 {offsets = [3, 0], sizes = [1, 512], strides = [1, 1]} : vector<4x512xf32> to vector<1x512xf32>
    %777 = vector.broadcast %775 : vector<6x1xf32> to vector<6x512xf32>
    %778 = vector.broadcast %776 : vector<1x512xf32> to vector<6x512xf32>
    %779 = arith.mulf %777, %778 : vector<6x512xf32>
    %780 = arith.addf %774, %779 : vector<6x512xf32>
    %781 = vector.broadcast %25 : vector<6x1xf32> to vector<6x512xf32>
    %782 = arith.addf %780, %781 : vector<6x512xf32>
    %783 = arith.addf %626, %782 : vector<6x512xf32>
    %784 = arith.subf %27, %630 : vector<3x512xf32>
    %785 = vector.extract_strided_slice %10 {offsets = [0, 0], sizes = [4, 1], strides = [1, 1]} : vector<4x3xf32> to vector<4x1xf32>
    %786 = vector.extract_strided_slice %784 {offsets = [0, 0], sizes = [1, 512], strides = [1, 1]} : vector<3x512xf32> to vector<1x512xf32>
    %787 = vector.broadcast %785 : vector<4x1xf32> to vector<4x512xf32>
    %788 = vector.broadcast %786 : vector<1x512xf32> to vector<4x512xf32>
    %789 = arith.mulf %787, %788 : vector<4x512xf32>
    %790 = vector.extract_strided_slice %10 {offsets = [0, 1], sizes = [4, 1], strides = [1, 1]} : vector<4x3xf32> to vector<4x1xf32>
    %791 = vector.extract_strided_slice %784 {offsets = [1, 0], sizes = [1, 512], strides = [1, 1]} : vector<3x512xf32> to vector<1x512xf32>
    %792 = vector.broadcast %790 : vector<4x1xf32> to vector<4x512xf32>
    %793 = vector.broadcast %791 : vector<1x512xf32> to vector<4x512xf32>
    %794 = arith.mulf %792, %793 : vector<4x512xf32>
    %795 = arith.addf %789, %794 : vector<4x512xf32>
    %796 = vector.extract_strided_slice %10 {offsets = [0, 2], sizes = [4, 1], strides = [1, 1]} : vector<4x3xf32> to vector<4x1xf32>
    %797 = vector.extract_strided_slice %784 {offsets = [2, 0], sizes = [1, 512], strides = [1, 1]} : vector<3x512xf32> to vector<1x512xf32>
    %798 = vector.broadcast %796 : vector<4x1xf32> to vector<4x512xf32>
    %799 = vector.broadcast %797 : vector<1x512xf32> to vector<4x512xf32>
    %800 = arith.mulf %798, %799 : vector<4x512xf32>
    %801 = arith.addf %795, %800 : vector<4x512xf32>
    %802 = vector.broadcast %11 : vector<4x1xf32> to vector<4x512xf32>
    %803 = arith.addf %801, %802 : vector<4x512xf32>
    %cst_39 = arith.constant 0.000000e+00 : f32
    %804 = vector.broadcast %cst_39 : f32 to vector<4x512xf32>
    %805 = arith.maximumf %803, %804 : vector<4x512xf32>
    %806 = vector.extract_strided_slice %12 {offsets = [0, 0], sizes = [5, 1], strides = [1, 1]} : vector<5x4xf32> to vector<5x1xf32>
    %807 = vector.extract_strided_slice %805 {offsets = [0, 0], sizes = [1, 512], strides = [1, 1]} : vector<4x512xf32> to vector<1x512xf32>
    %808 = vector.broadcast %806 : vector<5x1xf32> to vector<5x512xf32>
    %809 = vector.broadcast %807 : vector<1x512xf32> to vector<5x512xf32>
    %810 = arith.mulf %808, %809 : vector<5x512xf32>
    %811 = vector.extract_strided_slice %12 {offsets = [0, 1], sizes = [5, 1], strides = [1, 1]} : vector<5x4xf32> to vector<5x1xf32>
    %812 = vector.extract_strided_slice %805 {offsets = [1, 0], sizes = [1, 512], strides = [1, 1]} : vector<4x512xf32> to vector<1x512xf32>
    %813 = vector.broadcast %811 : vector<5x1xf32> to vector<5x512xf32>
    %814 = vector.broadcast %812 : vector<1x512xf32> to vector<5x512xf32>
    %815 = arith.mulf %813, %814 : vector<5x512xf32>
    %816 = arith.addf %810, %815 : vector<5x512xf32>
    %817 = vector.extract_strided_slice %12 {offsets = [0, 2], sizes = [5, 1], strides = [1, 1]} : vector<5x4xf32> to vector<5x1xf32>
    %818 = vector.extract_strided_slice %805 {offsets = [2, 0], sizes = [1, 512], strides = [1, 1]} : vector<4x512xf32> to vector<1x512xf32>
    %819 = vector.broadcast %817 : vector<5x1xf32> to vector<5x512xf32>
    %820 = vector.broadcast %818 : vector<1x512xf32> to vector<5x512xf32>
    %821 = arith.mulf %819, %820 : vector<5x512xf32>
    %822 = arith.addf %816, %821 : vector<5x512xf32>
    %823 = vector.extract_strided_slice %12 {offsets = [0, 3], sizes = [5, 1], strides = [1, 1]} : vector<5x4xf32> to vector<5x1xf32>
    %824 = vector.extract_strided_slice %805 {offsets = [3, 0], sizes = [1, 512], strides = [1, 1]} : vector<4x512xf32> to vector<1x512xf32>
    %825 = vector.broadcast %823 : vector<5x1xf32> to vector<5x512xf32>
    %826 = vector.broadcast %824 : vector<1x512xf32> to vector<5x512xf32>
    %827 = arith.mulf %825, %826 : vector<5x512xf32>
    %828 = arith.addf %822, %827 : vector<5x512xf32>
    %829 = vector.broadcast %13 : vector<5x1xf32> to vector<5x512xf32>
    %830 = arith.addf %828, %829 : vector<5x512xf32>
    %cst_40 = arith.constant 0.000000e+00 : f32
    %831 = vector.broadcast %cst_40 : f32 to vector<5x512xf32>
    %832 = arith.maximumf %830, %831 : vector<5x512xf32>
    %833 = vector.extract_strided_slice %14 {offsets = [0, 0], sizes = [4, 1], strides = [1, 1]} : vector<4x5xf32> to vector<4x1xf32>
    %834 = vector.extract_strided_slice %832 {offsets = [0, 0], sizes = [1, 512], strides = [1, 1]} : vector<5x512xf32> to vector<1x512xf32>
    %835 = vector.broadcast %833 : vector<4x1xf32> to vector<4x512xf32>
    %836 = vector.broadcast %834 : vector<1x512xf32> to vector<4x512xf32>
    %837 = arith.mulf %835, %836 : vector<4x512xf32>
    %838 = vector.extract_strided_slice %14 {offsets = [0, 1], sizes = [4, 1], strides = [1, 1]} : vector<4x5xf32> to vector<4x1xf32>
    %839 = vector.extract_strided_slice %832 {offsets = [1, 0], sizes = [1, 512], strides = [1, 1]} : vector<5x512xf32> to vector<1x512xf32>
    %840 = vector.broadcast %838 : vector<4x1xf32> to vector<4x512xf32>
    %841 = vector.broadcast %839 : vector<1x512xf32> to vector<4x512xf32>
    %842 = arith.mulf %840, %841 : vector<4x512xf32>
    %843 = arith.addf %837, %842 : vector<4x512xf32>
    %844 = vector.extract_strided_slice %14 {offsets = [0, 2], sizes = [4, 1], strides = [1, 1]} : vector<4x5xf32> to vector<4x1xf32>
    %845 = vector.extract_strided_slice %832 {offsets = [2, 0], sizes = [1, 512], strides = [1, 1]} : vector<5x512xf32> to vector<1x512xf32>
    %846 = vector.broadcast %844 : vector<4x1xf32> to vector<4x512xf32>
    %847 = vector.broadcast %845 : vector<1x512xf32> to vector<4x512xf32>
    %848 = arith.mulf %846, %847 : vector<4x512xf32>
    %849 = arith.addf %843, %848 : vector<4x512xf32>
    %850 = vector.extract_strided_slice %14 {offsets = [0, 3], sizes = [4, 1], strides = [1, 1]} : vector<4x5xf32> to vector<4x1xf32>
    %851 = vector.extract_strided_slice %832 {offsets = [3, 0], sizes = [1, 512], strides = [1, 1]} : vector<5x512xf32> to vector<1x512xf32>
    %852 = vector.broadcast %850 : vector<4x1xf32> to vector<4x512xf32>
    %853 = vector.broadcast %851 : vector<1x512xf32> to vector<4x512xf32>
    %854 = arith.mulf %852, %853 : vector<4x512xf32>
    %855 = arith.addf %849, %854 : vector<4x512xf32>
    %856 = vector.extract_strided_slice %14 {offsets = [0, 4], sizes = [4, 1], strides = [1, 1]} : vector<4x5xf32> to vector<4x1xf32>
    %857 = vector.extract_strided_slice %832 {offsets = [4, 0], sizes = [1, 512], strides = [1, 1]} : vector<5x512xf32> to vector<1x512xf32>
    %858 = vector.broadcast %856 : vector<4x1xf32> to vector<4x512xf32>
    %859 = vector.broadcast %857 : vector<1x512xf32> to vector<4x512xf32>
    %860 = arith.mulf %858, %859 : vector<4x512xf32>
    %861 = arith.addf %855, %860 : vector<4x512xf32>
    %862 = vector.broadcast %15 : vector<4x1xf32> to vector<4x512xf32>
    %863 = arith.addf %861, %862 : vector<4x512xf32>
    %cst_41 = arith.constant 0.000000e+00 : f32
    %864 = vector.broadcast %cst_41 : f32 to vector<4x512xf32>
    %865 = arith.maximumf %863, %864 : vector<4x512xf32>
    %866 = vector.extract_strided_slice %16 {offsets = [0, 0], sizes = [6, 1], strides = [1, 1]} : vector<6x4xf32> to vector<6x1xf32>
    %867 = vector.extract_strided_slice %865 {offsets = [0, 0], sizes = [1, 512], strides = [1, 1]} : vector<4x512xf32> to vector<1x512xf32>
    %868 = vector.broadcast %866 : vector<6x1xf32> to vector<6x512xf32>
    %869 = vector.broadcast %867 : vector<1x512xf32> to vector<6x512xf32>
    %870 = arith.mulf %868, %869 : vector<6x512xf32>
    %871 = vector.extract_strided_slice %16 {offsets = [0, 1], sizes = [6, 1], strides = [1, 1]} : vector<6x4xf32> to vector<6x1xf32>
    %872 = vector.extract_strided_slice %865 {offsets = [1, 0], sizes = [1, 512], strides = [1, 1]} : vector<4x512xf32> to vector<1x512xf32>
    %873 = vector.broadcast %871 : vector<6x1xf32> to vector<6x512xf32>
    %874 = vector.broadcast %872 : vector<1x512xf32> to vector<6x512xf32>
    %875 = arith.mulf %873, %874 : vector<6x512xf32>
    %876 = arith.addf %870, %875 : vector<6x512xf32>
    %877 = vector.extract_strided_slice %16 {offsets = [0, 2], sizes = [6, 1], strides = [1, 1]} : vector<6x4xf32> to vector<6x1xf32>
    %878 = vector.extract_strided_slice %865 {offsets = [2, 0], sizes = [1, 512], strides = [1, 1]} : vector<4x512xf32> to vector<1x512xf32>
    %879 = vector.broadcast %877 : vector<6x1xf32> to vector<6x512xf32>
    %880 = vector.broadcast %878 : vector<1x512xf32> to vector<6x512xf32>
    %881 = arith.mulf %879, %880 : vector<6x512xf32>
    %882 = arith.addf %876, %881 : vector<6x512xf32>
    %883 = vector.extract_strided_slice %16 {offsets = [0, 3], sizes = [6, 1], strides = [1, 1]} : vector<6x4xf32> to vector<6x1xf32>
    %884 = vector.extract_strided_slice %865 {offsets = [3, 0], sizes = [1, 512], strides = [1, 1]} : vector<4x512xf32> to vector<1x512xf32>
    %885 = vector.broadcast %883 : vector<6x1xf32> to vector<6x512xf32>
    %886 = vector.broadcast %884 : vector<1x512xf32> to vector<6x512xf32>
    %887 = arith.mulf %885, %886 : vector<6x512xf32>
    %888 = arith.addf %882, %887 : vector<6x512xf32>
    %889 = vector.broadcast %17 : vector<6x1xf32> to vector<6x512xf32>
    %890 = arith.addf %888, %889 : vector<6x512xf32>
    %891 = arith.addf %783, %890 : vector<6x512xf32>
    %c3 = arith.constant 3 : index
    %c0_42 = arith.constant 0 : index
    %c0_43 = arith.constant 0 : index
    %892 = vector.load %arg2[%c3, %c0_42, %c0_43] : memref<5x4x512xf32, #tpu.memory_space<vmem>>, vector<1x4x512xf32>
    %893 = vector.shape_cast %892 : vector<1x4x512xf32> to vector<4x512xf32>
    %c3_44 = arith.constant 3 : index
    %c0_45 = arith.constant 0 : index
    %c0_46 = arith.constant 0 : index
    %894 = vector.load %arg4[%c3_44, %c0_45, %c0_46] : memref<5x3x512xf32, #tpu.memory_space<vmem>>, vector<1x3x512xf32>
    %895 = vector.shape_cast %894 : vector<1x3x512xf32> to vector<3x512xf32>
    %896 = vector.extract_strided_slice %3 {offsets = [0, 0], sizes = [8, 1], strides = [1, 1]} : vector<8x4xf32> to vector<8x1xf32>
    %897 = vector.extract_strided_slice %893 {offsets = [0, 0], sizes = [1, 512], strides = [1, 1]} : vector<4x512xf32> to vector<1x512xf32>
    %898 = vector.broadcast %896 : vector<8x1xf32> to vector<8x512xf32>
    %899 = vector.broadcast %897 : vector<1x512xf32> to vector<8x512xf32>
    %900 = arith.mulf %898, %899 : vector<8x512xf32>
    %901 = vector.extract_strided_slice %3 {offsets = [0, 1], sizes = [8, 1], strides = [1, 1]} : vector<8x4xf32> to vector<8x1xf32>
    %902 = vector.extract_strided_slice %893 {offsets = [1, 0], sizes = [1, 512], strides = [1, 1]} : vector<4x512xf32> to vector<1x512xf32>
    %903 = vector.broadcast %901 : vector<8x1xf32> to vector<8x512xf32>
    %904 = vector.broadcast %902 : vector<1x512xf32> to vector<8x512xf32>
    %905 = arith.mulf %903, %904 : vector<8x512xf32>
    %906 = arith.addf %900, %905 : vector<8x512xf32>
    %907 = vector.extract_strided_slice %3 {offsets = [0, 2], sizes = [8, 1], strides = [1, 1]} : vector<8x4xf32> to vector<8x1xf32>
    %908 = vector.extract_strided_slice %893 {offsets = [2, 0], sizes = [1, 512], strides = [1, 1]} : vector<4x512xf32> to vector<1x512xf32>
    %909 = vector.broadcast %907 : vector<8x1xf32> to vector<8x512xf32>
    %910 = vector.broadcast %908 : vector<1x512xf32> to vector<8x512xf32>
    %911 = arith.mulf %909, %910 : vector<8x512xf32>
    %912 = arith.addf %906, %911 : vector<8x512xf32>
    %913 = vector.extract_strided_slice %3 {offsets = [0, 3], sizes = [8, 1], strides = [1, 1]} : vector<8x4xf32> to vector<8x1xf32>
    %914 = vector.extract_strided_slice %893 {offsets = [3, 0], sizes = [1, 512], strides = [1, 1]} : vector<4x512xf32> to vector<1x512xf32>
    %915 = vector.broadcast %913 : vector<8x1xf32> to vector<8x512xf32>
    %916 = vector.broadcast %914 : vector<1x512xf32> to vector<8x512xf32>
    %917 = arith.mulf %915, %916 : vector<8x512xf32>
    %918 = arith.addf %912, %917 : vector<8x512xf32>
    %919 = arith.maximumf %654, %918 : vector<8x512xf32>
    %920 = vector.extract_strided_slice %5 {offsets = [0, 0], sizes = [1, 1], strides = [1, 1]} : vector<1x4xf32> to vector<1x1xf32>
    %921 = vector.extract_strided_slice %893 {offsets = [0, 0], sizes = [1, 512], strides = [1, 1]} : vector<4x512xf32> to vector<1x512xf32>
    %922 = vector.broadcast %920 : vector<1x1xf32> to vector<1x512xf32>
    %923 = arith.mulf %922, %921 : vector<1x512xf32>
    %924 = vector.extract_strided_slice %5 {offsets = [0, 1], sizes = [1, 1], strides = [1, 1]} : vector<1x4xf32> to vector<1x1xf32>
    %925 = vector.extract_strided_slice %893 {offsets = [1, 0], sizes = [1, 512], strides = [1, 1]} : vector<4x512xf32> to vector<1x512xf32>
    %926 = vector.broadcast %924 : vector<1x1xf32> to vector<1x512xf32>
    %927 = arith.mulf %926, %925 : vector<1x512xf32>
    %928 = arith.addf %923, %927 : vector<1x512xf32>
    %929 = vector.extract_strided_slice %5 {offsets = [0, 2], sizes = [1, 1], strides = [1, 1]} : vector<1x4xf32> to vector<1x1xf32>
    %930 = vector.extract_strided_slice %893 {offsets = [2, 0], sizes = [1, 512], strides = [1, 1]} : vector<4x512xf32> to vector<1x512xf32>
    %931 = vector.broadcast %929 : vector<1x1xf32> to vector<1x512xf32>
    %932 = arith.mulf %931, %930 : vector<1x512xf32>
    %933 = arith.addf %928, %932 : vector<1x512xf32>
    %934 = vector.extract_strided_slice %5 {offsets = [0, 3], sizes = [1, 1], strides = [1, 1]} : vector<1x4xf32> to vector<1x1xf32>
    %935 = vector.extract_strided_slice %893 {offsets = [3, 0], sizes = [1, 512], strides = [1, 1]} : vector<4x512xf32> to vector<1x512xf32>
    %936 = vector.broadcast %934 : vector<1x1xf32> to vector<1x512xf32>
    %937 = arith.mulf %936, %935 : vector<1x512xf32>
    %938 = arith.addf %933, %937 : vector<1x512xf32>
    %939 = arith.addf %938, %73 : vector<1x512xf32>
    %940 = arith.maximumf %675, %939 : vector<1x512xf32>
    %941 = arith.minimumf %676, %939 : vector<1x512xf32>
    %942 = vector.extract_strided_slice %18 {offsets = [0, 0], sizes = [4, 1], strides = [1, 1]} : vector<4x3xf32> to vector<4x1xf32>
    %943 = vector.extract_strided_slice %895 {offsets = [0, 0], sizes = [1, 512], strides = [1, 1]} : vector<3x512xf32> to vector<1x512xf32>
    %944 = vector.broadcast %942 : vector<4x1xf32> to vector<4x512xf32>
    %945 = vector.broadcast %943 : vector<1x512xf32> to vector<4x512xf32>
    %946 = arith.mulf %944, %945 : vector<4x512xf32>
    %947 = vector.extract_strided_slice %18 {offsets = [0, 1], sizes = [4, 1], strides = [1, 1]} : vector<4x3xf32> to vector<4x1xf32>
    %948 = vector.extract_strided_slice %895 {offsets = [1, 0], sizes = [1, 512], strides = [1, 1]} : vector<3x512xf32> to vector<1x512xf32>
    %949 = vector.broadcast %947 : vector<4x1xf32> to vector<4x512xf32>
    %950 = vector.broadcast %948 : vector<1x512xf32> to vector<4x512xf32>
    %951 = arith.mulf %949, %950 : vector<4x512xf32>
    %952 = arith.addf %946, %951 : vector<4x512xf32>
    %953 = vector.extract_strided_slice %18 {offsets = [0, 2], sizes = [4, 1], strides = [1, 1]} : vector<4x3xf32> to vector<4x1xf32>
    %954 = vector.extract_strided_slice %895 {offsets = [2, 0], sizes = [1, 512], strides = [1, 1]} : vector<3x512xf32> to vector<1x512xf32>
    %955 = vector.broadcast %953 : vector<4x1xf32> to vector<4x512xf32>
    %956 = vector.broadcast %954 : vector<1x512xf32> to vector<4x512xf32>
    %957 = arith.mulf %955, %956 : vector<4x512xf32>
    %958 = arith.addf %952, %957 : vector<4x512xf32>
    %959 = vector.broadcast %19 : vector<4x1xf32> to vector<4x512xf32>
    %960 = arith.addf %958, %959 : vector<4x512xf32>
    %cst_47 = arith.constant 0.000000e+00 : f32
    %961 = vector.broadcast %cst_47 : f32 to vector<4x512xf32>
    %962 = arith.maximumf %960, %961 : vector<4x512xf32>
    %963 = vector.extract_strided_slice %20 {offsets = [0, 0], sizes = [5, 1], strides = [1, 1]} : vector<5x4xf32> to vector<5x1xf32>
    %964 = vector.extract_strided_slice %962 {offsets = [0, 0], sizes = [1, 512], strides = [1, 1]} : vector<4x512xf32> to vector<1x512xf32>
    %965 = vector.broadcast %963 : vector<5x1xf32> to vector<5x512xf32>
    %966 = vector.broadcast %964 : vector<1x512xf32> to vector<5x512xf32>
    %967 = arith.mulf %965, %966 : vector<5x512xf32>
    %968 = vector.extract_strided_slice %20 {offsets = [0, 1], sizes = [5, 1], strides = [1, 1]} : vector<5x4xf32> to vector<5x1xf32>
    %969 = vector.extract_strided_slice %962 {offsets = [1, 0], sizes = [1, 512], strides = [1, 1]} : vector<4x512xf32> to vector<1x512xf32>
    %970 = vector.broadcast %968 : vector<5x1xf32> to vector<5x512xf32>
    %971 = vector.broadcast %969 : vector<1x512xf32> to vector<5x512xf32>
    %972 = arith.mulf %970, %971 : vector<5x512xf32>
    %973 = arith.addf %967, %972 : vector<5x512xf32>
    %974 = vector.extract_strided_slice %20 {offsets = [0, 2], sizes = [5, 1], strides = [1, 1]} : vector<5x4xf32> to vector<5x1xf32>
    %975 = vector.extract_strided_slice %962 {offsets = [2, 0], sizes = [1, 512], strides = [1, 1]} : vector<4x512xf32> to vector<1x512xf32>
    %976 = vector.broadcast %974 : vector<5x1xf32> to vector<5x512xf32>
    %977 = vector.broadcast %975 : vector<1x512xf32> to vector<5x512xf32>
    %978 = arith.mulf %976, %977 : vector<5x512xf32>
    %979 = arith.addf %973, %978 : vector<5x512xf32>
    %980 = vector.extract_strided_slice %20 {offsets = [0, 3], sizes = [5, 1], strides = [1, 1]} : vector<5x4xf32> to vector<5x1xf32>
    %981 = vector.extract_strided_slice %962 {offsets = [3, 0], sizes = [1, 512], strides = [1, 1]} : vector<4x512xf32> to vector<1x512xf32>
    %982 = vector.broadcast %980 : vector<5x1xf32> to vector<5x512xf32>
    %983 = vector.broadcast %981 : vector<1x512xf32> to vector<5x512xf32>
    %984 = arith.mulf %982, %983 : vector<5x512xf32>
    %985 = arith.addf %979, %984 : vector<5x512xf32>
    %986 = vector.broadcast %21 : vector<5x1xf32> to vector<5x512xf32>
    %987 = arith.addf %985, %986 : vector<5x512xf32>
    %cst_48 = arith.constant 0.000000e+00 : f32
    %988 = vector.broadcast %cst_48 : f32 to vector<5x512xf32>
    %989 = arith.maximumf %987, %988 : vector<5x512xf32>
    %990 = vector.extract_strided_slice %22 {offsets = [0, 0], sizes = [4, 1], strides = [1, 1]} : vector<4x5xf32> to vector<4x1xf32>
    %991 = vector.extract_strided_slice %989 {offsets = [0, 0], sizes = [1, 512], strides = [1, 1]} : vector<5x512xf32> to vector<1x512xf32>
    %992 = vector.broadcast %990 : vector<4x1xf32> to vector<4x512xf32>
    %993 = vector.broadcast %991 : vector<1x512xf32> to vector<4x512xf32>
    %994 = arith.mulf %992, %993 : vector<4x512xf32>
    %995 = vector.extract_strided_slice %22 {offsets = [0, 1], sizes = [4, 1], strides = [1, 1]} : vector<4x5xf32> to vector<4x1xf32>
    %996 = vector.extract_strided_slice %989 {offsets = [1, 0], sizes = [1, 512], strides = [1, 1]} : vector<5x512xf32> to vector<1x512xf32>
    %997 = vector.broadcast %995 : vector<4x1xf32> to vector<4x512xf32>
    %998 = vector.broadcast %996 : vector<1x512xf32> to vector<4x512xf32>
    %999 = arith.mulf %997, %998 : vector<4x512xf32>
    %1000 = arith.addf %994, %999 : vector<4x512xf32>
    %1001 = vector.extract_strided_slice %22 {offsets = [0, 2], sizes = [4, 1], strides = [1, 1]} : vector<4x5xf32> to vector<4x1xf32>
    %1002 = vector.extract_strided_slice %989 {offsets = [2, 0], sizes = [1, 512], strides = [1, 1]} : vector<5x512xf32> to vector<1x512xf32>
    %1003 = vector.broadcast %1001 : vector<4x1xf32> to vector<4x512xf32>
    %1004 = vector.broadcast %1002 : vector<1x512xf32> to vector<4x512xf32>
    %1005 = arith.mulf %1003, %1004 : vector<4x512xf32>
    %1006 = arith.addf %1000, %1005 : vector<4x512xf32>
    %1007 = vector.extract_strided_slice %22 {offsets = [0, 3], sizes = [4, 1], strides = [1, 1]} : vector<4x5xf32> to vector<4x1xf32>
    %1008 = vector.extract_strided_slice %989 {offsets = [3, 0], sizes = [1, 512], strides = [1, 1]} : vector<5x512xf32> to vector<1x512xf32>
    %1009 = vector.broadcast %1007 : vector<4x1xf32> to vector<4x512xf32>
    %1010 = vector.broadcast %1008 : vector<1x512xf32> to vector<4x512xf32>
    %1011 = arith.mulf %1009, %1010 : vector<4x512xf32>
    %1012 = arith.addf %1006, %1011 : vector<4x512xf32>
    %1013 = vector.extract_strided_slice %22 {offsets = [0, 4], sizes = [4, 1], strides = [1, 1]} : vector<4x5xf32> to vector<4x1xf32>
    %1014 = vector.extract_strided_slice %989 {offsets = [4, 0], sizes = [1, 512], strides = [1, 1]} : vector<5x512xf32> to vector<1x512xf32>
    %1015 = vector.broadcast %1013 : vector<4x1xf32> to vector<4x512xf32>
    %1016 = vector.broadcast %1014 : vector<1x512xf32> to vector<4x512xf32>
    %1017 = arith.mulf %1015, %1016 : vector<4x512xf32>
    %1018 = arith.addf %1012, %1017 : vector<4x512xf32>
    %1019 = vector.broadcast %23 : vector<4x1xf32> to vector<4x512xf32>
    %1020 = arith.addf %1018, %1019 : vector<4x512xf32>
    %cst_49 = arith.constant 0.000000e+00 : f32
    %1021 = vector.broadcast %cst_49 : f32 to vector<4x512xf32>
    %1022 = arith.maximumf %1020, %1021 : vector<4x512xf32>
    %1023 = vector.extract_strided_slice %24 {offsets = [0, 0], sizes = [6, 1], strides = [1, 1]} : vector<6x4xf32> to vector<6x1xf32>
    %1024 = vector.extract_strided_slice %1022 {offsets = [0, 0], sizes = [1, 512], strides = [1, 1]} : vector<4x512xf32> to vector<1x512xf32>
    %1025 = vector.broadcast %1023 : vector<6x1xf32> to vector<6x512xf32>
    %1026 = vector.broadcast %1024 : vector<1x512xf32> to vector<6x512xf32>
    %1027 = arith.mulf %1025, %1026 : vector<6x512xf32>
    %1028 = vector.extract_strided_slice %24 {offsets = [0, 1], sizes = [6, 1], strides = [1, 1]} : vector<6x4xf32> to vector<6x1xf32>
    %1029 = vector.extract_strided_slice %1022 {offsets = [1, 0], sizes = [1, 512], strides = [1, 1]} : vector<4x512xf32> to vector<1x512xf32>
    %1030 = vector.broadcast %1028 : vector<6x1xf32> to vector<6x512xf32>
    %1031 = vector.broadcast %1029 : vector<1x512xf32> to vector<6x512xf32>
    %1032 = arith.mulf %1030, %1031 : vector<6x512xf32>
    %1033 = arith.addf %1027, %1032 : vector<6x512xf32>
    %1034 = vector.extract_strided_slice %24 {offsets = [0, 2], sizes = [6, 1], strides = [1, 1]} : vector<6x4xf32> to vector<6x1xf32>
    %1035 = vector.extract_strided_slice %1022 {offsets = [2, 0], sizes = [1, 512], strides = [1, 1]} : vector<4x512xf32> to vector<1x512xf32>
    %1036 = vector.broadcast %1034 : vector<6x1xf32> to vector<6x512xf32>
    %1037 = vector.broadcast %1035 : vector<1x512xf32> to vector<6x512xf32>
    %1038 = arith.mulf %1036, %1037 : vector<6x512xf32>
    %1039 = arith.addf %1033, %1038 : vector<6x512xf32>
    %1040 = vector.extract_strided_slice %24 {offsets = [0, 3], sizes = [6, 1], strides = [1, 1]} : vector<6x4xf32> to vector<6x1xf32>
    %1041 = vector.extract_strided_slice %1022 {offsets = [3, 0], sizes = [1, 512], strides = [1, 1]} : vector<4x512xf32> to vector<1x512xf32>
    %1042 = vector.broadcast %1040 : vector<6x1xf32> to vector<6x512xf32>
    %1043 = vector.broadcast %1041 : vector<1x512xf32> to vector<6x512xf32>
    %1044 = arith.mulf %1042, %1043 : vector<6x512xf32>
    %1045 = arith.addf %1039, %1044 : vector<6x512xf32>
    %1046 = vector.broadcast %25 : vector<6x1xf32> to vector<6x512xf32>
    %1047 = arith.addf %1045, %1046 : vector<6x512xf32>
    %1048 = arith.addf %891, %1047 : vector<6x512xf32>
    %1049 = arith.subf %27, %895 : vector<3x512xf32>
    %1050 = vector.extract_strided_slice %10 {offsets = [0, 0], sizes = [4, 1], strides = [1, 1]} : vector<4x3xf32> to vector<4x1xf32>
    %1051 = vector.extract_strided_slice %1049 {offsets = [0, 0], sizes = [1, 512], strides = [1, 1]} : vector<3x512xf32> to vector<1x512xf32>
    %1052 = vector.broadcast %1050 : vector<4x1xf32> to vector<4x512xf32>
    %1053 = vector.broadcast %1051 : vector<1x512xf32> to vector<4x512xf32>
    %1054 = arith.mulf %1052, %1053 : vector<4x512xf32>
    %1055 = vector.extract_strided_slice %10 {offsets = [0, 1], sizes = [4, 1], strides = [1, 1]} : vector<4x3xf32> to vector<4x1xf32>
    %1056 = vector.extract_strided_slice %1049 {offsets = [1, 0], sizes = [1, 512], strides = [1, 1]} : vector<3x512xf32> to vector<1x512xf32>
    %1057 = vector.broadcast %1055 : vector<4x1xf32> to vector<4x512xf32>
    %1058 = vector.broadcast %1056 : vector<1x512xf32> to vector<4x512xf32>
    %1059 = arith.mulf %1057, %1058 : vector<4x512xf32>
    %1060 = arith.addf %1054, %1059 : vector<4x512xf32>
    %1061 = vector.extract_strided_slice %10 {offsets = [0, 2], sizes = [4, 1], strides = [1, 1]} : vector<4x3xf32> to vector<4x1xf32>
    %1062 = vector.extract_strided_slice %1049 {offsets = [2, 0], sizes = [1, 512], strides = [1, 1]} : vector<3x512xf32> to vector<1x512xf32>
    %1063 = vector.broadcast %1061 : vector<4x1xf32> to vector<4x512xf32>
    %1064 = vector.broadcast %1062 : vector<1x512xf32> to vector<4x512xf32>
    %1065 = arith.mulf %1063, %1064 : vector<4x512xf32>
    %1066 = arith.addf %1060, %1065 : vector<4x512xf32>
    %1067 = vector.broadcast %11 : vector<4x1xf32> to vector<4x512xf32>
    %1068 = arith.addf %1066, %1067 : vector<4x512xf32>
    %cst_50 = arith.constant 0.000000e+00 : f32
    %1069 = vector.broadcast %cst_50 : f32 to vector<4x512xf32>
    %1070 = arith.maximumf %1068, %1069 : vector<4x512xf32>
    %1071 = vector.extract_strided_slice %12 {offsets = [0, 0], sizes = [5, 1], strides = [1, 1]} : vector<5x4xf32> to vector<5x1xf32>
    %1072 = vector.extract_strided_slice %1070 {offsets = [0, 0], sizes = [1, 512], strides = [1, 1]} : vector<4x512xf32> to vector<1x512xf32>
    %1073 = vector.broadcast %1071 : vector<5x1xf32> to vector<5x512xf32>
    %1074 = vector.broadcast %1072 : vector<1x512xf32> to vector<5x512xf32>
    %1075 = arith.mulf %1073, %1074 : vector<5x512xf32>
    %1076 = vector.extract_strided_slice %12 {offsets = [0, 1], sizes = [5, 1], strides = [1, 1]} : vector<5x4xf32> to vector<5x1xf32>
    %1077 = vector.extract_strided_slice %1070 {offsets = [1, 0], sizes = [1, 512], strides = [1, 1]} : vector<4x512xf32> to vector<1x512xf32>
    %1078 = vector.broadcast %1076 : vector<5x1xf32> to vector<5x512xf32>
    %1079 = vector.broadcast %1077 : vector<1x512xf32> to vector<5x512xf32>
    %1080 = arith.mulf %1078, %1079 : vector<5x512xf32>
    %1081 = arith.addf %1075, %1080 : vector<5x512xf32>
    %1082 = vector.extract_strided_slice %12 {offsets = [0, 2], sizes = [5, 1], strides = [1, 1]} : vector<5x4xf32> to vector<5x1xf32>
    %1083 = vector.extract_strided_slice %1070 {offsets = [2, 0], sizes = [1, 512], strides = [1, 1]} : vector<4x512xf32> to vector<1x512xf32>
    %1084 = vector.broadcast %1082 : vector<5x1xf32> to vector<5x512xf32>
    %1085 = vector.broadcast %1083 : vector<1x512xf32> to vector<5x512xf32>
    %1086 = arith.mulf %1084, %1085 : vector<5x512xf32>
    %1087 = arith.addf %1081, %1086 : vector<5x512xf32>
    %1088 = vector.extract_strided_slice %12 {offsets = [0, 3], sizes = [5, 1], strides = [1, 1]} : vector<5x4xf32> to vector<5x1xf32>
    %1089 = vector.extract_strided_slice %1070 {offsets = [3, 0], sizes = [1, 512], strides = [1, 1]} : vector<4x512xf32> to vector<1x512xf32>
    %1090 = vector.broadcast %1088 : vector<5x1xf32> to vector<5x512xf32>
    %1091 = vector.broadcast %1089 : vector<1x512xf32> to vector<5x512xf32>
    %1092 = arith.mulf %1090, %1091 : vector<5x512xf32>
    %1093 = arith.addf %1087, %1092 : vector<5x512xf32>
    %1094 = vector.broadcast %13 : vector<5x1xf32> to vector<5x512xf32>
    %1095 = arith.addf %1093, %1094 : vector<5x512xf32>
    %cst_51 = arith.constant 0.000000e+00 : f32
    %1096 = vector.broadcast %cst_51 : f32 to vector<5x512xf32>
    %1097 = arith.maximumf %1095, %1096 : vector<5x512xf32>
    %1098 = vector.extract_strided_slice %14 {offsets = [0, 0], sizes = [4, 1], strides = [1, 1]} : vector<4x5xf32> to vector<4x1xf32>
    %1099 = vector.extract_strided_slice %1097 {offsets = [0, 0], sizes = [1, 512], strides = [1, 1]} : vector<5x512xf32> to vector<1x512xf32>
    %1100 = vector.broadcast %1098 : vector<4x1xf32> to vector<4x512xf32>
    %1101 = vector.broadcast %1099 : vector<1x512xf32> to vector<4x512xf32>
    %1102 = arith.mulf %1100, %1101 : vector<4x512xf32>
    %1103 = vector.extract_strided_slice %14 {offsets = [0, 1], sizes = [4, 1], strides = [1, 1]} : vector<4x5xf32> to vector<4x1xf32>
    %1104 = vector.extract_strided_slice %1097 {offsets = [1, 0], sizes = [1, 512], strides = [1, 1]} : vector<5x512xf32> to vector<1x512xf32>
    %1105 = vector.broadcast %1103 : vector<4x1xf32> to vector<4x512xf32>
    %1106 = vector.broadcast %1104 : vector<1x512xf32> to vector<4x512xf32>
    %1107 = arith.mulf %1105, %1106 : vector<4x512xf32>
    %1108 = arith.addf %1102, %1107 : vector<4x512xf32>
    %1109 = vector.extract_strided_slice %14 {offsets = [0, 2], sizes = [4, 1], strides = [1, 1]} : vector<4x5xf32> to vector<4x1xf32>
    %1110 = vector.extract_strided_slice %1097 {offsets = [2, 0], sizes = [1, 512], strides = [1, 1]} : vector<5x512xf32> to vector<1x512xf32>
    %1111 = vector.broadcast %1109 : vector<4x1xf32> to vector<4x512xf32>
    %1112 = vector.broadcast %1110 : vector<1x512xf32> to vector<4x512xf32>
    %1113 = arith.mulf %1111, %1112 : vector<4x512xf32>
    %1114 = arith.addf %1108, %1113 : vector<4x512xf32>
    %1115 = vector.extract_strided_slice %14 {offsets = [0, 3], sizes = [4, 1], strides = [1, 1]} : vector<4x5xf32> to vector<4x1xf32>
    %1116 = vector.extract_strided_slice %1097 {offsets = [3, 0], sizes = [1, 512], strides = [1, 1]} : vector<5x512xf32> to vector<1x512xf32>
    %1117 = vector.broadcast %1115 : vector<4x1xf32> to vector<4x512xf32>
    %1118 = vector.broadcast %1116 : vector<1x512xf32> to vector<4x512xf32>
    %1119 = arith.mulf %1117, %1118 : vector<4x512xf32>
    %1120 = arith.addf %1114, %1119 : vector<4x512xf32>
    %1121 = vector.extract_strided_slice %14 {offsets = [0, 4], sizes = [4, 1], strides = [1, 1]} : vector<4x5xf32> to vector<4x1xf32>
    %1122 = vector.extract_strided_slice %1097 {offsets = [4, 0], sizes = [1, 512], strides = [1, 1]} : vector<5x512xf32> to vector<1x512xf32>
    %1123 = vector.broadcast %1121 : vector<4x1xf32> to vector<4x512xf32>
    %1124 = vector.broadcast %1122 : vector<1x512xf32> to vector<4x512xf32>
    %1125 = arith.mulf %1123, %1124 : vector<4x512xf32>
    %1126 = arith.addf %1120, %1125 : vector<4x512xf32>
    %1127 = vector.broadcast %15 : vector<4x1xf32> to vector<4x512xf32>
    %1128 = arith.addf %1126, %1127 : vector<4x512xf32>
    %cst_52 = arith.constant 0.000000e+00 : f32
    %1129 = vector.broadcast %cst_52 : f32 to vector<4x512xf32>
    %1130 = arith.maximumf %1128, %1129 : vector<4x512xf32>
    %1131 = vector.extract_strided_slice %16 {offsets = [0, 0], sizes = [6, 1], strides = [1, 1]} : vector<6x4xf32> to vector<6x1xf32>
    %1132 = vector.extract_strided_slice %1130 {offsets = [0, 0], sizes = [1, 512], strides = [1, 1]} : vector<4x512xf32> to vector<1x512xf32>
    %1133 = vector.broadcast %1131 : vector<6x1xf32> to vector<6x512xf32>
    %1134 = vector.broadcast %1132 : vector<1x512xf32> to vector<6x512xf32>
    %1135 = arith.mulf %1133, %1134 : vector<6x512xf32>
    %1136 = vector.extract_strided_slice %16 {offsets = [0, 1], sizes = [6, 1], strides = [1, 1]} : vector<6x4xf32> to vector<6x1xf32>
    %1137 = vector.extract_strided_slice %1130 {offsets = [1, 0], sizes = [1, 512], strides = [1, 1]} : vector<4x512xf32> to vector<1x512xf32>
    %1138 = vector.broadcast %1136 : vector<6x1xf32> to vector<6x512xf32>
    %1139 = vector.broadcast %1137 : vector<1x512xf32> to vector<6x512xf32>
    %1140 = arith.mulf %1138, %1139 : vector<6x512xf32>
    %1141 = arith.addf %1135, %1140 : vector<6x512xf32>
    %1142 = vector.extract_strided_slice %16 {offsets = [0, 2], sizes = [6, 1], strides = [1, 1]} : vector<6x4xf32> to vector<6x1xf32>
    %1143 = vector.extract_strided_slice %1130 {offsets = [2, 0], sizes = [1, 512], strides = [1, 1]} : vector<4x512xf32> to vector<1x512xf32>
    %1144 = vector.broadcast %1142 : vector<6x1xf32> to vector<6x512xf32>
    %1145 = vector.broadcast %1143 : vector<1x512xf32> to vector<6x512xf32>
    %1146 = arith.mulf %1144, %1145 : vector<6x512xf32>
    %1147 = arith.addf %1141, %1146 : vector<6x512xf32>
    %1148 = vector.extract_strided_slice %16 {offsets = [0, 3], sizes = [6, 1], strides = [1, 1]} : vector<6x4xf32> to vector<6x1xf32>
    %1149 = vector.extract_strided_slice %1130 {offsets = [3, 0], sizes = [1, 512], strides = [1, 1]} : vector<4x512xf32> to vector<1x512xf32>
    %1150 = vector.broadcast %1148 : vector<6x1xf32> to vector<6x512xf32>
    %1151 = vector.broadcast %1149 : vector<1x512xf32> to vector<6x512xf32>
    %1152 = arith.mulf %1150, %1151 : vector<6x512xf32>
    %1153 = arith.addf %1147, %1152 : vector<6x512xf32>
    %1154 = vector.broadcast %17 : vector<6x1xf32> to vector<6x512xf32>
    %1155 = arith.addf %1153, %1154 : vector<6x512xf32>
    %1156 = arith.addf %1048, %1155 : vector<6x512xf32>
    %c4 = arith.constant 4 : index
    %c0_53 = arith.constant 0 : index
    %c0_54 = arith.constant 0 : index
    %1157 = vector.load %arg2[%c4, %c0_53, %c0_54] : memref<5x4x512xf32, #tpu.memory_space<vmem>>, vector<1x4x512xf32>
    %1158 = vector.shape_cast %1157 : vector<1x4x512xf32> to vector<4x512xf32>
    %c4_55 = arith.constant 4 : index
    %c0_56 = arith.constant 0 : index
    %c0_57 = arith.constant 0 : index
    %1159 = vector.load %arg4[%c4_55, %c0_56, %c0_57] : memref<5x3x512xf32, #tpu.memory_space<vmem>>, vector<1x3x512xf32>
    %1160 = vector.shape_cast %1159 : vector<1x3x512xf32> to vector<3x512xf32>
    %1161 = vector.extract_strided_slice %3 {offsets = [0, 0], sizes = [8, 1], strides = [1, 1]} : vector<8x4xf32> to vector<8x1xf32>
    %1162 = vector.extract_strided_slice %1158 {offsets = [0, 0], sizes = [1, 512], strides = [1, 1]} : vector<4x512xf32> to vector<1x512xf32>
    %1163 = vector.broadcast %1161 : vector<8x1xf32> to vector<8x512xf32>
    %1164 = vector.broadcast %1162 : vector<1x512xf32> to vector<8x512xf32>
    %1165 = arith.mulf %1163, %1164 : vector<8x512xf32>
    %1166 = vector.extract_strided_slice %3 {offsets = [0, 1], sizes = [8, 1], strides = [1, 1]} : vector<8x4xf32> to vector<8x1xf32>
    %1167 = vector.extract_strided_slice %1158 {offsets = [1, 0], sizes = [1, 512], strides = [1, 1]} : vector<4x512xf32> to vector<1x512xf32>
    %1168 = vector.broadcast %1166 : vector<8x1xf32> to vector<8x512xf32>
    %1169 = vector.broadcast %1167 : vector<1x512xf32> to vector<8x512xf32>
    %1170 = arith.mulf %1168, %1169 : vector<8x512xf32>
    %1171 = arith.addf %1165, %1170 : vector<8x512xf32>
    %1172 = vector.extract_strided_slice %3 {offsets = [0, 2], sizes = [8, 1], strides = [1, 1]} : vector<8x4xf32> to vector<8x1xf32>
    %1173 = vector.extract_strided_slice %1158 {offsets = [2, 0], sizes = [1, 512], strides = [1, 1]} : vector<4x512xf32> to vector<1x512xf32>
    %1174 = vector.broadcast %1172 : vector<8x1xf32> to vector<8x512xf32>
    %1175 = vector.broadcast %1173 : vector<1x512xf32> to vector<8x512xf32>
    %1176 = arith.mulf %1174, %1175 : vector<8x512xf32>
    %1177 = arith.addf %1171, %1176 : vector<8x512xf32>
    %1178 = vector.extract_strided_slice %3 {offsets = [0, 3], sizes = [8, 1], strides = [1, 1]} : vector<8x4xf32> to vector<8x1xf32>
    %1179 = vector.extract_strided_slice %1158 {offsets = [3, 0], sizes = [1, 512], strides = [1, 1]} : vector<4x512xf32> to vector<1x512xf32>
    %1180 = vector.broadcast %1178 : vector<8x1xf32> to vector<8x512xf32>
    %1181 = vector.broadcast %1179 : vector<1x512xf32> to vector<8x512xf32>
    %1182 = arith.mulf %1180, %1181 : vector<8x512xf32>
    %1183 = arith.addf %1177, %1182 : vector<8x512xf32>
    %1184 = arith.maximumf %919, %1183 : vector<8x512xf32>
    %1185 = vector.extract_strided_slice %5 {offsets = [0, 0], sizes = [1, 1], strides = [1, 1]} : vector<1x4xf32> to vector<1x1xf32>
    %1186 = vector.extract_strided_slice %1158 {offsets = [0, 0], sizes = [1, 512], strides = [1, 1]} : vector<4x512xf32> to vector<1x512xf32>
    %1187 = vector.broadcast %1185 : vector<1x1xf32> to vector<1x512xf32>
    %1188 = arith.mulf %1187, %1186 : vector<1x512xf32>
    %1189 = vector.extract_strided_slice %5 {offsets = [0, 1], sizes = [1, 1], strides = [1, 1]} : vector<1x4xf32> to vector<1x1xf32>
    %1190 = vector.extract_strided_slice %1158 {offsets = [1, 0], sizes = [1, 512], strides = [1, 1]} : vector<4x512xf32> to vector<1x512xf32>
    %1191 = vector.broadcast %1189 : vector<1x1xf32> to vector<1x512xf32>
    %1192 = arith.mulf %1191, %1190 : vector<1x512xf32>
    %1193 = arith.addf %1188, %1192 : vector<1x512xf32>
    %1194 = vector.extract_strided_slice %5 {offsets = [0, 2], sizes = [1, 1], strides = [1, 1]} : vector<1x4xf32> to vector<1x1xf32>
    %1195 = vector.extract_strided_slice %1158 {offsets = [2, 0], sizes = [1, 512], strides = [1, 1]} : vector<4x512xf32> to vector<1x512xf32>
    %1196 = vector.broadcast %1194 : vector<1x1xf32> to vector<1x512xf32>
    %1197 = arith.mulf %1196, %1195 : vector<1x512xf32>
    %1198 = arith.addf %1193, %1197 : vector<1x512xf32>
    %1199 = vector.extract_strided_slice %5 {offsets = [0, 3], sizes = [1, 1], strides = [1, 1]} : vector<1x4xf32> to vector<1x1xf32>
    %1200 = vector.extract_strided_slice %1158 {offsets = [3, 0], sizes = [1, 512], strides = [1, 1]} : vector<4x512xf32> to vector<1x512xf32>
    %1201 = vector.broadcast %1199 : vector<1x1xf32> to vector<1x512xf32>
    %1202 = arith.mulf %1201, %1200 : vector<1x512xf32>
    %1203 = arith.addf %1198, %1202 : vector<1x512xf32>
    %1204 = arith.addf %1203, %73 : vector<1x512xf32>
    %1205 = arith.maximumf %940, %1204 : vector<1x512xf32>
    %1206 = arith.minimumf %941, %1204 : vector<1x512xf32>
    %1207 = vector.extract_strided_slice %18 {offsets = [0, 0], sizes = [4, 1], strides = [1, 1]} : vector<4x3xf32> to vector<4x1xf32>
    %1208 = vector.extract_strided_slice %1160 {offsets = [0, 0], sizes = [1, 512], strides = [1, 1]} : vector<3x512xf32> to vector<1x512xf32>
    %1209 = vector.broadcast %1207 : vector<4x1xf32> to vector<4x512xf32>
    %1210 = vector.broadcast %1208 : vector<1x512xf32> to vector<4x512xf32>
    %1211 = arith.mulf %1209, %1210 : vector<4x512xf32>
    %1212 = vector.extract_strided_slice %18 {offsets = [0, 1], sizes = [4, 1], strides = [1, 1]} : vector<4x3xf32> to vector<4x1xf32>
    %1213 = vector.extract_strided_slice %1160 {offsets = [1, 0], sizes = [1, 512], strides = [1, 1]} : vector<3x512xf32> to vector<1x512xf32>
    %1214 = vector.broadcast %1212 : vector<4x1xf32> to vector<4x512xf32>
    %1215 = vector.broadcast %1213 : vector<1x512xf32> to vector<4x512xf32>
    %1216 = arith.mulf %1214, %1215 : vector<4x512xf32>
    %1217 = arith.addf %1211, %1216 : vector<4x512xf32>
    %1218 = vector.extract_strided_slice %18 {offsets = [0, 2], sizes = [4, 1], strides = [1, 1]} : vector<4x3xf32> to vector<4x1xf32>
    %1219 = vector.extract_strided_slice %1160 {offsets = [2, 0], sizes = [1, 512], strides = [1, 1]} : vector<3x512xf32> to vector<1x512xf32>
    %1220 = vector.broadcast %1218 : vector<4x1xf32> to vector<4x512xf32>
    %1221 = vector.broadcast %1219 : vector<1x512xf32> to vector<4x512xf32>
    %1222 = arith.mulf %1220, %1221 : vector<4x512xf32>
    %1223 = arith.addf %1217, %1222 : vector<4x512xf32>
    %1224 = vector.broadcast %19 : vector<4x1xf32> to vector<4x512xf32>
    %1225 = arith.addf %1223, %1224 : vector<4x512xf32>
    %cst_58 = arith.constant 0.000000e+00 : f32
    %1226 = vector.broadcast %cst_58 : f32 to vector<4x512xf32>
    %1227 = arith.maximumf %1225, %1226 : vector<4x512xf32>
    %1228 = vector.extract_strided_slice %20 {offsets = [0, 0], sizes = [5, 1], strides = [1, 1]} : vector<5x4xf32> to vector<5x1xf32>
    %1229 = vector.extract_strided_slice %1227 {offsets = [0, 0], sizes = [1, 512], strides = [1, 1]} : vector<4x512xf32> to vector<1x512xf32>
    %1230 = vector.broadcast %1228 : vector<5x1xf32> to vector<5x512xf32>
    %1231 = vector.broadcast %1229 : vector<1x512xf32> to vector<5x512xf32>
    %1232 = arith.mulf %1230, %1231 : vector<5x512xf32>
    %1233 = vector.extract_strided_slice %20 {offsets = [0, 1], sizes = [5, 1], strides = [1, 1]} : vector<5x4xf32> to vector<5x1xf32>
    %1234 = vector.extract_strided_slice %1227 {offsets = [1, 0], sizes = [1, 512], strides = [1, 1]} : vector<4x512xf32> to vector<1x512xf32>
    %1235 = vector.broadcast %1233 : vector<5x1xf32> to vector<5x512xf32>
    %1236 = vector.broadcast %1234 : vector<1x512xf32> to vector<5x512xf32>
    %1237 = arith.mulf %1235, %1236 : vector<5x512xf32>
    %1238 = arith.addf %1232, %1237 : vector<5x512xf32>
    %1239 = vector.extract_strided_slice %20 {offsets = [0, 2], sizes = [5, 1], strides = [1, 1]} : vector<5x4xf32> to vector<5x1xf32>
    %1240 = vector.extract_strided_slice %1227 {offsets = [2, 0], sizes = [1, 512], strides = [1, 1]} : vector<4x512xf32> to vector<1x512xf32>
    %1241 = vector.broadcast %1239 : vector<5x1xf32> to vector<5x512xf32>
    %1242 = vector.broadcast %1240 : vector<1x512xf32> to vector<5x512xf32>
    %1243 = arith.mulf %1241, %1242 : vector<5x512xf32>
    %1244 = arith.addf %1238, %1243 : vector<5x512xf32>
    %1245 = vector.extract_strided_slice %20 {offsets = [0, 3], sizes = [5, 1], strides = [1, 1]} : vector<5x4xf32> to vector<5x1xf32>
    %1246 = vector.extract_strided_slice %1227 {offsets = [3, 0], sizes = [1, 512], strides = [1, 1]} : vector<4x512xf32> to vector<1x512xf32>
    %1247 = vector.broadcast %1245 : vector<5x1xf32> to vector<5x512xf32>
    %1248 = vector.broadcast %1246 : vector<1x512xf32> to vector<5x512xf32>
    %1249 = arith.mulf %1247, %1248 : vector<5x512xf32>
    %1250 = arith.addf %1244, %1249 : vector<5x512xf32>
    %1251 = vector.broadcast %21 : vector<5x1xf32> to vector<5x512xf32>
    %1252 = arith.addf %1250, %1251 : vector<5x512xf32>
    %cst_59 = arith.constant 0.000000e+00 : f32
    %1253 = vector.broadcast %cst_59 : f32 to vector<5x512xf32>
    %1254 = arith.maximumf %1252, %1253 : vector<5x512xf32>
    %1255 = vector.extract_strided_slice %22 {offsets = [0, 0], sizes = [4, 1], strides = [1, 1]} : vector<4x5xf32> to vector<4x1xf32>
    %1256 = vector.extract_strided_slice %1254 {offsets = [0, 0], sizes = [1, 512], strides = [1, 1]} : vector<5x512xf32> to vector<1x512xf32>
    %1257 = vector.broadcast %1255 : vector<4x1xf32> to vector<4x512xf32>
    %1258 = vector.broadcast %1256 : vector<1x512xf32> to vector<4x512xf32>
    %1259 = arith.mulf %1257, %1258 : vector<4x512xf32>
    %1260 = vector.extract_strided_slice %22 {offsets = [0, 1], sizes = [4, 1], strides = [1, 1]} : vector<4x5xf32> to vector<4x1xf32>
    %1261 = vector.extract_strided_slice %1254 {offsets = [1, 0], sizes = [1, 512], strides = [1, 1]} : vector<5x512xf32> to vector<1x512xf32>
    %1262 = vector.broadcast %1260 : vector<4x1xf32> to vector<4x512xf32>
    %1263 = vector.broadcast %1261 : vector<1x512xf32> to vector<4x512xf32>
    %1264 = arith.mulf %1262, %1263 : vector<4x512xf32>
    %1265 = arith.addf %1259, %1264 : vector<4x512xf32>
    %1266 = vector.extract_strided_slice %22 {offsets = [0, 2], sizes = [4, 1], strides = [1, 1]} : vector<4x5xf32> to vector<4x1xf32>
    %1267 = vector.extract_strided_slice %1254 {offsets = [2, 0], sizes = [1, 512], strides = [1, 1]} : vector<5x512xf32> to vector<1x512xf32>
    %1268 = vector.broadcast %1266 : vector<4x1xf32> to vector<4x512xf32>
    %1269 = vector.broadcast %1267 : vector<1x512xf32> to vector<4x512xf32>
    %1270 = arith.mulf %1268, %1269 : vector<4x512xf32>
    %1271 = arith.addf %1265, %1270 : vector<4x512xf32>
    %1272 = vector.extract_strided_slice %22 {offsets = [0, 3], sizes = [4, 1], strides = [1, 1]} : vector<4x5xf32> to vector<4x1xf32>
    %1273 = vector.extract_strided_slice %1254 {offsets = [3, 0], sizes = [1, 512], strides = [1, 1]} : vector<5x512xf32> to vector<1x512xf32>
    %1274 = vector.broadcast %1272 : vector<4x1xf32> to vector<4x512xf32>
    %1275 = vector.broadcast %1273 : vector<1x512xf32> to vector<4x512xf32>
    %1276 = arith.mulf %1274, %1275 : vector<4x512xf32>
    %1277 = arith.addf %1271, %1276 : vector<4x512xf32>
    %1278 = vector.extract_strided_slice %22 {offsets = [0, 4], sizes = [4, 1], strides = [1, 1]} : vector<4x5xf32> to vector<4x1xf32>
    %1279 = vector.extract_strided_slice %1254 {offsets = [4, 0], sizes = [1, 512], strides = [1, 1]} : vector<5x512xf32> to vector<1x512xf32>
    %1280 = vector.broadcast %1278 : vector<4x1xf32> to vector<4x512xf32>
    %1281 = vector.broadcast %1279 : vector<1x512xf32> to vector<4x512xf32>
    %1282 = arith.mulf %1280, %1281 : vector<4x512xf32>
    %1283 = arith.addf %1277, %1282 : vector<4x512xf32>
    %1284 = vector.broadcast %23 : vector<4x1xf32> to vector<4x512xf32>
    %1285 = arith.addf %1283, %1284 : vector<4x512xf32>
    %cst_60 = arith.constant 0.000000e+00 : f32
    %1286 = vector.broadcast %cst_60 : f32 to vector<4x512xf32>
    %1287 = arith.maximumf %1285, %1286 : vector<4x512xf32>
    %1288 = vector.extract_strided_slice %24 {offsets = [0, 0], sizes = [6, 1], strides = [1, 1]} : vector<6x4xf32> to vector<6x1xf32>
    %1289 = vector.extract_strided_slice %1287 {offsets = [0, 0], sizes = [1, 512], strides = [1, 1]} : vector<4x512xf32> to vector<1x512xf32>
    %1290 = vector.broadcast %1288 : vector<6x1xf32> to vector<6x512xf32>
    %1291 = vector.broadcast %1289 : vector<1x512xf32> to vector<6x512xf32>
    %1292 = arith.mulf %1290, %1291 : vector<6x512xf32>
    %1293 = vector.extract_strided_slice %24 {offsets = [0, 1], sizes = [6, 1], strides = [1, 1]} : vector<6x4xf32> to vector<6x1xf32>
    %1294 = vector.extract_strided_slice %1287 {offsets = [1, 0], sizes = [1, 512], strides = [1, 1]} : vector<4x512xf32> to vector<1x512xf32>
    %1295 = vector.broadcast %1293 : vector<6x1xf32> to vector<6x512xf32>
    %1296 = vector.broadcast %1294 : vector<1x512xf32> to vector<6x512xf32>
    %1297 = arith.mulf %1295, %1296 : vector<6x512xf32>
    %1298 = arith.addf %1292, %1297 : vector<6x512xf32>
    %1299 = vector.extract_strided_slice %24 {offsets = [0, 2], sizes = [6, 1], strides = [1, 1]} : vector<6x4xf32> to vector<6x1xf32>
    %1300 = vector.extract_strided_slice %1287 {offsets = [2, 0], sizes = [1, 512], strides = [1, 1]} : vector<4x512xf32> to vector<1x512xf32>
    %1301 = vector.broadcast %1299 : vector<6x1xf32> to vector<6x512xf32>
    %1302 = vector.broadcast %1300 : vector<1x512xf32> to vector<6x512xf32>
    %1303 = arith.mulf %1301, %1302 : vector<6x512xf32>
    %1304 = arith.addf %1298, %1303 : vector<6x512xf32>
    %1305 = vector.extract_strided_slice %24 {offsets = [0, 3], sizes = [6, 1], strides = [1, 1]} : vector<6x4xf32> to vector<6x1xf32>
    %1306 = vector.extract_strided_slice %1287 {offsets = [3, 0], sizes = [1, 512], strides = [1, 1]} : vector<4x512xf32> to vector<1x512xf32>
    %1307 = vector.broadcast %1305 : vector<6x1xf32> to vector<6x512xf32>
    %1308 = vector.broadcast %1306 : vector<1x512xf32> to vector<6x512xf32>
    %1309 = arith.mulf %1307, %1308 : vector<6x512xf32>
    %1310 = arith.addf %1304, %1309 : vector<6x512xf32>
    %1311 = vector.broadcast %25 : vector<6x1xf32> to vector<6x512xf32>
    %1312 = arith.addf %1310, %1311 : vector<6x512xf32>
    %1313 = arith.addf %1156, %1312 : vector<6x512xf32>
    %1314 = arith.subf %27, %1160 : vector<3x512xf32>
    %1315 = vector.extract_strided_slice %10 {offsets = [0, 0], sizes = [4, 1], strides = [1, 1]} : vector<4x3xf32> to vector<4x1xf32>
    %1316 = vector.extract_strided_slice %1314 {offsets = [0, 0], sizes = [1, 512], strides = [1, 1]} : vector<3x512xf32> to vector<1x512xf32>
    %1317 = vector.broadcast %1315 : vector<4x1xf32> to vector<4x512xf32>
    %1318 = vector.broadcast %1316 : vector<1x512xf32> to vector<4x512xf32>
    %1319 = arith.mulf %1317, %1318 : vector<4x512xf32>
    %1320 = vector.extract_strided_slice %10 {offsets = [0, 1], sizes = [4, 1], strides = [1, 1]} : vector<4x3xf32> to vector<4x1xf32>
    %1321 = vector.extract_strided_slice %1314 {offsets = [1, 0], sizes = [1, 512], strides = [1, 1]} : vector<3x512xf32> to vector<1x512xf32>
    %1322 = vector.broadcast %1320 : vector<4x1xf32> to vector<4x512xf32>
    %1323 = vector.broadcast %1321 : vector<1x512xf32> to vector<4x512xf32>
    %1324 = arith.mulf %1322, %1323 : vector<4x512xf32>
    %1325 = arith.addf %1319, %1324 : vector<4x512xf32>
    %1326 = vector.extract_strided_slice %10 {offsets = [0, 2], sizes = [4, 1], strides = [1, 1]} : vector<4x3xf32> to vector<4x1xf32>
    %1327 = vector.extract_strided_slice %1314 {offsets = [2, 0], sizes = [1, 512], strides = [1, 1]} : vector<3x512xf32> to vector<1x512xf32>
    %1328 = vector.broadcast %1326 : vector<4x1xf32> to vector<4x512xf32>
    %1329 = vector.broadcast %1327 : vector<1x512xf32> to vector<4x512xf32>
    %1330 = arith.mulf %1328, %1329 : vector<4x512xf32>
    %1331 = arith.addf %1325, %1330 : vector<4x512xf32>
    %1332 = vector.broadcast %11 : vector<4x1xf32> to vector<4x512xf32>
    %1333 = arith.addf %1331, %1332 : vector<4x512xf32>
    %cst_61 = arith.constant 0.000000e+00 : f32
    %1334 = vector.broadcast %cst_61 : f32 to vector<4x512xf32>
    %1335 = arith.maximumf %1333, %1334 : vector<4x512xf32>
    %1336 = vector.extract_strided_slice %12 {offsets = [0, 0], sizes = [5, 1], strides = [1, 1]} : vector<5x4xf32> to vector<5x1xf32>
    %1337 = vector.extract_strided_slice %1335 {offsets = [0, 0], sizes = [1, 512], strides = [1, 1]} : vector<4x512xf32> to vector<1x512xf32>
    %1338 = vector.broadcast %1336 : vector<5x1xf32> to vector<5x512xf32>
    %1339 = vector.broadcast %1337 : vector<1x512xf32> to vector<5x512xf32>
    %1340 = arith.mulf %1338, %1339 : vector<5x512xf32>
    %1341 = vector.extract_strided_slice %12 {offsets = [0, 1], sizes = [5, 1], strides = [1, 1]} : vector<5x4xf32> to vector<5x1xf32>
    %1342 = vector.extract_strided_slice %1335 {offsets = [1, 0], sizes = [1, 512], strides = [1, 1]} : vector<4x512xf32> to vector<1x512xf32>
    %1343 = vector.broadcast %1341 : vector<5x1xf32> to vector<5x512xf32>
    %1344 = vector.broadcast %1342 : vector<1x512xf32> to vector<5x512xf32>
    %1345 = arith.mulf %1343, %1344 : vector<5x512xf32>
    %1346 = arith.addf %1340, %1345 : vector<5x512xf32>
    %1347 = vector.extract_strided_slice %12 {offsets = [0, 2], sizes = [5, 1], strides = [1, 1]} : vector<5x4xf32> to vector<5x1xf32>
    %1348 = vector.extract_strided_slice %1335 {offsets = [2, 0], sizes = [1, 512], strides = [1, 1]} : vector<4x512xf32> to vector<1x512xf32>
    %1349 = vector.broadcast %1347 : vector<5x1xf32> to vector<5x512xf32>
    %1350 = vector.broadcast %1348 : vector<1x512xf32> to vector<5x512xf32>
    %1351 = arith.mulf %1349, %1350 : vector<5x512xf32>
    %1352 = arith.addf %1346, %1351 : vector<5x512xf32>
    %1353 = vector.extract_strided_slice %12 {offsets = [0, 3], sizes = [5, 1], strides = [1, 1]} : vector<5x4xf32> to vector<5x1xf32>
    %1354 = vector.extract_strided_slice %1335 {offsets = [3, 0], sizes = [1, 512], strides = [1, 1]} : vector<4x512xf32> to vector<1x512xf32>
    %1355 = vector.broadcast %1353 : vector<5x1xf32> to vector<5x512xf32>
    %1356 = vector.broadcast %1354 : vector<1x512xf32> to vector<5x512xf32>
    %1357 = arith.mulf %1355, %1356 : vector<5x512xf32>
    %1358 = arith.addf %1352, %1357 : vector<5x512xf32>
    %1359 = vector.broadcast %13 : vector<5x1xf32> to vector<5x512xf32>
    %1360 = arith.addf %1358, %1359 : vector<5x512xf32>
    %cst_62 = arith.constant 0.000000e+00 : f32
    %1361 = vector.broadcast %cst_62 : f32 to vector<5x512xf32>
    %1362 = arith.maximumf %1360, %1361 : vector<5x512xf32>
    %1363 = vector.extract_strided_slice %14 {offsets = [0, 0], sizes = [4, 1], strides = [1, 1]} : vector<4x5xf32> to vector<4x1xf32>
    %1364 = vector.extract_strided_slice %1362 {offsets = [0, 0], sizes = [1, 512], strides = [1, 1]} : vector<5x512xf32> to vector<1x512xf32>
    %1365 = vector.broadcast %1363 : vector<4x1xf32> to vector<4x512xf32>
    %1366 = vector.broadcast %1364 : vector<1x512xf32> to vector<4x512xf32>
    %1367 = arith.mulf %1365, %1366 : vector<4x512xf32>
    %1368 = vector.extract_strided_slice %14 {offsets = [0, 1], sizes = [4, 1], strides = [1, 1]} : vector<4x5xf32> to vector<4x1xf32>
    %1369 = vector.extract_strided_slice %1362 {offsets = [1, 0], sizes = [1, 512], strides = [1, 1]} : vector<5x512xf32> to vector<1x512xf32>
    %1370 = vector.broadcast %1368 : vector<4x1xf32> to vector<4x512xf32>
    %1371 = vector.broadcast %1369 : vector<1x512xf32> to vector<4x512xf32>
    %1372 = arith.mulf %1370, %1371 : vector<4x512xf32>
    %1373 = arith.addf %1367, %1372 : vector<4x512xf32>
    %1374 = vector.extract_strided_slice %14 {offsets = [0, 2], sizes = [4, 1], strides = [1, 1]} : vector<4x5xf32> to vector<4x1xf32>
    %1375 = vector.extract_strided_slice %1362 {offsets = [2, 0], sizes = [1, 512], strides = [1, 1]} : vector<5x512xf32> to vector<1x512xf32>
    %1376 = vector.broadcast %1374 : vector<4x1xf32> to vector<4x512xf32>
    %1377 = vector.broadcast %1375 : vector<1x512xf32> to vector<4x512xf32>
    %1378 = arith.mulf %1376, %1377 : vector<4x512xf32>
    %1379 = arith.addf %1373, %1378 : vector<4x512xf32>
    %1380 = vector.extract_strided_slice %14 {offsets = [0, 3], sizes = [4, 1], strides = [1, 1]} : vector<4x5xf32> to vector<4x1xf32>
    %1381 = vector.extract_strided_slice %1362 {offsets = [3, 0], sizes = [1, 512], strides = [1, 1]} : vector<5x512xf32> to vector<1x512xf32>
    %1382 = vector.broadcast %1380 : vector<4x1xf32> to vector<4x512xf32>
    %1383 = vector.broadcast %1381 : vector<1x512xf32> to vector<4x512xf32>
    %1384 = arith.mulf %1382, %1383 : vector<4x512xf32>
    %1385 = arith.addf %1379, %1384 : vector<4x512xf32>
    %1386 = vector.extract_strided_slice %14 {offsets = [0, 4], sizes = [4, 1], strides = [1, 1]} : vector<4x5xf32> to vector<4x1xf32>
    %1387 = vector.extract_strided_slice %1362 {offsets = [4, 0], sizes = [1, 512], strides = [1, 1]} : vector<5x512xf32> to vector<1x512xf32>
    %1388 = vector.broadcast %1386 : vector<4x1xf32> to vector<4x512xf32>
    %1389 = vector.broadcast %1387 : vector<1x512xf32> to vector<4x512xf32>
    %1390 = arith.mulf %1388, %1389 : vector<4x512xf32>
    %1391 = arith.addf %1385, %1390 : vector<4x512xf32>
    %1392 = vector.broadcast %15 : vector<4x1xf32> to vector<4x512xf32>
    %1393 = arith.addf %1391, %1392 : vector<4x512xf32>
    %cst_63 = arith.constant 0.000000e+00 : f32
    %1394 = vector.broadcast %cst_63 : f32 to vector<4x512xf32>
    %1395 = arith.maximumf %1393, %1394 : vector<4x512xf32>
    %1396 = vector.extract_strided_slice %16 {offsets = [0, 0], sizes = [6, 1], strides = [1, 1]} : vector<6x4xf32> to vector<6x1xf32>
    %1397 = vector.extract_strided_slice %1395 {offsets = [0, 0], sizes = [1, 512], strides = [1, 1]} : vector<4x512xf32> to vector<1x512xf32>
    %1398 = vector.broadcast %1396 : vector<6x1xf32> to vector<6x512xf32>
    %1399 = vector.broadcast %1397 : vector<1x512xf32> to vector<6x512xf32>
    %1400 = arith.mulf %1398, %1399 : vector<6x512xf32>
    %1401 = vector.extract_strided_slice %16 {offsets = [0, 1], sizes = [6, 1], strides = [1, 1]} : vector<6x4xf32> to vector<6x1xf32>
    %1402 = vector.extract_strided_slice %1395 {offsets = [1, 0], sizes = [1, 512], strides = [1, 1]} : vector<4x512xf32> to vector<1x512xf32>
    %1403 = vector.broadcast %1401 : vector<6x1xf32> to vector<6x512xf32>
    %1404 = vector.broadcast %1402 : vector<1x512xf32> to vector<6x512xf32>
    %1405 = arith.mulf %1403, %1404 : vector<6x512xf32>
    %1406 = arith.addf %1400, %1405 : vector<6x512xf32>
    %1407 = vector.extract_strided_slice %16 {offsets = [0, 2], sizes = [6, 1], strides = [1, 1]} : vector<6x4xf32> to vector<6x1xf32>
    %1408 = vector.extract_strided_slice %1395 {offsets = [2, 0], sizes = [1, 512], strides = [1, 1]} : vector<4x512xf32> to vector<1x512xf32>
    %1409 = vector.broadcast %1407 : vector<6x1xf32> to vector<6x512xf32>
    %1410 = vector.broadcast %1408 : vector<1x512xf32> to vector<6x512xf32>
    %1411 = arith.mulf %1409, %1410 : vector<6x512xf32>
    %1412 = arith.addf %1406, %1411 : vector<6x512xf32>
    %1413 = vector.extract_strided_slice %16 {offsets = [0, 3], sizes = [6, 1], strides = [1, 1]} : vector<6x4xf32> to vector<6x1xf32>
    %1414 = vector.extract_strided_slice %1395 {offsets = [3, 0], sizes = [1, 512], strides = [1, 1]} : vector<4x512xf32> to vector<1x512xf32>
    %1415 = vector.broadcast %1413 : vector<6x1xf32> to vector<6x512xf32>
    %1416 = vector.broadcast %1414 : vector<1x512xf32> to vector<6x512xf32>
    %1417 = arith.mulf %1415, %1416 : vector<6x512xf32>
    %1418 = arith.addf %1412, %1417 : vector<6x512xf32>
    %1419 = vector.broadcast %17 : vector<6x1xf32> to vector<6x512xf32>
    %1420 = arith.addf %1418, %1419 : vector<6x512xf32>
    %1421 = arith.addf %1313, %1420 : vector<6x512xf32>
    %1422 = vector.broadcast %4 : vector<8x1xf32> to vector<8x512xf32>
    %1423 = arith.addf %1184, %1422 : vector<8x512xf32>
    %cst_64 = arith.constant 2.000000e+00 : f32
    %1424 = vector.broadcast %cst_64 : f32 to vector<8x512xf32>
    %1425 = arith.mulf %1424, %52 : vector<8x512xf32>
    %1426 = arith.addf %1423, %1425 : vector<8x512xf32>
    %cst_65 = arith.constant 2.000000e-01 : f32
    %1427 = vector.broadcast %cst_65 : f32 to vector<6x512xf32>
    %1428 = arith.mulf %1421, %1427 : vector<6x512xf32>
    %1429 = arith.addf %1428, %92 : vector<6x512xf32>
    %cst_66 = arith.constant 0.000000e+00 : f32
    %1430 = vector.broadcast %cst_66 : f32 to vector<1x512xf32>
    %1431 = arith.subf %1430, %1205 : vector<1x512xf32>
    %1432 = math.exp %1431 : vector<1x512xf32>
    %cst_67 = arith.constant 1.000000e+00 : f32
    %1433 = vector.broadcast %cst_67 : f32 to vector<1x512xf32>
    %1434 = arith.addf %1433, %1432 : vector<1x512xf32>
    %cst_68 = arith.constant 1.000000e+00 : f32
    %1435 = vector.broadcast %cst_68 : f32 to vector<1x512xf32>
    %1436 = arith.divf %1435, %1434 : vector<1x512xf32>
    %1437 = math.exp %1206 : vector<1x512xf32>
    %cst_69 = arith.constant 1.000000e+00 : f32
    %1438 = vector.broadcast %cst_69 : f32 to vector<1x512xf32>
    %1439 = arith.addf %1438, %1437 : vector<1x512xf32>
    %cst_70 = arith.constant 1.000000e+00 : f32
    %1440 = vector.broadcast %cst_70 : f32 to vector<1x512xf32>
    %1441 = arith.divf %1440, %1439 : vector<1x512xf32>
    %c0_71 = arith.constant 0 : index
    %c0_72 = arith.constant 0 : index
    %1442 = vector.load %arg6[%c0_71, %c0_72] : memref<16x512xf32, #tpu.memory_space<vmem>>, vector<8x512xf32>
    tpu.vector_store %arg6[%c0_71, %c0_72], %1426 {strides = array<i32>} : memref<16x512xf32, #tpu.memory_space<vmem>>, vector<8x512xf32>,
    %c8 = arith.constant 8 : index
    %c0_73 = arith.constant 0 : index
    %1443 = vector.load %arg6[%c8, %c0_73] : memref<16x512xf32, #tpu.memory_space<vmem>>, vector<6x512xf32>
    tpu.vector_store %arg6[%c8, %c0_73], %1429 {strides = array<i32>} : memref<16x512xf32, #tpu.memory_space<vmem>>, vector<6x512xf32>,
    %c14 = arith.constant 14 : index
    %c0_74 = arith.constant 0 : index
    %1444 = vector.load %arg6[%c14, %c0_74] : memref<16x512xf32, #tpu.memory_space<vmem>>, vector<1x512xf32>
    tpu.vector_store %arg6[%c14, %c0_74], %1436 {strides = array<i32>} : memref<16x512xf32, #tpu.memory_space<vmem>>, vector<1x512xf32>,
    %c15 = arith.constant 15 : index
    %c0_75 = arith.constant 0 : index
    %1445 = vector.load %arg6[%c15, %c0_75] : memref<16x512xf32, #tpu.memory_space<vmem>>, vector<1x512xf32>
    tpu.vector_store %arg6[%c15, %c0_75], %1441 {strides = array<i32>} : memref<16x512xf32, #tpu.memory_space<vmem>>, vector<1x512xf32>,
    return
  }
  func.func @transform_0(%arg0: i32) -> (i32, i32) {
    %c0_i32 = arith.constant 0 : i32
    %c0_i32_0 = arith.constant 0 : i32
    return %c0_i32, %arg0 : i32, i32
  }
  func.func @transform_1(%arg0: i32) -> (i32, i32, i32) {
    %c0_i32 = arith.constant 0 : i32
    %c0_i32_0 = arith.constant 0 : i32
    %c0_i32_1 = arith.constant 0 : i32
    return %c0_i32, %c0_i32_0, %arg0 : i32, i32, i32
  }
  func.func @transform_2(%arg0: i32) -> (i32, i32) {
    %c0_i32 = arith.constant 0 : i32
    %c0_i32_0 = arith.constant 0 : i32
    return %c0_i32, %arg0 : i32, i32
  }
  func.func @transform_3(%arg0: i32) -> (i32, i32, i32) {
    %c0_i32 = arith.constant 0 : i32
    %c0_i32_0 = arith.constant 0 : i32
    %c0_i32_1 = arith.constant 0 : i32
    return %c0_i32, %c0_i32_0, %arg0 : i32, i32, i32
  }
  func.func @transform_4(%arg0: i32) -> (i32, i32) {
    %c0_i32 = arith.constant 0 : i32
    %c0_i32_0 = arith.constant 0 : i32
    %c0_i32_1 = arith.constant 0 : i32
    return %c0_i32, %c0_i32_0 : i32, i32
  }
  func.func @transform_5(%arg0: i32) -> (i32, i32) {
    %c0_i32 = arith.constant 0 : i32
    %c0_i32_0 = arith.constant 0 : i32
    return %c0_i32, %arg0 : i32, i32
  }
}

</mosaic_0001>

<llo_original>
// kernel: tpu_custom_call.1
$region0: #{tpu_custom_call.1}
  #allocation0 [shape = 'u32[]', space=smem, size = 0x4, offset = 0x4, fixed_abs, tag = 'smem constant byte address 0x4 - core index']
  #allocation1 [shape = 'u32[72,128]{1,0:T(1,128)}', space=vmem, size = 0x9000, scoped, tag = 'internal scratch']
  %s0 = inlined_call_operand.vmem [shape: f32[4,1024], index: 0, kind: input, shape index: {}]
  %s1 = inlined_call_operand.hbm [shape: f32[5,4,1024], index: 1, kind: input, shape index: {}]
  %s2 = inlined_call_operand.vmem [shape: f32[3,1024], index: 2, kind: input, shape index: {}]
  %s3 = inlined_call_operand.hbm [shape: f32[5,3,1024], index: 3, kind: input, shape index: {}]
  %s4 = inlined_call_operand.vmem [shape: f32[128,8], index: 4, kind: input, shape index: {}]
  %s5 = inlined_call_operand.hbm [shape: f32[16,1024], index: 5, kind: output, shape index: {}]
  %s6 = sld [smem:[#allocation0]]
  $region61: #{tpu_custom_call.1} parent=0
    _
  %s8 = ssub.s32 1, %s6
  %s9 = scalar_select 0, %s8, %s6
  $region1: #{tpu_custom_call.1} parent=0
    #allocation2 [shape = 'u8[81920]{0}', space=vmem, size = 0x14000, scoped, tag = 'input window, operand 1']
    #allocation3 [shape = 's32[2]{0}', space=sflag, size = 0x8, scoped, tag = 'scoped memory for tpu_custom_call.1']
    #allocation4 [shape = 's32[2]{0}', space=sflag, size = 0x8, scoped, tag = 'scoped memory for tpu_custom_call.1']
    #allocation5 [shape = 'u8[81920]{0}', space=vmem, size = 0x14000, scoped, tag = 'input window, operand 3']
    #allocation6 [shape = 's32[2]{0}', space=sflag, size = 0x8, scoped, tag = 'scoped memory for tpu_custom_call.1']
    #allocation7 [shape = 'u8[65536]{0}', space=vmem, size = 0x10000, scoped, tag = 'output window, operand 0']
    %10 = vsyncpa [#allocation3], 0
    %s11 = scalar_lea.sflag [#allocation3], 1
    %12 = vsyncpa %s11, 0
    %13 = vsyncpa [#allocation6], 0
    %s14 = scalar_lea.sflag [#allocation6], 1
    %15 = vsyncpa %s14, 0
    %16 = vsyncpa [#allocation4], 0
    %s17 = scalar_lea.sflag [#allocation4], 1
    %18 = vsyncpa %s17, 0
    loop: start=0, step=1, limit=4
    $region2: #{tpu_custom_call.1} parent=1 // loop_pre_header
      _
    $region3: #{tpu_custom_call.1} parent=1 // loop_header
      %s20 = sphi 0, %s24
      %p21 = scmp.ge.s32.totalorder %s20, 4
      %s30 = sphi 0, %s32
      %s33 = sphi 0, %s30
      %s34 = sphi 0, %s33
      %s50 = sphi 0, %s34
      %s56 = sphi 0, %s58
      %s59 = sphi 0, %s56
      %s60 = sphi 0, %s59
      %s76 = sphi 0, %s60
      %s82 = sphi 0, %s84
      %s85 = sphi 0, %s82
      %s86 = sphi 0, %s85
      %s102 = sphi 0, %s86
      %s108 = sphi 0, %s110
      %s111 = sphi 0, %s108
      %s112 = sphi 0, %s111
      %s128 = sphi 0, %s112
      %s132 = sphi 0, %s132
      %s134 = sphi 0, %s132
      %s135 = sphi 0, %s134
      %s149 = sphi 0, %s135
      %s155 = sphi 0, %s157
      %s158 = sphi 0, %s155
      %s159 = sphi 0, %s158
      %s175 = sphi 0, %s159
    $region4: #{tpu_custom_call.1} parent=1 // loop_header_branch
      %23 = sbr.rel (%p21) target = $region8
    $region5: #{tpu_custom_call.1} parent=1 // loop_body
      %s25 = ssub.s32 %s20, 1
      %s26 = ssub.s32 %s20, 2
      %s27 = sadd.s32 %s20, 1
      %s28 = ssub.s32 %s20, %s27
      %p29 = scmp.eq.s32.totalorder %s28, 0
      %s31 = sadd.s32 %s30, 1
      %s32 = scalar_select %p29, %s30, %s31
      %p35 = pneg %p29
      %p36 = scmp.eq.s32.totalorder %s20, 1
      %p37 = por %p35, %p36
      %p38 = scmp.ne.s32.totalorder %s30, %s33
      %p39 = scmp.eq.s32.totalorder %s20, 0
      %p40 = por %p38, %p39
      %p41 = scmp.ne.s32.totalorder %s30, %s33
      %p42 = scmp.eq.s32.totalorder %s25, 1
      %p43 = por %p41, %p42
      %p44 = scmp.ne.s32.totalorder %s33, %s34
      %p45 = scmp.eq.s32.totalorder %s25, 0
      %p46 = por %p44, %p45
      %p47 = scmp.ne.s32.totalorder %s33, %s34
      %p48 = scmp.eq.s32.totalorder %s26, 1
      %p49 = por %p47, %p48
      %p51 = scmp.ne.s32.totalorder %s34, %s50
      %p52 = scmp.eq.s32.totalorder %s26, 0
      %p53 = por %p51, %p52
      %s54 = ssub.s32 %s20, %s27
      %p55 = scmp.eq.s32.totalorder %s54, 0
      %s57 = sadd.s32 %s56, 1
      %s58 = scalar_select %p55, %s56, %s57
      %p61 = pneg %p55
      %p62 = scmp.eq.s32.totalorder %s20, 1
      %p63 = por %p61, %p62
      %p64 = scmp.ne.s32.totalorder %s56, %s59
      %p65 = scmp.eq.s32.totalorder %s20, 0
      %p66 = por %p64, %p65
      %p67 = scmp.ne.s32.totalorder %s56, %s59
      %p68 = scmp.eq.s32.totalorder %s25, 1
      %p69 = por %p67, %p68
      %p70 = scmp.ne.s32.totalorder %s59, %s60
      %p71 = scmp.eq.s32.totalorder %s25, 0
      %p72 = por %p70, %p71
      %p73 = scmp.ne.s32.totalorder %s59, %s60
      %p74 = scmp.eq.s32.totalorder %s26, 1
      %p75 = por %p73, %p74
      %p77 = scmp.ne.s32.totalorder %s60, %s76
      %p78 = scmp.eq.s32.totalorder %s26, 0
      %p79 = por %p77, %p78
      %s80 = ssub.s32 %s20, %s27
      %p81 = scmp.eq.s32.totalorder %s80, 0
      %s83 = sadd.s32 %s82, 1
      %s84 = scalar_select %p81, %s82, %s83
      %p87 = pneg %p81
      %p88 = scmp.eq.s32.totalorder %s20, 1
      %p89 = por %p87, %p88
      %p90 = scmp.ne.s32.totalorder %s82, %s85
      %p91 = scmp.eq.s32.totalorder %s20, 0
      %p92 = por %p90, %p91
      %p93 = scmp.ne.s32.totalorder %s82, %s85
      %p94 = scmp.eq.s32.totalorder %s25, 1
      %p95 = por %p93, %p94
      %p96 = scmp.ne.s32.totalorder %s85, %s86
      %p97 = scmp.eq.s32.totalorder %s25, 0
      %p98 = por %p96, %p97
      %p99 = scmp.ne.s32.totalorder %s85, %s86
      %p100 = scmp.eq.s32.totalorder %s26, 1
      %p101 = por %p99, %p100
      %p103 = scmp.ne.s32.totalorder %s86, %s102
      %p104 = scmp.eq.s32.totalorder %s26, 0
      %p105 = por %p103, %p104
      %s106 = ssub.s32 %s20, %s27
      %p107 = scmp.eq.s32.totalorder %s106, 0
      %s109 = sadd.s32 %s108, 1
      %s110 = scalar_select %p107, %s108, %s109
      %p113 = pneg %p107
      %p114 = scmp.eq.s32.totalorder %s20, 1
      %p115 = por %p113, %p114
      %p116 = scmp.ne.s32.totalorder %s108, %s111
      %p117 = scmp.eq.s32.totalorder %s20, 0
      %p118 = por %p116, %p117
      %p119 = scmp.ne.s32.totalorder %s108, %s111
      %p120 = scmp.eq.s32.totalorder %s25, 1
      %p121 = por %p119, %p120
      %p122 = scmp.ne.s32.totalorder %s111, %s112
      %p123 = scmp.eq.s32.totalorder %s25, 0
      %p124 = por %p122, %p123
      %p125 = scmp.ne.s32.totalorder %s111, %s112
      %p126 = scmp.eq.s32.totalorder %s26, 1
      %p127 = por %p125, %p126
      %p129 = scmp.ne.s32.totalorder %s112, %s128
      %p130 = scmp.eq.s32.totalorder %s26, 0
      %p131 = por %p129, %p130
      %s133 = sadd.s32 %s132, 1
      %p136 = scmp.eq.s32.totalorder %s20, 1
      %p137 = scmp.ne.s32.totalorder %s132, %s134
      %p138 = scmp.eq.s32.totalorder %s20, 0
      %p139 = por %p137, %p138
      %p140 = scmp.ne.s32.totalorder %s132, %s134
      %p141 = scmp.eq.s32.totalorder %s25, 1
      %p142 = por %p140, %p141
      %p143 = scmp.ne.s32.totalorder %s134, %s135
      %p144 = scmp.eq.s32.totalorder %s25, 0
      %p145 = por %p143, %p144
      %p146 = scmp.ne.s32.totalorder %s134, %s135
      %p147 = scmp.eq.s32.totalorder %s26, 1
      %p148 = por %p146, %p147
      %p150 = scmp.ne.s32.totalorder %s135, %s149
      %p151 = scmp.eq.s32.totalorder %s26, 0
      %p152 = por %p150, %p151
      %s153 = ssub.s32 %s20, %s27
      %p154 = scmp.eq.s32.totalorder %s153, 0
      %s156 = sadd.s32 %s155, 1
      %s157 = scalar_select %p154, %s155, %s156
      %p160 = pneg %p154
      %p161 = scmp.eq.s32.totalorder %s20, 1
      %p162 = por %p160, %p161
      %p163 = scmp.ne.s32.totalorder %s155, %s158
      %p164 = scmp.eq.s32.totalorder %s20, 0
      %p165 = por %p163, %p164
      %p166 = scmp.ne.s32.totalorder %s155, %s158
      %p167 = scmp.eq.s32.totalorder %s25, 1
      %p168 = por %p166, %p167
      %p169 = scmp.ne.s32.totalorder %s158, %s159
      %p170 = scmp.eq.s32.totalorder %s25, 0
      %p171 = por %p169, %p170
      %p172 = scmp.ne.s32.totalorder %s158, %s159
      %p173 = scmp.eq.s32.totalorder %s26, 1
      %p174 = por %p172, %p173
      %p176 = scmp.ne.s32.totalorder %s159, %s175
      %p177 = scmp.eq.s32.totalorder %s26, 0
      %p178 = por %p176, %p177
      %p179 = scmp.le.s32.totalorder 1, %s20
      %p180 = scmp.lt.s32.totalorder %s20, 3
      %p181 = pnand %p179, %p180
      %p182 = pneg %p181
      // Predicated region
      $region9: #{tpu_custom_call.1} parent=5 // pred_check
        _
      $region10: #{tpu_custom_call.1} parent=5 // pred_check_branch
        %184 = sbr.rel (%p181) target = $region12
      $region11: #{tpu_custom_call.1} parent=5 // pred_region
        %s185 = ssub.s32 %s20, 1
        // Predicated region
        $region13: #{tpu_custom_call.1} parent=11 // pred_check
          %p186 = pneg %p145
        $region14: #{tpu_custom_call.1} parent=11 // pred_check_branch
          %188 = sbr.rel (%p186) target = $region16
        $region15: #{tpu_custom_call.1} parent=11 // pred_region
          _
        $region16: #{tpu_custom_call.1} parent=11 // pred_fallthru
          _
      $region12: #{tpu_custom_call.1} parent=5 // pred_fallthru
        _
      %p189 = scmp.lt.s32.totalorder %s20, 2
      // Predicated region
      $region17: #{tpu_custom_call.1} parent=5 // pred_check
        %p190 = pneg %p189
      $region18: #{tpu_custom_call.1} parent=5 // pred_check_branch
        %192 = sbr.rel (%p190) target = $region20
      $region19: #{tpu_custom_call.1} parent=5 // pred_region
        // Predicated region
        $region21: #{tpu_custom_call.1} parent=19 // pred_check
          %p193 = pneg %p40
        $region22: #{tpu_custom_call.1} parent=19 // pred_check_branch
          %195 = sbr.rel (%p193) target = $region24
        $region23: #{tpu_custom_call.1} parent=19 // pred_region
          %s196 = smul.u32 4, %s20
          %p197 = scmp.lt.s32.totalorder %s196, 7
          %s198 = scalar_select %p197, %s196, 7
          %s199 = smul.addr %s198, 4
          %s200 = scalar_lea.vmem %s0, %s199
          %s201 = smul.u32 4, %s20
        $region24: #{tpu_custom_call.1} parent=19 // pred_fallthru
          _
        // Predicated region
        $region25: #{tpu_custom_call.1} parent=19 // pred_check
          %p202 = pneg %p66
        $region26: #{tpu_custom_call.1} parent=19 // pred_check_branch
          %204 = sbr.rel (%p202) target = $region28
        $region27: #{tpu_custom_call.1} parent=19 // pred_region
          %s205 = sand.u32 %s56, 1
          %s206 = scalar_lea.sflag [#allocation3], %s205
          %s207 = sand.u32 %s56, 1
          %s208 = smul.addr %s207, 80
          %s209 = scalar_lea.vmem [#allocation2], %s208
          %s210 = smul.u32 4, %s20
          %212 = vsyncadd %s206, 0
          %s213 = smul.addr %s210, 4
          %s214 = scalar_lea.hbm %s1, %s213
          %s215 = sshll.u32 %s214, 4
          %s216 = int_to_ptr.hbm [resolvable:$true] %s215
          %s217 = sshll.u32 %s209, 4
          %s218 = int_to_ptr.vmem [resolvable:$true] %s217
          %223 = dma.hbm_to_vmem [thread:$0]  %s216, 1280, %s218, %s206, 512, 256, 16
        $region28: #{tpu_custom_call.1} parent=19 // pred_fallthru
          _
        // Predicated region
        $region29: #{tpu_custom_call.1} parent=19 // pred_check
          %p224 = pneg %p92
        $region30: #{tpu_custom_call.1} parent=19 // pred_check_branch
          %226 = sbr.rel (%p224) target = $region32
        $region31: #{tpu_custom_call.1} parent=19 // pred_region
          %s227 = smul.u32 4, %s20
          %p228 = scmp.lt.s32.totalorder %s227, 7
          %s229 = scalar_select %p228, %s227, 7
          %s230 = smul.addr %s229, 4
          %s231 = scalar_lea.vmem %s2, %s230
          %s232 = smul.u32 4, %s20
        $region32: #{tpu_custom_call.1} parent=19 // pred_fallthru
          _
        // Predicated region
        $region33: #{tpu_custom_call.1} parent=19 // pred_check
          %p233 = pneg %p118
        $region34: #{tpu_custom_call.1} parent=19 // pred_check_branch
          %235 = sbr.rel (%p233) target = $region36
        $region35: #{tpu_custom_call.1} parent=19 // pred_region
          %s236 = sand.u32 %s108, 1
          %s237 = scalar_lea.sflag [#allocation6], %s236
          %s238 = sand.u32 %s108, 1
          %s239 = smul.addr %s238, 80
          %s240 = scalar_lea.vmem [#allocation5], %s239
          %s241 = smul.u32 4, %s20
          %243 = vsyncadd %s237, 0
          %s244 = smul.addr %s241, 4
          %s245 = scalar_lea.hbm %s3, %s244
          %s246 = sshll.u32 %s245, 4
          %s247 = int_to_ptr.hbm [resolvable:$true] %s246
          %s248 = sshll.u32 %s240, 4
          %s249 = int_to_ptr.vmem [resolvable:$true] %s248
          %254 = dma.hbm_to_vmem [thread:$0]  %s247, 1280, %s249, %s237, 512, 256, 16
        $region36: #{tpu_custom_call.1} parent=19 // pred_fallthru
          _
      $region20: #{tpu_custom_call.1} parent=5 // pred_fallthru
        _
      %p255 = scmp.le.s32.totalorder 1, %s20
      %p256 = scmp.lt.s32.totalorder %s20, 3
      %p257 = pnand %p255, %p256
      %p258 = pneg %p257
      // Predicated region
      $region37: #{tpu_custom_call.1} parent=5 // pred_check
        _
      $region38: #{tpu_custom_call.1} parent=5 // pred_check_branch
        %260 = sbr.rel (%p257) target = $region40
      $region39: #{tpu_custom_call.1} parent=5 // pred_region
        %s261 = ssub.s32 %s20, 1
        %s262 = sand.u32 %s59, 1
        %s263 = scalar_lea.sflag [#allocation3], %s262
        %s264 = sand.u32 %s59, 1
        %s265 = smul.addr %s264, 80
        %s266 = scalar_lea.vmem [#allocation2], %s265
        // Predicated region
        $region41: #{tpu_custom_call.1} parent=39 // pred_check
          %p267 = pneg %p72
        $region42: #{tpu_custom_call.1} parent=39 // pred_check_branch
          %269 = sbr.rel (%p267) target = $region44
        $region43: #{tpu_custom_call.1} parent=39 // pred_region
          %271 = dma.done %s263, 1280
        $region44: #{tpu_custom_call.1} parent=39 // pred_fallthru
          _
        %s272 = sand.u32 %s111, 1
        %s273 = scalar_lea.sflag [#allocation6], %s272
        %s274 = sand.u32 %s111, 1
        %s275 = smul.addr %s274, 80
        %s276 = scalar_lea.vmem [#allocation5], %s275
        // Predicated region
        $region45: #{tpu_custom_call.1} parent=39 // pred_check
          %p277 = pneg %p124
        $region46: #{tpu_custom_call.1} parent=39 // pred_check_branch
          %279 = sbr.rel (%p277) target = $region48
        $region47: #{tpu_custom_call.1} parent=39 // pred_region
          %281 = dma.done %s273, 1280
        $region48: #{tpu_custom_call.1} parent=39 // pred_fallthru
          _
        %s282 = smul.u32 4, %s25
        %p283 = scmp.lt.s32.totalorder %s282, 7
        %s284 = scalar_select %p283, %s282, 7
        %s285 = smul.addr %s284, 4
        %s286 = scalar_lea.vmem %s0, %s285
        %p287 = pneg %p46
        %p288 = pneg %p43
        %s289 = sand.u32 %s59, 1
        %s290 = scalar_lea.sflag [#allocation3], %s289
        %s291 = sand.u32 %s59, 1
        %s292 = smul.addr %s291, 80
        %s293 = scalar_lea.vmem [#allocation2], %s292
        %p294 = pneg %p72
        %p295 = pneg %p69
        %s296 = smul.u32 4, %s25
        %p297 = scmp.lt.s32.totalorder %s296, 7
        %s298 = scalar_select %p297, %s296, 7
        %s299 = smul.addr %s298, 4
        %s300 = scalar_lea.vmem %s2, %s299
        %p301 = pneg %p98
        %p302 = pneg %p95
        %s303 = sand.u32 %s111, 1
        %s304 = scalar_lea.sflag [#allocation6], %s303
        %s305 = sand.u32 %s111, 1
        %s306 = smul.addr %s305, 80
        %s307 = scalar_lea.vmem [#allocation5], %s306
        %p308 = pneg %p124
        %p309 = pneg %p121
        %p310 = pneg %p145
        %p311 = pneg %p142
        %p312 = pneg %p171
        %p313 = pneg %p168
        %s314 = sand.u32 %s158, 1
        %s315 = scalar_lea.sflag [#allocation4], %s314
        %s316 = sand.u32 %s158, 1
        %s317 = smul.addr %s316, 64
        %s318 = scalar_lea.vmem [#allocation7], %s317
        %s319 = smul.u32 4, %s25
        %p320 = scmp.lt.s32.totalorder %s319, 7
        %s321 = scalar_select %p320, %s319, 7
        %s322 = smul.addr %s321, 4
        %s323 = scalar_lea.vmem %s0, %s322
        %s324 = smul.u32 4, %s25
        %s325 = smul.u32 4, %s25
        %s326 = smul.u32 4, %s25
        %p327 = scmp.lt.s32.totalorder %s326, 7
        %s328 = scalar_select %p327, %s326, 7
        %s329 = smul.addr %s328, 4
        %s330 = scalar_lea.vmem %s2, %s329
        %s331 = smul.u32 4, %s25
        %s332 = smul.u32 4, %s25
        %s333 = smul.u32 4, %s25
        %v334 = vld [vmem:[%s4] sm:$0xff]
        %v335 = vld [vmem:[%s4 + $0x8] sm:$0xff]
        %v336 = vld [vmem:[%s4 + $0x10] sm:$0xff]
        %v337 = vld [vmem:[%s4 + $0x18] sm:$0xff]
        %v338 = vld [vmem:[%s4 + $0x20] sm:$0xff]
        %v339 = vld [vmem:[%s4 + $0x28] sm:$0xff]
        %v340 = vld [vmem:[%s4 + $0x30] sm:$0xff]
        %v341 = vld [vmem:[%s4 + $0x38] sm:$0xff]
        %v342 = vld [vmem:[%s4 + $0x40] sm:$0xff]
        %v343 = vld [vmem:[%s4 + $0x48] sm:$0xff]
        %v344 = vld [vmem:[%s4 + $0x50] sm:$0xff]
        %v345 = vld [vmem:[%s4 + $0x58] sm:$0xff]
        %v346 = vld [vmem:[%s4 + $0x60] sm:$0xff]
        %v347 = vld [vmem:[%s4 + $0x68] sm:$0xff]
        %v348 = vld [vmem:[%s4 + $0x70] sm:$0xff]
        %v349 = vld [vmem:[%s4 + $0x78] sm:$0xff]
        %v350 = vld [vmem:[%s323] sm:$0xff]
        %v351 = vld [vmem:[%s323 + $0x8] sm:$0xff]
        %v352 = vld [vmem:[%s330] sm:$0x77]
        %v353 = vld [vmem:[%s330 + $0x8] sm:$0x77]
        %355 = vset.pattern.permute.xlu0 0
        %356 = vperm.xlu0 %355, %v334
        %v357 = vpop.permute.xlu0 %356
        %v361 = vperm.slane %v350, 0
        %v362 = vperm.slane %v350, 4
        %v363 = vperm.slane %v351, 0
        %v364 = vperm.slane %v351, 4
        %v369 = vperm.slane %v361, 0
        %v370 = vperm.slane %v362, 0
        %v371 = vperm.slane %v363, 0
        %v372 = vperm.slane %v364, 0
        %v373 = vmul.f32 %v357, %v369
        %v374 = vmul.f32 %v357, %v370
        %v375 = vmul.f32 %v357, %v371
        %v376 = vmul.f32 %v357, %v372
        %377 = vset.pattern.permute.xlu0 1
        %378 = vperm.xlu0 %377, %v334
        %v379 = vpop.permute.xlu0 %378
        %v381 = vperm.slane %v350, 1
        %v382 = vperm.slane %v350, 5
        %v383 = vperm.slane %v351, 1
        %v384 = vperm.slane %v351, 5
        %v389 = vperm.slane %v381, 1
        %v390 = vperm.slane %v382, 1
        %v391 = vperm.slane %v383, 1
        %v392 = vperm.slane %v384, 1
        %v393 = vmul.f32 %v379, %v389
        %v394 = vmul.f32 %v379, %v390
        %v395 = vmul.f32 %v379, %v391
        %v396 = vmul.f32 %v379, %v392
        %v397 = vadd.f32 %v373, %v393
        %v398 = vadd.f32 %v374, %v394
        %v399 = vadd.f32 %v375, %v395
        %v400 = vadd.f32 %v376, %v396
        %401 = vset.pattern.permute.xlu0 2
        %402 = vperm.xlu0 %401, %v334
        %v403 = vpop.permute.xlu0 %402
        %v405 = vperm.slane %v350, 2
        %v406 = vperm.slane %v350, 6
        %v407 = vperm.slane %v351, 2
        %v408 = vperm.slane %v351, 6
        %v413 = vperm.slane %v405, 2
        %v414 = vperm.slane %v406, 2
        %v415 = vperm.slane %v407, 2
        %v416 = vperm.slane %v408, 2
        %v417 = vmul.f32 %v403, %v413
        %v418 = vmul.f32 %v403, %v414
        %v419 = vmul.f32 %v403, %v415
        %v420 = vmul.f32 %v403, %v416
        %v421 = vadd.f32 %v397, %v417
        %v422 = vadd.f32 %v398, %v418
        %v423 = vadd.f32 %v399, %v419
        %v424 = vadd.f32 %v400, %v420
        %425 = vset.pattern.permute.xlu0 3
        %426 = vperm.xlu0 %425, %v334
        %v427 = vpop.permute.xlu0 %426
        %v429 = vperm.slane %v350, 3
        %v430 = vperm.slane %v350, 7
        %v431 = vperm.slane %v351, 3
        %v432 = vperm.slane %v351, 7
        %v437 = vperm.slane %v429, 3
        %v438 = vperm.slane %v430, 3
        %v439 = vperm.slane %v431, 3
        %v440 = vperm.slane %v432, 3
        %v441 = vmul.f32 %v427, %v437
        %v442 = vmul.f32 %v427, %v438
        %v443 = vmul.f32 %v427, %v439
        %v444 = vmul.f32 %v427, %v440
        %v445 = vadd.f32 %v421, %v441
        %v446 = vadd.f32 %v422, %v442
        %v447 = vadd.f32 %v423, %v443
        %v448 = vadd.f32 %v424, %v444
        %450 = vset.pattern.permute.xlu0 0
        %451 = vperm.xlu0 %450, %v335
        %v452 = vpop.permute.xlu0 %451
        %v454 = vadd.f32 %v445, %v452
        %v455 = vadd.f32 %v446, %v452
        %v456 = vadd.f32 %v447, %v452
        %v457 = vadd.f32 %v448, %v452
        %459 = vset.pattern.permute.xlu0 0
        %460 = vperm.xlu0 %459, %v338
        %v461 = vpop.permute.xlu0 %460
        %v463 = vmul.f32 %v461, %v361
        %v464 = vmul.f32 %v461, %v362
        %v465 = vmul.f32 %v461, %v363
        %v466 = vmul.f32 %v461, %v364
        %467 = vset.pattern.permute.xlu0 1
        %468 = vperm.xlu0 %467, %v338
        %v469 = vpop.permute.xlu0 %468
        %v471 = vmul.f32 %v469, %v381
        %v472 = vmul.f32 %v469, %v382
        %v473 = vmul.f32 %v469, %v383
        %v474 = vmul.f32 %v469, %v384
        %v475 = vadd.f32 %v463, %v471
        %v476 = vadd.f32 %v464, %v472
        %v477 = vadd.f32 %v465, %v473
        %v478 = vadd.f32 %v466, %v474
        %479 = vset.pattern.permute.xlu0 2
        %480 = vperm.xlu0 %479, %v338
        %v481 = vpop.permute.xlu0 %480
        %v483 = vmul.f32 %v481, %v405
        %v484 = vmul.f32 %v481, %v406
        %v485 = vmul.f32 %v481, %v407
        %v486 = vmul.f32 %v481, %v408
        %v487 = vadd.f32 %v475, %v483
        %v488 = vadd.f32 %v476, %v484
        %v489 = vadd.f32 %v477, %v485
        %v490 = vadd.f32 %v478, %v486
        %491 = vset.pattern.permute.xlu0 3
        %492 = vperm.xlu0 %491, %v338
        %v493 = vpop.permute.xlu0 %492
        %v495 = vmul.f32 %v493, %v429
        %v496 = vmul.f32 %v493, %v430
        %v497 = vmul.f32 %v493, %v431
        %v498 = vmul.f32 %v493, %v432
        %v499 = vadd.f32 %v487, %v495
        %v500 = vadd.f32 %v488, %v496
        %v501 = vadd.f32 %v489, %v497
        %v502 = vadd.f32 %v490, %v498
        %v503 = vrot.slane %v461, 1
        %v505 = vadd.f32 %v499, %v503
        %v506 = vadd.f32 %v500, %v503
        %v507 = vadd.f32 %v501, %v503
        %v508 = vadd.f32 %v502, %v503
        %510 = vset.pattern.permute.xlu0 0
        %511 = vperm.xlu0 %510, %v339
        %v512 = vpop.permute.xlu0 %511
        %v516 = vperm.slane %v352, 0
        %v517 = vperm.slane %v352, 4
        %v518 = vperm.slane %v353, 0
        %v519 = vperm.slane %v353, 4
        %v524 = vperm.slane %v516, 0
        %v525 = vperm.slane %v517, 0
        %v526 = vperm.slane %v518, 0
        %v527 = vperm.slane %v519, 0
        %v528 = vmul.f32 %v461, %v524
        %v529 = vmul.f32 %v461, %v525
        %v530 = vmul.f32 %v461, %v526
        %v531 = vmul.f32 %v461, %v527
        %v532 = vmul.f32 %v512, %v524
        %v533 = vmul.f32 %v512, %v525
        %v534 = vmul.f32 %v512, %v526
        %v535 = vmul.f32 %v512, %v527
        %536 = vset.pattern.permute.xlu0 1
        %537 = vperm.xlu0 %536, %v339
        %v538 = vpop.permute.xlu0 %537
        %v540 = vperm.slane %v352, 1
        %v541 = vperm.slane %v352, 5
        %v542 = vperm.slane %v353, 1
        %v543 = vperm.slane %v353, 5
        %v548 = vperm.slane %v540, 1
        %v549 = vperm.slane %v541, 1
        %v550 = vperm.slane %v542, 1
        %v551 = vperm.slane %v543, 1
        %v552 = vmul.f32 %v469, %v548
        %v553 = vmul.f32 %v469, %v549
        %v554 = vmul.f32 %v469, %v550
        %v555 = vmul.f32 %v469, %v551
        %v556 = vmul.f32 %v538, %v548
        %v557 = vmul.f32 %v538, %v549
        %v558 = vmul.f32 %v538, %v550
        %v559 = vmul.f32 %v538, %v551
        %v560 = vadd.f32 %v528, %v552
        %v561 = vadd.f32 %v529, %v553
        %v562 = vadd.f32 %v530, %v554
        %v563 = vadd.f32 %v531, %v555
        %v564 = vadd.f32 %v532, %v556
        %v565 = vadd.f32 %v533, %v557
        %v566 = vadd.f32 %v534, %v558
        %v567 = vadd.f32 %v535, %v559
        %568 = vset.pattern.permute.xlu0 2
        %569 = vperm.xlu0 %568, %v339
        %v570 = vpop.permute.xlu0 %569
        %v572 = vperm.slane %v352, 2
        %v573 = vperm.slane %v352, 6
        %v574 = vperm.slane %v353, 2
        %v575 = vperm.slane %v353, 6
        %v580 = vperm.slane %v572, 2
        %v581 = vperm.slane %v573, 2
        %v582 = vperm.slane %v574, 2
        %v583 = vperm.slane %v575, 2
        %v584 = vmul.f32 %v481, %v580
        %v585 = vmul.f32 %v481, %v581
        %v586 = vmul.f32 %v481, %v582
        %v587 = vmul.f32 %v481, %v583
        %v588 = vmul.f32 %v570, %v580
        %v589 = vmul.f32 %v570, %v581
        %v590 = vmul.f32 %v570, %v582
        %v591 = vmul.f32 %v570, %v583
        %v592 = vadd.f32 %v560, %v584
        %v593 = vadd.f32 %v561, %v585
        %v594 = vadd.f32 %v562, %v586
        %v595 = vadd.f32 %v563, %v587
        %v596 = vadd.f32 %v564, %v588
        %v597 = vadd.f32 %v565, %v589
        %v598 = vadd.f32 %v566, %v590
        %v599 = vadd.f32 %v567, %v591
        %v600 = vrot.slane %v512, 6
        %v602 = vadd.f32 %v592, %v600
        %v603 = vadd.f32 %v593, %v600
        %v604 = vadd.f32 %v594, %v600
        %v605 = vadd.f32 %v595, %v600
        %v606 = vadd.f32 %v596, %v600
        %v607 = vadd.f32 %v597, %v600
        %v608 = vadd.f32 %v598, %v600
        %v609 = vadd.f32 %v599, %v600
        %v610 = vld [vmem:[%s266] sm:$0xff]
        %v611 = vld [vmem:[%s266 + $0x8] sm:$0xff]
        %v612 = vld [vmem:[%s276] sm:$0x77]
        %v613 = vld [vmem:[%s276 + $0x8] sm:$0x77]
        %615 = vset.pattern.permute.xlu0 0
        %616 = vperm.xlu0 %615, %v336
        %v617 = vpop.permute.xlu0 %616
        %v621 = vperm.slane %v610, 0
        %v622 = vperm.slane %v610, 4
        %v623 = vperm.slane %v611, 0
        %v624 = vperm.slane %v611, 4
        %v629 = vperm.slane %v621, 0
        %v630 = vperm.slane %v622, 0
        %v631 = vperm.slane %v623, 0
        %v632 = vperm.slane %v624, 0
        %v633 = vmul.f32 %v617, %v629
        %v634 = vmul.f32 %v617, %v630
        %v635 = vmul.f32 %v617, %v631
        %v636 = vmul.f32 %v617, %v632
        %637 = vset.pattern.permute.xlu0 1
        %638 = vperm.xlu0 %637, %v336
        %v639 = vpop.permute.xlu0 %638
        %v641 = vperm.slane %v610, 1
        %v642 = vperm.slane %v610, 5
        %v643 = vperm.slane %v611, 1
        %v644 = vperm.slane %v611, 5
        %v649 = vperm.slane %v641, 1
        %v650 = vperm.slane %v642, 1
        %v651 = vperm.slane %v643, 1
        %v652 = vperm.slane %v644, 1
        %v653 = vmul.f32 %v639, %v649
        %v654 = vmul.f32 %v639, %v650
        %v655 = vmul.f32 %v639, %v651
        %v656 = vmul.f32 %v639, %v652
        %v657 = vadd.f32 %v633, %v653
        %v658 = vadd.f32 %v634, %v654
        %v659 = vadd.f32 %v635, %v655
        %v660 = vadd.f32 %v636, %v656
        %661 = vset.pattern.permute.xlu0 2
        %662 = vperm.xlu0 %661, %v336
        %v663 = vpop.permute.xlu0 %662
        %v665 = vperm.slane %v610, 2
        %v666 = vperm.slane %v610, 6
        %v667 = vperm.slane %v611, 2
        %v668 = vperm.slane %v611, 6
        %v673 = vperm.slane %v665, 2
        %v674 = vperm.slane %v666, 2
        %v675 = vperm.slane %v667, 2
        %v676 = vperm.slane %v668, 2
        %v677 = vmul.f32 %v663, %v673
        %v678 = vmul.f32 %v663, %v674
        %v679 = vmul.f32 %v663, %v675
        %v680 = vmul.f32 %v663, %v676
        %v681 = vadd.f32 %v657, %v677
        %v682 = vadd.f32 %v658, %v678
        %v683 = vadd.f32 %v659, %v679
        %v684 = vadd.f32 %v660, %v680
        %685 = vset.pattern.permute.xlu0 3
        %686 = vperm.xlu0 %685, %v336
        %v687 = vpop.permute.xlu0 %686
        %v689 = vperm.slane %v610, 3
        %v690 = vperm.slane %v610, 7
        %v691 = vperm.slane %v611, 3
        %v692 = vperm.slane %v611, 7
        %v697 = vperm.slane %v689, 3
        %v698 = vperm.slane %v690, 3
        %v699 = vperm.slane %v691, 3
        %v700 = vperm.slane %v692, 3
        %v701 = vmul.f32 %v687, %v697
        %v702 = vmul.f32 %v687, %v698
        %v703 = vmul.f32 %v687, %v699
        %v704 = vmul.f32 %v687, %v700
        %v705 = vadd.f32 %v681, %v701
        %v706 = vadd.f32 %v682, %v702
        %v707 = vadd.f32 %v683, %v703
        %v708 = vadd.f32 %v684, %v704
        %v709 = vmul.f32 %v461, %v621
        %v710 = vmul.f32 %v461, %v622
        %v711 = vmul.f32 %v461, %v623
        %v712 = vmul.f32 %v461, %v624
        %v713 = vmul.f32 %v469, %v641
        %v714 = vmul.f32 %v469, %v642
        %v715 = vmul.f32 %v469, %v643
        %v716 = vmul.f32 %v469, %v644
        %v717 = vadd.f32 %v709, %v713
        %v718 = vadd.f32 %v710, %v714
        %v719 = vadd.f32 %v711, %v715
        %v720 = vadd.f32 %v712, %v716
        %v721 = vmul.f32 %v481, %v665
        %v722 = vmul.f32 %v481, %v666
        %v723 = vmul.f32 %v481, %v667
        %v724 = vmul.f32 %v481, %v668
        %v725 = vadd.f32 %v717, %v721
        %v726 = vadd.f32 %v718, %v722
        %v727 = vadd.f32 %v719, %v723
        %v728 = vadd.f32 %v720, %v724
        %v729 = vmul.f32 %v493, %v689
        %v730 = vmul.f32 %v493, %v690
        %v731 = vmul.f32 %v493, %v691
        %v732 = vmul.f32 %v493, %v692
        %v733 = vadd.f32 %v725, %v729
        %v734 = vadd.f32 %v726, %v730
        %v735 = vadd.f32 %v727, %v731
        %v736 = vadd.f32 %v728, %v732
        %v741 = vrot.slane %v505, 1
        %v742 = vrot.slane %v506, 1
        %v743 = vrot.slane %v507, 1
        %v744 = vrot.slane %v508, 1
        %v749 = vadd.f32 %v733, %v741
        %v750 = vadd.f32 %v734, %v742
        %v751 = vadd.f32 %v735, %v743
        %v752 = vadd.f32 %v736, %v744
        %754 = vset.pattern.permute.xlu0 0
        %755 = vperm.xlu0 %754, %v344
        %v756 = vpop.permute.xlu0 %755
        %759 = vset.pattern.permute.xlu0 0
        %760 = vperm.xlu0 %759, %v345
        %v761 = vpop.permute.xlu0 %760
        %v765 = vperm.slane %v612, 0
        %v766 = vperm.slane %v612, 4
        %v767 = vperm.slane %v613, 0
        %v768 = vperm.slane %v613, 4
        %v773 = vperm.slane %v765, 0
        %v774 = vperm.slane %v766, 0
        %v775 = vperm.slane %v767, 0
        %v776 = vperm.slane %v768, 0
        %v777 = vmul.f32 %v756, %v773
        %v778 = vmul.f32 %v756, %v774
        %v779 = vmul.f32 %v756, %v775
        %v780 = vmul.f32 %v756, %v776
        %v781 = vmul.f32 %v761, %v773
        %v782 = vmul.f32 %v761, %v774
        %v783 = vmul.f32 %v761, %v775
        %v784 = vmul.f32 %v761, %v776
        %785 = vset.pattern.permute.xlu0 1
        %786 = vperm.xlu0 %785, %v344
        %v787 = vpop.permute.xlu0 %786
        %789 = vset.pattern.permute.xlu0 1
        %790 = vperm.xlu0 %789, %v345
        %v791 = vpop.permute.xlu0 %790
        %v793 = vperm.slane %v612, 1
        %v794 = vperm.slane %v612, 5
        %v795 = vperm.slane %v613, 1
        %v796 = vperm.slane %v613, 5
        %v801 = vperm.slane %v793, 1
        %v802 = vperm.slane %v794, 1
        %v803 = vperm.slane %v795, 1
        %v804 = vperm.slane %v796, 1
        %v805 = vmul.f32 %v787, %v801
        %v806 = vmul.f32 %v787, %v802
        %v807 = vmul.f32 %v787, %v803
        %v808 = vmul.f32 %v787, %v804
        %v809 = vmul.f32 %v791, %v801
        %v810 = vmul.f32 %v791, %v802
        %v811 = vmul.f32 %v791, %v803
        %v812 = vmul.f32 %v791, %v804
        %v813 = vadd.f32 %v777, %v805
        %v814 = vadd.f32 %v778, %v806
        %v815 = vadd.f32 %v779, %v807
        %v816 = vadd.f32 %v780, %v808
        %v817 = vadd.f32 %v781, %v809
        %v818 = vadd.f32 %v782, %v810
        %v819 = vadd.f32 %v783, %v811
        %v820 = vadd.f32 %v784, %v812
        %821 = vset.pattern.permute.xlu0 2
        %822 = vperm.xlu0 %821, %v344
        %v823 = vpop.permute.xlu0 %822
        %825 = vset.pattern.permute.xlu0 2
        %826 = vperm.xlu0 %825, %v345
        %v827 = vpop.permute.xlu0 %826
        %v829 = vperm.slane %v612, 2
        %v830 = vperm.slane %v612, 6
        %v831 = vperm.slane %v613, 2
        %v832 = vperm.slane %v613, 6
        %v837 = vperm.slane %v829, 2
        %v838 = vperm.slane %v830, 2
        %v839 = vperm.slane %v831, 2
        %v840 = vperm.slane %v832, 2
        %v841 = vmul.f32 %v823, %v837
        %v842 = vmul.f32 %v823, %v838
        %v843 = vmul.f32 %v823, %v839
        %v844 = vmul.f32 %v823, %v840
        %v845 = vmul.f32 %v827, %v837
        %v846 = vmul.f32 %v827, %v838
        %v847 = vmul.f32 %v827, %v839
        %v848 = vmul.f32 %v827, %v840
        %v849 = vadd.f32 %v813, %v841
        %v850 = vadd.f32 %v814, %v842
        %v851 = vadd.f32 %v815, %v843
        %v852 = vadd.f32 %v816, %v844
        %v853 = vadd.f32 %v817, %v845
        %v854 = vadd.f32 %v818, %v846
        %v855 = vadd.f32 %v819, %v847
        %v856 = vadd.f32 %v820, %v848
        %v857 = vrot.slane %v761, 4
        %v859 = vadd.f32 %v849, %v857
        %v860 = vadd.f32 %v850, %v857
        %v861 = vadd.f32 %v851, %v857
        %v862 = vadd.f32 %v852, %v857
        %v863 = vadd.f32 %v853, %v857
        %v864 = vadd.f32 %v854, %v857
        %v865 = vadd.f32 %v855, %v857
        %v866 = vadd.f32 %v856, %v857
        %v867 = vmax.f32 %v859, 0.0
        %v868 = vmax.f32 %v860, 0.0
        %v869 = vmax.f32 %v861, 0.0
        %v870 = vmax.f32 %v862, 0.0
        %v871 = vmax.f32 %v863, 0.0
        %v872 = vmax.f32 %v864, 0.0
        %v873 = vmax.f32 %v865, 0.0
        %v874 = vmax.f32 %v866, 0.0
        %876 = vset.pattern.permute.xlu0 0
        %877 = vperm.xlu0 %876, %v346
        %v878 = vpop.permute.xlu0 %877
        %v880 = vperm.slane %v867, 5
        %v881 = vperm.slane %v868, 5
        %v882 = vperm.slane %v869, 5
        %v883 = vperm.slane %v870, 5
        %v884 = vmul.f32 %v761, %v880
        %v885 = vmul.f32 %v761, %v881
        %v886 = vmul.f32 %v761, %v882
        %v887 = vmul.f32 %v761, %v883
        %v888 = vmul.f32 %v878, %v880
        %v889 = vmul.f32 %v878, %v881
        %v890 = vmul.f32 %v878, %v882
        %v891 = vmul.f32 %v878, %v883
        %892 = vset.pattern.permute.xlu0 1
        %893 = vperm.xlu0 %892, %v346
        %v894 = vpop.permute.xlu0 %893
        %v896 = vperm.slane %v867, 6
        %v897 = vperm.slane %v868, 6
        %v898 = vperm.slane %v869, 6
        %v899 = vperm.slane %v870, 6
        %v900 = vmul.f32 %v791, %v896
        %v901 = vmul.f32 %v791, %v897
        %v902 = vmul.f32 %v791, %v898
        %v903 = vmul.f32 %v791, %v899
        %v904 = vmul.f32 %v894, %v896
        %v905 = vmul.f32 %v894, %v897
        %v906 = vmul.f32 %v894, %v898
        %v907 = vmul.f32 %v894, %v899
        %v908 = vadd.f32 %v884, %v900
        %v909 = vadd.f32 %v885, %v901
        %v910 = vadd.f32 %v886, %v902
        %v911 = vadd.f32 %v887, %v903
        %v912 = vadd.f32 %v888, %v904
        %v913 = vadd.f32 %v889, %v905
        %v914 = vadd.f32 %v890, %v906
        %v915 = vadd.f32 %v891, %v907
        %916 = vset.pattern.permute.xlu0 2
        %917 = vperm.xlu0 %916, %v346
        %v918 = vpop.permute.xlu0 %917
        %v920 = vperm.slane %v867, 7
        %v921 = vperm.slane %v868, 7
        %v922 = vperm.slane %v869, 7
        %v923 = vperm.slane %v870, 7
        %v924 = vmul.f32 %v827, %v920
        %v925 = vmul.f32 %v827, %v921
        %v926 = vmul.f32 %v827, %v922
        %v927 = vmul.f32 %v827, %v923
        %v928 = vmul.f32 %v918, %v920
        %v929 = vmul.f32 %v918, %v921
        %v930 = vmul.f32 %v918, %v922
        %v931 = vmul.f32 %v918, %v923
        %v932 = vadd.f32 %v908, %v924
        %v933 = vadd.f32 %v909, %v925
        %v934 = vadd.f32 %v910, %v926
        %v935 = vadd.f32 %v911, %v927
        %v936 = vadd.f32 %v912, %v928
        %v937 = vadd.f32 %v913, %v929
        %v938 = vadd.f32 %v914, %v930
        %v939 = vadd.f32 %v915, %v931
        %940 = vset.pattern.permute.xlu0 3
        %941 = vperm.xlu0 %940, %v345
        %v942 = vpop.permute.xlu0 %941
        %944 = vset.pattern.permute.xlu0 3
        %945 = vperm.xlu0 %944, %v346
        %v946 = vpop.permute.xlu0 %945
        %v948 = vperm.slane %v871, 0
        %v949 = vperm.slane %v872, 0
        %v950 = vperm.slane %v873, 0
        %v951 = vperm.slane %v874, 0
        %v952 = vmul.f32 %v942, %v948
        %v953 = vmul.f32 %v942, %v949
        %v954 = vmul.f32 %v942, %v950
        %v955 = vmul.f32 %v942, %v951
        %v956 = vmul.f32 %v946, %v948
        %v957 = vmul.f32 %v946, %v949
        %v958 = vmul.f32 %v946, %v950
        %v959 = vmul.f32 %v946, %v951
        %v960 = vadd.f32 %v932, %v952
        %v961 = vadd.f32 %v933, %v953
        %v962 = vadd.f32 %v934, %v954
        %v963 = vadd.f32 %v935, %v955
        %v964 = vadd.f32 %v936, %v956
        %v965 = vadd.f32 %v937, %v957
        %v966 = vadd.f32 %v938, %v958
        %v967 = vadd.f32 %v939, %v959
        %v968 = vrot.slane %v878, 5
        %v970 = vadd.f32 %v960, %v968
        %v971 = vadd.f32 %v961, %v968
        %v972 = vadd.f32 %v962, %v968
        %v973 = vadd.f32 %v963, %v968
        %v974 = vadd.f32 %v964, %v968
        %v975 = vadd.f32 %v965, %v968
        %v976 = vadd.f32 %v966, %v968
        %v977 = vadd.f32 %v967, %v968
        %v978 = vmax.f32 %v970, 0.0
        %v979 = vmax.f32 %v971, 0.0
        %v980 = vmax.f32 %v972, 0.0
        %v981 = vmax.f32 %v973, 0.0
        %v982 = vmax.f32 %v974, 0.0
        %v983 = vmax.f32 %v975, 0.0
        %v984 = vmax.f32 %v976, 0.0
        %v985 = vmax.f32 %v977, 0.0
        %987 = vset.pattern.permute.xlu0 0
        %988 = vperm.xlu0 %987, %v347
        %v989 = vpop.permute.xlu0 %988
        %v991 = vperm.slane %v978, 5
        %v992 = vperm.slane %v979, 5
        %v993 = vperm.slane %v980, 5
        %v994 = vperm.slane %v981, 5
        %v995 = vmul.f32 %v878, %v991
        %v996 = vmul.f32 %v878, %v992
        %v997 = vmul.f32 %v878, %v993
        %v998 = vmul.f32 %v878, %v994
        %v999 = vmul.f32 %v989, %v991
        %v1000 = vmul.f32 %v989, %v992
        %v1001 = vmul.f32 %v989, %v993
        %v1002 = vmul.f32 %v989, %v994
        %1003 = vset.pattern.permute.xlu0 1
        %1004 = vperm.xlu0 %1003, %v347
        %v1005 = vpop.permute.xlu0 %1004
        %v1007 = vperm.slane %v978, 6
        %v1008 = vperm.slane %v979, 6
        %v1009 = vperm.slane %v980, 6
        %v1010 = vperm.slane %v981, 6
        %v1011 = vmul.f32 %v894, %v1007
        %v1012 = vmul.f32 %v894, %v1008
        %v1013 = vmul.f32 %v894, %v1009
        %v1014 = vmul.f32 %v894, %v1010
        %v1015 = vmul.f32 %v1005, %v1007
        %v1016 = vmul.f32 %v1005, %v1008
        %v1017 = vmul.f32 %v1005, %v1009
        %v1018 = vmul.f32 %v1005, %v1010
        %v1019 = vadd.f32 %v995, %v1011
        %v1020 = vadd.f32 %v996, %v1012
        %v1021 = vadd.f32 %v997, %v1013
        %v1022 = vadd.f32 %v998, %v1014
        %v1023 = vadd.f32 %v999, %v1015
        %v1024 = vadd.f32 %v1000, %v1016
        %v1025 = vadd.f32 %v1001, %v1017
        %v1026 = vadd.f32 %v1002, %v1018
        %1027 = vset.pattern.permute.xlu0 2
        %1028 = vperm.xlu0 %1027, %v347
        %v1029 = vpop.permute.xlu0 %1028
        %v1031 = vperm.slane %v978, 7
        %v1032 = vperm.slane %v979, 7
        %v1033 = vperm.slane %v980, 7
        %v1034 = vperm.slane %v981, 7
        %v1035 = vmul.f32 %v918, %v1031
        %v1036 = vmul.f32 %v918, %v1032
        %v1037 = vmul.f32 %v918, %v1033
        %v1038 = vmul.f32 %v918, %v1034
        %v1039 = vmul.f32 %v1029, %v1031
        %v1040 = vmul.f32 %v1029, %v1032
        %v1041 = vmul.f32 %v1029, %v1033
        %v1042 = vmul.f32 %v1029, %v1034
        %v1043 = vadd.f32 %v1019, %v1035
        %v1044 = vadd.f32 %v1020, %v1036
        %v1045 = vadd.f32 %v1021, %v1037
        %v1046 = vadd.f32 %v1022, %v1038
        %v1047 = vadd.f32 %v1023, %v1039
        %v1048 = vadd.f32 %v1024, %v1040
        %v1049 = vadd.f32 %v1025, %v1041
        %v1050 = vadd.f32 %v1026, %v1042
        %1051 = vset.pattern.permute.xlu0 3
        %1052 = vperm.xlu0 %1051, %v347
        %v1053 = vpop.permute.xlu0 %1052
        %v1055 = vperm.slane %v982, 0
        %v1056 = vperm.slane %v983, 0
        %v1057 = vperm.slane %v984, 0
        %v1058 = vperm.slane %v985, 0
        %v1059 = vmul.f32 %v946, %v1055
        %v1060 = vmul.f32 %v946, %v1056
        %v1061 = vmul.f32 %v946, %v1057
        %v1062 = vmul.f32 %v946, %v1058
        %v1063 = vmul.f32 %v1053, %v1055
        %v1064 = vmul.f32 %v1053, %v1056
        %v1065 = vmul.f32 %v1053, %v1057
        %v1066 = vmul.f32 %v1053, %v1058
        %v1067 = vadd.f32 %v1043, %v1059
        %v1068 = vadd.f32 %v1044, %v1060
        %v1069 = vadd.f32 %v1045, %v1061
        %v1070 = vadd.f32 %v1046, %v1062
        %v1071 = vadd.f32 %v1047, %v1063
        %v1072 = vadd.f32 %v1048, %v1064
        %v1073 = vadd.f32 %v1049, %v1065
        %v1074 = vadd.f32 %v1050, %v1066
        %1075 = vset.pattern.permute.xlu0 4
        %1076 = vperm.xlu0 %1075, %v346
        %v1077 = vpop.permute.xlu0 %1076
        %1079 = vset.pattern.permute.xlu0 4
        %1080 = vperm.xlu0 %1079, %v347
        %v1081 = vpop.permute.xlu0 %1080
        %v1083 = vperm.slane %v982, 1
        %v1084 = vperm.slane %v983, 1
        %v1085 = vperm.slane %v984, 1
        %v1086 = vperm.slane %v985, 1
        %v1087 = vmul.f32 %v1077, %v1083
        %v1088 = vmul.f32 %v1077, %v1084
        %v1089 = vmul.f32 %v1077, %v1085
        %v1090 = vmul.f32 %v1077, %v1086
        %v1091 = vmul.f32 %v1081, %v1083
        %v1092 = vmul.f32 %v1081, %v1084
        %v1093 = vmul.f32 %v1081, %v1085
        %v1094 = vmul.f32 %v1081, %v1086
        %v1095 = vadd.f32 %v1067, %v1087
        %v1096 = vadd.f32 %v1068, %v1088
        %v1097 = vadd.f32 %v1069, %v1089
        %v1098 = vadd.f32 %v1070, %v1090
        %v1099 = vadd.f32 %v1071, %v1091
        %v1100 = vadd.f32 %v1072, %v1092
        %v1101 = vadd.f32 %v1073, %v1093
        %v1102 = vadd.f32 %v1074, %v1094
        %v1103 = vrot.slane %v989, 4
        %v1105 = vadd.f32 %v1095, %v1103
        %v1106 = vadd.f32 %v1096, %v1103
        %v1107 = vadd.f32 %v1097, %v1103
        %v1108 = vadd.f32 %v1098, %v1103
        %v1109 = vadd.f32 %v1099, %v1103
        %v1110 = vadd.f32 %v1100, %v1103
        %v1111 = vadd.f32 %v1101, %v1103
        %v1112 = vadd.f32 %v1102, %v1103
        %v1113 = vmax.f32 %v1105, 0.0
        %v1114 = vmax.f32 %v1106, 0.0
        %v1115 = vmax.f32 %v1107, 0.0
        %v1116 = vmax.f32 %v1108, 0.0
        %v1117 = vmax.f32 %v1109, 0.0
        %v1118 = vmax.f32 %v1110, 0.0
        %v1119 = vmax.f32 %v1111, 0.0
        %v1120 = vmax.f32 %v1112, 0.0
        %1122 = vset.pattern.permute.xlu0 0
        %1123 = vperm.xlu0 %1122, %v348
        %v1124 = vpop.permute.xlu0 %1123
        %v1126 = vperm.slane %v1113, 7
        %v1127 = vperm.slane %v1114, 7
        %v1128 = vperm.slane %v1115, 7
        %v1129 = vperm.slane %v1116, 7
        %v1130 = vmul.f32 %v989, %v1126
        %v1131 = vmul.f32 %v989, %v1127
        %v1132 = vmul.f32 %v989, %v1128
        %v1133 = vmul.f32 %v989, %v1129
        %v1134 = vmul.f32 %v1124, %v1126
        %v1135 = vmul.f32 %v1124, %v1127
        %v1136 = vmul.f32 %v1124, %v1128
        %v1137 = vmul.f32 %v1124, %v1129
        %1138 = vset.pattern.permute.xlu0 1
        %1139 = vperm.xlu0 %1138, %v348
        %v1140 = vpop.permute.xlu0 %1139
        %v1142 = vperm.slane %v1117, 0
        %v1143 = vperm.slane %v1118, 0
        %v1144 = vperm.slane %v1119, 0
        %v1145 = vperm.slane %v1120, 0
        %v1146 = vmul.f32 %v1005, %v1142
        %v1147 = vmul.f32 %v1005, %v1143
        %v1148 = vmul.f32 %v1005, %v1144
        %v1149 = vmul.f32 %v1005, %v1145
        %v1150 = vmul.f32 %v1140, %v1142
        %v1151 = vmul.f32 %v1140, %v1143
        %v1152 = vmul.f32 %v1140, %v1144
        %v1153 = vmul.f32 %v1140, %v1145
        %v1154 = vadd.f32 %v1130, %v1146
        %v1155 = vadd.f32 %v1131, %v1147
        %v1156 = vadd.f32 %v1132, %v1148
        %v1157 = vadd.f32 %v1133, %v1149
        %v1158 = vadd.f32 %v1134, %v1150
        %v1159 = vadd.f32 %v1135, %v1151
        %v1160 = vadd.f32 %v1136, %v1152
        %v1161 = vadd.f32 %v1137, %v1153
        %1162 = vset.pattern.permute.xlu0 2
        %1163 = vperm.xlu0 %1162, %v348
        %v1164 = vpop.permute.xlu0 %1163
        %v1166 = vperm.slane %v1117, 1
        %v1167 = vperm.slane %v1118, 1
        %v1168 = vperm.slane %v1119, 1
        %v1169 = vperm.slane %v1120, 1
        %v1170 = vmul.f32 %v1029, %v1166
        %v1171 = vmul.f32 %v1029, %v1167
        %v1172 = vmul.f32 %v1029, %v1168
        %v1173 = vmul.f32 %v1029, %v1169
        %v1174 = vmul.f32 %v1164, %v1166
        %v1175 = vmul.f32 %v1164, %v1167
        %v1176 = vmul.f32 %v1164, %v1168
        %v1177 = vmul.f32 %v1164, %v1169
        %v1178 = vadd.f32 %v1154, %v1170
        %v1179 = vadd.f32 %v1155, %v1171
        %v1180 = vadd.f32 %v1156, %v1172
        %v1181 = vadd.f32 %v1157, %v1173
        %v1182 = vadd.f32 %v1158, %v1174
        %v1183 = vadd.f32 %v1159, %v1175
        %v1184 = vadd.f32 %v1160, %v1176
        %v1185 = vadd.f32 %v1161, %v1177
        %1186 = vset.pattern.permute.xlu0 3
        %1187 = vperm.xlu0 %1186, %v348
        %v1188 = vpop.permute.xlu0 %1187
        %v1190 = vperm.slane %v1117, 2
        %v1191 = vperm.slane %v1118, 2
        %v1192 = vperm.slane %v1119, 2
        %v1193 = vperm.slane %v1120, 2
        %v1194 = vmul.f32 %v1053, %v1190
        %v1195 = vmul.f32 %v1053, %v1191
        %v1196 = vmul.f32 %v1053, %v1192
        %v1197 = vmul.f32 %v1053, %v1193
        %v1198 = vmul.f32 %v1188, %v1190
        %v1199 = vmul.f32 %v1188, %v1191
        %v1200 = vmul.f32 %v1188, %v1192
        %v1201 = vmul.f32 %v1188, %v1193
        %v1202 = vadd.f32 %v1178, %v1194
        %v1203 = vadd.f32 %v1179, %v1195
        %v1204 = vadd.f32 %v1180, %v1196
        %v1205 = vadd.f32 %v1181, %v1197
        %v1206 = vadd.f32 %v1182, %v1198
        %v1207 = vadd.f32 %v1183, %v1199
        %v1208 = vadd.f32 %v1184, %v1200
        %v1209 = vadd.f32 %v1185, %v1201
        %1211 = vset.pattern.permute.xlu0 0
        %1212 = vperm.xlu0 %1211, %v349
        %v1213 = vpop.permute.xlu0 %1212
        %vm1214 = vcmask 1041408
        %v1215 = vrot.slane %v1124, 6
        %v1216 = vrot.slane %v1213, 6
        %v1217 = vsel %vm1214, %v1215, %v1216
        %v1220 = vadd.f32 %v1202, %v1215
        %v1221 = vadd.f32 %v1203, %v1215
        %v1222 = vadd.f32 %v1204, %v1215
        %v1223 = vadd.f32 %v1205, %v1215
        %v1224 = vadd.f32 %v1206, %v1217
        %v1225 = vadd.f32 %v1207, %v1217
        %v1226 = vadd.f32 %v1208, %v1217
        %v1227 = vadd.f32 %v1209, %v1217
        %v1228 = vadd.f32 %v1220, 0.0
        %v1229 = vadd.f32 %v1221, 0.0
        %v1230 = vadd.f32 %v1222, 0.0
        %v1231 = vadd.f32 %v1223, 0.0
        %v1232 = vadd.f32 %v1224, 0.0
        %v1233 = vadd.f32 %v1225, 0.0
        %v1234 = vadd.f32 %v1226, 0.0
        %v1235 = vadd.f32 %v1227, 0.0
        %v1236 = vsub.f32 %v352, %v612
        %v1237 = vsub.f32 %v353, %v613
        %1239 = vset.pattern.permute.xlu0 0
        %1240 = vperm.xlu0 %1239, %v340
        %v1241 = vpop.permute.xlu0 %1240
        %v1245 = vperm.slane %v1236, 0
        %v1246 = vperm.slane %v1236, 4
        %v1247 = vperm.slane %v1237, 0
        %v1248 = vperm.slane %v1237, 4
        %v1253 = vperm.slane %v1245, 0
        %v1254 = vperm.slane %v1246, 0
        %v1255 = vperm.slane %v1247, 0
        %v1256 = vperm.slane %v1248, 0
        %v1257 = vmul.f32 %v512, %v1253
        %v1258 = vmul.f32 %v512, %v1254
        %v1259 = vmul.f32 %v512, %v1255
        %v1260 = vmul.f32 %v512, %v1256
        %v1261 = vmul.f32 %v1241, %v1253
        %v1262 = vmul.f32 %v1241, %v1254
        %v1263 = vmul.f32 %v1241, %v1255
        %v1264 = vmul.f32 %v1241, %v1256
        %1265 = vset.pattern.permute.xlu0 1
        %1266 = vperm.xlu0 %1265, %v340
        %v1267 = vpop.permute.xlu0 %1266
        %v1269 = vperm.slane %v1236, 1
        %v1270 = vperm.slane %v1236, 5
        %v1271 = vperm.slane %v1237, 1
        %v1272 = vperm.slane %v1237, 5
        %v1277 = vperm.slane %v1269, 1
        %v1278 = vperm.slane %v1270, 1
        %v1279 = vperm.slane %v1271, 1
        %v1280 = vperm.slane %v1272, 1
        %v1281 = vmul.f32 %v538, %v1277
        %v1282 = vmul.f32 %v538, %v1278
        %v1283 = vmul.f32 %v538, %v1279
        %v1284 = vmul.f32 %v538, %v1280
        %v1285 = vmul.f32 %v1267, %v1277
        %v1286 = vmul.f32 %v1267, %v1278
        %v1287 = vmul.f32 %v1267, %v1279
        %v1288 = vmul.f32 %v1267, %v1280
        %v1289 = vadd.f32 %v1257, %v1281
        %v1290 = vadd.f32 %v1258, %v1282
        %v1291 = vadd.f32 %v1259, %v1283
        %v1292 = vadd.f32 %v1260, %v1284
        %v1293 = vadd.f32 %v1261, %v1285
        %v1294 = vadd.f32 %v1262, %v1286
        %v1295 = vadd.f32 %v1263, %v1287
        %v1296 = vadd.f32 %v1264, %v1288
        %1297 = vset.pattern.permute.xlu0 2
        %1298 = vperm.xlu0 %1297, %v340
        %v1299 = vpop.permute.xlu0 %1298
        %v1301 = vperm.slane %v1236, 2
        %v1302 = vperm.slane %v1236, 6
        %v1303 = vperm.slane %v1237, 2
        %v1304 = vperm.slane %v1237, 6
        %v1309 = vperm.slane %v1301, 2
        %v1310 = vperm.slane %v1302, 2
        %v1311 = vperm.slane %v1303, 2
        %v1312 = vperm.slane %v1304, 2
        %v1313 = vmul.f32 %v570, %v1309
        %v1314 = vmul.f32 %v570, %v1310
        %v1315 = vmul.f32 %v570, %v1311
        %v1316 = vmul.f32 %v570, %v1312
        %v1317 = vmul.f32 %v1299, %v1309
        %v1318 = vmul.f32 %v1299, %v1310
        %v1319 = vmul.f32 %v1299, %v1311
        %v1320 = vmul.f32 %v1299, %v1312
        %v1321 = vadd.f32 %v1289, %v1313
        %v1322 = vadd.f32 %v1290, %v1314
        %v1323 = vadd.f32 %v1291, %v1315
        %v1324 = vadd.f32 %v1292, %v1316
        %v1325 = vadd.f32 %v1293, %v1317
        %v1326 = vadd.f32 %v1294, %v1318
        %v1327 = vadd.f32 %v1295, %v1319
        %v1328 = vadd.f32 %v1296, %v1320
        %v1329 = vrot.slane %v1241, 4
        %v1331 = vadd.f32 %v1321, %v1329
        %v1332 = vadd.f32 %v1322, %v1329
        %v1333 = vadd.f32 %v1323, %v1329
        %v1334 = vadd.f32 %v1324, %v1329
        %v1335 = vadd.f32 %v1325, %v1329
        %v1336 = vadd.f32 %v1326, %v1329
        %v1337 = vadd.f32 %v1327, %v1329
        %v1338 = vadd.f32 %v1328, %v1329
        %v1339 = vmax.f32 %v1331, 0.0
        %v1340 = vmax.f32 %v1332, 0.0
        %v1341 = vmax.f32 %v1333, 0.0
        %v1342 = vmax.f32 %v1334, 0.0
        %v1343 = vmax.f32 %v1335, 0.0
        %v1344 = vmax.f32 %v1336, 0.0
        %v1345 = vmax.f32 %v1337, 0.0
        %v1346 = vmax.f32 %v1338, 0.0
        %1348 = vset.pattern.permute.xlu0 0
        %1349 = vperm.xlu0 %1348, %v341
        %v1350 = vpop.permute.xlu0 %1349
        %v1352 = vperm.slane %v1339, 7
        %v1353 = vperm.slane %v1340, 7
        %v1354 = vperm.slane %v1341, 7
        %v1355 = vperm.slane %v1342, 7
        %v1356 = vmul.f32 %v1241, %v1352
        %v1357 = vmul.f32 %v1241, %v1353
        %v1358 = vmul.f32 %v1241, %v1354
        %v1359 = vmul.f32 %v1241, %v1355
        %v1360 = vmul.f32 %v1350, %v1352
        %v1361 = vmul.f32 %v1350, %v1353
        %v1362 = vmul.f32 %v1350, %v1354
        %v1363 = vmul.f32 %v1350, %v1355
        %1364 = vset.pattern.permute.xlu0 1
        %1365 = vperm.xlu0 %1364, %v341
        %v1366 = vpop.permute.xlu0 %1365
        %v1368 = vperm.slane %v1343, 0
        %v1369 = vperm.slane %v1344, 0
        %v1370 = vperm.slane %v1345, 0
        %v1371 = vperm.slane %v1346, 0
        %v1372 = vmul.f32 %v1267, %v1368
        %v1373 = vmul.f32 %v1267, %v1369
        %v1374 = vmul.f32 %v1267, %v1370
        %v1375 = vmul.f32 %v1267, %v1371
        %v1376 = vmul.f32 %v1366, %v1368
        %v1377 = vmul.f32 %v1366, %v1369
        %v1378 = vmul.f32 %v1366, %v1370
        %v1379 = vmul.f32 %v1366, %v1371
        %v1380 = vadd.f32 %v1356, %v1372
        %v1381 = vadd.f32 %v1357, %v1373
        %v1382 = vadd.f32 %v1358, %v1374
        %v1383 = vadd.f32 %v1359, %v1375
        %v1384 = vadd.f32 %v1360, %v1376
        %v1385 = vadd.f32 %v1361, %v1377
        %v1386 = vadd.f32 %v1362, %v1378
        %v1387 = vadd.f32 %v1363, %v1379
        %1388 = vset.pattern.permute.xlu0 2
        %1389 = vperm.xlu0 %1388, %v341
        %v1390 = vpop.permute.xlu0 %1389
        %v1392 = vperm.slane %v1343, 1
        %v1393 = vperm.slane %v1344, 1
        %v1394 = vperm.slane %v1345, 1
        %v1395 = vperm.slane %v1346, 1
        %v1396 = vmul.f32 %v1299, %v1392
        %v1397 = vmul.f32 %v1299, %v1393
        %v1398 = vmul.f32 %v1299, %v1394
        %v1399 = vmul.f32 %v1299, %v1395
        %v1400 = vmul.f32 %v1390, %v1392
        %v1401 = vmul.f32 %v1390, %v1393
        %v1402 = vmul.f32 %v1390, %v1394
        %v1403 = vmul.f32 %v1390, %v1395
        %v1404 = vadd.f32 %v1380, %v1396
        %v1405 = vadd.f32 %v1381, %v1397
        %v1406 = vadd.f32 %v1382, %v1398
        %v1407 = vadd.f32 %v1383, %v1399
        %v1408 = vadd.f32 %v1384, %v1400
        %v1409 = vadd.f32 %v1385, %v1401
        %v1410 = vadd.f32 %v1386, %v1402
        %v1411 = vadd.f32 %v1387, %v1403
        %1412 = vset.pattern.permute.xlu0 3
        %1413 = vperm.xlu0 %1412, %v340
        %v1414 = vpop.permute.xlu0 %1413
        %1416 = vset.pattern.permute.xlu0 3
        %1417 = vperm.xlu0 %1416, %v341
        %v1418 = vpop.permute.xlu0 %1417
        %v1420 = vperm.slane %v1343, 2
        %v1421 = vperm.slane %v1344, 2
        %v1422 = vperm.slane %v1345, 2
        %v1423 = vperm.slane %v1346, 2
        %v1424 = vmul.f32 %v1414, %v1420
        %v1425 = vmul.f32 %v1414, %v1421
        %v1426 = vmul.f32 %v1414, %v1422
        %v1427 = vmul.f32 %v1414, %v1423
        %v1428 = vmul.f32 %v1418, %v1420
        %v1429 = vmul.f32 %v1418, %v1421
        %v1430 = vmul.f32 %v1418, %v1422
        %v1431 = vmul.f32 %v1418, %v1423
        %v1432 = vadd.f32 %v1404, %v1424
        %v1433 = vadd.f32 %v1405, %v1425
        %v1434 = vadd.f32 %v1406, %v1426
        %v1435 = vadd.f32 %v1407, %v1427
        %v1436 = vadd.f32 %v1408, %v1428
        %v1437 = vadd.f32 %v1409, %v1429
        %v1438 = vadd.f32 %v1410, %v1430
        %v1439 = vadd.f32 %v1411, %v1431
        %1441 = vset.pattern.permute.xlu0 0
        %1442 = vperm.xlu0 %1441, %v342
        %v1443 = vpop.permute.xlu0 %1442
        %vm1444 = vcmask 1042432
        %v1445 = vrot.slane %v1350, 5
        %v1446 = vrot.slane %v1443, 5
        %v1447 = vsel %vm1444, %v1445, %v1446
        %v1450 = vadd.f32 %v1432, %v1445
        %v1451 = vadd.f32 %v1433, %v1445
        %v1452 = vadd.f32 %v1434, %v1445
        %v1453 = vadd.f32 %v1435, %v1445
        %v1454 = vadd.f32 %v1436, %v1447
        %v1455 = vadd.f32 %v1437, %v1447
        %v1456 = vadd.f32 %v1438, %v1447
        %v1457 = vadd.f32 %v1439, %v1447
        %v1458 = vmax.f32 %v1450, 0.0
        %v1459 = vmax.f32 %v1451, 0.0
        %v1460 = vmax.f32 %v1452, 0.0
        %v1461 = vmax.f32 %v1453, 0.0
        %v1462 = vmax.f32 %v1454, 0.0
        %v1463 = vmax.f32 %v1455, 0.0
        %v1464 = vmax.f32 %v1456, 0.0
        %v1465 = vmax.f32 %v1457, 0.0
        %v1467 = vperm.slane %v1458, 7
        %v1468 = vperm.slane %v1459, 7
        %v1469 = vperm.slane %v1460, 7
        %v1470 = vperm.slane %v1461, 7
        %v1471 = vmul.f32 %v1443, %v1467
        %v1472 = vmul.f32 %v1443, %v1468
        %v1473 = vmul.f32 %v1443, %v1469
        %v1474 = vmul.f32 %v1443, %v1470
        %1475 = vset.pattern.permute.xlu0 1
        %1476 = vperm.xlu0 %1475, %v342
        %v1477 = vpop.permute.xlu0 %1476
        %v1479 = vperm.slane %v1462, 0
        %v1480 = vperm.slane %v1463, 0
        %v1481 = vperm.slane %v1464, 0
        %v1482 = vperm.slane %v1465, 0
        %v1483 = vmul.f32 %v1477, %v1479
        %v1484 = vmul.f32 %v1477, %v1480
        %v1485 = vmul.f32 %v1477, %v1481
        %v1486 = vmul.f32 %v1477, %v1482
        %v1487 = vadd.f32 %v1471, %v1483
        %v1488 = vadd.f32 %v1472, %v1484
        %v1489 = vadd.f32 %v1473, %v1485
        %v1490 = vadd.f32 %v1474, %v1486
        %1491 = vset.pattern.permute.xlu0 2
        %1492 = vperm.xlu0 %1491, %v342
        %v1493 = vpop.permute.xlu0 %1492
        %v1495 = vperm.slane %v1462, 1
        %v1496 = vperm.slane %v1463, 1
        %v1497 = vperm.slane %v1464, 1
        %v1498 = vperm.slane %v1465, 1
        %v1499 = vmul.f32 %v1493, %v1495
        %v1500 = vmul.f32 %v1493, %v1496
        %v1501 = vmul.f32 %v1493, %v1497
        %v1502 = vmul.f32 %v1493, %v1498
        %v1503 = vadd.f32 %v1487, %v1499
        %v1504 = vadd.f32 %v1488, %v1500
        %v1505 = vadd.f32 %v1489, %v1501
        %v1506 = vadd.f32 %v1490, %v1502
        %1507 = vset.pattern.permute.xlu0 3
        %1508 = vperm.xlu0 %1507, %v342
        %v1509 = vpop.permute.xlu0 %1508
        %v1511 = vperm.slane %v1462, 2
        %v1512 = vperm.slane %v1463, 2
        %v1513 = vperm.slane %v1464, 2
        %v1514 = vperm.slane %v1465, 2
        %v1515 = vmul.f32 %v1509, %v1511
        %v1516 = vmul.f32 %v1509, %v1512
        %v1517 = vmul.f32 %v1509, %v1513
        %v1518 = vmul.f32 %v1509, %v1514
        %v1519 = vadd.f32 %v1503, %v1515
        %v1520 = vadd.f32 %v1504, %v1516
        %v1521 = vadd.f32 %v1505, %v1517
        %v1522 = vadd.f32 %v1506, %v1518
        %1523 = vset.pattern.permute.xlu0 4
        %1524 = vperm.xlu0 %1523, %v342
        %v1525 = vpop.permute.xlu0 %1524
        %v1527 = vperm.slane %v1462, 3
        %v1528 = vperm.slane %v1463, 3
        %v1529 = vperm.slane %v1464, 3
        %v1530 = vperm.slane %v1465, 3
        %v1531 = vmul.f32 %v1525, %v1527
        %v1532 = vmul.f32 %v1525, %v1528
        %v1533 = vmul.f32 %v1525, %v1529
        %v1534 = vmul.f32 %v1525, %v1530
        %v1535 = vadd.f32 %v1519, %v1531
        %v1536 = vadd.f32 %v1520, %v1532
        %v1537 = vadd.f32 %v1521, %v1533
        %v1538 = vadd.f32 %v1522, %v1534
        %1540 = vset.pattern.permute.xlu0 0
        %1541 = vperm.xlu0 %1540, %v343
        %v1542 = vpop.permute.xlu0 %1541
        %vm1543 = vcmask 1043456
        %v1544 = vrot.slane %v1443, 4
        %v1545 = vrot.slane %v1542, 4
        %v1546 = vsel %vm1543, %v1544, %v1545
        %v1548 = vadd.f32 %v1535, %v1546
        %v1549 = vadd.f32 %v1536, %v1546
        %v1550 = vadd.f32 %v1537, %v1546
        %v1551 = vadd.f32 %v1538, %v1546
        %v1552 = vmax.f32 %v1548, 0.0
        %v1553 = vmax.f32 %v1549, 0.0
        %v1554 = vmax.f32 %v1550, 0.0
        %v1555 = vmax.f32 %v1551, 0.0
        %v1557 = vperm.slane %v1552, 1
        %v1558 = vperm.slane %v1553, 1
        %v1559 = vperm.slane %v1554, 1
        %v1560 = vperm.slane %v1555, 1
        %v1561 = vmul.f32 %v1542, %v1557
        %v1562 = vmul.f32 %v1542, %v1558
        %v1563 = vmul.f32 %v1542, %v1559
        %v1564 = vmul.f32 %v1542, %v1560
        %1565 = vset.pattern.permute.xlu0 1
        %1566 = vperm.xlu0 %1565, %v343
        %v1567 = vpop.permute.xlu0 %1566
        %v1569 = vperm.slane %v1552, 2
        %v1570 = vperm.slane %v1553, 2
        %v1571 = vperm.slane %v1554, 2
        %v1572 = vperm.slane %v1555, 2
        %v1573 = vmul.f32 %v1567, %v1569
        %v1574 = vmul.f32 %v1567, %v1570
        %v1575 = vmul.f32 %v1567, %v1571
        %v1576 = vmul.f32 %v1567, %v1572
        %v1577 = vadd.f32 %v1561, %v1573
        %v1578 = vadd.f32 %v1562, %v1574
        %v1579 = vadd.f32 %v1563, %v1575
        %v1580 = vadd.f32 %v1564, %v1576
        %1581 = vset.pattern.permute.xlu0 2
        %1582 = vperm.xlu0 %1581, %v343
        %v1583 = vpop.permute.xlu0 %1582
        %v1585 = vperm.slane %v1552, 3
        %v1586 = vperm.slane %v1553, 3
        %v1587 = vperm.slane %v1554, 3
        %v1588 = vperm.slane %v1555, 3
        %v1589 = vmul.f32 %v1583, %v1585
        %v1590 = vmul.f32 %v1583, %v1586
        %v1591 = vmul.f32 %v1583, %v1587
        %v1592 = vmul.f32 %v1583, %v1588
        %v1593 = vadd.f32 %v1577, %v1589
        %v1594 = vadd.f32 %v1578, %v1590
        %v1595 = vadd.f32 %v1579, %v1591
        %v1596 = vadd.f32 %v1580, %v1592
        %1597 = vset.pattern.permute.xlu0 3
        %1598 = vperm.xlu0 %1597, %v343
        %v1599 = vpop.permute.xlu0 %1598
        %v1601 = vperm.slane %v1552, 4
        %v1602 = vperm.slane %v1553, 4
        %v1603 = vperm.slane %v1554, 4
        %v1604 = vperm.slane %v1555, 4
        %v1605 = vmul.f32 %v1599, %v1601
        %v1606 = vmul.f32 %v1599, %v1602
        %v1607 = vmul.f32 %v1599, %v1603
        %v1608 = vmul.f32 %v1599, %v1604
        %v1609 = vadd.f32 %v1593, %v1605
        %v1610 = vadd.f32 %v1594, %v1606
        %v1611 = vadd.f32 %v1595, %v1607
        %v1612 = vadd.f32 %v1596, %v1608
        %v1613 = vrot.slane %v1542, 6
        %v1614 = vrot.slane %v756, 6
        %v1615 = vsel %vm1214, %v1613, %v1614
        %v1617 = vadd.f32 %v1609, %v1615
        %v1618 = vadd.f32 %v1610, %v1615
        %v1619 = vadd.f32 %v1611, %v1615
        %v1620 = vadd.f32 %v1612, %v1615
        %v1625 = vrot.slane %v1617, 2
        %v1626 = vrot.slane %v1618, 2
        %v1627 = vrot.slane %v1619, 2
        %v1628 = vrot.slane %v1620, 2
        %v1633 = vadd.f32 %v1228, %v1625
        %v1634 = vadd.f32 %v1229, %v1626
        %v1635 = vadd.f32 %v1230, %v1627
        %v1636 = vadd.f32 %v1231, %v1628
        %v1637 = vadd.f32 %v1232, %v1625
        %v1638 = vadd.f32 %v1233, %v1626
        %v1639 = vadd.f32 %v1234, %v1627
        %v1640 = vadd.f32 %v1235, %v1628
        %s1641 = scalar_lea.vmem %s266, 16 [#allocation2]
        %v1642 = vld [vmem:[%s1641] sm:$0xff]
        %v1643 = vld [vmem:[%s1641 + $0x8] sm:$0xff]
        %s1644 = scalar_lea.vmem %s276, 16 [#allocation5]
        %v1645 = vld [vmem:[%s1644] sm:$0x77]
        %v1646 = vld [vmem:[%s1644 + $0x8] sm:$0x77]
        %v1649 = vperm.slane %v1642, 0
        %v1650 = vperm.slane %v1642, 4
        %v1651 = vperm.slane %v1643, 0
        %v1652 = vperm.slane %v1643, 4
        %v1657 = vperm.slane %v1649, 0
        %v1658 = vperm.slane %v1650, 0
        %v1659 = vperm.slane %v1651, 0
        %v1660 = vperm.slane %v1652, 0
        %v1661 = vmul.f32 %v617, %v1657
        %v1662 = vmul.f32 %v617, %v1658
        %v1663 = vmul.f32 %v617, %v1659
        %v1664 = vmul.f32 %v617, %v1660
        %v1665 = vperm.slane %v1642, 1
        %v1666 = vperm.slane %v1642, 5
        %v1667 = vperm.slane %v1643, 1
        %v1668 = vperm.slane %v1643, 5
        %v1673 = vperm.slane %v1665, 1
        %v1674 = vperm.slane %v1666, 1
        %v1675 = vperm.slane %v1667, 1
        %v1676 = vperm.slane %v1668, 1
        %v1677 = vmul.f32 %v639, %v1673
        %v1678 = vmul.f32 %v639, %v1674
        %v1679 = vmul.f32 %v639, %v1675
        %v1680 = vmul.f32 %v639, %v1676
        %v1681 = vadd.f32 %v1661, %v1677
        %v1682 = vadd.f32 %v1662, %v1678
        %v1683 = vadd.f32 %v1663, %v1679
        %v1684 = vadd.f32 %v1664, %v1680
        %v1685 = vperm.slane %v1642, 2
        %v1686 = vperm.slane %v1642, 6
        %v1687 = vperm.slane %v1643, 2
        %v1688 = vperm.slane %v1643, 6
        %v1693 = vperm.slane %v1685, 2
        %v1694 = vperm.slane %v1686, 2
        %v1695 = vperm.slane %v1687, 2
        %v1696 = vperm.slane %v1688, 2
        %v1697 = vmul.f32 %v663, %v1693
        %v1698 = vmul.f32 %v663, %v1694
        %v1699 = vmul.f32 %v663, %v1695
        %v1700 = vmul.f32 %v663, %v1696
        %v1701 = vadd.f32 %v1681, %v1697
        %v1702 = vadd.f32 %v1682, %v1698
        %v1703 = vadd.f32 %v1683, %v1699
        %v1704 = vadd.f32 %v1684, %v1700
        %v1705 = vperm.slane %v1642, 3
        %v1706 = vperm.slane %v1642, 7
        %v1707 = vperm.slane %v1643, 3
        %v1708 = vperm.slane %v1643, 7
        %v1713 = vperm.slane %v1705, 3
        %v1714 = vperm.slane %v1706, 3
        %v1715 = vperm.slane %v1707, 3
        %v1716 = vperm.slane %v1708, 3
        %v1717 = vmul.f32 %v687, %v1713
        %v1718 = vmul.f32 %v687, %v1714
        %v1719 = vmul.f32 %v687, %v1715
        %v1720 = vmul.f32 %v687, %v1716
        %v1721 = vadd.f32 %v1701, %v1717
        %v1722 = vadd.f32 %v1702, %v1718
        %v1723 = vadd.f32 %v1703, %v1719
        %v1724 = vadd.f32 %v1704, %v1720
        %v1725 = vmax.f32 %v705, %v1721
        %v1726 = vmax.f32 %v706, %v1722
        %v1727 = vmax.f32 %v707, %v1723
        %v1728 = vmax.f32 %v708, %v1724
        %v1729 = vmul.f32 %v461, %v1649
        %v1730 = vmul.f32 %v461, %v1650
        %v1731 = vmul.f32 %v461, %v1651
        %v1732 = vmul.f32 %v461, %v1652
        %v1733 = vmul.f32 %v469, %v1665
        %v1734 = vmul.f32 %v469, %v1666
        %v1735 = vmul.f32 %v469, %v1667
        %v1736 = vmul.f32 %v469, %v1668
        %v1737 = vadd.f32 %v1729, %v1733
        %v1738 = vadd.f32 %v1730, %v1734
        %v1739 = vadd.f32 %v1731, %v1735
        %v1740 = vadd.f32 %v1732, %v1736
        %v1741 = vmul.f32 %v481, %v1685
        %v1742 = vmul.f32 %v481, %v1686
        %v1743 = vmul.f32 %v481, %v1687
        %v1744 = vmul.f32 %v481, %v1688
        %v1745 = vadd.f32 %v1737, %v1741
        %v1746 = vadd.f32 %v1738, %v1742
        %v1747 = vadd.f32 %v1739, %v1743
        %v1748 = vadd.f32 %v1740, %v1744
        %v1749 = vmul.f32 %v493, %v1705
        %v1750 = vmul.f32 %v493, %v1706
        %v1751 = vmul.f32 %v493, %v1707
        %v1752 = vmul.f32 %v493, %v1708
        %v1753 = vadd.f32 %v1745, %v1749
        %v1754 = vadd.f32 %v1746, %v1750
        %v1755 = vadd.f32 %v1747, %v1751
        %v1756 = vadd.f32 %v1748, %v1752
        %v1757 = vadd.f32 %v1753, %v741
        %v1758 = vadd.f32 %v1754, %v742
        %v1759 = vadd.f32 %v1755, %v743
        %v1760 = vadd.f32 %v1756, %v744
        %v1761 = vmax.f32 %v749, %v1757
        %v1762 = vmax.f32 %v750, %v1758
        %v1763 = vmax.f32 %v751, %v1759
        %v1764 = vmax.f32 %v752, %v1760
        %v1765 = vmin.f32 %v749, %v1757
        %v1766 = vmin.f32 %v750, %v1758
        %v1767 = vmin.f32 %v751, %v1759
        %v1768 = vmin.f32 %v752, %v1760
        %v1771 = vperm.slane %v1645, 0
        %v1772 = vperm.slane %v1645, 4
        %v1773 = vperm.slane %v1646, 0
        %v1774 = vperm.slane %v1646, 4
        %v1779 = vperm.slane %v1771, 0
        %v1780 = vperm.slane %v1772, 0
        %v1781 = vperm.slane %v1773, 0
        %v1782 = vperm.slane %v1774, 0
        %v1783 = vmul.f32 %v756, %v1779
        %v1784 = vmul.f32 %v756, %v1780
        %v1785 = vmul.f32 %v756, %v1781
        %v1786 = vmul.f32 %v756, %v1782
        %v1787 = vmul.f32 %v761, %v1779
        %v1788 = vmul.f32 %v761, %v1780
        %v1789 = vmul.f32 %v761, %v1781
        %v1790 = vmul.f32 %v761, %v1782
        %v1791 = vperm.slane %v1645, 1
        %v1792 = vperm.slane %v1645, 5
        %v1793 = vperm.slane %v1646, 1
        %v1794 = vperm.slane %v1646, 5
        %v1799 = vperm.slane %v1791, 1
        %v1800 = vperm.slane %v1792, 1
        %v1801 = vperm.slane %v1793, 1
        %v1802 = vperm.slane %v1794, 1
        %v1803 = vmul.f32 %v787, %v1799
        %v1804 = vmul.f32 %v787, %v1800
        %v1805 = vmul.f32 %v787, %v1801
        %v1806 = vmul.f32 %v787, %v1802
        %v1807 = vmul.f32 %v791, %v1799
        %v1808 = vmul.f32 %v791, %v1800
        %v1809 = vmul.f32 %v791, %v1801
        %v1810 = vmul.f32 %v791, %v1802
        %v1811 = vadd.f32 %v1783, %v1803
        %v1812 = vadd.f32 %v1784, %v1804
        %v1813 = vadd.f32 %v1785, %v1805
        %v1814 = vadd.f32 %v1786, %v1806
        %v1815 = vadd.f32 %v1787, %v1807
        %v1816 = vadd.f32 %v1788, %v1808
        %v1817 = vadd.f32 %v1789, %v1809
        %v1818 = vadd.f32 %v1790, %v1810
        %v1819 = vperm.slane %v1645, 2
        %v1820 = vperm.slane %v1645, 6
        %v1821 = vperm.slane %v1646, 2
        %v1822 = vperm.slane %v1646, 6
        %v1827 = vperm.slane %v1819, 2
        %v1828 = vperm.slane %v1820, 2
        %v1829 = vperm.slane %v1821, 2
        %v1830 = vperm.slane %v1822, 2
        %v1831 = vmul.f32 %v823, %v1827
        %v1832 = vmul.f32 %v823, %v1828
        %v1833 = vmul.f32 %v823, %v1829
        %v1834 = vmul.f32 %v823, %v1830
        %v1835 = vmul.f32 %v827, %v1827
        %v1836 = vmul.f32 %v827, %v1828
        %v1837 = vmul.f32 %v827, %v1829
        %v1838 = vmul.f32 %v827, %v1830
        %v1839 = vadd.f32 %v1811, %v1831
        %v1840 = vadd.f32 %v1812, %v1832
        %v1841 = vadd.f32 %v1813, %v1833
        %v1842 = vadd.f32 %v1814, %v1834
        %v1843 = vadd.f32 %v1815, %v1835
        %v1844 = vadd.f32 %v1816, %v1836
        %v1845 = vadd.f32 %v1817, %v1837
        %v1846 = vadd.f32 %v1818, %v1838
        %v1847 = vadd.f32 %v1839, %v857
        %v1848 = vadd.f32 %v1840, %v857
        %v1849 = vadd.f32 %v1841, %v857
        %v1850 = vadd.f32 %v1842, %v857
        %v1851 = vadd.f32 %v1843, %v857
        %v1852 = vadd.f32 %v1844, %v857
        %v1853 = vadd.f32 %v1845, %v857
        %v1854 = vadd.f32 %v1846, %v857
        %v1855 = vmax.f32 %v1847, 0.0
        %v1856 = vmax.f32 %v1848, 0.0
        %v1857 = vmax.f32 %v1849, 0.0
        %v1858 = vmax.f32 %v1850, 0.0
        %v1859 = vmax.f32 %v1851, 0.0
        %v1860 = vmax.f32 %v1852, 0.0
        %v1861 = vmax.f32 %v1853, 0.0
        %v1862 = vmax.f32 %v1854, 0.0
        %v1863 = vperm.slane %v1855, 5
        %v1864 = vperm.slane %v1856, 5
        %v1865 = vperm.slane %v1857, 5
        %v1866 = vperm.slane %v1858, 5
        %v1867 = vmul.f32 %v761, %v1863
        %v1868 = vmul.f32 %v761, %v1864
        %v1869 = vmul.f32 %v761, %v1865
        %v1870 = vmul.f32 %v761, %v1866
        %v1871 = vmul.f32 %v878, %v1863
        %v1872 = vmul.f32 %v878, %v1864
        %v1873 = vmul.f32 %v878, %v1865
        %v1874 = vmul.f32 %v878, %v1866
        %v1875 = vperm.slane %v1855, 6
        %v1876 = vperm.slane %v1856, 6
        %v1877 = vperm.slane %v1857, 6
        %v1878 = vperm.slane %v1858, 6
        %v1879 = vmul.f32 %v791, %v1875
        %v1880 = vmul.f32 %v791, %v1876
        %v1881 = vmul.f32 %v791, %v1877
        %v1882 = vmul.f32 %v791, %v1878
        %v1883 = vmul.f32 %v894, %v1875
        %v1884 = vmul.f32 %v894, %v1876
        %v1885 = vmul.f32 %v894, %v1877
        %v1886 = vmul.f32 %v894, %v1878
        %v1887 = vadd.f32 %v1867, %v1879
        %v1888 = vadd.f32 %v1868, %v1880
        %v1889 = vadd.f32 %v1869, %v1881
        %v1890 = vadd.f32 %v1870, %v1882
        %v1891 = vadd.f32 %v1871, %v1883
        %v1892 = vadd.f32 %v1872, %v1884
        %v1893 = vadd.f32 %v1873, %v1885
        %v1894 = vadd.f32 %v1874, %v1886
        %v1895 = vperm.slane %v1855, 7
        %v1896 = vperm.slane %v1856, 7
        %v1897 = vperm.slane %v1857, 7
        %v1898 = vperm.slane %v1858, 7
        %v1899 = vmul.f32 %v827, %v1895
        %v1900 = vmul.f32 %v827, %v1896
        %v1901 = vmul.f32 %v827, %v1897
        %v1902 = vmul.f32 %v827, %v1898
        %v1903 = vmul.f32 %v918, %v1895
        %v1904 = vmul.f32 %v918, %v1896
        %v1905 = vmul.f32 %v918, %v1897
        %v1906 = vmul.f32 %v918, %v1898
        %v1907 = vadd.f32 %v1887, %v1899
        %v1908 = vadd.f32 %v1888, %v1900
        %v1909 = vadd.f32 %v1889, %v1901
        %v1910 = vadd.f32 %v1890, %v1902
        %v1911 = vadd.f32 %v1891, %v1903
        %v1912 = vadd.f32 %v1892, %v1904
        %v1913 = vadd.f32 %v1893, %v1905
        %v1914 = vadd.f32 %v1894, %v1906
        %v1915 = vperm.slane %v1859, 0
        %v1916 = vperm.slane %v1860, 0
        %v1917 = vperm.slane %v1861, 0
        %v1918 = vperm.slane %v1862, 0
        %v1919 = vmul.f32 %v942, %v1915
        %v1920 = vmul.f32 %v942, %v1916
        %v1921 = vmul.f32 %v942, %v1917
        %v1922 = vmul.f32 %v942, %v1918
        %v1923 = vmul.f32 %v946, %v1915
        %v1924 = vmul.f32 %v946, %v1916
        %v1925 = vmul.f32 %v946, %v1917
        %v1926 = vmul.f32 %v946, %v1918
        %v1927 = vadd.f32 %v1907, %v1919
        %v1928 = vadd.f32 %v1908, %v1920
        %v1929 = vadd.f32 %v1909, %v1921
        %v1930 = vadd.f32 %v1910, %v1922
        %v1931 = vadd.f32 %v1911, %v1923
        %v1932 = vadd.f32 %v1912, %v1924
        %v1933 = vadd.f32 %v1913, %v1925
        %v1934 = vadd.f32 %v1914, %v1926
        %v1935 = vadd.f32 %v1927, %v968
        %v1936 = vadd.f32 %v1928, %v968
        %v1937 = vadd.f32 %v1929, %v968
        %v1938 = vadd.f32 %v1930, %v968
        %v1939 = vadd.f32 %v1931, %v968
        %v1940 = vadd.f32 %v1932, %v968
        %v1941 = vadd.f32 %v1933, %v968
        %v1942 = vadd.f32 %v1934, %v968
        %v1943 = vmax.f32 %v1935, 0.0
        %v1944 = vmax.f32 %v1936, 0.0
        %v1945 = vmax.f32 %v1937, 0.0
        %v1946 = vmax.f32 %v1938, 0.0
        %v1947 = vmax.f32 %v1939, 0.0
        %v1948 = vmax.f32 %v1940, 0.0
        %v1949 = vmax.f32 %v1941, 0.0
        %v1950 = vmax.f32 %v1942, 0.0
        %v1951 = vperm.slane %v1943, 5
        %v1952 = vperm.slane %v1944, 5
        %v1953 = vperm.slane %v1945, 5
        %v1954 = vperm.slane %v1946, 5
        %v1955 = vmul.f32 %v878, %v1951
        %v1956 = vmul.f32 %v878, %v1952
        %v1957 = vmul.f32 %v878, %v1953
        %v1958 = vmul.f32 %v878, %v1954
        %v1959 = vmul.f32 %v989, %v1951
        %v1960 = vmul.f32 %v989, %v1952
        %v1961 = vmul.f32 %v989, %v1953
        %v1962 = vmul.f32 %v989, %v1954
        %v1963 = vperm.slane %v1943, 6
        %v1964 = vperm.slane %v1944, 6
        %v1965 = vperm.slane %v1945, 6
        %v1966 = vperm.slane %v1946, 6
        %v1967 = vmul.f32 %v894, %v1963
        %v1968 = vmul.f32 %v894, %v1964
        %v1969 = vmul.f32 %v894, %v1965
        %v1970 = vmul.f32 %v894, %v1966
        %v1971 = vmul.f32 %v1005, %v1963
        %v1972 = vmul.f32 %v1005, %v1964
        %v1973 = vmul.f32 %v1005, %v1965
        %v1974 = vmul.f32 %v1005, %v1966
        %v1975 = vadd.f32 %v1955, %v1967
        %v1976 = vadd.f32 %v1956, %v1968
        %v1977 = vadd.f32 %v1957, %v1969
        %v1978 = vadd.f32 %v1958, %v1970
        %v1979 = vadd.f32 %v1959, %v1971
        %v1980 = vadd.f32 %v1960, %v1972
        %v1981 = vadd.f32 %v1961, %v1973
        %v1982 = vadd.f32 %v1962, %v1974
        %v1983 = vperm.slane %v1943, 7
        %v1984 = vperm.slane %v1944, 7
        %v1985 = vperm.slane %v1945, 7
        %v1986 = vperm.slane %v1946, 7
        %v1987 = vmul.f32 %v918, %v1983
        %v1988 = vmul.f32 %v918, %v1984
        %v1989 = vmul.f32 %v918, %v1985
        %v1990 = vmul.f32 %v918, %v1986
        %v1991 = vmul.f32 %v1029, %v1983
        %v1992 = vmul.f32 %v1029, %v1984
        %v1993 = vmul.f32 %v1029, %v1985
        %v1994 = vmul.f32 %v1029, %v1986
        %v1995 = vadd.f32 %v1975, %v1987
        %v1996 = vadd.f32 %v1976, %v1988
        %v1997 = vadd.f32 %v1977, %v1989
        %v1998 = vadd.f32 %v1978, %v1990
        %v1999 = vadd.f32 %v1979, %v1991
        %v2000 = vadd.f32 %v1980, %v1992
        %v2001 = vadd.f32 %v1981, %v1993
        %v2002 = vadd.f32 %v1982, %v1994
        %v2003 = vperm.slane %v1947, 0
        %v2004 = vperm.slane %v1948, 0
        %v2005 = vperm.slane %v1949, 0
        %v2006 = vperm.slane %v1950, 0
        %v2007 = vmul.f32 %v946, %v2003
        %v2008 = vmul.f32 %v946, %v2004
        %v2009 = vmul.f32 %v946, %v2005
        %v2010 = vmul.f32 %v946, %v2006
        %v2011 = vmul.f32 %v1053, %v2003
        %v2012 = vmul.f32 %v1053, %v2004
        %v2013 = vmul.f32 %v1053, %v2005
        %v2014 = vmul.f32 %v1053, %v2006
        %v2015 = vadd.f32 %v1995, %v2007
        %v2016 = vadd.f32 %v1996, %v2008
        %v2017 = vadd.f32 %v1997, %v2009
        %v2018 = vadd.f32 %v1998, %v2010
        %v2019 = vadd.f32 %v1999, %v2011
        %v2020 = vadd.f32 %v2000, %v2012
        %v2021 = vadd.f32 %v2001, %v2013
        %v2022 = vadd.f32 %v2002, %v2014
        %v2023 = vperm.slane %v1947, 1
        %v2024 = vperm.slane %v1948, 1
        %v2025 = vperm.slane %v1949, 1
        %v2026 = vperm.slane %v1950, 1
        %v2027 = vmul.f32 %v1077, %v2023
        %v2028 = vmul.f32 %v1077, %v2024
        %v2029 = vmul.f32 %v1077, %v2025
        %v2030 = vmul.f32 %v1077, %v2026
        %v2031 = vmul.f32 %v1081, %v2023
        %v2032 = vmul.f32 %v1081, %v2024
        %v2033 = vmul.f32 %v1081, %v2025
        %v2034 = vmul.f32 %v1081, %v2026
        %v2035 = vadd.f32 %v2015, %v2027
        %v2036 = vadd.f32 %v2016, %v2028
        %v2037 = vadd.f32 %v2017, %v2029
        %v2038 = vadd.f32 %v2018, %v2030
        %v2039 = vadd.f32 %v2019, %v2031
        %v2040 = vadd.f32 %v2020, %v2032
        %v2041 = vadd.f32 %v2021, %v2033
        %v2042 = vadd.f32 %v2022, %v2034
        %v2043 = vadd.f32 %v2035, %v1103
        %v2044 = vadd.f32 %v2036, %v1103
        %v2045 = vadd.f32 %v2037, %v1103
        %v2046 = vadd.f32 %v2038, %v1103
        %v2047 = vadd.f32 %v2039, %v1103
        %v2048 = vadd.f32 %v2040, %v1103
        %v2049 = vadd.f32 %v2041, %v1103
        %v2050 = vadd.f32 %v2042, %v1103
        %v2051 = vmax.f32 %v2043, 0.0
        %v2052 = vmax.f32 %v2044, 0.0
        %v2053 = vmax.f32 %v2045, 0.0
        %v2054 = vmax.f32 %v2046, 0.0
        %v2055 = vmax.f32 %v2047, 0.0
        %v2056 = vmax.f32 %v2048, 0.0
        %v2057 = vmax.f32 %v2049, 0.0
        %v2058 = vmax.f32 %v2050, 0.0
        %v2059 = vperm.slane %v2051, 7
        %v2060 = vperm.slane %v2052, 7
        %v2061 = vperm.slane %v2053, 7
        %v2062 = vperm.slane %v2054, 7
        %v2063 = vmul.f32 %v989, %v2059
        %v2064 = vmul.f32 %v989, %v2060
        %v2065 = vmul.f32 %v989, %v2061
        %v2066 = vmul.f32 %v989, %v2062
        %v2067 = vmul.f32 %v1124, %v2059
        %v2068 = vmul.f32 %v1124, %v2060
        %v2069 = vmul.f32 %v1124, %v2061
        %v2070 = vmul.f32 %v1124, %v2062
        %v2071 = vperm.slane %v2055, 0
        %v2072 = vperm.slane %v2056, 0
        %v2073 = vperm.slane %v2057, 0
        %v2074 = vperm.slane %v2058, 0
        %v2075 = vmul.f32 %v1005, %v2071
        %v2076 = vmul.f32 %v1005, %v2072
        %v2077 = vmul.f32 %v1005, %v2073
        %v2078 = vmul.f32 %v1005, %v2074
        %v2079 = vmul.f32 %v1140, %v2071
        %v2080 = vmul.f32 %v1140, %v2072
        %v2081 = vmul.f32 %v1140, %v2073
        %v2082 = vmul.f32 %v1140, %v2074
        %v2083 = vadd.f32 %v2063, %v2075
        %v2084 = vadd.f32 %v2064, %v2076
        %v2085 = vadd.f32 %v2065, %v2077
        %v2086 = vadd.f32 %v2066, %v2078
        %v2087 = vadd.f32 %v2067, %v2079
        %v2088 = vadd.f32 %v2068, %v2080
        %v2089 = vadd.f32 %v2069, %v2081
        %v2090 = vadd.f32 %v2070, %v2082
        %v2091 = vperm.slane %v2055, 1
        %v2092 = vperm.slane %v2056, 1
        %v2093 = vperm.slane %v2057, 1
        %v2094 = vperm.slane %v2058, 1
        %v2095 = vmul.f32 %v1029, %v2091
        %v2096 = vmul.f32 %v1029, %v2092
        %v2097 = vmul.f32 %v1029, %v2093
        %v2098 = vmul.f32 %v1029, %v2094
        %v2099 = vmul.f32 %v1164, %v2091
        %v2100 = vmul.f32 %v1164, %v2092
        %v2101 = vmul.f32 %v1164, %v2093
        %v2102 = vmul.f32 %v1164, %v2094
        %v2103 = vadd.f32 %v2083, %v2095
        %v2104 = vadd.f32 %v2084, %v2096
        %v2105 = vadd.f32 %v2085, %v2097
        %v2106 = vadd.f32 %v2086, %v2098
        %v2107 = vadd.f32 %v2087, %v2099
        %v2108 = vadd.f32 %v2088, %v2100
        %v2109 = vadd.f32 %v2089, %v2101
        %v2110 = vadd.f32 %v2090, %v2102
        %v2111 = vperm.slane %v2055, 2
        %v2112 = vperm.slane %v2056, 2
        %v2113 = vperm.slane %v2057, 2
        %v2114 = vperm.slane %v2058, 2
        %v2115 = vmul.f32 %v1053, %v2111
        %v2116 = vmul.f32 %v1053, %v2112
        %v2117 = vmul.f32 %v1053, %v2113
        %v2118 = vmul.f32 %v1053, %v2114
        %v2119 = vmul.f32 %v1188, %v2111
        %v2120 = vmul.f32 %v1188, %v2112
        %v2121 = vmul.f32 %v1188, %v2113
        %v2122 = vmul.f32 %v1188, %v2114
        %v2123 = vadd.f32 %v2103, %v2115
        %v2124 = vadd.f32 %v2104, %v2116
        %v2125 = vadd.f32 %v2105, %v2117
        %v2126 = vadd.f32 %v2106, %v2118
        %v2127 = vadd.f32 %v2107, %v2119
        %v2128 = vadd.f32 %v2108, %v2120
        %v2129 = vadd.f32 %v2109, %v2121
        %v2130 = vadd.f32 %v2110, %v2122
        %v2131 = vadd.f32 %v2123, %v1215
        %v2132 = vadd.f32 %v2124, %v1215
        %v2133 = vadd.f32 %v2125, %v1215
        %v2134 = vadd.f32 %v2126, %v1215
        %v2135 = vadd.f32 %v2127, %v1217
        %v2136 = vadd.f32 %v2128, %v1217
        %v2137 = vadd.f32 %v2129, %v1217
        %v2138 = vadd.f32 %v2130, %v1217
        %v2139 = vadd.f32 %v1633, %v2131
        %v2140 = vadd.f32 %v1634, %v2132
        %v2141 = vadd.f32 %v1635, %v2133
        %v2142 = vadd.f32 %v1636, %v2134
        %v2143 = vadd.f32 %v1637, %v2135
        %v2144 = vadd.f32 %v1638, %v2136
        %v2145 = vadd.f32 %v1639, %v2137
        %v2146 = vadd.f32 %v1640, %v2138
        %v2147 = vsub.f32 %v352, %v1645
        %v2148 = vsub.f32 %v353, %v1646
        %v2151 = vperm.slane %v2147, 0
        %v2152 = vperm.slane %v2147, 4
        %v2153 = vperm.slane %v2148, 0
        %v2154 = vperm.slane %v2148, 4
        %v2159 = vperm.slane %v2151, 0
        %v2160 = vperm.slane %v2152, 0
        %v2161 = vperm.slane %v2153, 0
        %v2162 = vperm.slane %v2154, 0
        %v2163 = vmul.f32 %v512, %v2159
        %v2164 = vmul.f32 %v512, %v2160
        %v2165 = vmul.f32 %v512, %v2161
        %v2166 = vmul.f32 %v512, %v2162
        %v2167 = vmul.f32 %v1241, %v2159
        %v2168 = vmul.f32 %v1241, %v2160
        %v2169 = vmul.f32 %v1241, %v2161
        %v2170 = vmul.f32 %v1241, %v2162
        %v2171 = vperm.slane %v2147, 1
        %v2172 = vperm.slane %v2147, 5
        %v2173 = vperm.slane %v2148, 1
        %v2174 = vperm.slane %v2148, 5
        %v2179 = vperm.slane %v2171, 1
        %v2180 = vperm.slane %v2172, 1
        %v2181 = vperm.slane %v2173, 1
        %v2182 = vperm.slane %v2174, 1
        %v2183 = vmul.f32 %v538, %v2179
        %v2184 = vmul.f32 %v538, %v2180
        %v2185 = vmul.f32 %v538, %v2181
        %v2186 = vmul.f32 %v538, %v2182
        %v2187 = vmul.f32 %v1267, %v2179
        %v2188 = vmul.f32 %v1267, %v2180
        %v2189 = vmul.f32 %v1267, %v2181
        %v2190 = vmul.f32 %v1267, %v2182
        %v2191 = vadd.f32 %v2163, %v2183
        %v2192 = vadd.f32 %v2164, %v2184
        %v2193 = vadd.f32 %v2165, %v2185
        %v2194 = vadd.f32 %v2166, %v2186
        %v2195 = vadd.f32 %v2167, %v2187
        %v2196 = vadd.f32 %v2168, %v2188
        %v2197 = vadd.f32 %v2169, %v2189
        %v2198 = vadd.f32 %v2170, %v2190
        %v2199 = vperm.slane %v2147, 2
        %v2200 = vperm.slane %v2147, 6
        %v2201 = vperm.slane %v2148, 2
        %v2202 = vperm.slane %v2148, 6
        %v2207 = vperm.slane %v2199, 2
        %v2208 = vperm.slane %v2200, 2
        %v2209 = vperm.slane %v2201, 2
        %v2210 = vperm.slane %v2202, 2
        %v2211 = vmul.f32 %v570, %v2207
        %v2212 = vmul.f32 %v570, %v2208
        %v2213 = vmul.f32 %v570, %v2209
        %v2214 = vmul.f32 %v570, %v2210
        %v2215 = vmul.f32 %v1299, %v2207
        %v2216 = vmul.f32 %v1299, %v2208
        %v2217 = vmul.f32 %v1299, %v2209
        %v2218 = vmul.f32 %v1299, %v2210
        %v2219 = vadd.f32 %v2191, %v2211
        %v2220 = vadd.f32 %v2192, %v2212
        %v2221 = vadd.f32 %v2193, %v2213
        %v2222 = vadd.f32 %v2194, %v2214
        %v2223 = vadd.f32 %v2195, %v2215
        %v2224 = vadd.f32 %v2196, %v2216
        %v2225 = vadd.f32 %v2197, %v2217
        %v2226 = vadd.f32 %v2198, %v2218
        %v2227 = vadd.f32 %v2219, %v1329
        %v2228 = vadd.f32 %v2220, %v1329
        %v2229 = vadd.f32 %v2221, %v1329
        %v2230 = vadd.f32 %v2222, %v1329
        %v2231 = vadd.f32 %v2223, %v1329
        %v2232 = vadd.f32 %v2224, %v1329
        %v2233 = vadd.f32 %v2225, %v1329
        %v2234 = vadd.f32 %v2226, %v1329
        %v2235 = vmax.f32 %v2227, 0.0
        %v2236 = vmax.f32 %v2228, 0.0
        %v2237 = vmax.f32 %v2229, 0.0
        %v2238 = vmax.f32 %v2230, 0.0
        %v2239 = vmax.f32 %v2231, 0.0
        %v2240 = vmax.f32 %v2232, 0.0
        %v2241 = vmax.f32 %v2233, 0.0
        %v2242 = vmax.f32 %v2234, 0.0
        %v2243 = vperm.slane %v2235, 7
        %v2244 = vperm.slane %v2236, 7
        %v2245 = vperm.slane %v2237, 7
        %v2246 = vperm.slane %v2238, 7
        %v2247 = vmul.f32 %v1241, %v2243
        %v2248 = vmul.f32 %v1241, %v2244
        %v2249 = vmul.f32 %v1241, %v2245
        %v2250 = vmul.f32 %v1241, %v2246
        %v2251 = vmul.f32 %v1350, %v2243
        %v2252 = vmul.f32 %v1350, %v2244
        %v2253 = vmul.f32 %v1350, %v2245
        %v2254 = vmul.f32 %v1350, %v2246
        %v2255 = vperm.slane %v2239, 0
        %v2256 = vperm.slane %v2240, 0
        %v2257 = vperm.slane %v2241, 0
        %v2258 = vperm.slane %v2242, 0
        %v2259 = vmul.f32 %v1267, %v2255
        %v2260 = vmul.f32 %v1267, %v2256
        %v2261 = vmul.f32 %v1267, %v2257
        %v2262 = vmul.f32 %v1267, %v2258
        %v2263 = vmul.f32 %v1366, %v2255
        %v2264 = vmul.f32 %v1366, %v2256
        %v2265 = vmul.f32 %v1366, %v2257
        %v2266 = vmul.f32 %v1366, %v2258
        %v2267 = vadd.f32 %v2247, %v2259
        %v2268 = vadd.f32 %v2248, %v2260
        %v2269 = vadd.f32 %v2249, %v2261
        %v2270 = vadd.f32 %v2250, %v2262
        %v2271 = vadd.f32 %v2251, %v2263
        %v2272 = vadd.f32 %v2252, %v2264
        %v2273 = vadd.f32 %v2253, %v2265
        %v2274 = vadd.f32 %v2254, %v2266
        %v2275 = vperm.slane %v2239, 1
        %v2276 = vperm.slane %v2240, 1
        %v2277 = vperm.slane %v2241, 1
        %v2278 = vperm.slane %v2242, 1
        %v2279 = vmul.f32 %v1299, %v2275
        %v2280 = vmul.f32 %v1299, %v2276
        %v2281 = vmul.f32 %v1299, %v2277
        %v2282 = vmul.f32 %v1299, %v2278
        %v2283 = vmul.f32 %v1390, %v2275
        %v2284 = vmul.f32 %v1390, %v2276
        %v2285 = vmul.f32 %v1390, %v2277
        %v2286 = vmul.f32 %v1390, %v2278
        %v2287 = vadd.f32 %v2267, %v2279
        %v2288 = vadd.f32 %v2268, %v2280
        %v2289 = vadd.f32 %v2269, %v2281
        %v2290 = vadd.f32 %v2270, %v2282
        %v2291 = vadd.f32 %v2271, %v2283
        %v2292 = vadd.f32 %v2272, %v2284
        %v2293 = vadd.f32 %v2273, %v2285
        %v2294 = vadd.f32 %v2274, %v2286
        %v2295 = vperm.slane %v2239, 2
        %v2296 = vperm.slane %v2240, 2
        %v2297 = vperm.slane %v2241, 2
        %v2298 = vperm.slane %v2242, 2
        %v2299 = vmul.f32 %v1414, %v2295
        %v2300 = vmul.f32 %v1414, %v2296
        %v2301 = vmul.f32 %v1414, %v2297
        %v2302 = vmul.f32 %v1414, %v2298
        %v2303 = vmul.f32 %v1418, %v2295
        %v2304 = vmul.f32 %v1418, %v2296
        %v2305 = vmul.f32 %v1418, %v2297
        %v2306 = vmul.f32 %v1418, %v2298
        %v2307 = vadd.f32 %v2287, %v2299
        %v2308 = vadd.f32 %v2288, %v2300
        %v2309 = vadd.f32 %v2289, %v2301
        %v2310 = vadd.f32 %v2290, %v2302
        %v2311 = vadd.f32 %v2291, %v2303
        %v2312 = vadd.f32 %v2292, %v2304
        %v2313 = vadd.f32 %v2293, %v2305
        %v2314 = vadd.f32 %v2294, %v2306
        %v2315 = vadd.f32 %v2307, %v1445
        %v2316 = vadd.f32 %v2308, %v1445
        %v2317 = vadd.f32 %v2309, %v1445
        %v2318 = vadd.f32 %v2310, %v1445
        %v2319 = vadd.f32 %v2311, %v1447
        %v2320 = vadd.f32 %v2312, %v1447
        %v2321 = vadd.f32 %v2313, %v1447
        %v2322 = vadd.f32 %v2314, %v1447
        %v2323 = vmax.f32 %v2315, 0.0
        %v2324 = vmax.f32 %v2316, 0.0
        %v2325 = vmax.f32 %v2317, 0.0
        %v2326 = vmax.f32 %v2318, 0.0
        %v2327 = vmax.f32 %v2319, 0.0
        %v2328 = vmax.f32 %v2320, 0.0
        %v2329 = vmax.f32 %v2321, 0.0
        %v2330 = vmax.f32 %v2322, 0.0
        %v2331 = vperm.slane %v2323, 7
        %v2332 = vperm.slane %v2324, 7
        %v2333 = vperm.slane %v2325, 7
        %v2334 = vperm.slane %v2326, 7
        %v2335 = vmul.f32 %v1443, %v2331
        %v2336 = vmul.f32 %v1443, %v2332
        %v2337 = vmul.f32 %v1443, %v2333
        %v2338 = vmul.f32 %v1443, %v2334
        %v2339 = vperm.slane %v2327, 0
        %v2340 = vperm.slane %v2328, 0
        %v2341 = vperm.slane %v2329, 0
        %v2342 = vperm.slane %v2330, 0
        %v2343 = vmul.f32 %v1477, %v2339
        %v2344 = vmul.f32 %v1477, %v2340
        %v2345 = vmul.f32 %v1477, %v2341
        %v2346 = vmul.f32 %v1477, %v2342
        %v2347 = vadd.f32 %v2335, %v2343
        %v2348 = vadd.f32 %v2336, %v2344
        %v2349 = vadd.f32 %v2337, %v2345
        %v2350 = vadd.f32 %v2338, %v2346
        %v2351 = vperm.slane %v2327, 1
        %v2352 = vperm.slane %v2328, 1
        %v2353 = vperm.slane %v2329, 1
        %v2354 = vperm.slane %v2330, 1
        %v2355 = vmul.f32 %v1493, %v2351
        %v2356 = vmul.f32 %v1493, %v2352
        %v2357 = vmul.f32 %v1493, %v2353
        %v2358 = vmul.f32 %v1493, %v2354
        %v2359 = vadd.f32 %v2347, %v2355
        %v2360 = vadd.f32 %v2348, %v2356
        %v2361 = vadd.f32 %v2349, %v2357
        %v2362 = vadd.f32 %v2350, %v2358
        %v2363 = vperm.slane %v2327, 2
        %v2364 = vperm.slane %v2328, 2
        %v2365 = vperm.slane %v2329, 2
        %v2366 = vperm.slane %v2330, 2
        %v2367 = vmul.f32 %v1509, %v2363
        %v2368 = vmul.f32 %v1509, %v2364
        %v2369 = vmul.f32 %v1509, %v2365
        %v2370 = vmul.f32 %v1509, %v2366
        %v2371 = vadd.f32 %v2359, %v2367
        %v2372 = vadd.f32 %v2360, %v2368
        %v2373 = vadd.f32 %v2361, %v2369
        %v2374 = vadd.f32 %v2362, %v2370
        %v2375 = vperm.slane %v2327, 3
        %v2376 = vperm.slane %v2328, 3
        %v2377 = vperm.slane %v2329, 3
        %v2378 = vperm.slane %v2330, 3
        %v2379 = vmul.f32 %v1525, %v2375
        %v2380 = vmul.f32 %v1525, %v2376
        %v2381 = vmul.f32 %v1525, %v2377
        %v2382 = vmul.f32 %v1525, %v2378
        %v2383 = vadd.f32 %v2371, %v2379
        %v2384 = vadd.f32 %v2372, %v2380
        %v2385 = vadd.f32 %v2373, %v2381
        %v2386 = vadd.f32 %v2374, %v2382
        %v2387 = vadd.f32 %v2383, %v1546
        %v2388 = vadd.f32 %v2384, %v1546
        %v2389 = vadd.f32 %v2385, %v1546
        %v2390 = vadd.f32 %v2386, %v1546
        %v2391 = vmax.f32 %v2387, 0.0
        %v2392 = vmax.f32 %v2388, 0.0
        %v2393 = vmax.f32 %v2389, 0.0
        %v2394 = vmax.f32 %v2390, 0.0
        %v2395 = vperm.slane %v2391, 1
        %v2396 = vperm.slane %v2392, 1
        %v2397 = vperm.slane %v2393, 1
        %v2398 = vperm.slane %v2394, 1
        %v2399 = vmul.f32 %v1542, %v2395
        %v2400 = vmul.f32 %v1542, %v2396
        %v2401 = vmul.f32 %v1542, %v2397
        %v2402 = vmul.f32 %v1542, %v2398
        %v2403 = vperm.slane %v2391, 2
        %v2404 = vperm.slane %v2392, 2
        %v2405 = vperm.slane %v2393, 2
        %v2406 = vperm.slane %v2394, 2
        %v2407 = vmul.f32 %v1567, %v2403
        %v2408 = vmul.f32 %v1567, %v2404
        %v2409 = vmul.f32 %v1567, %v2405
        %v2410 = vmul.f32 %v1567, %v2406
        %v2411 = vadd.f32 %v2399, %v2407
        %v2412 = vadd.f32 %v2400, %v2408
        %v2413 = vadd.f32 %v2401, %v2409
        %v2414 = vadd.f32 %v2402, %v2410
        %v2415 = vperm.slane %v2391, 3
        %v2416 = vperm.slane %v2392, 3
        %v2417 = vperm.slane %v2393, 3
        %v2418 = vperm.slane %v2394, 3
        %v2419 = vmul.f32 %v1583, %v2415
        %v2420 = vmul.f32 %v1583, %v2416
        %v2421 = vmul.f32 %v1583, %v2417
        %v2422 = vmul.f32 %v1583, %v2418
        %v2423 = vadd.f32 %v2411, %v2419
        %v2424 = vadd.f32 %v2412, %v2420
        %v2425 = vadd.f32 %v2413, %v2421
        %v2426 = vadd.f32 %v2414, %v2422
        %v2427 = vperm.slane %v2391, 4
        %v2428 = vperm.slane %v2392, 4
        %v2429 = vperm.slane %v2393, 4
        %v2430 = vperm.slane %v2394, 4
        %v2431 = vmul.f32 %v1599, %v2427
        %v2432 = vmul.f32 %v1599, %v2428
        %v2433 = vmul.f32 %v1599, %v2429
        %v2434 = vmul.f32 %v1599, %v2430
        %v2435 = vadd.f32 %v2423, %v2431
        %v2436 = vadd.f32 %v2424, %v2432
        %v2437 = vadd.f32 %v2425, %v2433
        %v2438 = vadd.f32 %v2426, %v2434
        %v2439 = vadd.f32 %v2435, %v1615
        %v2440 = vadd.f32 %v2436, %v1615
        %v2441 = vadd.f32 %v2437, %v1615
        %v2442 = vadd.f32 %v2438, %v1615
        %v2447 = vrot.slane %v2439, 2
        %v2448 = vrot.slane %v2440, 2
        %v2449 = vrot.slane %v2441, 2
        %v2450 = vrot.slane %v2442, 2
        %v2455 = vadd.f32 %v2139, %v2447
        %v2456 = vadd.f32 %v2140, %v2448
        %v2457 = vadd.f32 %v2141, %v2449
        %v2458 = vadd.f32 %v2142, %v2450
        %v2459 = vadd.f32 %v2143, %v2447
        %v2460 = vadd.f32 %v2144, %v2448
        %v2461 = vadd.f32 %v2145, %v2449
        %v2462 = vadd.f32 %v2146, %v2450
        %s2463 = scalar_lea.vmem %s266, 32 [#allocation2]
        %v2464 = vld [vmem:[%s2463] sm:$0xff]
        %v2465 = vld [vmem:[%s2463 + $0x8] sm:$0xff]
        %s2466 = scalar_lea.vmem %s276, 32 [#allocation5]
        %v2467 = vld [vmem:[%s2466] sm:$0x77]
        %v2468 = vld [vmem:[%s2466 + $0x8] sm:$0x77]
        %v2471 = vperm.slane %v2464, 0
        %v2472 = vperm.slane %v2464, 4
        %v2473 = vperm.slane %v2465, 0
        %v2474 = vperm.slane %v2465, 4
        %v2479 = vperm.slane %v2471, 0
        %v2480 = vperm.slane %v2472, 0
        %v2481 = vperm.slane %v2473, 0
        %v2482 = vperm.slane %v2474, 0
        %v2483 = vmul.f32 %v617, %v2479
        %v2484 = vmul.f32 %v617, %v2480
        %v2485 = vmul.f32 %v617, %v2481
        %v2486 = vmul.f32 %v617, %v2482
        %v2487 = vperm.slane %v2464, 1
        %v2488 = vperm.slane %v2464, 5
        %v2489 = vperm.slane %v2465, 1
        %v2490 = vperm.slane %v2465, 5
        %v2495 = vperm.slane %v2487, 1
        %v2496 = vperm.slane %v2488, 1
        %v2497 = vperm.slane %v2489, 1
        %v2498 = vperm.slane %v2490, 1
        %v2499 = vmul.f32 %v639, %v2495
        %v2500 = vmul.f32 %v639, %v2496
        %v2501 = vmul.f32 %v639, %v2497
        %v2502 = vmul.f32 %v639, %v2498
        %v2503 = vadd.f32 %v2483, %v2499
        %v2504 = vadd.f32 %v2484, %v2500
        %v2505 = vadd.f32 %v2485, %v2501
        %v2506 = vadd.f32 %v2486, %v2502
        %v2507 = vperm.slane %v2464, 2
        %v2508 = vperm.slane %v2464, 6
        %v2509 = vperm.slane %v2465, 2
        %v2510 = vperm.slane %v2465, 6
        %v2515 = vperm.slane %v2507, 2
        %v2516 = vperm.slane %v2508, 2
        %v2517 = vperm.slane %v2509, 2
        %v2518 = vperm.slane %v2510, 2
        %v2519 = vmul.f32 %v663, %v2515
        %v2520 = vmul.f32 %v663, %v2516
        %v2521 = vmul.f32 %v663, %v2517
        %v2522 = vmul.f32 %v663, %v2518
        %v2523 = vadd.f32 %v2503, %v2519
        %v2524 = vadd.f32 %v2504, %v2520
        %v2525 = vadd.f32 %v2505, %v2521
        %v2526 = vadd.f32 %v2506, %v2522
        %v2527 = vperm.slane %v2464, 3
        %v2528 = vperm.slane %v2464, 7
        %v2529 = vperm.slane %v2465, 3
        %v2530 = vperm.slane %v2465, 7
        %v2535 = vperm.slane %v2527, 3
        %v2536 = vperm.slane %v2528, 3
        %v2537 = vperm.slane %v2529, 3
        %v2538 = vperm.slane %v2530, 3
        %v2539 = vmul.f32 %v687, %v2535
        %v2540 = vmul.f32 %v687, %v2536
        %v2541 = vmul.f32 %v687, %v2537
        %v2542 = vmul.f32 %v687, %v2538
        %v2543 = vadd.f32 %v2523, %v2539
        %v2544 = vadd.f32 %v2524, %v2540
        %v2545 = vadd.f32 %v2525, %v2541
        %v2546 = vadd.f32 %v2526, %v2542
        %v2547 = vmax.f32 %v1725, %v2543
        %v2548 = vmax.f32 %v1726, %v2544
        %v2549 = vmax.f32 %v1727, %v2545
        %v2550 = vmax.f32 %v1728, %v2546
        %v2551 = vmul.f32 %v461, %v2471
        %v2552 = vmul.f32 %v461, %v2472
        %v2553 = vmul.f32 %v461, %v2473
        %v2554 = vmul.f32 %v461, %v2474
        %v2555 = vmul.f32 %v469, %v2487
        %v2556 = vmul.f32 %v469, %v2488
        %v2557 = vmul.f32 %v469, %v2489
        %v2558 = vmul.f32 %v469, %v2490
        %v2559 = vadd.f32 %v2551, %v2555
        %v2560 = vadd.f32 %v2552, %v2556
        %v2561 = vadd.f32 %v2553, %v2557
        %v2562 = vadd.f32 %v2554, %v2558
        %v2563 = vmul.f32 %v481, %v2507
        %v2564 = vmul.f32 %v481, %v2508
        %v2565 = vmul.f32 %v481, %v2509
        %v2566 = vmul.f32 %v481, %v2510
        %v2567 = vadd.f32 %v2559, %v2563
        %v2568 = vadd.f32 %v2560, %v2564
        %v2569 = vadd.f32 %v2561, %v2565
        %v2570 = vadd.f32 %v2562, %v2566
        %v2571 = vmul.f32 %v493, %v2527
        %v2572 = vmul.f32 %v493, %v2528
        %v2573 = vmul.f32 %v493, %v2529
        %v2574 = vmul.f32 %v493, %v2530
        %v2575 = vadd.f32 %v2567, %v2571
        %v2576 = vadd.f32 %v2568, %v2572
        %v2577 = vadd.f32 %v2569, %v2573
        %v2578 = vadd.f32 %v2570, %v2574
        %v2579 = vadd.f32 %v2575, %v741
        %v2580 = vadd.f32 %v2576, %v742
        %v2581 = vadd.f32 %v2577, %v743
        %v2582 = vadd.f32 %v2578, %v744
        %v2583 = vmax.f32 %v1761, %v2579
        %v2584 = vmax.f32 %v1762, %v2580
        %v2585 = vmax.f32 %v1763, %v2581
        %v2586 = vmax.f32 %v1764, %v2582
        %v2587 = vmin.f32 %v1765, %v2579
        %v2588 = vmin.f32 %v1766, %v2580
        %v2589 = vmin.f32 %v1767, %v2581
        %v2590 = vmin.f32 %v1768, %v2582
        %v2593 = vperm.slane %v2467, 0
        %v2594 = vperm.slane %v2467, 4
        %v2595 = vperm.slane %v2468, 0
        %v2596 = vperm.slane %v2468, 4
        %v2601 = vperm.slane %v2593, 0
        %v2602 = vperm.slane %v2594, 0
        %v2603 = vperm.slane %v2595, 0
        %v2604 = vperm.slane %v2596, 0
        %v2605 = vmul.f32 %v756, %v2601
        %v2606 = vmul.f32 %v756, %v2602
        %v2607 = vmul.f32 %v756, %v2603
        %v2608 = vmul.f32 %v756, %v2604
        %v2609 = vmul.f32 %v761, %v2601
        %v2610 = vmul.f32 %v761, %v2602
        %v2611 = vmul.f32 %v761, %v2603
        %v2612 = vmul.f32 %v761, %v2604
        %v2613 = vperm.slane %v2467, 1
        %v2614 = vperm.slane %v2467, 5
        %v2615 = vperm.slane %v2468, 1
        %v2616 = vperm.slane %v2468, 5
        %v2621 = vperm.slane %v2613, 1
        %v2622 = vperm.slane %v2614, 1
        %v2623 = vperm.slane %v2615, 1
        %v2624 = vperm.slane %v2616, 1
        %v2625 = vmul.f32 %v787, %v2621
        %v2626 = vmul.f32 %v787, %v2622
        %v2627 = vmul.f32 %v787, %v2623
        %v2628 = vmul.f32 %v787, %v2624
        %v2629 = vmul.f32 %v791, %v2621
        %v2630 = vmul.f32 %v791, %v2622
        %v2631 = vmul.f32 %v791, %v2623
        %v2632 = vmul.f32 %v791, %v2624
        %v2633 = vadd.f32 %v2605, %v2625
        %v2634 = vadd.f32 %v2606, %v2626
        %v2635 = vadd.f32 %v2607, %v2627
        %v2636 = vadd.f32 %v2608, %v2628
        %v2637 = vadd.f32 %v2609, %v2629
        %v2638 = vadd.f32 %v2610, %v2630
        %v2639 = vadd.f32 %v2611, %v2631
        %v2640 = vadd.f32 %v2612, %v2632
        %v2641 = vperm.slane %v2467, 2
        %v2642 = vperm.slane %v2467, 6
        %v2643 = vperm.slane %v2468, 2
        %v2644 = vperm.slane %v2468, 6
        %v2649 = vperm.slane %v2641, 2
        %v2650 = vperm.slane %v2642, 2
        %v2651 = vperm.slane %v2643, 2
        %v2652 = vperm.slane %v2644, 2
        %v2653 = vmul.f32 %v823, %v2649
        %v2654 = vmul.f32 %v823, %v2650
        %v2655 = vmul.f32 %v823, %v2651
        %v2656 = vmul.f32 %v823, %v2652
        %v2657 = vmul.f32 %v827, %v2649
        %v2658 = vmul.f32 %v827, %v2650
        %v2659 = vmul.f32 %v827, %v2651
        %v2660 = vmul.f32 %v827, %v2652
        %v2661 = vadd.f32 %v2633, %v2653
        %v2662 = vadd.f32 %v2634, %v2654
        %v2663 = vadd.f32 %v2635, %v2655
        %v2664 = vadd.f32 %v2636, %v2656
        %v2665 = vadd.f32 %v2637, %v2657
        %v2666 = vadd.f32 %v2638, %v2658
        %v2667 = vadd.f32 %v2639, %v2659
        %v2668 = vadd.f32 %v2640, %v2660
        %v2669 = vadd.f32 %v2661, %v857
        %v2670 = vadd.f32 %v2662, %v857
        %v2671 = vadd.f32 %v2663, %v857
        %v2672 = vadd.f32 %v2664, %v857
        %v2673 = vadd.f32 %v2665, %v857
        %v2674 = vadd.f32 %v2666, %v857
        %v2675 = vadd.f32 %v2667, %v857
        %v2676 = vadd.f32 %v2668, %v857
        %v2677 = vmax.f32 %v2669, 0.0
        %v2678 = vmax.f32 %v2670, 0.0
        %v2679 = vmax.f32 %v2671, 0.0
        %v2680 = vmax.f32 %v2672, 0.0
        %v2681 = vmax.f32 %v2673, 0.0
        %v2682 = vmax.f32 %v2674, 0.0
        %v2683 = vmax.f32 %v2675, 0.0
        %v2684 = vmax.f32 %v2676, 0.0
        %v2685 = vperm.slane %v2677, 5
        %v2686 = vperm.slane %v2678, 5
        %v2687 = vperm.slane %v2679, 5
        %v2688 = vperm.slane %v2680, 5
        %v2689 = vmul.f32 %v761, %v2685
        %v2690 = vmul.f32 %v761, %v2686
        %v2691 = vmul.f32 %v761, %v2687
        %v2692 = vmul.f32 %v761, %v2688
        %v2693 = vmul.f32 %v878, %v2685
        %v2694 = vmul.f32 %v878, %v2686
        %v2695 = vmul.f32 %v878, %v2687
        %v2696 = vmul.f32 %v878, %v2688
        %v2697 = vperm.slane %v2677, 6
        %v2698 = vperm.slane %v2678, 6
        %v2699 = vperm.slane %v2679, 6
        %v2700 = vperm.slane %v2680, 6
        %v2701 = vmul.f32 %v791, %v2697
        %v2702 = vmul.f32 %v791, %v2698
        %v2703 = vmul.f32 %v791, %v2699
        %v2704 = vmul.f32 %v791, %v2700
        %v2705 = vmul.f32 %v894, %v2697
        %v2706 = vmul.f32 %v894, %v2698
        %v2707 = vmul.f32 %v894, %v2699
        %v2708 = vmul.f32 %v894, %v2700
        %v2709 = vadd.f32 %v2689, %v2701
        %v2710 = vadd.f32 %v2690, %v2702
        %v2711 = vadd.f32 %v2691, %v2703
        %v2712 = vadd.f32 %v2692, %v2704
        %v2713 = vadd.f32 %v2693, %v2705
        %v2714 = vadd.f32 %v2694, %v2706
        %v2715 = vadd.f32 %v2695, %v2707
        %v2716 = vadd.f32 %v2696, %v2708
        %v2717 = vperm.slane %v2677, 7
        %v2718 = vperm.slane %v2678, 7
        %v2719 = vperm.slane %v2679, 7
        %v2720 = vperm.slane %v2680, 7
        %v2721 = vmul.f32 %v827, %v2717
        %v2722 = vmul.f32 %v827, %v2718
        %v2723 = vmul.f32 %v827, %v2719
        %v2724 = vmul.f32 %v827, %v2720
        %v2725 = vmul.f32 %v918, %v2717
        %v2726 = vmul.f32 %v918, %v2718
        %v2727 = vmul.f32 %v918, %v2719
        %v2728 = vmul.f32 %v918, %v2720
        %v2729 = vadd.f32 %v2709, %v2721
        %v2730 = vadd.f32 %v2710, %v2722
        %v2731 = vadd.f32 %v2711, %v2723
        %v2732 = vadd.f32 %v2712, %v2724
        %v2733 = vadd.f32 %v2713, %v2725
        %v2734 = vadd.f32 %v2714, %v2726
        %v2735 = vadd.f32 %v2715, %v2727
        %v2736 = vadd.f32 %v2716, %v2728
        %v2737 = vperm.slane %v2681, 0
        %v2738 = vperm.slane %v2682, 0
        %v2739 = vperm.slane %v2683, 0
        %v2740 = vperm.slane %v2684, 0
        %v2741 = vmul.f32 %v942, %v2737
        %v2742 = vmul.f32 %v942, %v2738
        %v2743 = vmul.f32 %v942, %v2739
        %v2744 = vmul.f32 %v942, %v2740
        %v2745 = vmul.f32 %v946, %v2737
        %v2746 = vmul.f32 %v946, %v2738
        %v2747 = vmul.f32 %v946, %v2739
        %v2748 = vmul.f32 %v946, %v2740
        %v2749 = vadd.f32 %v2729, %v2741
        %v2750 = vadd.f32 %v2730, %v2742
        %v2751 = vadd.f32 %v2731, %v2743
        %v2752 = vadd.f32 %v2732, %v2744
        %v2753 = vadd.f32 %v2733, %v2745
        %v2754 = vadd.f32 %v2734, %v2746
        %v2755 = vadd.f32 %v2735, %v2747
        %v2756 = vadd.f32 %v2736, %v2748
        %v2757 = vadd.f32 %v2749, %v968
        %v2758 = vadd.f32 %v2750, %v968
        %v2759 = vadd.f32 %v2751, %v968
        %v2760 = vadd.f32 %v2752, %v968
        %v2761 = vadd.f32 %v2753, %v968
        %v2762 = vadd.f32 %v2754, %v968
        %v2763 = vadd.f32 %v2755, %v968
        %v2764 = vadd.f32 %v2756, %v968
        %v2765 = vmax.f32 %v2757, 0.0
        %v2766 = vmax.f32 %v2758, 0.0
        %v2767 = vmax.f32 %v2759, 0.0
        %v2768 = vmax.f32 %v2760, 0.0
        %v2769 = vmax.f32 %v2761, 0.0
        %v2770 = vmax.f32 %v2762, 0.0
        %v2771 = vmax.f32 %v2763, 0.0
        %v2772 = vmax.f32 %v2764, 0.0
        %v2773 = vperm.slane %v2765, 5
        %v2774 = vperm.slane %v2766, 5
        %v2775 = vperm.slane %v2767, 5
        %v2776 = vperm.slane %v2768, 5
        %v2777 = vmul.f32 %v878, %v2773
        %v2778 = vmul.f32 %v878, %v2774
        %v2779 = vmul.f32 %v878, %v2775
        %v2780 = vmul.f32 %v878, %v2776
        %v2781 = vmul.f32 %v989, %v2773
        %v2782 = vmul.f32 %v989, %v2774
        %v2783 = vmul.f32 %v989, %v2775
        %v2784 = vmul.f32 %v989, %v2776
        %v2785 = vperm.slane %v2765, 6
        %v2786 = vperm.slane %v2766, 6
        %v2787 = vperm.slane %v2767, 6
        %v2788 = vperm.slane %v2768, 6
        %v2789 = vmul.f32 %v894, %v2785
        %v2790 = vmul.f32 %v894, %v2786
        %v2791 = vmul.f32 %v894, %v2787
        %v2792 = vmul.f32 %v894, %v2788
        %v2793 = vmul.f32 %v1005, %v2785
        %v2794 = vmul.f32 %v1005, %v2786
        %v2795 = vmul.f32 %v1005, %v2787
        %v2796 = vmul.f32 %v1005, %v2788
        %v2797 = vadd.f32 %v2777, %v2789
        %v2798 = vadd.f32 %v2778, %v2790
        %v2799 = vadd.f32 %v2779, %v2791
        %v2800 = vadd.f32 %v2780, %v2792
        %v2801 = vadd.f32 %v2781, %v2793
        %v2802 = vadd.f32 %v2782, %v2794
        %v2803 = vadd.f32 %v2783, %v2795
        %v2804 = vadd.f32 %v2784, %v2796
        %v2805 = vperm.slane %v2765, 7
        %v2806 = vperm.slane %v2766, 7
        %v2807 = vperm.slane %v2767, 7
        %v2808 = vperm.slane %v2768, 7
        %v2809 = vmul.f32 %v918, %v2805
        %v2810 = vmul.f32 %v918, %v2806
        %v2811 = vmul.f32 %v918, %v2807
        %v2812 = vmul.f32 %v918, %v2808
        %v2813 = vmul.f32 %v1029, %v2805
        %v2814 = vmul.f32 %v1029, %v2806
        %v2815 = vmul.f32 %v1029, %v2807
        %v2816 = vmul.f32 %v1029, %v2808
        %v2817 = vadd.f32 %v2797, %v2809
        %v2818 = vadd.f32 %v2798, %v2810
        %v2819 = vadd.f32 %v2799, %v2811
        %v2820 = vadd.f32 %v2800, %v2812
        %v2821 = vadd.f32 %v2801, %v2813
        %v2822 = vadd.f32 %v2802, %v2814
        %v2823 = vadd.f32 %v2803, %v2815
        %v2824 = vadd.f32 %v2804, %v2816
        %v2825 = vperm.slane %v2769, 0
        %v2826 = vperm.slane %v2770, 0
        %v2827 = vperm.slane %v2771, 0
        %v2828 = vperm.slane %v2772, 0
        %v2829 = vmul.f32 %v946, %v2825
        %v2830 = vmul.f32 %v946, %v2826
        %v2831 = vmul.f32 %v946, %v2827
        %v2832 = vmul.f32 %v946, %v2828
        %v2833 = vmul.f32 %v1053, %v2825
        %v2834 = vmul.f32 %v1053, %v2826
        %v2835 = vmul.f32 %v1053, %v2827
        %v2836 = vmul.f32 %v1053, %v2828
        %v2837 = vadd.f32 %v2817, %v2829
        %v2838 = vadd.f32 %v2818, %v2830
        %v2839 = vadd.f32 %v2819, %v2831
        %v2840 = vadd.f32 %v2820, %v2832
        %v2841 = vadd.f32 %v2821, %v2833
        %v2842 = vadd.f32 %v2822, %v2834
        %v2843 = vadd.f32 %v2823, %v2835
        %v2844 = vadd.f32 %v2824, %v2836
        %v2845 = vperm.slane %v2769, 1
        %v2846 = vperm.slane %v2770, 1
        %v2847 = vperm.slane %v2771, 1
        %v2848 = vperm.slane %v2772, 1
        %v2849 = vmul.f32 %v1077, %v2845
        %v2850 = vmul.f32 %v1077, %v2846
        %v2851 = vmul.f32 %v1077, %v2847
        %v2852 = vmul.f32 %v1077, %v2848
        %v2853 = vmul.f32 %v1081, %v2845
        %v2854 = vmul.f32 %v1081, %v2846
        %v2855 = vmul.f32 %v1081, %v2847
        %v2856 = vmul.f32 %v1081, %v2848
        %v2857 = vadd.f32 %v2837, %v2849
        %v2858 = vadd.f32 %v2838, %v2850
        %v2859 = vadd.f32 %v2839, %v2851
        %v2860 = vadd.f32 %v2840, %v2852
        %v2861 = vadd.f32 %v2841, %v2853
        %v2862 = vadd.f32 %v2842, %v2854
        %v2863 = vadd.f32 %v2843, %v2855
        %v2864 = vadd.f32 %v2844, %v2856
        %v2865 = vadd.f32 %v2857, %v1103
        %v2866 = vadd.f32 %v2858, %v1103
        %v2867 = vadd.f32 %v2859, %v1103
        %v2868 = vadd.f32 %v2860, %v1103
        %v2869 = vadd.f32 %v2861, %v1103
        %v2870 = vadd.f32 %v2862, %v1103
        %v2871 = vadd.f32 %v2863, %v1103
        %v2872 = vadd.f32 %v2864, %v1103
        %v2873 = vmax.f32 %v2865, 0.0
        %v2874 = vmax.f32 %v2866, 0.0
        %v2875 = vmax.f32 %v2867, 0.0
        %v2876 = vmax.f32 %v2868, 0.0
        %v2877 = vmax.f32 %v2869, 0.0
        %v2878 = vmax.f32 %v2870, 0.0
        %v2879 = vmax.f32 %v2871, 0.0
        %v2880 = vmax.f32 %v2872, 0.0
        %v2881 = vperm.slane %v2873, 7
        %v2882 = vperm.slane %v2874, 7
        %v2883 = vperm.slane %v2875, 7
        %v2884 = vperm.slane %v2876, 7
        %v2885 = vmul.f32 %v989, %v2881
        %v2886 = vmul.f32 %v989, %v2882
        %v2887 = vmul.f32 %v989, %v2883
        %v2888 = vmul.f32 %v989, %v2884
        %v2889 = vmul.f32 %v1124, %v2881
        %v2890 = vmul.f32 %v1124, %v2882
        %v2891 = vmul.f32 %v1124, %v2883
        %v2892 = vmul.f32 %v1124, %v2884
        %v2893 = vperm.slane %v2877, 0
        %v2894 = vperm.slane %v2878, 0
        %v2895 = vperm.slane %v2879, 0
        %v2896 = vperm.slane %v2880, 0
        %v2897 = vmul.f32 %v1005, %v2893
        %v2898 = vmul.f32 %v1005, %v2894
        %v2899 = vmul.f32 %v1005, %v2895
        %v2900 = vmul.f32 %v1005, %v2896
        %v2901 = vmul.f32 %v1140, %v2893
        %v2902 = vmul.f32 %v1140, %v2894
        %v2903 = vmul.f32 %v1140, %v2895
        %v2904 = vmul.f32 %v1140, %v2896
        %v2905 = vadd.f32 %v2885, %v2897
        %v2906 = vadd.f32 %v2886, %v2898
        %v2907 = vadd.f32 %v2887, %v2899
        %v2908 = vadd.f32 %v2888, %v2900
        %v2909 = vadd.f32 %v2889, %v2901
        %v2910 = vadd.f32 %v2890, %v2902
        %v2911 = vadd.f32 %v2891, %v2903
        %v2912 = vadd.f32 %v2892, %v2904
        %v2913 = vperm.slane %v2877, 1
        %v2914 = vperm.slane %v2878, 1
        %v2915 = vperm.slane %v2879, 1
        %v2916 = vperm.slane %v2880, 1
        %v2917 = vmul.f32 %v1029, %v2913
        %v2918 = vmul.f32 %v1029, %v2914
        %v2919 = vmul.f32 %v1029, %v2915
        %v2920 = vmul.f32 %v1029, %v2916
        %v2921 = vmul.f32 %v1164, %v2913
        %v2922 = vmul.f32 %v1164, %v2914
        %v2923 = vmul.f32 %v1164, %v2915
        %v2924 = vmul.f32 %v1164, %v2916
        %v2925 = vadd.f32 %v2905, %v2917
        %v2926 = vadd.f32 %v2906, %v2918
        %v2927 = vadd.f32 %v2907, %v2919
        %v2928 = vadd.f32 %v2908, %v2920
        %v2929 = vadd.f32 %v2909, %v2921
        %v2930 = vadd.f32 %v2910, %v2922
        %v2931 = vadd.f32 %v2911, %v2923
        %v2932 = vadd.f32 %v2912, %v2924
        %v2933 = vperm.slane %v2877, 2
        %v2934 = vperm.slane %v2878, 2
        %v2935 = vperm.slane %v2879, 2
        %v2936 = vperm.slane %v2880, 2
        %v2937 = vmul.f32 %v1053, %v2933
        %v2938 = vmul.f32 %v1053, %v2934
        %v2939 = vmul.f32 %v1053, %v2935
        %v2940 = vmul.f32 %v1053, %v2936
        %v2941 = vmul.f32 %v1188, %v2933
        %v2942 = vmul.f32 %v1188, %v2934
        %v2943 = vmul.f32 %v1188, %v2935
        %v2944 = vmul.f32 %v1188, %v2936
        %v2945 = vadd.f32 %v2925, %v2937
        %v2946 = vadd.f32 %v2926, %v2938
        %v2947 = vadd.f32 %v2927, %v2939
        %v2948 = vadd.f32 %v2928, %v2940
        %v2949 = vadd.f32 %v2929, %v2941
        %v2950 = vadd.f32 %v2930, %v2942
        %v2951 = vadd.f32 %v2931, %v2943
        %v2952 = vadd.f32 %v2932, %v2944
        %v2953 = vadd.f32 %v2945, %v1215
        %v2954 = vadd.f32 %v2946, %v1215
        %v2955 = vadd.f32 %v2947, %v1215
        %v2956 = vadd.f32 %v2948, %v1215
        %v2957 = vadd.f32 %v2949, %v1217
        %v2958 = vadd.f32 %v2950, %v1217
        %v2959 = vadd.f32 %v2951, %v1217
        %v2960 = vadd.f32 %v2952, %v1217
        %v2961 = vadd.f32 %v2455, %v2953
        %v2962 = vadd.f32 %v2456, %v2954
        %v2963 = vadd.f32 %v2457, %v2955
        %v2964 = vadd.f32 %v2458, %v2956
        %v2965 = vadd.f32 %v2459, %v2957
        %v2966 = vadd.f32 %v2460, %v2958
        %v2967 = vadd.f32 %v2461, %v2959
        %v2968 = vadd.f32 %v2462, %v2960
        %v2969 = vsub.f32 %v352, %v2467
        %v2970 = vsub.f32 %v353, %v2468
        %v2973 = vperm.slane %v2969, 0
        %v2974 = vperm.slane %v2969, 4
        %v2975 = vperm.slane %v2970, 0
        %v2976 = vperm.slane %v2970, 4
        %v2981 = vperm.slane %v2973, 0
        %v2982 = vperm.slane %v2974, 0
        %v2983 = vperm.slane %v2975, 0
        %v2984 = vperm.slane %v2976, 0
        %v2985 = vmul.f32 %v512, %v2981
        %v2986 = vmul.f32 %v512, %v2982
        %v2987 = vmul.f32 %v512, %v2983
        %v2988 = vmul.f32 %v512, %v2984
        %v2989 = vmul.f32 %v1241, %v2981
        %v2990 = vmul.f32 %v1241, %v2982
        %v2991 = vmul.f32 %v1241, %v2983
        %v2992 = vmul.f32 %v1241, %v2984
        %v2993 = vperm.slane %v2969, 1
        %v2994 = vperm.slane %v2969, 5
        %v2995 = vperm.slane %v2970, 1
        %v2996 = vperm.slane %v2970, 5
        %v3001 = vperm.slane %v2993, 1
        %v3002 = vperm.slane %v2994, 1
        %v3003 = vperm.slane %v2995, 1
        %v3004 = vperm.slane %v2996, 1
        %v3005 = vmul.f32 %v538, %v3001
        %v3006 = vmul.f32 %v538, %v3002
        %v3007 = vmul.f32 %v538, %v3003
        %v3008 = vmul.f32 %v538, %v3004
        %v3009 = vmul.f32 %v1267, %v3001
        %v3010 = vmul.f32 %v1267, %v3002
        %v3011 = vmul.f32 %v1267, %v3003
        %v3012 = vmul.f32 %v1267, %v3004
        %v3013 = vadd.f32 %v2985, %v3005
        %v3014 = vadd.f32 %v2986, %v3006
        %v3015 = vadd.f32 %v2987, %v3007
        %v3016 = vadd.f32 %v2988, %v3008
        %v3017 = vadd.f32 %v2989, %v3009
        %v3018 = vadd.f32 %v2990, %v3010
        %v3019 = vadd.f32 %v2991, %v3011
        %v3020 = vadd.f32 %v2992, %v3012
        %v3021 = vperm.slane %v2969, 2
        %v3022 = vperm.slane %v2969, 6
        %v3023 = vperm.slane %v2970, 2
        %v3024 = vperm.slane %v2970, 6
        %v3029 = vperm.slane %v3021, 2
        %v3030 = vperm.slane %v3022, 2
        %v3031 = vperm.slane %v3023, 2
        %v3032 = vperm.slane %v3024, 2
        %v3033 = vmul.f32 %v570, %v3029
        %v3034 = vmul.f32 %v570, %v3030
        %v3035 = vmul.f32 %v570, %v3031
        %v3036 = vmul.f32 %v570, %v3032
        %v3037 = vmul.f32 %v1299, %v3029
        %v3038 = vmul.f32 %v1299, %v3030
        %v3039 = vmul.f32 %v1299, %v3031
        %v3040 = vmul.f32 %v1299, %v3032
        %v3041 = vadd.f32 %v3013, %v3033
        %v3042 = vadd.f32 %v3014, %v3034
        %v3043 = vadd.f32 %v3015, %v3035
        %v3044 = vadd.f32 %v3016, %v3036
        %v3045 = vadd.f32 %v3017, %v3037
        %v3046 = vadd.f32 %v3018, %v3038
        %v3047 = vadd.f32 %v3019, %v3039
        %v3048 = vadd.f32 %v3020, %v3040
        %v3049 = vadd.f32 %v3041, %v1329
        %v3050 = vadd.f32 %v3042, %v1329
        %v3051 = vadd.f32 %v3043, %v1329
        %v3052 = vadd.f32 %v3044, %v1329
        %v3053 = vadd.f32 %v3045, %v1329
        %v3054 = vadd.f32 %v3046, %v1329
        %v3055 = vadd.f32 %v3047, %v1329
        %v3056 = vadd.f32 %v3048, %v1329
        %v3057 = vmax.f32 %v3049, 0.0
        %v3058 = vmax.f32 %v3050, 0.0
        %v3059 = vmax.f32 %v3051, 0.0
        %v3060 = vmax.f32 %v3052, 0.0
        %v3061 = vmax.f32 %v3053, 0.0
        %v3062 = vmax.f32 %v3054, 0.0
        %v3063 = vmax.f32 %v3055, 0.0
        %v3064 = vmax.f32 %v3056, 0.0
        %v3065 = vperm.slane %v3057, 7
        %v3066 = vperm.slane %v3058, 7
        %v3067 = vperm.slane %v3059, 7
        %v3068 = vperm.slane %v3060, 7
        %v3069 = vmul.f32 %v1241, %v3065
        %v3070 = vmul.f32 %v1241, %v3066
        %v3071 = vmul.f32 %v1241, %v3067
        %v3072 = vmul.f32 %v1241, %v3068
        %v3073 = vmul.f32 %v1350, %v3065
        %v3074 = vmul.f32 %v1350, %v3066
        %v3075 = vmul.f32 %v1350, %v3067
        %v3076 = vmul.f32 %v1350, %v3068
        %v3077 = vperm.slane %v3061, 0
        %v3078 = vperm.slane %v3062, 0
        %v3079 = vperm.slane %v3063, 0
        %v3080 = vperm.slane %v3064, 0
        %v3081 = vmul.f32 %v1267, %v3077
        %v3082 = vmul.f32 %v1267, %v3078
        %v3083 = vmul.f32 %v1267, %v3079
        %v3084 = vmul.f32 %v1267, %v3080
        %v3085 = vmul.f32 %v1366, %v3077
        %v3086 = vmul.f32 %v1366, %v3078
        %v3087 = vmul.f32 %v1366, %v3079
        %v3088 = vmul.f32 %v1366, %v3080
        %v3089 = vadd.f32 %v3069, %v3081
        %v3090 = vadd.f32 %v3070, %v3082
        %v3091 = vadd.f32 %v3071, %v3083
        %v3092 = vadd.f32 %v3072, %v3084
        %v3093 = vadd.f32 %v3073, %v3085
        %v3094 = vadd.f32 %v3074, %v3086
        %v3095 = vadd.f32 %v3075, %v3087
        %v3096 = vadd.f32 %v3076, %v3088
        %v3097 = vperm.slane %v3061, 1
        %v3098 = vperm.slane %v3062, 1
        %v3099 = vperm.slane %v3063, 1
        %v3100 = vperm.slane %v3064, 1
        %v3101 = vmul.f32 %v1299, %v3097
        %v3102 = vmul.f32 %v1299, %v3098
        %v3103 = vmul.f32 %v1299, %v3099
        %v3104 = vmul.f32 %v1299, %v3100
        %v3105 = vmul.f32 %v1390, %v3097
        %v3106 = vmul.f32 %v1390, %v3098
        %v3107 = vmul.f32 %v1390, %v3099
        %v3108 = vmul.f32 %v1390, %v3100
        %v3109 = vadd.f32 %v3089, %v3101
        %v3110 = vadd.f32 %v3090, %v3102
        %v3111 = vadd.f32 %v3091, %v3103
        %v3112 = vadd.f32 %v3092, %v3104
        %v3113 = vadd.f32 %v3093, %v3105
        %v3114 = vadd.f32 %v3094, %v3106
        %v3115 = vadd.f32 %v3095, %v3107
        %v3116 = vadd.f32 %v3096, %v3108
        %v3117 = vperm.slane %v3061, 2
        %v3118 = vperm.slane %v3062, 2
        %v3119 = vperm.slane %v3063, 2
        %v3120 = vperm.slane %v3064, 2
        %v3121 = vmul.f32 %v1414, %v3117
        %v3122 = vmul.f32 %v1414, %v3118
        %v3123 = vmul.f32 %v1414, %v3119
        %v3124 = vmul.f32 %v1414, %v3120
        %v3125 = vmul.f32 %v1418, %v3117
        %v3126 = vmul.f32 %v1418, %v3118
        %v3127 = vmul.f32 %v1418, %v3119
        %v3128 = vmul.f32 %v1418, %v3120
        %v3129 = vadd.f32 %v3109, %v3121
        %v3130 = vadd.f32 %v3110, %v3122
        %v3131 = vadd.f32 %v3111, %v3123
        %v3132 = vadd.f32 %v3112, %v3124
        %v3133 = vadd.f32 %v3113, %v3125
        %v3134 = vadd.f32 %v3114, %v3126
        %v3135 = vadd.f32 %v3115, %v3127
        %v3136 = vadd.f32 %v3116, %v3128
        %v3137 = vadd.f32 %v3129, %v1445
        %v3138 = vadd.f32 %v3130, %v1445
        %v3139 = vadd.f32 %v3131, %v1445
        %v3140 = vadd.f32 %v3132, %v1445
        %v3141 = vadd.f32 %v3133, %v1447
        %v3142 = vadd.f32 %v3134, %v1447
        %v3143 = vadd.f32 %v3135, %v1447
        %v3144 = vadd.f32 %v3136, %v1447
        %v3145 = vmax.f32 %v3137, 0.0
        %v3146 = vmax.f32 %v3138, 0.0
        %v3147 = vmax.f32 %v3139, 0.0
        %v3148 = vmax.f32 %v3140, 0.0
        %v3149 = vmax.f32 %v3141, 0.0
        %v3150 = vmax.f32 %v3142, 0.0
        %v3151 = vmax.f32 %v3143, 0.0
        %v3152 = vmax.f32 %v3144, 0.0
        %v3153 = vperm.slane %v3145, 7
        %v3154 = vperm.slane %v3146, 7
        %v3155 = vperm.slane %v3147, 7
        %v3156 = vperm.slane %v3148, 7
        %v3157 = vmul.f32 %v1443, %v3153
        %v3158 = vmul.f32 %v1443, %v3154
        %v3159 = vmul.f32 %v1443, %v3155
        %v3160 = vmul.f32 %v1443, %v3156
        %v3161 = vperm.slane %v3149, 0
        %v3162 = vperm.slane %v3150, 0
        %v3163 = vperm.slane %v3151, 0
        %v3164 = vperm.slane %v3152, 0
        %v3165 = vmul.f32 %v1477, %v3161
        %v3166 = vmul.f32 %v1477, %v3162
        %v3167 = vmul.f32 %v1477, %v3163
        %v3168 = vmul.f32 %v1477, %v3164
        %v3169 = vadd.f32 %v3157, %v3165
        %v3170 = vadd.f32 %v3158, %v3166
        %v3171 = vadd.f32 %v3159, %v3167
        %v3172 = vadd.f32 %v3160, %v3168
        %v3173 = vperm.slane %v3149, 1
        %v3174 = vperm.slane %v3150, 1
        %v3175 = vperm.slane %v3151, 1
        %v3176 = vperm.slane %v3152, 1
        %v3177 = vmul.f32 %v1493, %v3173
        %v3178 = vmul.f32 %v1493, %v3174
        %v3179 = vmul.f32 %v1493, %v3175
        %v3180 = vmul.f32 %v1493, %v3176
        %v3181 = vadd.f32 %v3169, %v3177
        %v3182 = vadd.f32 %v3170, %v3178
        %v3183 = vadd.f32 %v3171, %v3179
        %v3184 = vadd.f32 %v3172, %v3180
        %v3185 = vperm.slane %v3149, 2
        %v3186 = vperm.slane %v3150, 2
        %v3187 = vperm.slane %v3151, 2
        %v3188 = vperm.slane %v3152, 2
        %v3189 = vmul.f32 %v1509, %v3185
        %v3190 = vmul.f32 %v1509, %v3186
        %v3191 = vmul.f32 %v1509, %v3187
        %v3192 = vmul.f32 %v1509, %v3188
        %v3193 = vadd.f32 %v3181, %v3189
        %v3194 = vadd.f32 %v3182, %v3190
        %v3195 = vadd.f32 %v3183, %v3191
        %v3196 = vadd.f32 %v3184, %v3192
        %v3197 = vperm.slane %v3149, 3
        %v3198 = vperm.slane %v3150, 3
        %v3199 = vperm.slane %v3151, 3
        %v3200 = vperm.slane %v3152, 3
        %v3201 = vmul.f32 %v1525, %v3197
        %v3202 = vmul.f32 %v1525, %v3198
        %v3203 = vmul.f32 %v1525, %v3199
        %v3204 = vmul.f32 %v1525, %v3200
        %v3205 = vadd.f32 %v3193, %v3201
        %v3206 = vadd.f32 %v3194, %v3202
        %v3207 = vadd.f32 %v3195, %v3203
        %v3208 = vadd.f32 %v3196, %v3204
        %v3209 = vadd.f32 %v3205, %v1546
        %v3210 = vadd.f32 %v3206, %v1546
        %v3211 = vadd.f32 %v3207, %v1546
        %v3212 = vadd.f32 %v3208, %v1546
        %v3213 = vmax.f32 %v3209, 0.0
        %v3214 = vmax.f32 %v3210, 0.0
        %v3215 = vmax.f32 %v3211, 0.0
        %v3216 = vmax.f32 %v3212, 0.0
        %v3217 = vperm.slane %v3213, 1
        %v3218 = vperm.slane %v3214, 1
        %v3219 = vperm.slane %v3215, 1
        %v3220 = vperm.slane %v3216, 1
        %v3221 = vmul.f32 %v1542, %v3217
        %v3222 = vmul.f32 %v1542, %v3218
        %v3223 = vmul.f32 %v1542, %v3219
        %v3224 = vmul.f32 %v1542, %v3220
        %v3225 = vperm.slane %v3213, 2
        %v3226 = vperm.slane %v3214, 2
        %v3227 = vperm.slane %v3215, 2
        %v3228 = vperm.slane %v3216, 2
        %v3229 = vmul.f32 %v1567, %v3225
        %v3230 = vmul.f32 %v1567, %v3226
        %v3231 = vmul.f32 %v1567, %v3227
        %v3232 = vmul.f32 %v1567, %v3228
        %v3233 = vadd.f32 %v3221, %v3229
        %v3234 = vadd.f32 %v3222, %v3230
        %v3235 = vadd.f32 %v3223, %v3231
        %v3236 = vadd.f32 %v3224, %v3232
        %v3237 = vperm.slane %v3213, 3
        %v3238 = vperm.slane %v3214, 3
        %v3239 = vperm.slane %v3215, 3
        %v3240 = vperm.slane %v3216, 3
        %v3241 = vmul.f32 %v1583, %v3237
        %v3242 = vmul.f32 %v1583, %v3238
        %v3243 = vmul.f32 %v1583, %v3239
        %v3244 = vmul.f32 %v1583, %v3240
        %v3245 = vadd.f32 %v3233, %v3241
        %v3246 = vadd.f32 %v3234, %v3242
        %v3247 = vadd.f32 %v3235, %v3243
        %v3248 = vadd.f32 %v3236, %v3244
        %v3249 = vperm.slane %v3213, 4
        %v3250 = vperm.slane %v3214, 4
        %v3251 = vperm.slane %v3215, 4
        %v3252 = vperm.slane %v3216, 4
        %v3253 = vmul.f32 %v1599, %v3249
        %v3254 = vmul.f32 %v1599, %v3250
        %v3255 = vmul.f32 %v1599, %v3251
        %v3256 = vmul.f32 %v1599, %v3252
        %v3257 = vadd.f32 %v3245, %v3253
        %v3258 = vadd.f32 %v3246, %v3254
        %v3259 = vadd.f32 %v3247, %v3255
        %v3260 = vadd.f32 %v3248, %v3256
        %v3261 = vadd.f32 %v3257, %v1615
        %v3262 = vadd.f32 %v3258, %v1615
        %v3263 = vadd.f32 %v3259, %v1615
        %v3264 = vadd.f32 %v3260, %v1615
        %v3269 = vrot.slane %v3261, 2
        %v3270 = vrot.slane %v3262, 2
        %v3271 = vrot.slane %v3263, 2
        %v3272 = vrot.slane %v3264, 2
        %v3277 = vadd.f32 %v2961, %v3269
        %v3278 = vadd.f32 %v2962, %v3270
        %v3279 = vadd.f32 %v2963, %v3271
        %v3280 = vadd.f32 %v2964, %v3272
        %v3281 = vadd.f32 %v2965, %v3269
        %v3282 = vadd.f32 %v2966, %v3270
        %v3283 = vadd.f32 %v2967, %v3271
        %v3284 = vadd.f32 %v2968, %v3272
        %s3285 = scalar_lea.vmem %s266, 48 [#allocation2]
        %v3286 = vld [vmem:[%s3285] sm:$0xff]
        %v3287 = vld [vmem:[%s3285 + $0x8] sm:$0xff]
        %s3288 = scalar_lea.vmem %s276, 48 [#allocation5]
        %v3289 = vld [vmem:[%s3288] sm:$0x77]
        %v3290 = vld [vmem:[%s3288 + $0x8] sm:$0x77]
        %v3293 = vperm.slane %v3286, 0
        %v3294 = vperm.slane %v3286, 4
        %v3295 = vperm.slane %v3287, 0
        %v3296 = vperm.slane %v3287, 4
        %v3301 = vperm.slane %v3293, 0
        %v3302 = vperm.slane %v3294, 0
        %v3303 = vperm.slane %v3295, 0
        %v3304 = vperm.slane %v3296, 0
        %v3305 = vmul.f32 %v617, %v3301
        %v3306 = vmul.f32 %v617, %v3302
        %v3307 = vmul.f32 %v617, %v3303
        %v3308 = vmul.f32 %v617, %v3304
        %v3309 = vperm.slane %v3286, 1
        %v3310 = vperm.slane %v3286, 5
        %v3311 = vperm.slane %v3287, 1
        %v3312 = vperm.slane %v3287, 5
        %v3317 = vperm.slane %v3309, 1
        %v3318 = vperm.slane %v3310, 1
        %v3319 = vperm.slane %v3311, 1
        %v3320 = vperm.slane %v3312, 1
        %v3321 = vmul.f32 %v639, %v3317
        %v3322 = vmul.f32 %v639, %v3318
        %v3323 = vmul.f32 %v639, %v3319
        %v3324 = vmul.f32 %v639, %v3320
        %v3325 = vadd.f32 %v3305, %v3321
        %v3326 = vadd.f32 %v3306, %v3322
        %v3327 = vadd.f32 %v3307, %v3323
        %v3328 = vadd.f32 %v3308, %v3324
        %v3329 = vperm.slane %v3286, 2
        %v3330 = vperm.slane %v3286, 6
        %v3331 = vperm.slane %v3287, 2
        %v3332 = vperm.slane %v3287, 6
        %v3337 = vperm.slane %v3329, 2
        %v3338 = vperm.slane %v3330, 2
        %v3339 = vperm.slane %v3331, 2
        %v3340 = vperm.slane %v3332, 2
        %v3341 = vmul.f32 %v663, %v3337
        %v3342 = vmul.f32 %v663, %v3338
        %v3343 = vmul.f32 %v663, %v3339
        %v3344 = vmul.f32 %v663, %v3340
        %v3345 = vadd.f32 %v3325, %v3341
        %v3346 = vadd.f32 %v3326, %v3342
        %v3347 = vadd.f32 %v3327, %v3343
        %v3348 = vadd.f32 %v3328, %v3344
        %v3349 = vperm.slane %v3286, 3
        %v3350 = vperm.slane %v3286, 7
        %v3351 = vperm.slane %v3287, 3
        %v3352 = vperm.slane %v3287, 7
        %v3357 = vperm.slane %v3349, 3
        %v3358 = vperm.slane %v3350, 3
        %v3359 = vperm.slane %v3351, 3
        %v3360 = vperm.slane %v3352, 3
        %v3361 = vmul.f32 %v687, %v3357
        %v3362 = vmul.f32 %v687, %v3358
        %v3363 = vmul.f32 %v687, %v3359
        %v3364 = vmul.f32 %v687, %v3360
        %v3365 = vadd.f32 %v3345, %v3361
        %v3366 = vadd.f32 %v3346, %v3362
        %v3367 = vadd.f32 %v3347, %v3363
        %v3368 = vadd.f32 %v3348, %v3364
        %v3369 = vmax.f32 %v2547, %v3365
        %v3370 = vmax.f32 %v2548, %v3366
        %v3371 = vmax.f32 %v2549, %v3367
        %v3372 = vmax.f32 %v2550, %v3368
        %v3373 = vmul.f32 %v461, %v3293
        %v3374 = vmul.f32 %v461, %v3294
        %v3375 = vmul.f32 %v461, %v3295
        %v3376 = vmul.f32 %v461, %v3296
        %v3377 = vmul.f32 %v469, %v3309
        %v3378 = vmul.f32 %v469, %v3310
        %v3379 = vmul.f32 %v469, %v3311
        %v3380 = vmul.f32 %v469, %v3312
        %v3381 = vadd.f32 %v3373, %v3377
        %v3382 = vadd.f32 %v3374, %v3378
        %v3383 = vadd.f32 %v3375, %v3379
        %v3384 = vadd.f32 %v3376, %v3380
        %v3385 = vmul.f32 %v481, %v3329
        %v3386 = vmul.f32 %v481, %v3330
        %v3387 = vmul.f32 %v481, %v3331
        %v3388 = vmul.f32 %v481, %v3332
        %v3389 = vadd.f32 %v3381, %v3385
        %v3390 = vadd.f32 %v3382, %v3386
        %v3391 = vadd.f32 %v3383, %v3387
        %v3392 = vadd.f32 %v3384, %v3388
        %v3393 = vmul.f32 %v493, %v3349
        %v3394 = vmul.f32 %v493, %v3350
        %v3395 = vmul.f32 %v493, %v3351
        %v3396 = vmul.f32 %v493, %v3352
        %v3397 = vadd.f32 %v3389, %v3393
        %v3398 = vadd.f32 %v3390, %v3394
        %v3399 = vadd.f32 %v3391, %v3395
        %v3400 = vadd.f32 %v3392, %v3396
        %v3401 = vadd.f32 %v3397, %v741
        %v3402 = vadd.f32 %v3398, %v742
        %v3403 = vadd.f32 %v3399, %v743
        %v3404 = vadd.f32 %v3400, %v744
        %v3405 = vmax.f32 %v2583, %v3401
        %v3406 = vmax.f32 %v2584, %v3402
        %v3407 = vmax.f32 %v2585, %v3403
        %v3408 = vmax.f32 %v2586, %v3404
        %v3409 = vmin.f32 %v2587, %v3401
        %v3410 = vmin.f32 %v2588, %v3402
        %v3411 = vmin.f32 %v2589, %v3403
        %v3412 = vmin.f32 %v2590, %v3404
        %v3415 = vperm.slane %v3289, 0
        %v3416 = vperm.slane %v3289, 4
        %v3417 = vperm.slane %v3290, 0
        %v3418 = vperm.slane %v3290, 4
        %v3423 = vperm.slane %v3415, 0
        %v3424 = vperm.slane %v3416, 0
        %v3425 = vperm.slane %v3417, 0
        %v3426 = vperm.slane %v3418, 0
        %v3427 = vmul.f32 %v756, %v3423
        %v3428 = vmul.f32 %v756, %v3424
        %v3429 = vmul.f32 %v756, %v3425
        %v3430 = vmul.f32 %v756, %v3426
        %v3431 = vmul.f32 %v761, %v3423
        %v3432 = vmul.f32 %v761, %v3424
        %v3433 = vmul.f32 %v761, %v3425
        %v3434 = vmul.f32 %v761, %v3426
        %v3435 = vperm.slane %v3289, 1
        %v3436 = vperm.slane %v3289, 5
        %v3437 = vperm.slane %v3290, 1
        %v3438 = vperm.slane %v3290, 5
        %v3443 = vperm.slane %v3435, 1
        %v3444 = vperm.slane %v3436, 1
        %v3445 = vperm.slane %v3437, 1
        %v3446 = vperm.slane %v3438, 1
        %v3447 = vmul.f32 %v787, %v3443
        %v3448 = vmul.f32 %v787, %v3444
        %v3449 = vmul.f32 %v787, %v3445
        %v3450 = vmul.f32 %v787, %v3446
        %v3451 = vmul.f32 %v791, %v3443
        %v3452 = vmul.f32 %v791, %v3444
        %v3453 = vmul.f32 %v791, %v3445
        %v3454 = vmul.f32 %v791, %v3446
        %v3455 = vadd.f32 %v3427, %v3447
        %v3456 = vadd.f32 %v3428, %v3448
        %v3457 = vadd.f32 %v3429, %v3449
        %v3458 = vadd.f32 %v3430, %v3450
        %v3459 = vadd.f32 %v3431, %v3451
        %v3460 = vadd.f32 %v3432, %v3452
        %v3461 = vadd.f32 %v3433, %v3453
        %v3462 = vadd.f32 %v3434, %v3454
        %v3463 = vperm.slane %v3289, 2
        %v3464 = vperm.slane %v3289, 6
        %v3465 = vperm.slane %v3290, 2
        %v3466 = vperm.slane %v3290, 6
        %v3471 = vperm.slane %v3463, 2
        %v3472 = vperm.slane %v3464, 2
        %v3473 = vperm.slane %v3465, 2
        %v3474 = vperm.slane %v3466, 2
        %v3475 = vmul.f32 %v823, %v3471
        %v3476 = vmul.f32 %v823, %v3472
        %v3477 = vmul.f32 %v823, %v3473
        %v3478 = vmul.f32 %v823, %v3474
        %v3479 = vmul.f32 %v827, %v3471
        %v3480 = vmul.f32 %v827, %v3472
        %v3481 = vmul.f32 %v827, %v3473
        %v3482 = vmul.f32 %v827, %v3474
        %v3483 = vadd.f32 %v3455, %v3475
        %v3484 = vadd.f32 %v3456, %v3476
        %v3485 = vadd.f32 %v3457, %v3477
        %v3486 = vadd.f32 %v3458, %v3478
        %v3487 = vadd.f32 %v3459, %v3479
        %v3488 = vadd.f32 %v3460, %v3480
        %v3489 = vadd.f32 %v3461, %v3481
        %v3490 = vadd.f32 %v3462, %v3482
        %v3491 = vadd.f32 %v3483, %v857
        %v3492 = vadd.f32 %v3484, %v857
        %v3493 = vadd.f32 %v3485, %v857
        %v3494 = vadd.f32 %v3486, %v857
        %v3495 = vadd.f32 %v3487, %v857
        %v3496 = vadd.f32 %v3488, %v857
        %v3497 = vadd.f32 %v3489, %v857
        %v3498 = vadd.f32 %v3490, %v857
        %v3499 = vmax.f32 %v3491, 0.0
        %v3500 = vmax.f32 %v3492, 0.0
        %v3501 = vmax.f32 %v3493, 0.0
        %v3502 = vmax.f32 %v3494, 0.0
        %v3503 = vmax.f32 %v3495, 0.0
        %v3504 = vmax.f32 %v3496, 0.0
        %v3505 = vmax.f32 %v3497, 0.0
        %v3506 = vmax.f32 %v3498, 0.0
        %v3507 = vperm.slane %v3499, 5
        %v3508 = vperm.slane %v3500, 5
        %v3509 = vperm.slane %v3501, 5
        %v3510 = vperm.slane %v3502, 5
        %v3511 = vmul.f32 %v761, %v3507
        %v3512 = vmul.f32 %v761, %v3508
        %v3513 = vmul.f32 %v761, %v3509
        %v3514 = vmul.f32 %v761, %v3510
        %v3515 = vmul.f32 %v878, %v3507
        %v3516 = vmul.f32 %v878, %v3508
        %v3517 = vmul.f32 %v878, %v3509
        %v3518 = vmul.f32 %v878, %v3510
        %v3519 = vperm.slane %v3499, 6
        %v3520 = vperm.slane %v3500, 6
        %v3521 = vperm.slane %v3501, 6
        %v3522 = vperm.slane %v3502, 6
        %v3523 = vmul.f32 %v791, %v3519
        %v3524 = vmul.f32 %v791, %v3520
        %v3525 = vmul.f32 %v791, %v3521
        %v3526 = vmul.f32 %v791, %v3522
        %v3527 = vmul.f32 %v894, %v3519
        %v3528 = vmul.f32 %v894, %v3520
        %v3529 = vmul.f32 %v894, %v3521
        %v3530 = vmul.f32 %v894, %v3522
        %v3531 = vadd.f32 %v3511, %v3523
        %v3532 = vadd.f32 %v3512, %v3524
        %v3533 = vadd.f32 %v3513, %v3525
        %v3534 = vadd.f32 %v3514, %v3526
        %v3535 = vadd.f32 %v3515, %v3527
        %v3536 = vadd.f32 %v3516, %v3528
        %v3537 = vadd.f32 %v3517, %v3529
        %v3538 = vadd.f32 %v3518, %v3530
        %v3539 = vperm.slane %v3499, 7
        %v3540 = vperm.slane %v3500, 7
        %v3541 = vperm.slane %v3501, 7
        %v3542 = vperm.slane %v3502, 7
        %v3543 = vmul.f32 %v827, %v3539
        %v3544 = vmul.f32 %v827, %v3540
        %v3545 = vmul.f32 %v827, %v3541
        %v3546 = vmul.f32 %v827, %v3542
        %v3547 = vmul.f32 %v918, %v3539
        %v3548 = vmul.f32 %v918, %v3540
        %v3549 = vmul.f32 %v918, %v3541
        %v3550 = vmul.f32 %v918, %v3542
        %v3551 = vadd.f32 %v3531, %v3543
        %v3552 = vadd.f32 %v3532, %v3544
        %v3553 = vadd.f32 %v3533, %v3545
        %v3554 = vadd.f32 %v3534, %v3546
        %v3555 = vadd.f32 %v3535, %v3547
        %v3556 = vadd.f32 %v3536, %v3548
        %v3557 = vadd.f32 %v3537, %v3549
        %v3558 = vadd.f32 %v3538, %v3550
        %v3559 = vperm.slane %v3503, 0
        %v3560 = vperm.slane %v3504, 0
        %v3561 = vperm.slane %v3505, 0
        %v3562 = vperm.slane %v3506, 0
        %v3563 = vmul.f32 %v942, %v3559
        %v3564 = vmul.f32 %v942, %v3560
        %v3565 = vmul.f32 %v942, %v3561
        %v3566 = vmul.f32 %v942, %v3562
        %v3567 = vmul.f32 %v946, %v3559
        %v3568 = vmul.f32 %v946, %v3560
        %v3569 = vmul.f32 %v946, %v3561
        %v3570 = vmul.f32 %v946, %v3562
        %v3571 = vadd.f32 %v3551, %v3563
        %v3572 = vadd.f32 %v3552, %v3564
        %v3573 = vadd.f32 %v3553, %v3565
        %v3574 = vadd.f32 %v3554, %v3566
        %v3575 = vadd.f32 %v3555, %v3567
        %v3576 = vadd.f32 %v3556, %v3568
        %v3577 = vadd.f32 %v3557, %v3569
        %v3578 = vadd.f32 %v3558, %v3570
        %v3579 = vadd.f32 %v3571, %v968
        %v3580 = vadd.f32 %v3572, %v968
        %v3581 = vadd.f32 %v3573, %v968
        %v3582 = vadd.f32 %v3574, %v968
        %v3583 = vadd.f32 %v3575, %v968
        %v3584 = vadd.f32 %v3576, %v968
        %v3585 = vadd.f32 %v3577, %v968
        %v3586 = vadd.f32 %v3578, %v968
        %v3587 = vmax.f32 %v3579, 0.0
        %v3588 = vmax.f32 %v3580, 0.0
        %v3589 = vmax.f32 %v3581, 0.0
        %v3590 = vmax.f32 %v3582, 0.0
        %v3591 = vmax.f32 %v3583, 0.0
        %v3592 = vmax.f32 %v3584, 0.0
        %v3593 = vmax.f32 %v3585, 0.0
        %v3594 = vmax.f32 %v3586, 0.0
        %v3595 = vperm.slane %v3587, 5
        %v3596 = vperm.slane %v3588, 5
        %v3597 = vperm.slane %v3589, 5
        %v3598 = vperm.slane %v3590, 5
        %v3599 = vmul.f32 %v878, %v3595
        %v3600 = vmul.f32 %v878, %v3596
        %v3601 = vmul.f32 %v878, %v3597
        %v3602 = vmul.f32 %v878, %v3598
        %v3603 = vmul.f32 %v989, %v3595
        %v3604 = vmul.f32 %v989, %v3596
        %v3605 = vmul.f32 %v989, %v3597
        %v3606 = vmul.f32 %v989, %v3598
        %v3607 = vperm.slane %v3587, 6
        %v3608 = vperm.slane %v3588, 6
        %v3609 = vperm.slane %v3589, 6
        %v3610 = vperm.slane %v3590, 6
        %v3611 = vmul.f32 %v894, %v3607
        %v3612 = vmul.f32 %v894, %v3608
        %v3613 = vmul.f32 %v894, %v3609
        %v3614 = vmul.f32 %v894, %v3610
        %v3615 = vmul.f32 %v1005, %v3607
        %v3616 = vmul.f32 %v1005, %v3608
        %v3617 = vmul.f32 %v1005, %v3609
        %v3618 = vmul.f32 %v1005, %v3610
        %v3619 = vadd.f32 %v3599, %v3611
        %v3620 = vadd.f32 %v3600, %v3612
        %v3621 = vadd.f32 %v3601, %v3613
        %v3622 = vadd.f32 %v3602, %v3614
        %v3623 = vadd.f32 %v3603, %v3615
        %v3624 = vadd.f32 %v3604, %v3616
        %v3625 = vadd.f32 %v3605, %v3617
        %v3626 = vadd.f32 %v3606, %v3618
        %v3627 = vperm.slane %v3587, 7
        %v3628 = vperm.slane %v3588, 7
        %v3629 = vperm.slane %v3589, 7
        %v3630 = vperm.slane %v3590, 7
        %v3631 = vmul.f32 %v918, %v3627
        %v3632 = vmul.f32 %v918, %v3628
        %v3633 = vmul.f32 %v918, %v3629
        %v3634 = vmul.f32 %v918, %v3630
        %v3635 = vmul.f32 %v1029, %v3627
        %v3636 = vmul.f32 %v1029, %v3628
        %v3637 = vmul.f32 %v1029, %v3629
        %v3638 = vmul.f32 %v1029, %v3630
        %v3639 = vadd.f32 %v3619, %v3631
        %v3640 = vadd.f32 %v3620, %v3632
        %v3641 = vadd.f32 %v3621, %v3633
        %v3642 = vadd.f32 %v3622, %v3634
        %v3643 = vadd.f32 %v3623, %v3635
        %v3644 = vadd.f32 %v3624, %v3636
        %v3645 = vadd.f32 %v3625, %v3637
        %v3646 = vadd.f32 %v3626, %v3638
        %v3647 = vperm.slane %v3591, 0
        %v3648 = vperm.slane %v3592, 0
        %v3649 = vperm.slane %v3593, 0
        %v3650 = vperm.slane %v3594, 0
        %v3651 = vmul.f32 %v946, %v3647
        %v3652 = vmul.f32 %v946, %v3648
        %v3653 = vmul.f32 %v946, %v3649
        %v3654 = vmul.f32 %v946, %v3650
        %v3655 = vmul.f32 %v1053, %v3647
        %v3656 = vmul.f32 %v1053, %v3648
        %v3657 = vmul.f32 %v1053, %v3649
        %v3658 = vmul.f32 %v1053, %v3650
        %v3659 = vadd.f32 %v3639, %v3651
        %v3660 = vadd.f32 %v3640, %v3652
        %v3661 = vadd.f32 %v3641, %v3653
        %v3662 = vadd.f32 %v3642, %v3654
        %v3663 = vadd.f32 %v3643, %v3655
        %v3664 = vadd.f32 %v3644, %v3656
        %v3665 = vadd.f32 %v3645, %v3657
        %v3666 = vadd.f32 %v3646, %v3658
        %v3667 = vperm.slane %v3591, 1
        %v3668 = vperm.slane %v3592, 1
        %v3669 = vperm.slane %v3593, 1
        %v3670 = vperm.slane %v3594, 1
        %v3671 = vmul.f32 %v1077, %v3667
        %v3672 = vmul.f32 %v1077, %v3668
        %v3673 = vmul.f32 %v1077, %v3669
        %v3674 = vmul.f32 %v1077, %v3670
        %v3675 = vmul.f32 %v1081, %v3667
        %v3676 = vmul.f32 %v1081, %v3668
        %v3677 = vmul.f32 %v1081, %v3669
        %v3678 = vmul.f32 %v1081, %v3670
        %v3679 = vadd.f32 %v3659, %v3671
        %v3680 = vadd.f32 %v3660, %v3672
        %v3681 = vadd.f32 %v3661, %v3673
        %v3682 = vadd.f32 %v3662, %v3674
        %v3683 = vadd.f32 %v3663, %v3675
        %v3684 = vadd.f32 %v3664, %v3676
        %v3685 = vadd.f32 %v3665, %v3677
        %v3686 = vadd.f32 %v3666, %v3678
        %v3687 = vadd.f32 %v3679, %v1103
        %v3688 = vadd.f32 %v3680, %v1103
        %v3689 = vadd.f32 %v3681, %v1103
        %v3690 = vadd.f32 %v3682, %v1103
        %v3691 = vadd.f32 %v3683, %v1103
        %v3692 = vadd.f32 %v3684, %v1103
        %v3693 = vadd.f32 %v3685, %v1103
        %v3694 = vadd.f32 %v3686, %v1103
        %v3695 = vmax.f32 %v3687, 0.0
        %v3696 = vmax.f32 %v3688, 0.0
        %v3697 = vmax.f32 %v3689, 0.0
        %v3698 = vmax.f32 %v3690, 0.0
        %v3699 = vmax.f32 %v3691, 0.0
        %v3700 = vmax.f32 %v3692, 0.0
        %v3701 = vmax.f32 %v3693, 0.0
        %v3702 = vmax.f32 %v3694, 0.0
        %v3703 = vperm.slane %v3695, 7
        %v3704 = vperm.slane %v3696, 7
        %v3705 = vperm.slane %v3697, 7
        %v3706 = vperm.slane %v3698, 7
        %v3707 = vmul.f32 %v989, %v3703
        %v3708 = vmul.f32 %v989, %v3704
        %v3709 = vmul.f32 %v989, %v3705
        %v3710 = vmul.f32 %v989, %v3706
        %v3711 = vmul.f32 %v1124, %v3703
        %v3712 = vmul.f32 %v1124, %v3704
        %v3713 = vmul.f32 %v1124, %v3705
        %v3714 = vmul.f32 %v1124, %v3706
        %v3715 = vperm.slane %v3699, 0
        %v3716 = vperm.slane %v3700, 0
        %v3717 = vperm.slane %v3701, 0
        %v3718 = vperm.slane %v3702, 0
        %v3719 = vmul.f32 %v1005, %v3715
        %v3720 = vmul.f32 %v1005, %v3716
        %v3721 = vmul.f32 %v1005, %v3717
        %v3722 = vmul.f32 %v1005, %v3718
        %v3723 = vmul.f32 %v1140, %v3715
        %v3724 = vmul.f32 %v1140, %v3716
        %v3725 = vmul.f32 %v1140, %v3717
        %v3726 = vmul.f32 %v1140, %v3718
        %v3727 = vadd.f32 %v3707, %v3719
        %v3728 = vadd.f32 %v3708, %v3720
        %v3729 = vadd.f32 %v3709, %v3721
        %v3730 = vadd.f32 %v3710, %v3722
        %v3731 = vadd.f32 %v3711, %v3723
        %v3732 = vadd.f32 %v3712, %v3724
        %v3733 = vadd.f32 %v3713, %v3725
        %v3734 = vadd.f32 %v3714, %v3726
        %v3735 = vperm.slane %v3699, 1
        %v3736 = vperm.slane %v3700, 1
        %v3737 = vperm.slane %v3701, 1
        %v3738 = vperm.slane %v3702, 1
        %v3739 = vmul.f32 %v1029, %v3735
        %v3740 = vmul.f32 %v1029, %v3736
        %v3741 = vmul.f32 %v1029, %v3737
        %v3742 = vmul.f32 %v1029, %v3738
        %v3743 = vmul.f32 %v1164, %v3735
        %v3744 = vmul.f32 %v1164, %v3736
        %v3745 = vmul.f32 %v1164, %v3737
        %v3746 = vmul.f32 %v1164, %v3738
        %v3747 = vadd.f32 %v3727, %v3739
        %v3748 = vadd.f32 %v3728, %v3740
        %v3749 = vadd.f32 %v3729, %v3741
        %v3750 = vadd.f32 %v3730, %v3742
        %v3751 = vadd.f32 %v3731, %v3743
        %v3752 = vadd.f32 %v3732, %v3744
        %v3753 = vadd.f32 %v3733, %v3745
        %v3754 = vadd.f32 %v3734, %v3746
        %v3755 = vperm.slane %v3699, 2
        %v3756 = vperm.slane %v3700, 2
        %v3757 = vperm.slane %v3701, 2
        %v3758 = vperm.slane %v3702, 2
        %v3759 = vmul.f32 %v1053, %v3755
        %v3760 = vmul.f32 %v1053, %v3756
        %v3761 = vmul.f32 %v1053, %v3757
        %v3762 = vmul.f32 %v1053, %v3758
        %v3763 = vmul.f32 %v1188, %v3755
        %v3764 = vmul.f32 %v1188, %v3756
        %v3765 = vmul.f32 %v1188, %v3757
        %v3766 = vmul.f32 %v1188, %v3758
        %v3767 = vadd.f32 %v3747, %v3759
        %v3768 = vadd.f32 %v3748, %v3760
        %v3769 = vadd.f32 %v3749, %v3761
        %v3770 = vadd.f32 %v3750, %v3762
        %v3771 = vadd.f32 %v3751, %v3763
        %v3772 = vadd.f32 %v3752, %v3764
        %v3773 = vadd.f32 %v3753, %v3765
        %v3774 = vadd.f32 %v3754, %v3766
        %v3775 = vadd.f32 %v3767, %v1215
        %v3776 = vadd.f32 %v3768, %v1215
        %v3777 = vadd.f32 %v3769, %v1215
        %v3778 = vadd.f32 %v3770, %v1215
        %v3779 = vadd.f32 %v3771, %v1217
        %v3780 = vadd.f32 %v3772, %v1217
        %v3781 = vadd.f32 %v3773, %v1217
        %v3782 = vadd.f32 %v3774, %v1217
        %v3783 = vadd.f32 %v3277, %v3775
        %v3784 = vadd.f32 %v3278, %v3776
        %v3785 = vadd.f32 %v3279, %v3777
        %v3786 = vadd.f32 %v3280, %v3778
        %v3787 = vadd.f32 %v3281, %v3779
        %v3788 = vadd.f32 %v3282, %v3780
        %v3789 = vadd.f32 %v3283, %v3781
        %v3790 = vadd.f32 %v3284, %v3782
        %v3791 = vsub.f32 %v352, %v3289
        %v3792 = vsub.f32 %v353, %v3290
        %v3795 = vperm.slane %v3791, 0
        %v3796 = vperm.slane %v3791, 4
        %v3797 = vperm.slane %v3792, 0
        %v3798 = vperm.slane %v3792, 4
        %v3803 = vperm.slane %v3795, 0
        %v3804 = vperm.slane %v3796, 0
        %v3805 = vperm.slane %v3797, 0
        %v3806 = vperm.slane %v3798, 0
        %v3807 = vmul.f32 %v512, %v3803
        %v3808 = vmul.f32 %v512, %v3804
        %v3809 = vmul.f32 %v512, %v3805
        %v3810 = vmul.f32 %v512, %v3806
        %v3811 = vmul.f32 %v1241, %v3803
        %v3812 = vmul.f32 %v1241, %v3804
        %v3813 = vmul.f32 %v1241, %v3805
        %v3814 = vmul.f32 %v1241, %v3806
        %v3815 = vperm.slane %v3791, 1
        %v3816 = vperm.slane %v3791, 5
        %v3817 = vperm.slane %v3792, 1
        %v3818 = vperm.slane %v3792, 5
        %v3823 = vperm.slane %v3815, 1
        %v3824 = vperm.slane %v3816, 1
        %v3825 = vperm.slane %v3817, 1
        %v3826 = vperm.slane %v3818, 1
        %v3827 = vmul.f32 %v538, %v3823
        %v3828 = vmul.f32 %v538, %v3824
        %v3829 = vmul.f32 %v538, %v3825
        %v3830 = vmul.f32 %v538, %v3826
        %v3831 = vmul.f32 %v1267, %v3823
        %v3832 = vmul.f32 %v1267, %v3824
        %v3833 = vmul.f32 %v1267, %v3825
        %v3834 = vmul.f32 %v1267, %v3826
        %v3835 = vadd.f32 %v3807, %v3827
        %v3836 = vadd.f32 %v3808, %v3828
        %v3837 = vadd.f32 %v3809, %v3829
        %v3838 = vadd.f32 %v3810, %v3830
        %v3839 = vadd.f32 %v3811, %v3831
        %v3840 = vadd.f32 %v3812, %v3832
        %v3841 = vadd.f32 %v3813, %v3833
        %v3842 = vadd.f32 %v3814, %v3834
        %v3843 = vperm.slane %v3791, 2
        %v3844 = vperm.slane %v3791, 6
        %v3845 = vperm.slane %v3792, 2
        %v3846 = vperm.slane %v3792, 6
        %v3851 = vperm.slane %v3843, 2
        %v3852 = vperm.slane %v3844, 2
        %v3853 = vperm.slane %v3845, 2
        %v3854 = vperm.slane %v3846, 2
        %v3855 = vmul.f32 %v570, %v3851
        %v3856 = vmul.f32 %v570, %v3852
        %v3857 = vmul.f32 %v570, %v3853
        %v3858 = vmul.f32 %v570, %v3854
        %v3859 = vmul.f32 %v1299, %v3851
        %v3860 = vmul.f32 %v1299, %v3852
        %v3861 = vmul.f32 %v1299, %v3853
        %v3862 = vmul.f32 %v1299, %v3854
        %v3863 = vadd.f32 %v3835, %v3855
        %v3864 = vadd.f32 %v3836, %v3856
        %v3865 = vadd.f32 %v3837, %v3857
        %v3866 = vadd.f32 %v3838, %v3858
        %v3867 = vadd.f32 %v3839, %v3859
        %v3868 = vadd.f32 %v3840, %v3860
        %v3869 = vadd.f32 %v3841, %v3861
        %v3870 = vadd.f32 %v3842, %v3862
        %v3871 = vadd.f32 %v3863, %v1329
        %v3872 = vadd.f32 %v3864, %v1329
        %v3873 = vadd.f32 %v3865, %v1329
        %v3874 = vadd.f32 %v3866, %v1329
        %v3875 = vadd.f32 %v3867, %v1329
        %v3876 = vadd.f32 %v3868, %v1329
        %v3877 = vadd.f32 %v3869, %v1329
        %v3878 = vadd.f32 %v3870, %v1329
        %v3879 = vmax.f32 %v3871, 0.0
        %v3880 = vmax.f32 %v3872, 0.0
        %v3881 = vmax.f32 %v3873, 0.0
        %v3882 = vmax.f32 %v3874, 0.0
        %v3883 = vmax.f32 %v3875, 0.0
        %v3884 = vmax.f32 %v3876, 0.0
        %v3885 = vmax.f32 %v3877, 0.0
        %v3886 = vmax.f32 %v3878, 0.0
        %v3887 = vperm.slane %v3879, 7
        %v3888 = vperm.slane %v3880, 7
        %v3889 = vperm.slane %v3881, 7
        %v3890 = vperm.slane %v3882, 7
        %v3891 = vmul.f32 %v1241, %v3887
        %v3892 = vmul.f32 %v1241, %v3888
        %v3893 = vmul.f32 %v1241, %v3889
        %v3894 = vmul.f32 %v1241, %v3890
        %v3895 = vmul.f32 %v1350, %v3887
        %v3896 = vmul.f32 %v1350, %v3888
        %v3897 = vmul.f32 %v1350, %v3889
        %v3898 = vmul.f32 %v1350, %v3890
        %v3899 = vperm.slane %v3883, 0
        %v3900 = vperm.slane %v3884, 0
        %v3901 = vperm.slane %v3885, 0
        %v3902 = vperm.slane %v3886, 0
        %v3903 = vmul.f32 %v1267, %v3899
        %v3904 = vmul.f32 %v1267, %v3900
        %v3905 = vmul.f32 %v1267, %v3901
        %v3906 = vmul.f32 %v1267, %v3902
        %v3907 = vmul.f32 %v1366, %v3899
        %v3908 = vmul.f32 %v1366, %v3900
        %v3909 = vmul.f32 %v1366, %v3901
        %v3910 = vmul.f32 %v1366, %v3902
        %v3911 = vadd.f32 %v3891, %v3903
        %v3912 = vadd.f32 %v3892, %v3904
        %v3913 = vadd.f32 %v3893, %v3905
        %v3914 = vadd.f32 %v3894, %v3906
        %v3915 = vadd.f32 %v3895, %v3907
        %v3916 = vadd.f32 %v3896, %v3908
        %v3917 = vadd.f32 %v3897, %v3909
        %v3918 = vadd.f32 %v3898, %v3910
        %v3919 = vperm.slane %v3883, 1
        %v3920 = vperm.slane %v3884, 1
        %v3921 = vperm.slane %v3885, 1
        %v3922 = vperm.slane %v3886, 1
        %v3923 = vmul.f32 %v1299, %v3919
        %v3924 = vmul.f32 %v1299, %v3920
        %v3925 = vmul.f32 %v1299, %v3921
        %v3926 = vmul.f32 %v1299, %v3922
        %v3927 = vmul.f32 %v1390, %v3919
        %v3928 = vmul.f32 %v1390, %v3920
        %v3929 = vmul.f32 %v1390, %v3921
        %v3930 = vmul.f32 %v1390, %v3922
        %v3931 = vadd.f32 %v3911, %v3923
        %v3932 = vadd.f32 %v3912, %v3924
        %v3933 = vadd.f32 %v3913, %v3925
        %v3934 = vadd.f32 %v3914, %v3926
        %v3935 = vadd.f32 %v3915, %v3927
        %v3936 = vadd.f32 %v3916, %v3928
        %v3937 = vadd.f32 %v3917, %v3929
        %v3938 = vadd.f32 %v3918, %v3930
        %v3939 = vperm.slane %v3883, 2
        %v3940 = vperm.slane %v3884, 2
        %v3941 = vperm.slane %v3885, 2
        %v3942 = vperm.slane %v3886, 2
        %v3943 = vmul.f32 %v1414, %v3939
        %v3944 = vmul.f32 %v1414, %v3940
        %v3945 = vmul.f32 %v1414, %v3941
        %v3946 = vmul.f32 %v1414, %v3942
        %v3947 = vmul.f32 %v1418, %v3939
        %v3948 = vmul.f32 %v1418, %v3940
        %v3949 = vmul.f32 %v1418, %v3941
        %v3950 = vmul.f32 %v1418, %v3942
        %v3951 = vadd.f32 %v3931, %v3943
        %v3952 = vadd.f32 %v3932, %v3944
        %v3953 = vadd.f32 %v3933, %v3945
        %v3954 = vadd.f32 %v3934, %v3946
        %v3955 = vadd.f32 %v3935, %v3947
        %v3956 = vadd.f32 %v3936, %v3948
        %v3957 = vadd.f32 %v3937, %v3949
        %v3958 = vadd.f32 %v3938, %v3950
        %v3959 = vadd.f32 %v3951, %v1445
        %v3960 = vadd.f32 %v3952, %v1445
        %v3961 = vadd.f32 %v3953, %v1445
        %v3962 = vadd.f32 %v3954, %v1445
        %v3963 = vadd.f32 %v3955, %v1447
        %v3964 = vadd.f32 %v3956, %v1447
        %v3965 = vadd.f32 %v3957, %v1447
        %v3966 = vadd.f32 %v3958, %v1447
        %v3967 = vmax.f32 %v3959, 0.0
        %v3968 = vmax.f32 %v3960, 0.0
        %v3969 = vmax.f32 %v3961, 0.0
        %v3970 = vmax.f32 %v3962, 0.0
        %v3971 = vmax.f32 %v3963, 0.0
        %v3972 = vmax.f32 %v3964, 0.0
        %v3973 = vmax.f32 %v3965, 0.0
        %v3974 = vmax.f32 %v3966, 0.0
        %v3975 = vperm.slane %v3967, 7
        %v3976 = vperm.slane %v3968, 7
        %v3977 = vperm.slane %v3969, 7
        %v3978 = vperm.slane %v3970, 7
        %v3979 = vmul.f32 %v1443, %v3975
        %v3980 = vmul.f32 %v1443, %v3976
        %v3981 = vmul.f32 %v1443, %v3977
        %v3982 = vmul.f32 %v1443, %v3978
        %v3983 = vperm.slane %v3971, 0
        %v3984 = vperm.slane %v3972, 0
        %v3985 = vperm.slane %v3973, 0
        %v3986 = vperm.slane %v3974, 0
        %v3987 = vmul.f32 %v1477, %v3983
        %v3988 = vmul.f32 %v1477, %v3984
        %v3989 = vmul.f32 %v1477, %v3985
        %v3990 = vmul.f32 %v1477, %v3986
        %v3991 = vadd.f32 %v3979, %v3987
        %v3992 = vadd.f32 %v3980, %v3988
        %v3993 = vadd.f32 %v3981, %v3989
        %v3994 = vadd.f32 %v3982, %v3990
        %v3995 = vperm.slane %v3971, 1
        %v3996 = vperm.slane %v3972, 1
        %v3997 = vperm.slane %v3973, 1
        %v3998 = vperm.slane %v3974, 1
        %v3999 = vmul.f32 %v1493, %v3995
        %v4000 = vmul.f32 %v1493, %v3996
        %v4001 = vmul.f32 %v1493, %v3997
        %v4002 = vmul.f32 %v1493, %v3998
        %v4003 = vadd.f32 %v3991, %v3999
        %v4004 = vadd.f32 %v3992, %v4000
        %v4005 = vadd.f32 %v3993, %v4001
        %v4006 = vadd.f32 %v3994, %v4002
        %v4007 = vperm.slane %v3971, 2
        %v4008 = vperm.slane %v3972, 2
        %v4009 = vperm.slane %v3973, 2
        %v4010 = vperm.slane %v3974, 2
        %v4011 = vmul.f32 %v1509, %v4007
        %v4012 = vmul.f32 %v1509, %v4008
        %v4013 = vmul.f32 %v1509, %v4009
        %v4014 = vmul.f32 %v1509, %v4010
        %v4015 = vadd.f32 %v4003, %v4011
        %v4016 = vadd.f32 %v4004, %v4012
        %v4017 = vadd.f32 %v4005, %v4013
        %v4018 = vadd.f32 %v4006, %v4014
        %v4019 = vperm.slane %v3971, 3
        %v4020 = vperm.slane %v3972, 3
        %v4021 = vperm.slane %v3973, 3
        %v4022 = vperm.slane %v3974, 3
        %v4023 = vmul.f32 %v1525, %v4019
        %v4024 = vmul.f32 %v1525, %v4020
        %v4025 = vmul.f32 %v1525, %v4021
        %v4026 = vmul.f32 %v1525, %v4022
        %v4027 = vadd.f32 %v4015, %v4023
        %v4028 = vadd.f32 %v4016, %v4024
        %v4029 = vadd.f32 %v4017, %v4025
        %v4030 = vadd.f32 %v4018, %v4026
        %v4031 = vadd.f32 %v4027, %v1546
        %v4032 = vadd.f32 %v4028, %v1546
        %v4033 = vadd.f32 %v4029, %v1546
        %v4034 = vadd.f32 %v4030, %v1546
        %v4035 = vmax.f32 %v4031, 0.0
        %v4036 = vmax.f32 %v4032, 0.0
        %v4037 = vmax.f32 %v4033, 0.0
        %v4038 = vmax.f32 %v4034, 0.0
        %v4039 = vperm.slane %v4035, 1
        %v4040 = vperm.slane %v4036, 1
        %v4041 = vperm.slane %v4037, 1
        %v4042 = vperm.slane %v4038, 1
        %v4043 = vmul.f32 %v1542, %v4039
        %v4044 = vmul.f32 %v1542, %v4040
        %v4045 = vmul.f32 %v1542, %v4041
        %v4046 = vmul.f32 %v1542, %v4042
        %v4047 = vperm.slane %v4035, 2
        %v4048 = vperm.slane %v4036, 2
        %v4049 = vperm.slane %v4037, 2
        %v4050 = vperm.slane %v4038, 2
        %v4051 = vmul.f32 %v1567, %v4047
        %v4052 = vmul.f32 %v1567, %v4048
        %v4053 = vmul.f32 %v1567, %v4049
        %v4054 = vmul.f32 %v1567, %v4050
        %v4055 = vadd.f32 %v4043, %v4051
        %v4056 = vadd.f32 %v4044, %v4052
        %v4057 = vadd.f32 %v4045, %v4053
        %v4058 = vadd.f32 %v4046, %v4054
        %v4059 = vperm.slane %v4035, 3
        %v4060 = vperm.slane %v4036, 3
        %v4061 = vperm.slane %v4037, 3
        %v4062 = vperm.slane %v4038, 3
        %v4063 = vmul.f32 %v1583, %v4059
        %v4064 = vmul.f32 %v1583, %v4060
        %v4065 = vmul.f32 %v1583, %v4061
        %v4066 = vmul.f32 %v1583, %v4062
        %v4067 = vadd.f32 %v4055, %v4063
        %v4068 = vadd.f32 %v4056, %v4064
        %v4069 = vadd.f32 %v4057, %v4065
        %v4070 = vadd.f32 %v4058, %v4066
        %v4071 = vperm.slane %v4035, 4
        %v4072 = vperm.slane %v4036, 4
        %v4073 = vperm.slane %v4037, 4
        %v4074 = vperm.slane %v4038, 4
        %v4075 = vmul.f32 %v1599, %v4071
        %v4076 = vmul.f32 %v1599, %v4072
        %v4077 = vmul.f32 %v1599, %v4073
        %v4078 = vmul.f32 %v1599, %v4074
        %v4079 = vadd.f32 %v4067, %v4075
        %v4080 = vadd.f32 %v4068, %v4076
        %v4081 = vadd.f32 %v4069, %v4077
        %v4082 = vadd.f32 %v4070, %v4078
        %v4083 = vadd.f32 %v4079, %v1615
        %v4084 = vadd.f32 %v4080, %v1615
        %v4085 = vadd.f32 %v4081, %v1615
        %v4086 = vadd.f32 %v4082, %v1615
        %v4091 = vrot.slane %v4083, 2
        %v4092 = vrot.slane %v4084, 2
        %v4093 = vrot.slane %v4085, 2
        %v4094 = vrot.slane %v4086, 2
        %v4099 = vadd.f32 %v3783, %v4091
        %v4100 = vadd.f32 %v3784, %v4092
        %v4101 = vadd.f32 %v3785, %v4093
        %v4102 = vadd.f32 %v3786, %v4094
        %v4103 = vadd.f32 %v3787, %v4091
        %v4104 = vadd.f32 %v3788, %v4092
        %v4105 = vadd.f32 %v3789, %v4093
        %v4106 = vadd.f32 %v3790, %v4094
        %s4107 = scalar_lea.vmem %s266, 64 [#allocation2]
        %v4108 = vld [vmem:[%s4107] sm:$0xff]
        %v4109 = vld [vmem:[%s4107 + $0x8] sm:$0xff]
        %s4110 = scalar_lea.vmem %s276, 64 [#allocation5]
        %v4111 = vld [vmem:[%s4110] sm:$0x77]
        %v4112 = vld [vmem:[%s4110 + $0x8] sm:$0x77]
        %v4115 = vperm.slane %v4108, 0
        %v4116 = vperm.slane %v4108, 4
        %v4117 = vperm.slane %v4109, 0
        %v4118 = vperm.slane %v4109, 4
        %v4123 = vperm.slane %v4115, 0
        %v4124 = vperm.slane %v4116, 0
        %v4125 = vperm.slane %v4117, 0
        %v4126 = vperm.slane %v4118, 0
        %v4127 = vmul.f32 %v617, %v4123
        %v4128 = vmul.f32 %v617, %v4124
        %v4129 = vmul.f32 %v617, %v4125
        %v4130 = vmul.f32 %v617, %v4126
        %v4131 = vperm.slane %v4108, 1
        %v4132 = vperm.slane %v4108, 5
        %v4133 = vperm.slane %v4109, 1
        %v4134 = vperm.slane %v4109, 5
        %v4139 = vperm.slane %v4131, 1
        %v4140 = vperm.slane %v4132, 1
        %v4141 = vperm.slane %v4133, 1
        %v4142 = vperm.slane %v4134, 1
        %v4143 = vmul.f32 %v639, %v4139
        %v4144 = vmul.f32 %v639, %v4140
        %v4145 = vmul.f32 %v639, %v4141
        %v4146 = vmul.f32 %v639, %v4142
        %v4147 = vadd.f32 %v4127, %v4143
        %v4148 = vadd.f32 %v4128, %v4144
        %v4149 = vadd.f32 %v4129, %v4145
        %v4150 = vadd.f32 %v4130, %v4146
        %v4151 = vperm.slane %v4108, 2
        %v4152 = vperm.slane %v4108, 6
        %v4153 = vperm.slane %v4109, 2
        %v4154 = vperm.slane %v4109, 6
        %v4159 = vperm.slane %v4151, 2
        %v4160 = vperm.slane %v4152, 2
        %v4161 = vperm.slane %v4153, 2
        %v4162 = vperm.slane %v4154, 2
        %v4163 = vmul.f32 %v663, %v4159
        %v4164 = vmul.f32 %v663, %v4160
        %v4165 = vmul.f32 %v663, %v4161
        %v4166 = vmul.f32 %v663, %v4162
        %v4167 = vadd.f32 %v4147, %v4163
        %v4168 = vadd.f32 %v4148, %v4164
        %v4169 = vadd.f32 %v4149, %v4165
        %v4170 = vadd.f32 %v4150, %v4166
        %v4171 = vperm.slane %v4108, 3
        %v4172 = vperm.slane %v4108, 7
        %v4173 = vperm.slane %v4109, 3
        %v4174 = vperm.slane %v4109, 7
        %v4179 = vperm.slane %v4171, 3
        %v4180 = vperm.slane %v4172, 3
        %v4181 = vperm.slane %v4173, 3
        %v4182 = vperm.slane %v4174, 3
        %v4183 = vmul.f32 %v687, %v4179
        %v4184 = vmul.f32 %v687, %v4180
        %v4185 = vmul.f32 %v687, %v4181
        %v4186 = vmul.f32 %v687, %v4182
        %v4187 = vadd.f32 %v4167, %v4183
        %v4188 = vadd.f32 %v4168, %v4184
        %v4189 = vadd.f32 %v4169, %v4185
        %v4190 = vadd.f32 %v4170, %v4186
        %v4191 = vmax.f32 %v3369, %v4187
        %v4192 = vmax.f32 %v3370, %v4188
        %v4193 = vmax.f32 %v3371, %v4189
        %v4194 = vmax.f32 %v3372, %v4190
        %v4195 = vmul.f32 %v461, %v4115
        %v4196 = vmul.f32 %v461, %v4116
        %v4197 = vmul.f32 %v461, %v4117
        %v4198 = vmul.f32 %v461, %v4118
        %v4199 = vmul.f32 %v469, %v4131
        %v4200 = vmul.f32 %v469, %v4132
        %v4201 = vmul.f32 %v469, %v4133
        %v4202 = vmul.f32 %v469, %v4134
        %v4203 = vadd.f32 %v4195, %v4199
        %v4204 = vadd.f32 %v4196, %v4200
        %v4205 = vadd.f32 %v4197, %v4201
        %v4206 = vadd.f32 %v4198, %v4202
        %v4207 = vmul.f32 %v481, %v4151
        %v4208 = vmul.f32 %v481, %v4152
        %v4209 = vmul.f32 %v481, %v4153
        %v4210 = vmul.f32 %v481, %v4154
        %v4211 = vadd.f32 %v4203, %v4207
        %v4212 = vadd.f32 %v4204, %v4208
        %v4213 = vadd.f32 %v4205, %v4209
        %v4214 = vadd.f32 %v4206, %v4210
        %v4215 = vmul.f32 %v493, %v4171
        %v4216 = vmul.f32 %v493, %v4172
        %v4217 = vmul.f32 %v493, %v4173
        %v4218 = vmul.f32 %v493, %v4174
        %v4219 = vadd.f32 %v4211, %v4215
        %v4220 = vadd.f32 %v4212, %v4216
        %v4221 = vadd.f32 %v4213, %v4217
        %v4222 = vadd.f32 %v4214, %v4218
        %v4223 = vadd.f32 %v4219, %v741
        %v4224 = vadd.f32 %v4220, %v742
        %v4225 = vadd.f32 %v4221, %v743
        %v4226 = vadd.f32 %v4222, %v744
        %v4227 = vmax.f32 %v3405, %v4223
        %v4228 = vmax.f32 %v3406, %v4224
        %v4229 = vmax.f32 %v3407, %v4225
        %v4230 = vmax.f32 %v3408, %v4226
        %v4231 = vmin.f32 %v3409, %v4223
        %v4232 = vmin.f32 %v3410, %v4224
        %v4233 = vmin.f32 %v3411, %v4225
        %v4234 = vmin.f32 %v3412, %v4226
        %v4237 = vperm.slane %v4111, 0
        %v4238 = vperm.slane %v4111, 4
        %v4239 = vperm.slane %v4112, 0
        %v4240 = vperm.slane %v4112, 4
        %v4245 = vperm.slane %v4237, 0
        %v4246 = vperm.slane %v4238, 0
        %v4247 = vperm.slane %v4239, 0
        %v4248 = vperm.slane %v4240, 0
        %v4249 = vmul.f32 %v756, %v4245
        %v4250 = vmul.f32 %v756, %v4246
        %v4251 = vmul.f32 %v756, %v4247
        %v4252 = vmul.f32 %v756, %v4248
        %v4253 = vmul.f32 %v761, %v4245
        %v4254 = vmul.f32 %v761, %v4246
        %v4255 = vmul.f32 %v761, %v4247
        %v4256 = vmul.f32 %v761, %v4248
        %v4257 = vperm.slane %v4111, 1
        %v4258 = vperm.slane %v4111, 5
        %v4259 = vperm.slane %v4112, 1
        %v4260 = vperm.slane %v4112, 5
        %v4265 = vperm.slane %v4257, 1
        %v4266 = vperm.slane %v4258, 1
        %v4267 = vperm.slane %v4259, 1
        %v4268 = vperm.slane %v4260, 1
        %v4269 = vmul.f32 %v787, %v4265
        %v4270 = vmul.f32 %v787, %v4266
        %v4271 = vmul.f32 %v787, %v4267
        %v4272 = vmul.f32 %v787, %v4268
        %v4273 = vmul.f32 %v791, %v4265
        %v4274 = vmul.f32 %v791, %v4266
        %v4275 = vmul.f32 %v791, %v4267
        %v4276 = vmul.f32 %v791, %v4268
        %v4277 = vadd.f32 %v4249, %v4269
        %v4278 = vadd.f32 %v4250, %v4270
        %v4279 = vadd.f32 %v4251, %v4271
        %v4280 = vadd.f32 %v4252, %v4272
        %v4281 = vadd.f32 %v4253, %v4273
        %v4282 = vadd.f32 %v4254, %v4274
        %v4283 = vadd.f32 %v4255, %v4275
        %v4284 = vadd.f32 %v4256, %v4276
        %v4285 = vperm.slane %v4111, 2
        %v4286 = vperm.slane %v4111, 6
        %v4287 = vperm.slane %v4112, 2
        %v4288 = vperm.slane %v4112, 6
        %v4293 = vperm.slane %v4285, 2
        %v4294 = vperm.slane %v4286, 2
        %v4295 = vperm.slane %v4287, 2
        %v4296 = vperm.slane %v4288, 2
        %v4297 = vmul.f32 %v823, %v4293
        %v4298 = vmul.f32 %v823, %v4294
        %v4299 = vmul.f32 %v823, %v4295
        %v4300 = vmul.f32 %v823, %v4296
        %v4301 = vmul.f32 %v827, %v4293
        %v4302 = vmul.f32 %v827, %v4294
        %v4303 = vmul.f32 %v827, %v4295
        %v4304 = vmul.f32 %v827, %v4296
        %v4305 = vadd.f32 %v4277, %v4297
        %v4306 = vadd.f32 %v4278, %v4298
        %v4307 = vadd.f32 %v4279, %v4299
        %v4308 = vadd.f32 %v4280, %v4300
        %v4309 = vadd.f32 %v4281, %v4301
        %v4310 = vadd.f32 %v4282, %v4302
        %v4311 = vadd.f32 %v4283, %v4303
        %v4312 = vadd.f32 %v4284, %v4304
        %v4313 = vadd.f32 %v4305, %v857
        %v4314 = vadd.f32 %v4306, %v857
        %v4315 = vadd.f32 %v4307, %v857
        %v4316 = vadd.f32 %v4308, %v857
        %v4317 = vadd.f32 %v4309, %v857
        %v4318 = vadd.f32 %v4310, %v857
        %v4319 = vadd.f32 %v4311, %v857
        %v4320 = vadd.f32 %v4312, %v857
        %v4321 = vmax.f32 %v4313, 0.0
        %v4322 = vmax.f32 %v4314, 0.0
        %v4323 = vmax.f32 %v4315, 0.0
        %v4324 = vmax.f32 %v4316, 0.0
        %v4325 = vmax.f32 %v4317, 0.0
        %v4326 = vmax.f32 %v4318, 0.0
        %v4327 = vmax.f32 %v4319, 0.0
        %v4328 = vmax.f32 %v4320, 0.0
        %v4329 = vperm.slane %v4321, 5
        %v4330 = vperm.slane %v4322, 5
        %v4331 = vperm.slane %v4323, 5
        %v4332 = vperm.slane %v4324, 5
        %v4333 = vmul.f32 %v761, %v4329
        %v4334 = vmul.f32 %v761, %v4330
        %v4335 = vmul.f32 %v761, %v4331
        %v4336 = vmul.f32 %v761, %v4332
        %v4337 = vmul.f32 %v878, %v4329
        %v4338 = vmul.f32 %v878, %v4330
        %v4339 = vmul.f32 %v878, %v4331
        %v4340 = vmul.f32 %v878, %v4332
        %v4341 = vperm.slane %v4321, 6
        %v4342 = vperm.slane %v4322, 6
        %v4343 = vperm.slane %v4323, 6
        %v4344 = vperm.slane %v4324, 6
        %v4345 = vmul.f32 %v791, %v4341
        %v4346 = vmul.f32 %v791, %v4342
        %v4347 = vmul.f32 %v791, %v4343
        %v4348 = vmul.f32 %v791, %v4344
        %v4349 = vmul.f32 %v894, %v4341
        %v4350 = vmul.f32 %v894, %v4342
        %v4351 = vmul.f32 %v894, %v4343
        %v4352 = vmul.f32 %v894, %v4344
        %v4353 = vadd.f32 %v4333, %v4345
        %v4354 = vadd.f32 %v4334, %v4346
        %v4355 = vadd.f32 %v4335, %v4347
        %v4356 = vadd.f32 %v4336, %v4348
        %v4357 = vadd.f32 %v4337, %v4349
        %v4358 = vadd.f32 %v4338, %v4350
        %v4359 = vadd.f32 %v4339, %v4351
        %v4360 = vadd.f32 %v4340, %v4352
        %v4361 = vperm.slane %v4321, 7
        %v4362 = vperm.slane %v4322, 7
        %v4363 = vperm.slane %v4323, 7
        %v4364 = vperm.slane %v4324, 7
        %v4365 = vmul.f32 %v827, %v4361
        %v4366 = vmul.f32 %v827, %v4362
        %v4367 = vmul.f32 %v827, %v4363
        %v4368 = vmul.f32 %v827, %v4364
        %v4369 = vmul.f32 %v918, %v4361
        %v4370 = vmul.f32 %v918, %v4362
        %v4371 = vmul.f32 %v918, %v4363
        %v4372 = vmul.f32 %v918, %v4364
        %v4373 = vadd.f32 %v4353, %v4365
        %v4374 = vadd.f32 %v4354, %v4366
        %v4375 = vadd.f32 %v4355, %v4367
        %v4376 = vadd.f32 %v4356, %v4368
        %v4377 = vadd.f32 %v4357, %v4369
        %v4378 = vadd.f32 %v4358, %v4370
        %v4379 = vadd.f32 %v4359, %v4371
        %v4380 = vadd.f32 %v4360, %v4372
        %v4381 = vperm.slane %v4325, 0
        %v4382 = vperm.slane %v4326, 0
        %v4383 = vperm.slane %v4327, 0
        %v4384 = vperm.slane %v4328, 0
        %v4385 = vmul.f32 %v942, %v4381
        %v4386 = vmul.f32 %v942, %v4382
        %v4387 = vmul.f32 %v942, %v4383
        %v4388 = vmul.f32 %v942, %v4384
        %v4389 = vmul.f32 %v946, %v4381
        %v4390 = vmul.f32 %v946, %v4382
        %v4391 = vmul.f32 %v946, %v4383
        %v4392 = vmul.f32 %v946, %v4384
        %v4393 = vadd.f32 %v4373, %v4385
        %v4394 = vadd.f32 %v4374, %v4386
        %v4395 = vadd.f32 %v4375, %v4387
        %v4396 = vadd.f32 %v4376, %v4388
        %v4397 = vadd.f32 %v4377, %v4389
        %v4398 = vadd.f32 %v4378, %v4390
        %v4399 = vadd.f32 %v4379, %v4391
        %v4400 = vadd.f32 %v4380, %v4392
        %v4401 = vadd.f32 %v4393, %v968
        %v4402 = vadd.f32 %v4394, %v968
        %v4403 = vadd.f32 %v4395, %v968
        %v4404 = vadd.f32 %v4396, %v968
        %v4405 = vadd.f32 %v4397, %v968
        %v4406 = vadd.f32 %v4398, %v968
        %v4407 = vadd.f32 %v4399, %v968
        %v4408 = vadd.f32 %v4400, %v968
        %v4409 = vmax.f32 %v4401, 0.0
        %v4410 = vmax.f32 %v4402, 0.0
        %v4411 = vmax.f32 %v4403, 0.0
        %v4412 = vmax.f32 %v4404, 0.0
        %v4413 = vmax.f32 %v4405, 0.0
        %v4414 = vmax.f32 %v4406, 0.0
        %v4415 = vmax.f32 %v4407, 0.0
        %v4416 = vmax.f32 %v4408, 0.0
        %v4417 = vperm.slane %v4409, 5
        %v4418 = vperm.slane %v4410, 5
        %v4419 = vperm.slane %v4411, 5
        %v4420 = vperm.slane %v4412, 5
        %v4421 = vmul.f32 %v878, %v4417
        %v4422 = vmul.f32 %v878, %v4418
        %v4423 = vmul.f32 %v878, %v4419
        %v4424 = vmul.f32 %v878, %v4420
        %v4425 = vmul.f32 %v989, %v4417
        %v4426 = vmul.f32 %v989, %v4418
        %v4427 = vmul.f32 %v989, %v4419
        %v4428 = vmul.f32 %v989, %v4420
        %v4429 = vperm.slane %v4409, 6
        %v4430 = vperm.slane %v4410, 6
        %v4431 = vperm.slane %v4411, 6
        %v4432 = vperm.slane %v4412, 6
        %v4433 = vmul.f32 %v894, %v4429
        %v4434 = vmul.f32 %v894, %v4430
        %v4435 = vmul.f32 %v894, %v4431
        %v4436 = vmul.f32 %v894, %v4432
        %v4437 = vmul.f32 %v1005, %v4429
        %v4438 = vmul.f32 %v1005, %v4430
        %v4439 = vmul.f32 %v1005, %v4431
        %v4440 = vmul.f32 %v1005, %v4432
        %v4441 = vadd.f32 %v4421, %v4433
        %v4442 = vadd.f32 %v4422, %v4434
        %v4443 = vadd.f32 %v4423, %v4435
        %v4444 = vadd.f32 %v4424, %v4436
        %v4445 = vadd.f32 %v4425, %v4437
        %v4446 = vadd.f32 %v4426, %v4438
        %v4447 = vadd.f32 %v4427, %v4439
        %v4448 = vadd.f32 %v4428, %v4440
        %v4449 = vperm.slane %v4409, 7
        %v4450 = vperm.slane %v4410, 7
        %v4451 = vperm.slane %v4411, 7
        %v4452 = vperm.slane %v4412, 7
        %v4453 = vmul.f32 %v918, %v4449
        %v4454 = vmul.f32 %v918, %v4450
        %v4455 = vmul.f32 %v918, %v4451
        %v4456 = vmul.f32 %v918, %v4452
        %v4457 = vmul.f32 %v1029, %v4449
        %v4458 = vmul.f32 %v1029, %v4450
        %v4459 = vmul.f32 %v1029, %v4451
        %v4460 = vmul.f32 %v1029, %v4452
        %v4461 = vadd.f32 %v4441, %v4453
        %v4462 = vadd.f32 %v4442, %v4454
        %v4463 = vadd.f32 %v4443, %v4455
        %v4464 = vadd.f32 %v4444, %v4456
        %v4465 = vadd.f32 %v4445, %v4457
        %v4466 = vadd.f32 %v4446, %v4458
        %v4467 = vadd.f32 %v4447, %v4459
        %v4468 = vadd.f32 %v4448, %v4460
        %v4469 = vperm.slane %v4413, 0
        %v4470 = vperm.slane %v4414, 0
        %v4471 = vperm.slane %v4415, 0
        %v4472 = vperm.slane %v4416, 0
        %v4473 = vmul.f32 %v946, %v4469
        %v4474 = vmul.f32 %v946, %v4470
        %v4475 = vmul.f32 %v946, %v4471
        %v4476 = vmul.f32 %v946, %v4472
        %v4477 = vmul.f32 %v1053, %v4469
        %v4478 = vmul.f32 %v1053, %v4470
        %v4479 = vmul.f32 %v1053, %v4471
        %v4480 = vmul.f32 %v1053, %v4472
        %v4481 = vadd.f32 %v4461, %v4473
        %v4482 = vadd.f32 %v4462, %v4474
        %v4483 = vadd.f32 %v4463, %v4475
        %v4484 = vadd.f32 %v4464, %v4476
        %v4485 = vadd.f32 %v4465, %v4477
        %v4486 = vadd.f32 %v4466, %v4478
        %v4487 = vadd.f32 %v4467, %v4479
        %v4488 = vadd.f32 %v4468, %v4480
        %v4489 = vperm.slane %v4413, 1
        %v4490 = vperm.slane %v4414, 1
        %v4491 = vperm.slane %v4415, 1
        %v4492 = vperm.slane %v4416, 1
        %v4493 = vmul.f32 %v1077, %v4489
        %v4494 = vmul.f32 %v1077, %v4490
        %v4495 = vmul.f32 %v1077, %v4491
        %v4496 = vmul.f32 %v1077, %v4492
        %v4497 = vmul.f32 %v1081, %v4489
        %v4498 = vmul.f32 %v1081, %v4490
        %v4499 = vmul.f32 %v1081, %v4491
        %v4500 = vmul.f32 %v1081, %v4492
        %v4501 = vadd.f32 %v4481, %v4493
        %v4502 = vadd.f32 %v4482, %v4494
        %v4503 = vadd.f32 %v4483, %v4495
        %v4504 = vadd.f32 %v4484, %v4496
        %v4505 = vadd.f32 %v4485, %v4497
        %v4506 = vadd.f32 %v4486, %v4498
        %v4507 = vadd.f32 %v4487, %v4499
        %v4508 = vadd.f32 %v4488, %v4500
        %v4509 = vadd.f32 %v4501, %v1103
        %v4510 = vadd.f32 %v4502, %v1103
        %v4511 = vadd.f32 %v4503, %v1103
        %v4512 = vadd.f32 %v4504, %v1103
        %v4513 = vadd.f32 %v4505, %v1103
        %v4514 = vadd.f32 %v4506, %v1103
        %v4515 = vadd.f32 %v4507, %v1103
        %v4516 = vadd.f32 %v4508, %v1103
        %v4517 = vmax.f32 %v4509, 0.0
        %v4518 = vmax.f32 %v4510, 0.0
        %v4519 = vmax.f32 %v4511, 0.0
        %v4520 = vmax.f32 %v4512, 0.0
        %v4521 = vmax.f32 %v4513, 0.0
        %v4522 = vmax.f32 %v4514, 0.0
        %v4523 = vmax.f32 %v4515, 0.0
        %v4524 = vmax.f32 %v4516, 0.0
        %v4525 = vperm.slane %v4517, 7
        %v4526 = vperm.slane %v4518, 7
        %v4527 = vperm.slane %v4519, 7
        %v4528 = vperm.slane %v4520, 7
        %v4529 = vmul.f32 %v989, %v4525
        %v4530 = vmul.f32 %v989, %v4526
        %v4531 = vmul.f32 %v989, %v4527
        %v4532 = vmul.f32 %v989, %v4528
        %v4533 = vmul.f32 %v1124, %v4525
        %v4534 = vmul.f32 %v1124, %v4526
        %v4535 = vmul.f32 %v1124, %v4527
        %v4536 = vmul.f32 %v1124, %v4528
        %v4537 = vperm.slane %v4521, 0
        %v4538 = vperm.slane %v4522, 0
        %v4539 = vperm.slane %v4523, 0
        %v4540 = vperm.slane %v4524, 0
        %v4541 = vmul.f32 %v1005, %v4537
        %v4542 = vmul.f32 %v1005, %v4538
        %v4543 = vmul.f32 %v1005, %v4539
        %v4544 = vmul.f32 %v1005, %v4540
        %v4545 = vmul.f32 %v1140, %v4537
        %v4546 = vmul.f32 %v1140, %v4538
        %v4547 = vmul.f32 %v1140, %v4539
        %v4548 = vmul.f32 %v1140, %v4540
        %v4549 = vadd.f32 %v4529, %v4541
        %v4550 = vadd.f32 %v4530, %v4542
        %v4551 = vadd.f32 %v4531, %v4543
        %v4552 = vadd.f32 %v4532, %v4544
        %v4553 = vadd.f32 %v4533, %v4545
        %v4554 = vadd.f32 %v4534, %v4546
        %v4555 = vadd.f32 %v4535, %v4547
        %v4556 = vadd.f32 %v4536, %v4548
        %v4557 = vperm.slane %v4521, 1
        %v4558 = vperm.slane %v4522, 1
        %v4559 = vperm.slane %v4523, 1
        %v4560 = vperm.slane %v4524, 1
        %v4561 = vmul.f32 %v1029, %v4557
        %v4562 = vmul.f32 %v1029, %v4558
        %v4563 = vmul.f32 %v1029, %v4559
        %v4564 = vmul.f32 %v1029, %v4560
        %v4565 = vmul.f32 %v1164, %v4557
        %v4566 = vmul.f32 %v1164, %v4558
        %v4567 = vmul.f32 %v1164, %v4559
        %v4568 = vmul.f32 %v1164, %v4560
        %v4569 = vadd.f32 %v4549, %v4561
        %v4570 = vadd.f32 %v4550, %v4562
        %v4571 = vadd.f32 %v4551, %v4563
        %v4572 = vadd.f32 %v4552, %v4564
        %v4573 = vadd.f32 %v4553, %v4565
        %v4574 = vadd.f32 %v4554, %v4566
        %v4575 = vadd.f32 %v4555, %v4567
        %v4576 = vadd.f32 %v4556, %v4568
        %v4577 = vperm.slane %v4521, 2
        %v4578 = vperm.slane %v4522, 2
        %v4579 = vperm.slane %v4523, 2
        %v4580 = vperm.slane %v4524, 2
        %v4581 = vmul.f32 %v1053, %v4577
        %v4582 = vmul.f32 %v1053, %v4578
        %v4583 = vmul.f32 %v1053, %v4579
        %v4584 = vmul.f32 %v1053, %v4580
        %v4585 = vmul.f32 %v1188, %v4577
        %v4586 = vmul.f32 %v1188, %v4578
        %v4587 = vmul.f32 %v1188, %v4579
        %v4588 = vmul.f32 %v1188, %v4580
        %v4589 = vadd.f32 %v4569, %v4581
        %v4590 = vadd.f32 %v4570, %v4582
        %v4591 = vadd.f32 %v4571, %v4583
        %v4592 = vadd.f32 %v4572, %v4584
        %v4593 = vadd.f32 %v4573, %v4585
        %v4594 = vadd.f32 %v4574, %v4586
        %v4595 = vadd.f32 %v4575, %v4587
        %v4596 = vadd.f32 %v4576, %v4588
        %v4597 = vadd.f32 %v4589, %v1215
        %v4598 = vadd.f32 %v4590, %v1215
        %v4599 = vadd.f32 %v4591, %v1215
        %v4600 = vadd.f32 %v4592, %v1215
        %v4601 = vadd.f32 %v4593, %v1217
        %v4602 = vadd.f32 %v4594, %v1217
        %v4603 = vadd.f32 %v4595, %v1217
        %v4604 = vadd.f32 %v4596, %v1217
        %v4605 = vadd.f32 %v4099, %v4597
        %v4606 = vadd.f32 %v4100, %v4598
        %v4607 = vadd.f32 %v4101, %v4599
        %v4608 = vadd.f32 %v4102, %v4600
        %v4609 = vadd.f32 %v4103, %v4601
        %v4610 = vadd.f32 %v4104, %v4602
        %v4611 = vadd.f32 %v4105, %v4603
        %v4612 = vadd.f32 %v4106, %v4604
        %v4613 = vsub.f32 %v352, %v4111
        %v4614 = vsub.f32 %v353, %v4112
        %v4617 = vperm.slane %v4613, 0
        %v4618 = vperm.slane %v4613, 4
        %v4619 = vperm.slane %v4614, 0
        %v4620 = vperm.slane %v4614, 4
        %v4625 = vperm.slane %v4617, 0
        %v4626 = vperm.slane %v4618, 0
        %v4627 = vperm.slane %v4619, 0
        %v4628 = vperm.slane %v4620, 0
        %v4629 = vmul.f32 %v512, %v4625
        %v4630 = vmul.f32 %v512, %v4626
        %v4631 = vmul.f32 %v512, %v4627
        %v4632 = vmul.f32 %v512, %v4628
        %v4633 = vmul.f32 %v1241, %v4625
        %v4634 = vmul.f32 %v1241, %v4626
        %v4635 = vmul.f32 %v1241, %v4627
        %v4636 = vmul.f32 %v1241, %v4628
        %v4637 = vperm.slane %v4613, 1
        %v4638 = vperm.slane %v4613, 5
        %v4639 = vperm.slane %v4614, 1
        %v4640 = vperm.slane %v4614, 5
        %v4645 = vperm.slane %v4637, 1
        %v4646 = vperm.slane %v4638, 1
        %v4647 = vperm.slane %v4639, 1
        %v4648 = vperm.slane %v4640, 1
        %v4649 = vmul.f32 %v538, %v4645
        %v4650 = vmul.f32 %v538, %v4646
        %v4651 = vmul.f32 %v538, %v4647
        %v4652 = vmul.f32 %v538, %v4648
        %v4653 = vmul.f32 %v1267, %v4645
        %v4654 = vmul.f32 %v1267, %v4646
        %v4655 = vmul.f32 %v1267, %v4647
        %v4656 = vmul.f32 %v1267, %v4648
        %v4657 = vadd.f32 %v4629, %v4649
        %v4658 = vadd.f32 %v4630, %v4650
        %v4659 = vadd.f32 %v4631, %v4651
        %v4660 = vadd.f32 %v4632, %v4652
        %v4661 = vadd.f32 %v4633, %v4653
        %v4662 = vadd.f32 %v4634, %v4654
        %v4663 = vadd.f32 %v4635, %v4655
        %v4664 = vadd.f32 %v4636, %v4656
        %v4665 = vperm.slane %v4613, 2
        %v4666 = vperm.slane %v4613, 6
        %v4667 = vperm.slane %v4614, 2
        %v4668 = vperm.slane %v4614, 6
        %v4673 = vperm.slane %v4665, 2
        %v4674 = vperm.slane %v4666, 2
        %v4675 = vperm.slane %v4667, 2
        %v4676 = vperm.slane %v4668, 2
        %v4677 = vmul.f32 %v570, %v4673
        %v4678 = vmul.f32 %v570, %v4674
        %v4679 = vmul.f32 %v570, %v4675
        %v4680 = vmul.f32 %v570, %v4676
        %v4681 = vmul.f32 %v1299, %v4673
        %v4682 = vmul.f32 %v1299, %v4674
        %v4683 = vmul.f32 %v1299, %v4675
        %v4684 = vmul.f32 %v1299, %v4676
        %v4685 = vadd.f32 %v4657, %v4677
        %v4686 = vadd.f32 %v4658, %v4678
        %v4687 = vadd.f32 %v4659, %v4679
        %v4688 = vadd.f32 %v4660, %v4680
        %v4689 = vadd.f32 %v4661, %v4681
        %v4690 = vadd.f32 %v4662, %v4682
        %v4691 = vadd.f32 %v4663, %v4683
        %v4692 = vadd.f32 %v4664, %v4684
        %v4693 = vadd.f32 %v4685, %v1329
        %v4694 = vadd.f32 %v4686, %v1329
        %v4695 = vadd.f32 %v4687, %v1329
        %v4696 = vadd.f32 %v4688, %v1329
        %v4697 = vadd.f32 %v4689, %v1329
        %v4698 = vadd.f32 %v4690, %v1329
        %v4699 = vadd.f32 %v4691, %v1329
        %v4700 = vadd.f32 %v4692, %v1329
        %v4701 = vmax.f32 %v4693, 0.0
        %v4702 = vmax.f32 %v4694, 0.0
        %v4703 = vmax.f32 %v4695, 0.0
        %v4704 = vmax.f32 %v4696, 0.0
        %v4705 = vmax.f32 %v4697, 0.0
        %v4706 = vmax.f32 %v4698, 0.0
        %v4707 = vmax.f32 %v4699, 0.0
        %v4708 = vmax.f32 %v4700, 0.0
        %v4709 = vperm.slane %v4701, 7
        %v4710 = vperm.slane %v4702, 7
        %v4711 = vperm.slane %v4703, 7
        %v4712 = vperm.slane %v4704, 7
        %v4713 = vmul.f32 %v1241, %v4709
        %v4714 = vmul.f32 %v1241, %v4710
        %v4715 = vmul.f32 %v1241, %v4711
        %v4716 = vmul.f32 %v1241, %v4712
        %v4717 = vmul.f32 %v1350, %v4709
        %v4718 = vmul.f32 %v1350, %v4710
        %v4719 = vmul.f32 %v1350, %v4711
        %v4720 = vmul.f32 %v1350, %v4712
        %v4721 = vperm.slane %v4705, 0
        %v4722 = vperm.slane %v4706, 0
        %v4723 = vperm.slane %v4707, 0
        %v4724 = vperm.slane %v4708, 0
        %v4725 = vmul.f32 %v1267, %v4721
        %v4726 = vmul.f32 %v1267, %v4722
        %v4727 = vmul.f32 %v1267, %v4723
        %v4728 = vmul.f32 %v1267, %v4724
        %v4729 = vmul.f32 %v1366, %v4721
        %v4730 = vmul.f32 %v1366, %v4722
        %v4731 = vmul.f32 %v1366, %v4723
        %v4732 = vmul.f32 %v1366, %v4724
        %v4733 = vadd.f32 %v4713, %v4725
        %v4734 = vadd.f32 %v4714, %v4726
        %v4735 = vadd.f32 %v4715, %v4727
        %v4736 = vadd.f32 %v4716, %v4728
        %v4737 = vadd.f32 %v4717, %v4729
        %v4738 = vadd.f32 %v4718, %v4730
        %v4739 = vadd.f32 %v4719, %v4731
        %v4740 = vadd.f32 %v4720, %v4732
        %v4741 = vperm.slane %v4705, 1
        %v4742 = vperm.slane %v4706, 1
        %v4743 = vperm.slane %v4707, 1
        %v4744 = vperm.slane %v4708, 1
        %v4745 = vmul.f32 %v1299, %v4741
        %v4746 = vmul.f32 %v1299, %v4742
        %v4747 = vmul.f32 %v1299, %v4743
        %v4748 = vmul.f32 %v1299, %v4744
        %v4749 = vmul.f32 %v1390, %v4741
        %v4750 = vmul.f32 %v1390, %v4742
        %v4751 = vmul.f32 %v1390, %v4743
        %v4752 = vmul.f32 %v1390, %v4744
        %v4753 = vadd.f32 %v4733, %v4745
        %v4754 = vadd.f32 %v4734, %v4746
        %v4755 = vadd.f32 %v4735, %v4747
        %v4756 = vadd.f32 %v4736, %v4748
        %v4757 = vadd.f32 %v4737, %v4749
        %v4758 = vadd.f32 %v4738, %v4750
        %v4759 = vadd.f32 %v4739, %v4751
        %v4760 = vadd.f32 %v4740, %v4752
        %v4761 = vperm.slane %v4705, 2
        %v4762 = vperm.slane %v4706, 2
        %v4763 = vperm.slane %v4707, 2
        %v4764 = vperm.slane %v4708, 2
        %v4765 = vmul.f32 %v1414, %v4761
        %v4766 = vmul.f32 %v1414, %v4762
        %v4767 = vmul.f32 %v1414, %v4763
        %v4768 = vmul.f32 %v1414, %v4764
        %v4769 = vmul.f32 %v1418, %v4761
        %v4770 = vmul.f32 %v1418, %v4762
        %v4771 = vmul.f32 %v1418, %v4763
        %v4772 = vmul.f32 %v1418, %v4764
        %v4773 = vadd.f32 %v4753, %v4765
        %v4774 = vadd.f32 %v4754, %v4766
        %v4775 = vadd.f32 %v4755, %v4767
        %v4776 = vadd.f32 %v4756, %v4768
        %v4777 = vadd.f32 %v4757, %v4769
        %v4778 = vadd.f32 %v4758, %v4770
        %v4779 = vadd.f32 %v4759, %v4771
        %v4780 = vadd.f32 %v4760, %v4772
        %v4781 = vadd.f32 %v4773, %v1445
        %v4782 = vadd.f32 %v4774, %v1445
        %v4783 = vadd.f32 %v4775, %v1445
        %v4784 = vadd.f32 %v4776, %v1445
        %v4785 = vadd.f32 %v4777, %v1447
        %v4786 = vadd.f32 %v4778, %v1447
        %v4787 = vadd.f32 %v4779, %v1447
        %v4788 = vadd.f32 %v4780, %v1447
        %v4789 = vmax.f32 %v4781, 0.0
        %v4790 = vmax.f32 %v4782, 0.0
        %v4791 = vmax.f32 %v4783, 0.0
        %v4792 = vmax.f32 %v4784, 0.0
        %v4793 = vmax.f32 %v4785, 0.0
        %v4794 = vmax.f32 %v4786, 0.0
        %v4795 = vmax.f32 %v4787, 0.0
        %v4796 = vmax.f32 %v4788, 0.0
        %v4797 = vperm.slane %v4789, 7
        %v4798 = vperm.slane %v4790, 7
        %v4799 = vperm.slane %v4791, 7
        %v4800 = vperm.slane %v4792, 7
        %v4801 = vmul.f32 %v1443, %v4797
        %v4802 = vmul.f32 %v1443, %v4798
        %v4803 = vmul.f32 %v1443, %v4799
        %v4804 = vmul.f32 %v1443, %v4800
        %v4805 = vperm.slane %v4793, 0
        %v4806 = vperm.slane %v4794, 0
        %v4807 = vperm.slane %v4795, 0
        %v4808 = vperm.slane %v4796, 0
        %v4809 = vmul.f32 %v1477, %v4805
        %v4810 = vmul.f32 %v1477, %v4806
        %v4811 = vmul.f32 %v1477, %v4807
        %v4812 = vmul.f32 %v1477, %v4808
        %v4813 = vadd.f32 %v4801, %v4809
        %v4814 = vadd.f32 %v4802, %v4810
        %v4815 = vadd.f32 %v4803, %v4811
        %v4816 = vadd.f32 %v4804, %v4812
        %v4817 = vperm.slane %v4793, 1
        %v4818 = vperm.slane %v4794, 1
        %v4819 = vperm.slane %v4795, 1
        %v4820 = vperm.slane %v4796, 1
        %v4821 = vmul.f32 %v1493, %v4817
        %v4822 = vmul.f32 %v1493, %v4818
        %v4823 = vmul.f32 %v1493, %v4819
        %v4824 = vmul.f32 %v1493, %v4820
        %v4825 = vadd.f32 %v4813, %v4821
        %v4826 = vadd.f32 %v4814, %v4822
        %v4827 = vadd.f32 %v4815, %v4823
        %v4828 = vadd.f32 %v4816, %v4824
        %v4829 = vperm.slane %v4793, 2
        %v4830 = vperm.slane %v4794, 2
        %v4831 = vperm.slane %v4795, 2
        %v4832 = vperm.slane %v4796, 2
        %v4833 = vmul.f32 %v1509, %v4829
        %v4834 = vmul.f32 %v1509, %v4830
        %v4835 = vmul.f32 %v1509, %v4831
        %v4836 = vmul.f32 %v1509, %v4832
        %v4837 = vadd.f32 %v4825, %v4833
        %v4838 = vadd.f32 %v4826, %v4834
        %v4839 = vadd.f32 %v4827, %v4835
        %v4840 = vadd.f32 %v4828, %v4836
        %v4841 = vperm.slane %v4793, 3
        %v4842 = vperm.slane %v4794, 3
        %v4843 = vperm.slane %v4795, 3
        %v4844 = vperm.slane %v4796, 3
        %v4845 = vmul.f32 %v1525, %v4841
        %v4846 = vmul.f32 %v1525, %v4842
        %v4847 = vmul.f32 %v1525, %v4843
        %v4848 = vmul.f32 %v1525, %v4844
        %v4849 = vadd.f32 %v4837, %v4845
        %v4850 = vadd.f32 %v4838, %v4846
        %v4851 = vadd.f32 %v4839, %v4847
        %v4852 = vadd.f32 %v4840, %v4848
        %v4853 = vadd.f32 %v4849, %v1546
        %v4854 = vadd.f32 %v4850, %v1546
        %v4855 = vadd.f32 %v4851, %v1546
        %v4856 = vadd.f32 %v4852, %v1546
        %v4857 = vmax.f32 %v4853, 0.0
        %v4858 = vmax.f32 %v4854, 0.0
        %v4859 = vmax.f32 %v4855, 0.0
        %v4860 = vmax.f32 %v4856, 0.0
        %v4861 = vperm.slane %v4857, 1
        %v4862 = vperm.slane %v4858, 1
        %v4863 = vperm.slane %v4859, 1
        %v4864 = vperm.slane %v4860, 1
        %v4865 = vmul.f32 %v1542, %v4861
        %v4866 = vmul.f32 %v1542, %v4862
        %v4867 = vmul.f32 %v1542, %v4863
        %v4868 = vmul.f32 %v1542, %v4864
        %v4869 = vperm.slane %v4857, 2
        %v4870 = vperm.slane %v4858, 2
        %v4871 = vperm.slane %v4859, 2
        %v4872 = vperm.slane %v4860, 2
        %v4873 = vmul.f32 %v1567, %v4869
        %v4874 = vmul.f32 %v1567, %v4870
        %v4875 = vmul.f32 %v1567, %v4871
        %v4876 = vmul.f32 %v1567, %v4872
        %v4877 = vadd.f32 %v4865, %v4873
        %v4878 = vadd.f32 %v4866, %v4874
        %v4879 = vadd.f32 %v4867, %v4875
        %v4880 = vadd.f32 %v4868, %v4876
        %v4881 = vperm.slane %v4857, 3
        %v4882 = vperm.slane %v4858, 3
        %v4883 = vperm.slane %v4859, 3
        %v4884 = vperm.slane %v4860, 3
        %v4885 = vmul.f32 %v1583, %v4881
        %v4886 = vmul.f32 %v1583, %v4882
        %v4887 = vmul.f32 %v1583, %v4883
        %v4888 = vmul.f32 %v1583, %v4884
        %v4889 = vadd.f32 %v4877, %v4885
        %v4890 = vadd.f32 %v4878, %v4886
        %v4891 = vadd.f32 %v4879, %v4887
        %v4892 = vadd.f32 %v4880, %v4888
        %v4893 = vperm.slane %v4857, 4
        %v4894 = vperm.slane %v4858, 4
        %v4895 = vperm.slane %v4859, 4
        %v4896 = vperm.slane %v4860, 4
        %v4897 = vmul.f32 %v1599, %v4893
        %v4898 = vmul.f32 %v1599, %v4894
        %v4899 = vmul.f32 %v1599, %v4895
        %v4900 = vmul.f32 %v1599, %v4896
        %v4901 = vadd.f32 %v4889, %v4897
        %v4902 = vadd.f32 %v4890, %v4898
        %v4903 = vadd.f32 %v4891, %v4899
        %v4904 = vadd.f32 %v4892, %v4900
        %v4905 = vadd.f32 %v4901, %v1615
        %v4906 = vadd.f32 %v4902, %v1615
        %v4907 = vadd.f32 %v4903, %v1615
        %v4908 = vadd.f32 %v4904, %v1615
        %v4913 = vrot.slane %v4905, 2
        %v4914 = vrot.slane %v4906, 2
        %v4915 = vrot.slane %v4907, 2
        %v4916 = vrot.slane %v4908, 2
        %v4921 = vadd.f32 %v4605, %v4913
        %v4922 = vadd.f32 %v4606, %v4914
        %v4923 = vadd.f32 %v4607, %v4915
        %v4924 = vadd.f32 %v4608, %v4916
        %v4925 = vadd.f32 %v4609, %v4913
        %v4926 = vadd.f32 %v4610, %v4914
        %v4927 = vadd.f32 %v4611, %v4915
        %v4928 = vadd.f32 %v4612, %v4916
        %4930 = vset.pattern.permute.xlu0 0
        %4931 = vperm.xlu0 %4930, %v337
        %v4932 = vpop.permute.xlu0 %4931
        %v4934 = vadd.f32 %v4191, %v4932
        %v4935 = vadd.f32 %v4192, %v4932
        %v4936 = vadd.f32 %v4193, %v4932
        %v4937 = vadd.f32 %v4194, %v4932
        %v4938 = vmul.f32 %v454, 2.0
        %v4939 = vmul.f32 %v455, 2.0
        %v4940 = vmul.f32 %v456, 2.0
        %v4941 = vmul.f32 %v457, 2.0
        %v4942 = vadd.f32 %v4934, %v4938
        %v4943 = vadd.f32 %v4935, %v4939
        %v4944 = vadd.f32 %v4936, %v4940
        %v4945 = vadd.f32 %v4937, %v4941
        %v4946 = vmul.f32 %v4921, 0.2
        %v4947 = vmul.f32 %v4922, 0.2
        %v4948 = vmul.f32 %v4923, 0.2
        %v4949 = vmul.f32 %v4924, 0.2
        %v4950 = vmul.f32 %v4925, 0.2
        %v4951 = vmul.f32 %v4926, 0.2
        %v4952 = vmul.f32 %v4927, 0.2
        %v4953 = vmul.f32 %v4928, 0.2
        %v4962 = vrot.slane %v602, 4
        %v4963 = vrot.slane %v603, 4
        %v4964 = vrot.slane %v604, 4
        %v4965 = vrot.slane %v605, 4
        %v4966 = vrot.slane %v606, 4
        %v4967 = vsel %vm1543, %v4962, %v4966
        %v4968 = vrot.slane %v607, 4
        %v4969 = vsel %vm1543, %v4963, %v4968
        %v4970 = vrot.slane %v608, 4
        %v4971 = vsel %vm1543, %v4964, %v4970
        %v4972 = vrot.slane %v609, 4
        %v4973 = vsel %vm1543, %v4965, %v4972
        %v4982 = vadd.f32 %v4946, %v4962
        %v4983 = vadd.f32 %v4947, %v4963
        %v4984 = vadd.f32 %v4948, %v4964
        %v4985 = vadd.f32 %v4949, %v4965
        %v4986 = vadd.f32 %v4950, %v4967
        %v4987 = vadd.f32 %v4951, %v4969
        %v4988 = vadd.f32 %v4952, %v4971
        %v4989 = vadd.f32 %v4953, %v4973
        %v4990 = vsub.f32 0.0, %v4227
        %v4991 = vsub.f32 0.0, %v4228
        %v4992 = vsub.f32 0.0, %v4229
        %v4993 = vsub.f32 0.0, %v4230
        %v4994 = vmul.f32 %v4990, 1.442695
        %v4995 = vpow.pop %v4994
        %v4996 = vmul.f32 %v4991, 1.442695
        %v4997 = vpow.pop %v4996
        %v4998 = vmul.f32 %v4992, 1.442695
        %v4999 = vpow.pop %v4998
        %v5000 = vmul.f32 %v4993, 1.442695
        %v5001 = vpow.pop %v5000
        %v5002 = vadd.f32 %v4995, 1.0
        %v5003 = vadd.f32 %v4997, 1.0
        %v5004 = vadd.f32 %v4999, 1.0
        %v5005 = vadd.f32 %v5001, 1.0
        %v5006 = vrcp.pop %v5002
        %v5007 = vmul.f32 %v5002, %v5006
        %v5008 = vsub.f32 1.0, %v5007
        %v5009 = vmul.f32 %v5006, %v5008
        %v5010 = vadd.f32 %v5006, %v5009
        %vm5011 = vweird.f32 %v5002
        %vm5012 = vweird.f32 %v5006
        %vm5013 = vmor %vm5011, %vm5012
        %v5014 = vsel %vm5013, %v5006, %v5010
        %v5015 = vand.u32 2147483647, %v5002
        %vm5016 = vcmp.eq.f32.partialorder %v5015, 8.507059e+37
        %v5017 = vand.u32 %v5002, 2147483648
        %v5018 = vor.u32 1.1754944e-38, %v5017
        %v5019 = vsel %vm5016, %v5018, %v5014
        %v5020 = vmul.f32 1.0, %v5019
        %v5021 = vrcp.pop %v5003
        %v5022 = vmul.f32 %v5003, %v5021
        %v5023 = vsub.f32 1.0, %v5022
        %v5024 = vmul.f32 %v5021, %v5023
        %v5025 = vadd.f32 %v5021, %v5024
        %vm5026 = vweird.f32 %v5003
        %vm5027 = vweird.f32 %v5021
        %vm5028 = vmor %vm5026, %vm5027
        %v5029 = vsel %vm5028, %v5021, %v5025
        %v5030 = vand.u32 2147483647, %v5003
        %vm5031 = vcmp.eq.f32.partialorder %v5030, 8.507059e+37
        %v5032 = vand.u32 %v5003, 2147483648
        %v5033 = vor.u32 1.1754944e-38, %v5032
        %v5034 = vsel %vm5031, %v5033, %v5029
        %v5035 = vmul.f32 1.0, %v5034
        %v5036 = vrcp.pop %v5004
        %v5037 = vmul.f32 %v5004, %v5036
        %v5038 = vsub.f32 1.0, %v5037
        %v5039 = vmul.f32 %v5036, %v5038
        %v5040 = vadd.f32 %v5036, %v5039
        %vm5041 = vweird.f32 %v5004
        %vm5042 = vweird.f32 %v5036
        %vm5043 = vmor %vm5041, %vm5042
        %v5044 = vsel %vm5043, %v5036, %v5040
        %v5045 = vand.u32 2147483647, %v5004
        %vm5046 = vcmp.eq.f32.partialorder %v5045, 8.507059e+37
        %v5047 = vand.u32 %v5004, 2147483648
        %v5048 = vor.u32 1.1754944e-38, %v5047
        %v5049 = vsel %vm5046, %v5048, %v5044
        %v5050 = vmul.f32 1.0, %v5049
        %v5051 = vrcp.pop %v5005
        %v5052 = vmul.f32 %v5005, %v5051
        %v5053 = vsub.f32 1.0, %v5052
        %v5054 = vmul.f32 %v5051, %v5053
        %v5055 = vadd.f32 %v5051, %v5054
        %vm5056 = vweird.f32 %v5005
        %vm5057 = vweird.f32 %v5051
        %vm5058 = vmor %vm5056, %vm5057
        %v5059 = vsel %vm5058, %v5051, %v5055
        %v5060 = vand.u32 2147483647, %v5005
        %vm5061 = vcmp.eq.f32.partialorder %v5060, 8.507059e+37
        %v5062 = vand.u32 %v5005, 2147483648
        %v5063 = vor.u32 1.1754944e-38, %v5062
        %v5064 = vsel %vm5061, %v5063, %v5059
        %v5065 = vmul.f32 1.0, %v5064
        %v5066 = vmul.f32 %v4231, 1.442695
        %v5067 = vpow.pop %v5066
        %v5068 = vmul.f32 %v4232, 1.442695
        %v5069 = vpow.pop %v5068
        %v5070 = vmul.f32 %v4233, 1.442695
        %v5071 = vpow.pop %v5070
        %v5072 = vmul.f32 %v4234, 1.442695
        %v5073 = vpow.pop %v5072
        %v5074 = vadd.f32 %v5067, 1.0
        %v5075 = vadd.f32 %v5069, 1.0
        %v5076 = vadd.f32 %v5071, 1.0
        %v5077 = vadd.f32 %v5073, 1.0
        %v5078 = vrcp.pop %v5074
        %v5079 = vmul.f32 %v5074, %v5078
        %v5080 = vsub.f32 1.0, %v5079
        %v5081 = vmul.f32 %v5078, %v5080
        %v5082 = vadd.f32 %v5078, %v5081
        %vm5083 = vweird.f32 %v5074
        %vm5084 = vweird.f32 %v5078
        %vm5085 = vmor %vm5083, %vm5084
        %v5086 = vsel %vm5085, %v5078, %v5082
        %v5087 = vand.u32 2147483647, %v5074
        %vm5088 = vcmp.eq.f32.partialorder %v5087, 8.507059e+37
        %v5089 = vand.u32 %v5074, 2147483648
        %v5090 = vor.u32 1.1754944e-38, %v5089
        %v5091 = vsel %vm5088, %v5090, %v5086
        %v5092 = vmul.f32 1.0, %v5091
        %v5093 = vrcp.pop %v5075
        %v5094 = vmul.f32 %v5075, %v5093
        %v5095 = vsub.f32 1.0, %v5094
        %v5096 = vmul.f32 %v5093, %v5095
        %v5097 = vadd.f32 %v5093, %v5096
        %vm5098 = vweird.f32 %v5075
        %vm5099 = vweird.f32 %v5093
        %vm5100 = vmor %vm5098, %vm5099
        %v5101 = vsel %vm5100, %v5093, %v5097
        %v5102 = vand.u32 2147483647, %v5075
        %vm5103 = vcmp.eq.f32.partialorder %v5102, 8.507059e+37
        %v5104 = vand.u32 %v5075, 2147483648
        %v5105 = vor.u32 1.1754944e-38, %v5104
        %v5106 = vsel %vm5103, %v5105, %v5101
        %v5107 = vmul.f32 1.0, %v5106
        %v5108 = vrcp.pop %v5076
        %v5109 = vmul.f32 %v5076, %v5108
        %v5110 = vsub.f32 1.0, %v5109
        %v5111 = vmul.f32 %v5108, %v5110
        %v5112 = vadd.f32 %v5108, %v5111
        %vm5113 = vweird.f32 %v5076
        %vm5114 = vweird.f32 %v5108
        %vm5115 = vmor %vm5113, %vm5114
        %v5116 = vsel %vm5115, %v5108, %v5112
        %v5117 = vand.u32 2147483647, %v5076
        %vm5118 = vcmp.eq.f32.partialorder %v5117, 8.507059e+37
        %v5119 = vand.u32 %v5076, 2147483648
        %v5120 = vor.u32 1.1754944e-38, %v5119
        %v5121 = vsel %vm5118, %v5120, %v5116
        %v5122 = vmul.f32 1.0, %v5121
        %v5123 = vrcp.pop %v5077
        %v5124 = vmul.f32 %v5077, %v5123
        %v5125 = vsub.f32 1.0, %v5124
        %v5126 = vmul.f32 %v5123, %v5125
        %v5127 = vadd.f32 %v5123, %v5126
        %vm5128 = vweird.f32 %v5077
        %vm5129 = vweird.f32 %v5123
        %vm5130 = vmor %vm5128, %vm5129
        %v5131 = vsel %vm5130, %v5123, %v5127
        %v5132 = vand.u32 2147483647, %v5077
        %vm5133 = vcmp.eq.f32.partialorder %v5132, 8.507059e+37
        %v5134 = vand.u32 %v5077, 2147483648
        %v5135 = vor.u32 1.1754944e-38, %v5134
        %v5136 = vsel %vm5133, %v5135, %v5131
        %v5137 = vmul.f32 1.0, %v5136
        %5138 = vst [vmem:[%s318] sm:$0xff] %v4942
        %5139 = vst [vmem:[%s318 + $0x8] sm:$0xff] %v4943
        %5140 = vst [vmem:[%s318 + $0x10] sm:$0xff] %v4944
        %5141 = vst [vmem:[%s318 + $0x18] sm:$0xff] %v4945
        %vm5150 = vcmask 1040384
        %v5151 = vrot.slane %v4982, 7
        %v5152 = vrot.slane %v4986, 7
        %v5153 = vsel %vm5150, %v5151, %v5152
        %v5154 = vrot.slane %v4983, 7
        %v5155 = vrot.slane %v4987, 7
        %v5156 = vsel %vm5150, %v5154, %v5155
        %v5157 = vrot.slane %v4984, 7
        %v5158 = vrot.slane %v4988, 7
        %v5159 = vsel %vm5150, %v5157, %v5158
        %v5160 = vrot.slane %v4985, 7
        %v5161 = vrot.slane %v4989, 7
        %v5162 = vsel %vm5150, %v5160, %v5161
        %5167 = vst [vmem:[%s318 + $0x20] sm:$0x3f] %v5153
        %5168 = vst [vmem:[%s318 + $0x28] sm:$0x3f] %v5156
        %5169 = vst [vmem:[%s318 + $0x30] sm:$0x3f] %v5159
        %5170 = vst [vmem:[%s318 + $0x38] sm:$0x3f] %v5162
        %v5175 = vrot.slane %v5035, 7
        %v5176 = vrot.slane %v5050, 6
        %v5177 = vrot.slane %v5065, 5
        %v5178 = vsel %vm5150, %v5020, %v5175
        %vm5179 = vcmask 1042434
        %v5180 = vsel %vm5179, %v5176, %v5177
        %v5181 = vsel %vm1214, %v5178, %v5180
        %v5183 = vlaneseq
        %vm5184 = vcmp.ge.s32.totalorder %v5183, 0
        %vm5185 = vcmp.lt.s32.totalorder %v5183, 512
        %vm5186 = vmand %vm5184, %vm5185
        %s5187 = scalar_lea.vmem %s318, 38 [#allocation7]
        %5188 = vst.msk [vmem:[%s5187] ss:$8 sm:$0xf] %vm5186, %v5181
        %5189 = vst.msk [vmem:[%s5187] ss:$8 sm:$0x0] %vm5186, %v5181
        %v5194 = vrot.slane %v5107, 7
        %v5195 = vrot.slane %v5122, 6
        %v5196 = vrot.slane %v5137, 5
        %v5197 = vsel %vm5150, %v5092, %v5194
        %v5198 = vsel %vm5179, %v5195, %v5196
        %v5199 = vsel %vm1214, %v5197, %v5198
        %s5201 = scalar_lea.vmem %s318, 39 [#allocation7]
        %5202 = vst.msk [vmem:[%s5201] ss:$8 sm:$0xf] %vm5186, %v5199
        %5203 = vst.msk [vmem:[%s5201] ss:$8 sm:$0x0] %vm5186, %v5199
        %s5204 = sand.u32 %s158, 1
        %s5205 = scalar_lea.sflag [#allocation4], %s5204
        %s5206 = sand.u32 %s158, 1
        %s5207 = smul.addr %s5206, 64
        %s5208 = scalar_lea.vmem [#allocation7], %s5207
        // Predicated region
        $region49: #{tpu_custom_call.1} parent=39 // pred_check
          %p5209 = pneg %p168
        $region50: #{tpu_custom_call.1} parent=39 // pred_check_branch
          %5211 = sbr.rel (%p5209) target = $region52
        $region51: #{tpu_custom_call.1} parent=39 // pred_region
          %s5212 = smul.u32 4, %s25
          %5214 = vsyncadd %s5205, 0
          %s5215 = smul.addr %s5212, 8
          %s5216 = scalar_lea.hbm %s5, %s5215
          %s5217 = sshll.u32 %s5208, 4
          %s5218 = int_to_ptr.vmem [resolvable:$true] %s5217
          %s5219 = sshll.u32 %s5216, 4
          %s5220 = int_to_ptr.hbm [resolvable:$true] %s5219
          %5225 = dma.vmem_to_hbm [thread:$0]  %s5218, 1024, %s5220, %s5205, 512, 1024, 32
        $region52: #{tpu_custom_call.1} parent=39 // pred_fallthru
          _
      $region40: #{tpu_custom_call.1} parent=5 // pred_fallthru
        _
      %p5226 = scmp.le.s32.totalorder 2, %s20
      // Predicated region
      $region53: #{tpu_custom_call.1} parent=5 // pred_check
        %p5227 = pneg %p5226
      $region54: #{tpu_custom_call.1} parent=5 // pred_check_branch
        %5229 = sbr.rel (%p5227) target = $region56
      $region55: #{tpu_custom_call.1} parent=5 // pred_region
        %s5230 = ssub.s32 %s20, 2
        // Predicated region
        $region57: #{tpu_custom_call.1} parent=55 // pred_check
          %p5231 = pneg %p174
        $region58: #{tpu_custom_call.1} parent=55 // pred_check_branch
          %5233 = sbr.rel (%p5231) target = $region60
        $region59: #{tpu_custom_call.1} parent=55 // pred_region
          %s5234 = sand.u32 %s159, 1
          %s5235 = scalar_lea.sflag [#allocation4], %s5234
          %s5236 = sand.u32 %s159, 1
          %s5237 = smul.addr %s5236, 64
          %s5238 = scalar_lea.vmem [#allocation7], %s5237
          %5240 = dma.done %s5235, 1024
        $region60: #{tpu_custom_call.1} parent=55 // pred_fallthru
          _
      $region56: #{tpu_custom_call.1} parent=5 // pred_fallthru
        _
    $region6: #{tpu_custom_call.1} parent=1 // loop_footer
      %s24 = sadd.s32 1, %s20
    $region7: #{tpu_custom_call.1} parent=1 // loop_footer_branch
      %19 = sbr.rel target = $region3
    $region8: #{tpu_custom_call.1} parent=1 // loop_exit
      _
    %5241 = vsyncpa [#allocation3], 1
    %s5242 = scalar_lea.sflag [#allocation3], 1
    %5243 = vsyncpa %s5242, 1
    %5244 = vsyncpa [#allocation6], 1
    %s5245 = scalar_lea.sflag [#allocation6], 1
    %5246 = vsyncpa %s5245, 1
    %5247 = vsyncpa [#allocation4], 1
    %s5248 = scalar_lea.sflag [#allocation4], 1
    %5249 = vsyncpa %s5248, 1

</llo_original>
